<compile_context>
chip_gen: v6e
topology: v6e:2x2x1
jax: 0.10.0
libtpu: 0.0.40
codegen_flags: <defaults>
</compile_context>

<pallas_src>
import functools
import math

import jax
import jax.numpy as jnp
from jax.experimental import pallas as pl
from jax.experimental.pallas import tpu as pltpu


# ----------------------------- in-kernel helpers -----------------------------

def _layernorm(x, gamma, beta, eps=1e-5):
    # PyTorch nn.LayerNorm semantics (biased variance, eps inside rsqrt).  f32 elementwise.
    mu = jnp.mean(x, axis=-1, keepdims=True)
    var = jnp.mean((x - mu) ** 2, axis=-1, keepdims=True)
    return (x - mu) * jax.lax.rsqrt(var + eps) * gamma + beta


def _gelu_exact(x):
    # nn.GELU() default = exact erf-based GELU.  f32 elementwise.
    return 0.5 * x * (1.0 + jax.lax.erf(x * (1.0 / math.sqrt(2.0))))


# --------------------------------- kernel ------------------------------------

def _rab_kernel(x_ref,
                ln1_g_ref, ln1_b_ref,
                in_wt_ref, in_b_ref,
                out_wt_ref, out_b_ref,
                ln2_g_ref, ln2_b_ref,
                fc_wt_ref, fc_b_ref,
                proj_wt_ref, proj_b_ref,
                o_ref,
                oh_scratch,
                *, n_head):
    TB, L, D = x_ref.shape
    dh = D // n_head
    M = TB * L

    # Flatten the batch tile so all dense matmuls run with M = TB*L rows.
    x2 = x_ref[...].reshape(M, D)

    # ---- ln_1 (f32) ----
    ln1 = _layernorm(x2, ln1_g_ref[...], ln1_b_ref[...])

    # ---- fused QKV in-projection: bf16 operands, f32 accumulation ----
    # (weights pre-transposed and q-scale pre-folded at prep time)
    qkv = jnp.dot(ln1.astype(jnp.bfloat16), in_wt_ref[...],
                  preferred_element_type=jnp.float32) + in_b_ref[...]
    q = qkv[:, :D].reshape(TB, L, D)
    k = qkv[:, D:2 * D].reshape(TB, L, D)
    v = qkv[:, 2 * D:].reshape(TB, L, D)

    # ---- per-head attention (batched over TB); head outputs collected in bf16 VMEM scratch ----
    # Head slices are lane slices; pick dh as a lane multiple (128) at the call site when
    # possible so loads and scratch stores stay lane-dense.
    for h in range(n_head):                     # static unroll (n_head is small)
        lo = h * dh
        qh = q[:, :, lo:lo + dh].astype(jnp.bfloat16)     # (TB, L, dh)
        kh = k[:, :, lo:lo + dh].astype(jnp.bfloat16)
        vh = v[:, :, lo:lo + dh].astype(jnp.bfloat16)
        s = jnp.einsum('bld,bmd->blm', qh, kh,
                       preferred_element_type=jnp.float32)           # (TB, L, L) f32
        s = s - jnp.max(s, axis=-1, keepdims=True)
        p = jnp.exp(s)                                               # f32 (EUP)
        rsum = jnp.sum(p, axis=-1, keepdims=True)                    # (TB, L, 1) f32
        oh = jnp.einsum('blm,bmd->bld', p.astype(jnp.bfloat16), vh,
                        preferred_element_type=jnp.float32)          # (TB, L, dh) f32
        # Normalize the small (L, dh) head output (not the (L, L) prob matrix);
        # the approximate reciprocal runs on the otherwise-idle EUP slot.
        oh_scratch[:, :, lo:lo + dh] = (
            oh * pl.reciprocal(rsum, approx=True)).astype(jnp.bfloat16)

    # ---- single out-projection over all heads (K = D), bf16 operands ----
    attn = jnp.dot(oh_scratch[...].reshape(M, D), out_wt_ref[...],
                   preferred_element_type=jnp.float32) + out_b_ref[...]

    # ---- residual 1 (f32) ----
    x1 = x2 + attn

    # ---- ln_2 + MLP (c_fc -> GELU -> c_proj), bf16 matmul operands ----
    ln2 = _layernorm(x1, ln2_g_ref[...], ln2_b_ref[...])
    hdn = jnp.dot(ln2.astype(jnp.bfloat16), fc_wt_ref[...],
                  preferred_element_type=jnp.float32) + fc_b_ref[...]
    hdn = _gelu_exact(hdn)
    mlp = jnp.dot(hdn.astype(jnp.bfloat16), proj_wt_ref[...],
                  preferred_element_type=jnp.float32) + proj_b_ref[...]

    # ---- residual 2 ----
    o_ref[...] = (x1 + mlp).reshape(TB, L, D).astype(o_ref.dtype)


# ------------------------- parameter preparation (one-time) -------------------

def prepare_params(params, n_head):
    """One-time transform of PyTorch-layout weights into kernel layout:
    pre-transposed bf16 matmul weights, f32 biases as (1, X) rows, LN params f32,
    and the 1/sqrt(dh) attention scale folded into the q block of the in-projection."""
    D = params["out_w"].shape[0]
    dh = D // n_head
    scale = 1.0 / math.sqrt(dh)

    col_scale = jnp.concatenate(
        [jnp.full((1, D), scale, jnp.float32), jnp.ones((1, 2 * D), jnp.float32)], axis=1)
    in_wt = jnp.asarray(params["in_w"], jnp.float32).T * col_scale     # (D, 3D), q cols scaled
    in_b = jnp.asarray(params["in_b"], jnp.float32).reshape(1, 3 * D) * col_scale

    return dict(
        ln1_g=jnp.asarray(params["ln1_g"], jnp.float32).reshape(1, D),
        ln1_b=jnp.asarray(params["ln1_b"], jnp.float32).reshape(1, D),
        in_wt=in_wt.astype(jnp.bfloat16),
        in_b=in_b,
        out_wt=jnp.asarray(params["out_w"], jnp.float32).T.astype(jnp.bfloat16),   # (D, D)
        out_b=jnp.asarray(params["out_b"], jnp.float32).reshape(1, D),
        ln2_g=jnp.asarray(params["ln2_g"], jnp.float32).reshape(1, D),
        ln2_b=jnp.asarray(params["ln2_b"], jnp.float32).reshape(1, D),
        fc_wt=jnp.asarray(params["fc_w"], jnp.float32).T.astype(jnp.bfloat16),     # (D, hidden)
        fc_b=jnp.asarray(params["fc_b"], jnp.float32).reshape(1, -1),
        proj_wt=jnp.asarray(params["proj_w"], jnp.float32).T.astype(jnp.bfloat16), # (hidden, D)
        proj_b=jnp.asarray(params["proj_b"], jnp.float32).reshape(1, D),
    )


# ------------------------- tile / VMEM sizing heuristics ----------------------

def _weight_bytes(weights):
    return int(sum(int(w.size) * int(w.dtype.itemsize) for w in weights))


def _estimate_vmem_bytes(tb, L, D, hidden, weights):
    """Rough per-grid-step VMEM estimate (activations + resident weights)."""
    m = tb * L
    act = (2 * 2 * tb * L * D * 4          # x tile + out tile, double-buffered, f32
           + m * 3 * D * 4                 # fused qkv (f32)
           + 2 * tb * L * L * 4            # per-head scores + probs (f32)
           + tb * L * D * 2                # bf16 head-output scratch
           + 2 * m * hidden * 4)           # mlp hidden + gelu temp (f32)
    # margin for compiler temporaries; weights counted twice (worst case: double-buffered)
    return int(1.5 * act) + 2 * _weight_bytes(weights)


def _pick_batch_tile(N, L, D, hidden, weights, budget_bytes):
    """Largest divisor of N that fits the VMEM budget while keeping >= 2 grid steps
    (DMA/compute overlap; 'parallel' axis sharding across v7x's two TensorCores)."""
    tb = 1
    for c in range(1, N + 1):
        if N % c != 0:
            continue
        if N > 1 and N // c < 2:
            continue
        if _estimate_vmem_bytes(c, L, D, hidden, weights) > budget_bytes:
            continue
        tb = c
    return tb


# --------------------------------- wrapper -----------------------------------

def residual_attention_block(x, prep, n_head, *, batch_tile=None):
    """x: (L, N, D) float32.  Returns (L, N, D).  Assumes mlp_ratio > 0."""
    # TODO(synk): attn_mask is not supported (forward is exercised with attn_mask=None).
    L, N, D = x.shape
    hidden = prep["fc_wt"].shape[1]

    weights = (prep["ln1_g"], prep["ln1_b"],
               prep["in_wt"], prep["in_b"],
               prep["out_wt"], prep["out_b"],
               prep["ln2_g"], prep["ln2_b"],
               prep["fc_wt"], prep["fc_b"],
               prep["proj_wt"], prep["proj_b"])

    budget = 48 << 20                      # safe on v7x (64 MiB VMEM) as well as v5e/v6e
    tb = batch_tile if batch_tile is not None else _pick_batch_tile(N, L, D, hidden, weights, budget)
    assert N % tb == 0, "batch tile must divide N"

    vmem_limit = min(max(_estimate_vmem_bytes(tb, L, D, hidden, weights), 32 << 20), budget)

    # HBM transpose to batch-leading layout (see layout note at top of file).
    xb = jnp.transpose(x, (1, 0, 2))                                  # (N, L, D)

    # Advisory cost estimate so XLA schedules around the custom call.
    flops = int(N * (L * (6 * D * D + 2 * D * D + 4 * D * hidden) + 4 * L * L * D))
    transcendentals = int(N * n_head * L * L + N * L * hidden)
    bytes_accessed = int(2 * x.size * x.dtype.itemsize + _weight_bytes(weights))
    cost = pl.CostEstimate(flops=flops, transcendentals=transcendentals,
                           bytes_accessed=bytes_accessed)

    def _run(single_buffer_weights):
        def w_spec(a):
            # Constant index_map -> block is revisited (stays VMEM-resident, DMA'd once).
            idx = lambda b: (0,) * a.ndim
            if single_buffer_weights:
                # Revisited blocks never need a second buffer: halve weight VMEM residency.
                return pl.BlockSpec(a.shape, idx, pipeline_mode=pl.Buffered(1))
            return pl.BlockSpec(a.shape, idx)

        return pl.pallas_call(
            functools.partial(_rab_kernel, n_head=n_head),
            out_shape=jax.ShapeDtypeStruct((N, L, D), x.dtype),
            grid_spec=pltpu.PrefetchScalarGridSpec(
                num_scalar_prefetch=0,
                grid=(N // tb,),
                in_specs=[pl.BlockSpec((tb, L, D), lambda b: (b, 0, 0))]
                         + [w_spec(w) for w in weights],
                out_specs=pl.BlockSpec((tb, L, D), lambda b: (b, 0, 0)),
                scratch_shapes=[pltpu.VMEM((tb, L, D), jnp.bfloat16)],
            ),
            compiler_params=pltpu.CompilerParams(
                dimension_semantics=("parallel",),
                vmem_limit_bytes=int(vmem_limit)),
            cost_estimate=cost,
        )(xb, *weights)

    try:
        out = _run(True)
    except Exception:
        # Fallback for jax versions without pipeline_mode / Buffered(1) support.
        out = _run(False)

    return jnp.transpose(out, (1, 0, 2))                              # back to (L, N, D)


# ------------------------------ reference (JAX) -------------------------------

def reference_block(x, params, n_head):
    L, N, D = x.shape
    dh = D // n_head

    def ln(v, g, b):
        mu = jnp.mean(v, -1, keepdims=True)
        var = jnp.mean((v - mu) ** 2, -1, keepdims=True)
        return (v - mu) / jnp.sqrt(var + 1e-5) * g + b

    ln1 = ln(x, params["ln1_g"], params["ln1_b"])
    qkv = ln1 @ params["in_w"].T + params["in_b"]
    q, k, v = qkv[..., :D], qkv[..., D:2 * D], qkv[..., 2 * D:]

    def heads(t):  # (L, N, D) -> (N, H, L, dh)
        return jnp.transpose(t.reshape(L, N, n_head, dh), (1, 2, 0, 3))

    qh, kh, vh = heads(q) / math.sqrt(dh), heads(k), heads(v)
    s = jnp.einsum("nhld,nhmd->nhlm", qh, kh)
    p = jax.nn.softmax(s, axis=-1)
    o = jnp.einsum("nhlm,nhmd->nhld", p, vh)              # (N, H, L, dh)
    o = jnp.transpose(o, (2, 0, 1, 3)).reshape(L, N, D)
    attn = o @ params["out_w"].T + params["out_b"]

    x1 = x + attn
    ln2 = ln(x1, params["ln2_g"], params["ln2_b"])
    h = ln2 @ params["fc_w"].T + params["fc_b"]
    h = 0.5 * h * (1.0 + jax.lax.erf(h / math.sqrt(2.0)))
    mlp = h @ params["proj_w"].T + params["proj_b"]
    return x1 + mlp


# ---------------------------------- main --------------------------------------

if __name__ == "__main__":
    # Small but lane-friendly demo sizes: D and dh are multiples of 128 so per-head
    # slices and all output slabs are lane-dense.
    L, N, D = 8, 4, 256         # seq, batch, d_model
    n_head = 2                  # dh = 128
    mlp_ratio = 4.0
    mlp_w = int(D * mlp_ratio)  # 1024

    key = jax.random.PRNGKey(0)
    ks = jax.random.split(key, 9)

    # PyTorch-layout parameters (out_features, in_features), biases 1-D.
    params = {
        "ln1_g":  jnp.ones((D,), jnp.float32),
        "ln1_b":  jnp.zeros((D,), jnp.float32),
        "in_w":   0.05 * jax.random.normal(ks[0], (3 * D, D), jnp.float32),
        "in_b":   0.01 * jax.random.normal(ks[1], (3 * D,), jnp.float32),
        "out_w":  0.05 * jax.random.normal(ks[2], (D, D), jnp.float32),
        "out_b":  0.01 * jax.random.normal(ks[3], (D,), jnp.float32),
        "ln2_g":  jnp.ones((D,), jnp.float32),
        "ln2_b":  jnp.zeros((D,), jnp.float32),
        "fc_w":   0.05 * jax.random.normal(ks[4], (mlp_w, D), jnp.float32),
        "fc_b":   0.01 * jax.random.normal(ks[5], (mlp_w,), jnp.float32),
        "proj_w": 0.05 * jax.random.normal(ks[6], (D, mlp_w), jnp.float32),
        "proj_b": 0.01 * jax.random.normal(ks[7], (D,), jnp.float32),
    }

    x = jax.random.normal(ks[8], (L, N, D), jnp.float32)

    prep = prepare_params(params, n_head)          # one-time weight re-layout / scale fold / bf16 cast
    y = residual_attention_block(x, prep, n_head)
    y = jax.block_until_ready(y)

    y_ref = reference_block(x, params, n_head)
    assert y.shape == (L, N, D)
    max_err = float(jnp.max(jnp.abs(y - y_ref)))
    # Tolerance accounts for bf16 matmul operands (f32 accumulation) and the approximate
    # EUP reciprocal in softmax normalization.
    assert jnp.allclose(y, y_ref, atol=5e-2, rtol=5e-2), f"mismatch vs. reference (max err {max_err})"

    print("KERNEL_OK")
</pallas_src>

<mosaic_0001>
module attributes {stable_mosaic.version = 11 : i64} {
  func.func @_rab_kernel(%arg0: i32, %arg1: memref<2x8x256xf32, #tpu.memory_space<vmem>>, %arg2: memref<1x256xf32, #tpu.memory_space<vmem>>, %arg3: memref<1x256xf32, #tpu.memory_space<vmem>>, %arg4: memref<256x768xbf16, #tpu.memory_space<vmem>>, %arg5: memref<1x768xf32, #tpu.memory_space<vmem>>, %arg6: memref<256x256xbf16, #tpu.memory_space<vmem>>, %arg7: memref<1x256xf32, #tpu.memory_space<vmem>>, %arg8: memref<1x256xf32, #tpu.memory_space<vmem>>, %arg9: memref<1x256xf32, #tpu.memory_space<vmem>>, %arg10: memref<256x1024xbf16, #tpu.memory_space<vmem>>, %arg11: memref<1x1024xf32, #tpu.memory_space<vmem>>, %arg12: memref<1024x256xbf16, #tpu.memory_space<vmem>>, %arg13: memref<1x256xf32, #tpu.memory_space<vmem>>, %arg14: memref<2x8x256xf32, #tpu.memory_space<vmem>>, %arg15: memref<2x8x256xbf16, #tpu.memory_space<vmem>>) attributes {dimension_semantics = [#tpu.dimension_semantics<parallel>], iteration_bounds = array<i64: 2>, scalar_prefetch = 0 : i64, scratch_operands = 1 : i64, tpu.core_type = #tpu.core_type<tc>, window_params = [{transform_indices = @transform_0, window_bounds = array<i64: 2, 8, 256>}, {pipeline_mode = #tpu.pipeline_mode<synchronous>, transform_indices = @transform_1, window_bounds = array<i64: 1, 256>}, {pipeline_mode = #tpu.pipeline_mode<synchronous>, transform_indices = @transform_2, window_bounds = array<i64: 1, 256>}, {pipeline_mode = #tpu.pipeline_mode<synchronous>, transform_indices = @transform_3, window_bounds = array<i64: 256, 768>}, {pipeline_mode = #tpu.pipeline_mode<synchronous>, transform_indices = @transform_4, window_bounds = array<i64: 1, 768>}, {pipeline_mode = #tpu.pipeline_mode<synchronous>, transform_indices = @transform_5, window_bounds = array<i64: 256, 256>}, {pipeline_mode = #tpu.pipeline_mode<synchronous>, transform_indices = @transform_6, window_bounds = array<i64: 1, 256>}, {pipeline_mode = #tpu.pipeline_mode<synchronous>, transform_indices = @transform_7, window_bounds = array<i64: 1, 256>}, {pipeline_mode = #tpu.pipeline_mode<synchronous>, transform_indices = @transform_8, window_bounds = array<i64: 1, 256>}, {pipeline_mode = #tpu.pipeline_mode<synchronous>, transform_indices = @transform_9, window_bounds = array<i64: 256, 1024>}, {pipeline_mode = #tpu.pipeline_mode<synchronous>, transform_indices = @transform_10, window_bounds = array<i64: 1, 1024>}, {pipeline_mode = #tpu.pipeline_mode<synchronous>, transform_indices = @transform_11, window_bounds = array<i64: 1024, 256>}, {pipeline_mode = #tpu.pipeline_mode<synchronous>, transform_indices = @transform_12, window_bounds = array<i64: 1, 256>}, {transform_indices = @transform_13, window_bounds = array<i64: 2, 8, 256>}]} {
    %c0 = arith.constant 0 : index
    %c0_0 = arith.constant 0 : index
    %c0_1 = arith.constant 0 : index
    %0 = vector.load %arg1[%c0, %c0_0, %c0_1] : memref<2x8x256xf32, #tpu.memory_space<vmem>>, vector<2x8x256xf32>
    %1 = vector.shape_cast %0 : vector<2x8x256xf32> to vector<16x256xf32>
    %c0_2 = arith.constant 0 : index
    %c0_3 = arith.constant 0 : index
    %2 = vector.load %arg2[%c0_2, %c0_3] : memref<1x256xf32, #tpu.memory_space<vmem>>, vector<1x256xf32>
    %c0_4 = arith.constant 0 : index
    %c0_5 = arith.constant 0 : index
    %3 = vector.load %arg3[%c0_4, %c0_5] : memref<1x256xf32, #tpu.memory_space<vmem>>, vector<1x256xf32>
    %cst = arith.constant dense<0.000000e+00> : vector<16xf32>
    %4 = vector.multi_reduction <add>, %1, %cst [1] : vector<16x256xf32> to vector<16xf32>
    %5 = vector.shape_cast %4 : vector<16xf32> to vector<16x1xf32>
    %cst_6 = arith.constant 2.560000e+02 : f32
    %6 = vector.broadcast %cst_6 : f32 to vector<16x1xf32>
    %7 = arith.divf %5, %6 : vector<16x1xf32>
    %8 = vector.broadcast %7 : vector<16x1xf32> to vector<16x256xf32>
    %9 = arith.subf %1, %8 : vector<16x256xf32>
    %10 = arith.mulf %9, %9 : vector<16x256xf32>
    %cst_7 = arith.constant dense<0.000000e+00> : vector<16xf32>
    %11 = vector.multi_reduction <add>, %10, %cst_7 [1] : vector<16x256xf32> to vector<16xf32>
    %12 = vector.shape_cast %11 : vector<16xf32> to vector<16x1xf32>
    %cst_8 = arith.constant 2.560000e+02 : f32
    %13 = vector.broadcast %cst_8 : f32 to vector<16x1xf32>
    %14 = arith.divf %12, %13 : vector<16x1xf32>
    %15 = vector.broadcast %7 : vector<16x1xf32> to vector<16x256xf32>
    %16 = arith.subf %1, %15 : vector<16x256xf32>
    %cst_9 = arith.constant 9.99999974E-6 : f32
    %17 = vector.broadcast %cst_9 : f32 to vector<16x1xf32>
    %18 = arith.addf %14, %17 : vector<16x1xf32>
    %19 = math.rsqrt %18 : vector<16x1xf32>
    %20 = vector.broadcast %19 : vector<16x1xf32> to vector<16x256xf32>
    %21 = arith.mulf %16, %20 : vector<16x256xf32>
    %22 = vector.broadcast %2 : vector<1x256xf32> to vector<16x256xf32>
    %23 = arith.mulf %21, %22 : vector<16x256xf32>
    %24 = vector.broadcast %3 : vector<1x256xf32> to vector<16x256xf32>
    %25 = arith.addf %23, %24 : vector<16x256xf32>
    %26 = arith.truncf %25 : vector<16x256xf32> to vector<16x256xbf16>
    %c0_10 = arith.constant 0 : index
    %c0_11 = arith.constant 0 : index
    %27 = vector.load %arg4[%c0_10, %c0_11] : memref<256x768xbf16, #tpu.memory_space<vmem>>, vector<256x768xbf16>
    %cst_12 = arith.constant dense<0.000000e+00> : vector<16x768xf32>
    %28 = tpu.matmul %26, %27, %cst_12 {dimension_numbers = #tpu.dot_dimension_numbers<[1], [0], [0], [1], [0, 0, 1, 1], [], []>} : vector<16x256xbf16>, vector<256x768xbf16>, vector<16x768xf32> -> vector<16x768xf32>
    %c0_13 = arith.constant 0 : index
    %c0_14 = arith.constant 0 : index
    %29 = vector.load %arg5[%c0_13, %c0_14] : memref<1x768xf32, #tpu.memory_space<vmem>>, vector<1x768xf32>
    %30 = vector.broadcast %29 : vector<1x768xf32> to vector<16x768xf32>
    %31 = arith.addf %28, %30 : vector<16x768xf32>
    %32 = vector.extract_strided_slice %31 {offsets = [0, 0], sizes = [16, 256], strides = [1, 1]} : vector<16x768xf32> to vector<16x256xf32>
    %33 = vector.shape_cast %32 : vector<16x256xf32> to vector<2x8x256xf32>
    %34 = vector.extract_strided_slice %31 {offsets = [0, 256], sizes = [16, 256], strides = [1, 1]} : vector<16x768xf32> to vector<16x256xf32>
    %35 = vector.shape_cast %34 : vector<16x256xf32> to vector<2x8x256xf32>
    %36 = vector.extract_strided_slice %31 {offsets = [0, 512], sizes = [16, 256], strides = [1, 1]} : vector<16x768xf32> to vector<16x256xf32>
    %37 = vector.shape_cast %36 : vector<16x256xf32> to vector<2x8x256xf32>
    %38 = vector.extract_strided_slice %33 {offsets = [0, 0, 0], sizes = [2, 8, 128], strides = [1, 1, 1]} : vector<2x8x256xf32> to vector<2x8x128xf32>
    %39 = arith.truncf %38 : vector<2x8x128xf32> to vector<2x8x128xbf16>
    %40 = vector.extract_strided_slice %35 {offsets = [0, 0, 0], sizes = [2, 8, 128], strides = [1, 1, 1]} : vector<2x8x256xf32> to vector<2x8x128xf32>
    %41 = arith.truncf %40 : vector<2x8x128xf32> to vector<2x8x128xbf16>
    %42 = vector.extract_strided_slice %37 {offsets = [0, 0, 0], sizes = [2, 8, 128], strides = [1, 1, 1]} : vector<2x8x256xf32> to vector<2x8x128xf32>
    %43 = arith.truncf %42 : vector<2x8x128xf32> to vector<2x8x128xbf16>
    "tpu.trace_start"() <{level = 10 : i32, message = "bld,bmd->blm"}> : () -> ()
    %cst_15 = arith.constant dense<0.000000e+00> : vector<2x8x8xf32>
    %44 = tpu.matmul %39, %41, %cst_15 {dimension_numbers = #tpu.dot_dimension_numbers<[2], [2], [1], [1], [0, 0, 0, 1, 1, 1], [0], [0]>} : vector<2x8x128xbf16>, vector<2x8x128xbf16>, vector<2x8x8xf32> -> vector<2x8x8xf32>
    "tpu.trace_stop"() : () -> ()
    %cst_16 = arith.constant dense<0xFF800000> : vector<2x8xf32>
    %45 = vector.multi_reduction <maximumf>, %44, %cst_16 [2] : vector<2x8x8xf32> to vector<2x8xf32>
    %46 = vector.shape_cast %45 : vector<2x8xf32> to vector<2x8x1xf32>
    %47 = vector.broadcast %46 : vector<2x8x1xf32> to vector<2x8x8xf32>
    %48 = arith.subf %44, %47 : vector<2x8x8xf32>
    %49 = math.exp %48 : vector<2x8x8xf32>
    %cst_17 = arith.constant dense<0.000000e+00> : vector<2x8xf32>
    %50 = vector.multi_reduction <add>, %49, %cst_17 [2] : vector<2x8x8xf32> to vector<2x8xf32>
    %51 = vector.shape_cast %50 : vector<2x8xf32> to vector<2x8x1xf32>
    %52 = arith.truncf %49 : vector<2x8x8xf32> to vector<2x8x8xbf16>
    "tpu.trace_start"() <{level = 10 : i32, message = "blm,bmd->bld"}> : () -> ()
    %cst_18 = arith.constant dense<0.000000e+00> : vector<2x8x128xf32>
    %53 = tpu.matmul %52, %43, %cst_18 {dimension_numbers = #tpu.dot_dimension_numbers<[2], [1], [1], [2], [0, 0, 0, 1, 1, 2], [0], [0]>} : vector<2x8x8xbf16>, vector<2x8x128xbf16>, vector<2x8x128xf32> -> vector<2x8x128xf32>
    "tpu.trace_stop"() : () -> ()
    %54 = tpu.reciprocal %51 {approx = true} : vector<2x8x1xf32> -> vector<2x8x1xf32>
    %55 = vector.broadcast %54 : vector<2x8x1xf32> to vector<2x8x128xf32>
    %56 = arith.mulf %53, %55 : vector<2x8x128xf32>
    %57 = arith.truncf %56 : vector<2x8x128xf32> to vector<2x8x128xbf16>
    %c0_19 = arith.constant 0 : index
    %c0_20 = arith.constant 0 : index
    %c0_21 = arith.constant 0 : index
    %58 = vector.load %arg15[%c0_19, %c0_20, %c0_21] : memref<2x8x256xbf16, #tpu.memory_space<vmem>>, vector<2x8x128xbf16>
    tpu.vector_store %arg15[%c0_19, %c0_20, %c0_21], %57 {strides = array<i32>} : memref<2x8x256xbf16, #tpu.memory_space<vmem>>, vector<2x8x128xbf16>,
    %59 = vector.extract_strided_slice %33 {offsets = [0, 0, 128], sizes = [2, 8, 128], strides = [1, 1, 1]} : vector<2x8x256xf32> to vector<2x8x128xf32>
    %60 = arith.truncf %59 : vector<2x8x128xf32> to vector<2x8x128xbf16>
    %61 = vector.extract_strided_slice %35 {offsets = [0, 0, 128], sizes = [2, 8, 128], strides = [1, 1, 1]} : vector<2x8x256xf32> to vector<2x8x128xf32>
    %62 = arith.truncf %61 : vector<2x8x128xf32> to vector<2x8x128xbf16>
    %63 = vector.extract_strided_slice %37 {offsets = [0, 0, 128], sizes = [2, 8, 128], strides = [1, 1, 1]} : vector<2x8x256xf32> to vector<2x8x128xf32>
    %64 = arith.truncf %63 : vector<2x8x128xf32> to vector<2x8x128xbf16>
    "tpu.trace_start"() <{level = 10 : i32, message = "bld,bmd->blm"}> : () -> ()
    %cst_22 = arith.constant dense<0.000000e+00> : vector<2x8x8xf32>
    %65 = tpu.matmul %60, %62, %cst_22 {dimension_numbers = #tpu.dot_dimension_numbers<[2], [2], [1], [1], [0, 0, 0, 1, 1, 1], [0], [0]>} : vector<2x8x128xbf16>, vector<2x8x128xbf16>, vector<2x8x8xf32> -> vector<2x8x8xf32>
    "tpu.trace_stop"() : () -> ()
    %cst_23 = arith.constant dense<0xFF800000> : vector<2x8xf32>
    %66 = vector.multi_reduction <maximumf>, %65, %cst_23 [2] : vector<2x8x8xf32> to vector<2x8xf32>
    %67 = vector.shape_cast %66 : vector<2x8xf32> to vector<2x8x1xf32>
    %68 = vector.broadcast %67 : vector<2x8x1xf32> to vector<2x8x8xf32>
    %69 = arith.subf %65, %68 : vector<2x8x8xf32>
    %70 = math.exp %69 : vector<2x8x8xf32>
    %cst_24 = arith.constant dense<0.000000e+00> : vector<2x8xf32>
    %71 = vector.multi_reduction <add>, %70, %cst_24 [2] : vector<2x8x8xf32> to vector<2x8xf32>
    %72 = vector.shape_cast %71 : vector<2x8xf32> to vector<2x8x1xf32>
    %73 = arith.truncf %70 : vector<2x8x8xf32> to vector<2x8x8xbf16>
    "tpu.trace_start"() <{level = 10 : i32, message = "blm,bmd->bld"}> : () -> ()
    %cst_25 = arith.constant dense<0.000000e+00> : vector<2x8x128xf32>
    %74 = tpu.matmul %73, %64, %cst_25 {dimension_numbers = #tpu.dot_dimension_numbers<[2], [1], [1], [2], [0, 0, 0, 1, 1, 2], [0], [0]>} : vector<2x8x8xbf16>, vector<2x8x128xbf16>, vector<2x8x128xf32> -> vector<2x8x128xf32>
    "tpu.trace_stop"() : () -> ()
    %75 = tpu.reciprocal %72 {approx = true} : vector<2x8x1xf32> -> vector<2x8x1xf32>
    %76 = vector.broadcast %75 : vector<2x8x1xf32> to vector<2x8x128xf32>
    %77 = arith.mulf %74, %76 : vector<2x8x128xf32>
    %78 = arith.truncf %77 : vector<2x8x128xf32> to vector<2x8x128xbf16>
    %c0_26 = arith.constant 0 : index
    %c0_27 = arith.constant 0 : index
    %c128 = arith.constant 128 : index
    %79 = vector.load %arg15[%c0_26, %c0_27, %c128] : memref<2x8x256xbf16, #tpu.memory_space<vmem>>, vector<2x8x128xbf16>
    tpu.vector_store %arg15[%c0_26, %c0_27, %c128], %78 {strides = array<i32>} : memref<2x8x256xbf16, #tpu.memory_space<vmem>>, vector<2x8x128xbf16>,
    %c0_28 = arith.constant 0 : index
    %c0_29 = arith.constant 0 : index
    %c0_30 = arith.constant 0 : index
    %80 = vector.load %arg15[%c0_28, %c0_29, %c0_30] : memref<2x8x256xbf16, #tpu.memory_space<vmem>>, vector<2x8x256xbf16>
    %81 = vector.shape_cast %80 : vector<2x8x256xbf16> to vector<16x256xbf16>
    %c0_31 = arith.constant 0 : index
    %c0_32 = arith.constant 0 : index
    %82 = vector.load %arg6[%c0_31, %c0_32] : memref<256x256xbf16, #tpu.memory_space<vmem>>, vector<256x256xbf16>
    %cst_33 = arith.constant dense<0.000000e+00> : vector<16x256xf32>
    %83 = tpu.matmul %81, %82, %cst_33 {dimension_numbers = #tpu.dot_dimension_numbers<[1], [0], [0], [1], [0, 0, 1, 1], [], []>} : vector<16x256xbf16>, vector<256x256xbf16>, vector<16x256xf32> -> vector<16x256xf32>
    %c0_34 = arith.constant 0 : index
    %c0_35 = arith.constant 0 : index
    %84 = vector.load %arg7[%c0_34, %c0_35] : memref<1x256xf32, #tpu.memory_space<vmem>>, vector<1x256xf32>
    %85 = vector.broadcast %84 : vector<1x256xf32> to vector<16x256xf32>
    %86 = arith.addf %83, %85 : vector<16x256xf32>
    %87 = arith.addf %1, %86 : vector<16x256xf32>
    %c0_36 = arith.constant 0 : index
    %c0_37 = arith.constant 0 : index
    %88 = vector.load %arg8[%c0_36, %c0_37] : memref<1x256xf32, #tpu.memory_space<vmem>>, vector<1x256xf32>
    %c0_38 = arith.constant 0 : index
    %c0_39 = arith.constant 0 : index
    %89 = vector.load %arg9[%c0_38, %c0_39] : memref<1x256xf32, #tpu.memory_space<vmem>>, vector<1x256xf32>
    %cst_40 = arith.constant dense<0.000000e+00> : vector<16xf32>
    %90 = vector.multi_reduction <add>, %87, %cst_40 [1] : vector<16x256xf32> to vector<16xf32>
    %91 = vector.shape_cast %90 : vector<16xf32> to vector<16x1xf32>
    %cst_41 = arith.constant 2.560000e+02 : f32
    %92 = vector.broadcast %cst_41 : f32 to vector<16x1xf32>
    %93 = arith.divf %91, %92 : vector<16x1xf32>
    %94 = vector.broadcast %93 : vector<16x1xf32> to vector<16x256xf32>
    %95 = arith.subf %87, %94 : vector<16x256xf32>
    %96 = arith.mulf %95, %95 : vector<16x256xf32>
    %cst_42 = arith.constant dense<0.000000e+00> : vector<16xf32>
    %97 = vector.multi_reduction <add>, %96, %cst_42 [1] : vector<16x256xf32> to vector<16xf32>
    %98 = vector.shape_cast %97 : vector<16xf32> to vector<16x1xf32>
    %cst_43 = arith.constant 2.560000e+02 : f32
    %99 = vector.broadcast %cst_43 : f32 to vector<16x1xf32>
    %100 = arith.divf %98, %99 : vector<16x1xf32>
    %101 = vector.broadcast %93 : vector<16x1xf32> to vector<16x256xf32>
    %102 = arith.subf %87, %101 : vector<16x256xf32>
    %cst_44 = arith.constant 9.99999974E-6 : f32
    %103 = vector.broadcast %cst_44 : f32 to vector<16x1xf32>
    %104 = arith.addf %100, %103 : vector<16x1xf32>
    %105 = math.rsqrt %104 : vector<16x1xf32>
    %106 = vector.broadcast %105 : vector<16x1xf32> to vector<16x256xf32>
    %107 = arith.mulf %102, %106 : vector<16x256xf32>
    %108 = vector.broadcast %88 : vector<1x256xf32> to vector<16x256xf32>
    %109 = arith.mulf %107, %108 : vector<16x256xf32>
    %110 = vector.broadcast %89 : vector<1x256xf32> to vector<16x256xf32>
    %111 = arith.addf %109, %110 : vector<16x256xf32>
    %112 = arith.truncf %111 : vector<16x256xf32> to vector<16x256xbf16>
    %c0_45 = arith.constant 0 : index
    %c0_46 = arith.constant 0 : index
    %113 = vector.load %arg10[%c0_45, %c0_46] : memref<256x1024xbf16, #tpu.memory_space<vmem>>, vector<256x1024xbf16>
    %cst_47 = arith.constant dense<0.000000e+00> : vector<16x1024xf32>
    %114 = tpu.matmul %112, %113, %cst_47 {dimension_numbers = #tpu.dot_dimension_numbers<[1], [0], [0], [1], [0, 0, 1, 1], [], []>} : vector<16x256xbf16>, vector<256x1024xbf16>, vector<16x1024xf32> -> vector<16x1024xf32>
    %c0_48 = arith.constant 0 : index
    %c0_49 = arith.constant 0 : index
    %115 = vector.load %arg11[%c0_48, %c0_49] : memref<1x1024xf32, #tpu.memory_space<vmem>>, vector<1x1024xf32>
    %116 = vector.broadcast %115 : vector<1x1024xf32> to vector<16x1024xf32>
    %117 = arith.addf %114, %116 : vector<16x1024xf32>
    %cst_50 = arith.constant 5.000000e-01 : f32
    %118 = vector.broadcast %cst_50 : f32 to vector<16x1024xf32>
    %119 = arith.mulf %118, %117 : vector<16x1024xf32>
    %cst_51 = arith.constant 0.707106769 : f32
    %120 = vector.broadcast %cst_51 : f32 to vector<16x1024xf32>
    %121 = arith.mulf %117, %120 : vector<16x1024xf32>
    %122 = math.erf %121 : vector<16x1024xf32>
    %cst_52 = arith.constant 1.000000e+00 : f32
    %123 = vector.broadcast %cst_52 : f32 to vector<16x1024xf32>
    %124 = arith.addf %123, %122 : vector<16x1024xf32>
    %125 = arith.mulf %119, %124 : vector<16x1024xf32>
    %126 = arith.truncf %125 : vector<16x1024xf32> to vector<16x1024xbf16>
    %c0_53 = arith.constant 0 : index
    %c0_54 = arith.constant 0 : index
    %127 = vector.load %arg12[%c0_53, %c0_54] : memref<1024x256xbf16, #tpu.memory_space<vmem>>, vector<1024x256xbf16>
    %cst_55 = arith.constant dense<0.000000e+00> : vector<16x256xf32>
    %128 = tpu.matmul %126, %127, %cst_55 {dimension_numbers = #tpu.dot_dimension_numbers<[1], [0], [0], [1], [0, 0, 1, 1], [], []>} : vector<16x1024xbf16>, vector<1024x256xbf16>, vector<16x256xf32> -> vector<16x256xf32>
    %c0_56 = arith.constant 0 : index
    %c0_57 = arith.constant 0 : index
    %129 = vector.load %arg13[%c0_56, %c0_57] : memref<1x256xf32, #tpu.memory_space<vmem>>, vector<1x256xf32>
    %130 = vector.broadcast %129 : vector<1x256xf32> to vector<16x256xf32>
    %131 = arith.addf %128, %130 : vector<16x256xf32>
    %132 = arith.addf %87, %131 : vector<16x256xf32>
    %133 = vector.shape_cast %132 : vector<16x256xf32> to vector<2x8x256xf32>
    %c0_58 = arith.constant 0 : index
    %c0_59 = arith.constant 0 : index
    %c0_60 = arith.constant 0 : index
    %134 = vector.load %arg14[%c0_58, %c0_59, %c0_60] : memref<2x8x256xf32, #tpu.memory_space<vmem>>, vector<2x8x256xf32>
    tpu.vector_store %arg14[%c0_58, %c0_59, %c0_60], %133 {strides = array<i32>} : memref<2x8x256xf32, #tpu.memory_space<vmem>>, vector<2x8x256xf32>,
    return
  }
  func.func @transform_0(%arg0: i32) -> (i32, i32, i32) {
    %c0_i32 = arith.constant 0 : i32
    %c0_i32_0 = arith.constant 0 : i32
    %c0_i32_1 = arith.constant 0 : i32
    return %arg0, %c0_i32, %c0_i32_0 : i32, i32, i32
  }
  func.func @transform_1(%arg0: i32) -> (i32, i32) {
    %c0_i32 = arith.constant 0 : i32
    %c0_i32_0 = arith.constant 0 : i32
    %c0_i32_1 = arith.constant 0 : i32
    return %c0_i32, %c0_i32_0 : i32, i32
  }
  func.func @transform_2(%arg0: i32) -> (i32, i32) {
    %c0_i32 = arith.constant 0 : i32
    %c0_i32_0 = arith.constant 0 : i32
    %c0_i32_1 = arith.constant 0 : i32
    return %c0_i32, %c0_i32_0 : i32, i32
  }
  func.func @transform_3(%arg0: i32) -> (i32, i32) {
    %c0_i32 = arith.constant 0 : i32
    %c0_i32_0 = arith.constant 0 : i32
    %c0_i32_1 = arith.constant 0 : i32
    return %c0_i32, %c0_i32_0 : i32, i32
  }
  func.func @transform_4(%arg0: i32) -> (i32, i32) {
    %c0_i32 = arith.constant 0 : i32
    %c0_i32_0 = arith.constant 0 : i32
    %c0_i32_1 = arith.constant 0 : i32
    return %c0_i32, %c0_i32_0 : i32, i32
  }
  func.func @transform_5(%arg0: i32) -> (i32, i32) {
    %c0_i32 = arith.constant 0 : i32
    %c0_i32_0 = arith.constant 0 : i32
    %c0_i32_1 = arith.constant 0 : i32
    return %c0_i32, %c0_i32_0 : i32, i32
  }
  func.func @transform_6(%arg0: i32) -> (i32, i32) {
    %c0_i32 = arith.constant 0 : i32
    %c0_i32_0 = arith.constant 0 : i32
    %c0_i32_1 = arith.constant 0 : i32
    return %c0_i32, %c0_i32_0 : i32, i32
  }
  func.func @transform_7(%arg0: i32) -> (i32, i32) {
    %c0_i32 = arith.constant 0 : i32
    %c0_i32_0 = arith.constant 0 : i32
    %c0_i32_1 = arith.constant 0 : i32
    return %c0_i32, %c0_i32_0 : i32, i32
  }
  func.func @transform_8(%arg0: i32) -> (i32, i32) {
    %c0_i32 = arith.constant 0 : i32
    %c0_i32_0 = arith.constant 0 : i32
    %c0_i32_1 = arith.constant 0 : i32
    return %c0_i32, %c0_i32_0 : i32, i32
  }
  func.func @transform_9(%arg0: i32) -> (i32, i32) {
    %c0_i32 = arith.constant 0 : i32
    %c0_i32_0 = arith.constant 0 : i32
    %c0_i32_1 = arith.constant 0 : i32
    return %c0_i32, %c0_i32_0 : i32, i32
  }
  func.func @transform_10(%arg0: i32) -> (i32, i32) {
    %c0_i32 = arith.constant 0 : i32
    %c0_i32_0 = arith.constant 0 : i32
    %c0_i32_1 = arith.constant 0 : i32
    return %c0_i32, %c0_i32_0 : i32, i32
  }
  func.func @transform_11(%arg0: i32) -> (i32, i32) {
    %c0_i32 = arith.constant 0 : i32
    %c0_i32_0 = arith.constant 0 : i32
    %c0_i32_1 = arith.constant 0 : i32
    return %c0_i32, %c0_i32_0 : i32, i32
  }
  func.func @transform_12(%arg0: i32) -> (i32, i32) {
    %c0_i32 = arith.constant 0 : i32
    %c0_i32_0 = arith.constant 0 : i32
    %c0_i32_1 = arith.constant 0 : i32
    return %c0_i32, %c0_i32_0 : i32, i32
  }
  func.func @transform_13(%arg0: i32) -> (i32, i32, i32) {
    %c0_i32 = arith.constant 0 : i32
    %c0_i32_0 = arith.constant 0 : i32
    %c0_i32_1 = arith.constant 0 : i32
    return %arg0, %c0_i32, %c0_i32_0 : i32, i32, i32
  }
}

module attributes {stable_mosaic.version = 11 : i64} {
  func.func @_rab_kernel(%arg0: i32, %arg1: memref<2x8x256xf32, #tpu.memory_space<vmem>>, %arg2: memref<1x256xf32, #tpu.memory_space<vmem>>, %arg3: memref<1x256xf32, #tpu.memory_space<vmem>>, %arg4: memref<256x768xbf16, #tpu.memory_space<vmem>>, %arg5: memref<1x768xf32, #tpu.memory_space<vmem>>, %arg6: memref<256x256xbf16, #tpu.memory_space<vmem>>, %arg7: memref<1x256xf32, #tpu.memory_space<vmem>>, %arg8: memref<1x256xf32, #tpu.memory_space<vmem>>, %arg9: memref<1x256xf32, #tpu.memory_space<vmem>>, %arg10: memref<256x1024xbf16, #tpu.memory_space<vmem>>, %arg11: memref<1x1024xf32, #tpu.memory_space<vmem>>, %arg12: memref<1024x256xbf16, #tpu.memory_space<vmem>>, %arg13: memref<1x256xf32, #tpu.memory_space<vmem>>, %arg14: memref<2x8x256xf32, #tpu.memory_space<vmem>>, %arg15: memref<2x8x256xbf16, #tpu.memory_space<vmem>>) attributes {dimension_semantics = [#tpu.dimension_semantics<parallel>], iteration_bounds = array<i64: 2>, scalar_prefetch = 0 : i64, scratch_operands = 1 : i64, tpu.core_type = #tpu.core_type<tc>, window_params = [{transform_indices = @transform_0, window_bounds = array<i64: 2, 8, 256>}, {pipeline_mode = #tpu.pipeline_mode<synchronous>, transform_indices = @transform_1, window_bounds = array<i64: 1, 256>}, {pipeline_mode = #tpu.pipeline_mode<synchronous>, transform_indices = @transform_2, window_bounds = array<i64: 1, 256>}, {pipeline_mode = #tpu.pipeline_mode<synchronous>, transform_indices = @transform_3, window_bounds = array<i64: 256, 768>}, {pipeline_mode = #tpu.pipeline_mode<synchronous>, transform_indices = @transform_4, window_bounds = array<i64: 1, 768>}, {pipeline_mode = #tpu.pipeline_mode<synchronous>, transform_indices = @transform_5, window_bounds = array<i64: 256, 256>}, {pipeline_mode = #tpu.pipeline_mode<synchronous>, transform_indices = @transform_6, window_bounds = array<i64: 1, 256>}, {pipeline_mode = #tpu.pipeline_mode<synchronous>, transform_indices = @transform_7, window_bounds = array<i64: 1, 256>}, {pipeline_mode = #tpu.pipeline_mode<synchronous>, transform_indices = @transform_8, window_bounds = array<i64: 1, 256>}, {pipeline_mode = #tpu.pipeline_mode<synchronous>, transform_indices = @transform_9, window_bounds = array<i64: 256, 1024>}, {pipeline_mode = #tpu.pipeline_mode<synchronous>, transform_indices = @transform_10, window_bounds = array<i64: 1, 1024>}, {pipeline_mode = #tpu.pipeline_mode<synchronous>, transform_indices = @transform_11, window_bounds = array<i64: 1024, 256>}, {pipeline_mode = #tpu.pipeline_mode<synchronous>, transform_indices = @transform_12, window_bounds = array<i64: 1, 256>}, {transform_indices = @transform_13, window_bounds = array<i64: 2, 8, 256>}]} {
    %c0 = arith.constant 0 : index
    %c0_0 = arith.constant 0 : index
    %c0_1 = arith.constant 0 : index
    %0 = vector.load %arg1[%c0, %c0_0, %c0_1] : memref<2x8x256xf32, #tpu.memory_space<vmem>>, vector<2x8x256xf32>
    %1 = vector.shape_cast %0 : vector<2x8x256xf32> to vector<16x256xf32>
    %c0_2 = arith.constant 0 : index
    %c0_3 = arith.constant 0 : index
    %2 = vector.load %arg2[%c0_2, %c0_3] : memref<1x256xf32, #tpu.memory_space<vmem>>, vector<1x256xf32>
    %c0_4 = arith.constant 0 : index
    %c0_5 = arith.constant 0 : index
    %3 = vector.load %arg3[%c0_4, %c0_5] : memref<1x256xf32, #tpu.memory_space<vmem>>, vector<1x256xf32>
    %cst = arith.constant dense<0.000000e+00> : vector<16xf32>
    %4 = vector.multi_reduction <add>, %1, %cst [1] : vector<16x256xf32> to vector<16xf32>
    %5 = vector.shape_cast %4 : vector<16xf32> to vector<16x1xf32>
    %cst_6 = arith.constant 2.560000e+02 : f32
    %6 = vector.broadcast %cst_6 : f32 to vector<16x1xf32>
    %7 = arith.divf %5, %6 : vector<16x1xf32>
    %8 = vector.broadcast %7 : vector<16x1xf32> to vector<16x256xf32>
    %9 = arith.subf %1, %8 : vector<16x256xf32>
    %10 = arith.mulf %9, %9 : vector<16x256xf32>
    %cst_7 = arith.constant dense<0.000000e+00> : vector<16xf32>
    %11 = vector.multi_reduction <add>, %10, %cst_7 [1] : vector<16x256xf32> to vector<16xf32>
    %12 = vector.shape_cast %11 : vector<16xf32> to vector<16x1xf32>
    %cst_8 = arith.constant 2.560000e+02 : f32
    %13 = vector.broadcast %cst_8 : f32 to vector<16x1xf32>
    %14 = arith.divf %12, %13 : vector<16x1xf32>
    %15 = vector.broadcast %7 : vector<16x1xf32> to vector<16x256xf32>
    %16 = arith.subf %1, %15 : vector<16x256xf32>
    %cst_9 = arith.constant 9.99999974E-6 : f32
    %17 = vector.broadcast %cst_9 : f32 to vector<16x1xf32>
    %18 = arith.addf %14, %17 : vector<16x1xf32>
    %19 = math.rsqrt %18 : vector<16x1xf32>
    %20 = vector.broadcast %19 : vector<16x1xf32> to vector<16x256xf32>
    %21 = arith.mulf %16, %20 : vector<16x256xf32>
    %22 = vector.broadcast %2 : vector<1x256xf32> to vector<16x256xf32>
    %23 = arith.mulf %21, %22 : vector<16x256xf32>
    %24 = vector.broadcast %3 : vector<1x256xf32> to vector<16x256xf32>
    %25 = arith.addf %23, %24 : vector<16x256xf32>
    %26 = arith.truncf %25 : vector<16x256xf32> to vector<16x256xbf16>
    %c0_10 = arith.constant 0 : index
    %c0_11 = arith.constant 0 : index
    %27 = vector.load %arg4[%c0_10, %c0_11] : memref<256x768xbf16, #tpu.memory_space<vmem>>, vector<256x768xbf16>
    %cst_12 = arith.constant dense<0.000000e+00> : vector<16x768xf32>
    %28 = tpu.matmul %26, %27, %cst_12 {dimension_numbers = #tpu.dot_dimension_numbers<[1], [0], [0], [1], [0, 0, 1, 1], [], []>} : vector<16x256xbf16>, vector<256x768xbf16>, vector<16x768xf32> -> vector<16x768xf32>
    %c0_13 = arith.constant 0 : index
    %c0_14 = arith.constant 0 : index
    %29 = vector.load %arg5[%c0_13, %c0_14] : memref<1x768xf32, #tpu.memory_space<vmem>>, vector<1x768xf32>
    %30 = vector.broadcast %29 : vector<1x768xf32> to vector<16x768xf32>
    %31 = arith.addf %28, %30 : vector<16x768xf32>
    %32 = vector.extract_strided_slice %31 {offsets = [0, 0], sizes = [16, 256], strides = [1, 1]} : vector<16x768xf32> to vector<16x256xf32>
    %33 = vector.shape_cast %32 : vector<16x256xf32> to vector<2x8x256xf32>
    %34 = vector.extract_strided_slice %31 {offsets = [0, 256], sizes = [16, 256], strides = [1, 1]} : vector<16x768xf32> to vector<16x256xf32>
    %35 = vector.shape_cast %34 : vector<16x256xf32> to vector<2x8x256xf32>
    %36 = vector.extract_strided_slice %31 {offsets = [0, 512], sizes = [16, 256], strides = [1, 1]} : vector<16x768xf32> to vector<16x256xf32>
    %37 = vector.shape_cast %36 : vector<16x256xf32> to vector<2x8x256xf32>
    %38 = vector.extract_strided_slice %33 {offsets = [0, 0, 0], sizes = [2, 8, 128], strides = [1, 1, 1]} : vector<2x8x256xf32> to vector<2x8x128xf32>
    %39 = arith.truncf %38 : vector<2x8x128xf32> to vector<2x8x128xbf16>
    %40 = vector.extract_strided_slice %35 {offsets = [0, 0, 0], sizes = [2, 8, 128], strides = [1, 1, 1]} : vector<2x8x256xf32> to vector<2x8x128xf32>
    %41 = arith.truncf %40 : vector<2x8x128xf32> to vector<2x8x128xbf16>
    %42 = vector.extract_strided_slice %37 {offsets = [0, 0, 0], sizes = [2, 8, 128], strides = [1, 1, 1]} : vector<2x8x256xf32> to vector<2x8x128xf32>
    %43 = arith.truncf %42 : vector<2x8x128xf32> to vector<2x8x128xbf16>
    "tpu.trace_start"() <{level = 10 : i32, message = "bld,bmd->blm"}> : () -> ()
    %cst_15 = arith.constant dense<0.000000e+00> : vector<2x8x8xf32>
    %44 = tpu.matmul %39, %41, %cst_15 {dimension_numbers = #tpu.dot_dimension_numbers<[2], [2], [1], [1], [0, 0, 0, 1, 1, 1], [0], [0]>} : vector<2x8x128xbf16>, vector<2x8x128xbf16>, vector<2x8x8xf32> -> vector<2x8x8xf32>
    "tpu.trace_stop"() : () -> ()
    %cst_16 = arith.constant dense<0xFF800000> : vector<2x8xf32>
    %45 = vector.multi_reduction <maximumf>, %44, %cst_16 [2] : vector<2x8x8xf32> to vector<2x8xf32>
    %46 = vector.shape_cast %45 : vector<2x8xf32> to vector<2x8x1xf32>
    %47 = vector.broadcast %46 : vector<2x8x1xf32> to vector<2x8x8xf32>
    %48 = arith.subf %44, %47 : vector<2x8x8xf32>
    %49 = math.exp %48 : vector<2x8x8xf32>
    %cst_17 = arith.constant dense<0.000000e+00> : vector<2x8xf32>
    %50 = vector.multi_reduction <add>, %49, %cst_17 [2] : vector<2x8x8xf32> to vector<2x8xf32>
    %51 = vector.shape_cast %50 : vector<2x8xf32> to vector<2x8x1xf32>
    %52 = arith.truncf %49 : vector<2x8x8xf32> to vector<2x8x8xbf16>
    "tpu.trace_start"() <{level = 10 : i32, message = "blm,bmd->bld"}> : () -> ()
    %cst_18 = arith.constant dense<0.000000e+00> : vector<2x8x128xf32>
    %53 = tpu.matmul %52, %43, %cst_18 {dimension_numbers = #tpu.dot_dimension_numbers<[2], [1], [1], [2], [0, 0, 0, 1, 1, 2], [0], [0]>} : vector<2x8x8xbf16>, vector<2x8x128xbf16>, vector<2x8x128xf32> -> vector<2x8x128xf32>
    "tpu.trace_stop"() : () -> ()
    %54 = tpu.reciprocal %51 {approx = true} : vector<2x8x1xf32> -> vector<2x8x1xf32>
    %55 = vector.broadcast %54 : vector<2x8x1xf32> to vector<2x8x128xf32>
    %56 = arith.mulf %53, %55 : vector<2x8x128xf32>
    %57 = arith.truncf %56 : vector<2x8x128xf32> to vector<2x8x128xbf16>
    %c0_19 = arith.constant 0 : index
    %c0_20 = arith.constant 0 : index
    %c0_21 = arith.constant 0 : index
    %58 = vector.load %arg15[%c0_19, %c0_20, %c0_21] : memref<2x8x256xbf16, #tpu.memory_space<vmem>>, vector<2x8x128xbf16>
    tpu.vector_store %arg15[%c0_19, %c0_20, %c0_21], %57 {strides = array<i32>} : memref<2x8x256xbf16, #tpu.memory_space<vmem>>, vector<2x8x128xbf16>,
    %59 = vector.extract_strided_slice %33 {offsets = [0, 0, 128], sizes = [2, 8, 128], strides = [1, 1, 1]} : vector<2x8x256xf32> to vector<2x8x128xf32>
    %60 = arith.truncf %59 : vector<2x8x128xf32> to vector<2x8x128xbf16>
    %61 = vector.extract_strided_slice %35 {offsets = [0, 0, 128], sizes = [2, 8, 128], strides = [1, 1, 1]} : vector<2x8x256xf32> to vector<2x8x128xf32>
    %62 = arith.truncf %61 : vector<2x8x128xf32> to vector<2x8x128xbf16>
    %63 = vector.extract_strided_slice %37 {offsets = [0, 0, 128], sizes = [2, 8, 128], strides = [1, 1, 1]} : vector<2x8x256xf32> to vector<2x8x128xf32>
    %64 = arith.truncf %63 : vector<2x8x128xf32> to vector<2x8x128xbf16>
    "tpu.trace_start"() <{level = 10 : i32, message = "bld,bmd->blm"}> : () -> ()
    %cst_22 = arith.constant dense<0.000000e+00> : vector<2x8x8xf32>
    %65 = tpu.matmul %60, %62, %cst_22 {dimension_numbers = #tpu.dot_dimension_numbers<[2], [2], [1], [1], [0, 0, 0, 1, 1, 1], [0], [0]>} : vector<2x8x128xbf16>, vector<2x8x128xbf16>, vector<2x8x8xf32> -> vector<2x8x8xf32>
    "tpu.trace_stop"() : () -> ()
    %cst_23 = arith.constant dense<0xFF800000> : vector<2x8xf32>
    %66 = vector.multi_reduction <maximumf>, %65, %cst_23 [2] : vector<2x8x8xf32> to vector<2x8xf32>
    %67 = vector.shape_cast %66 : vector<2x8xf32> to vector<2x8x1xf32>
    %68 = vector.broadcast %67 : vector<2x8x1xf32> to vector<2x8x8xf32>
    %69 = arith.subf %65, %68 : vector<2x8x8xf32>
    %70 = math.exp %69 : vector<2x8x8xf32>
    %cst_24 = arith.constant dense<0.000000e+00> : vector<2x8xf32>
    %71 = vector.multi_reduction <add>, %70, %cst_24 [2] : vector<2x8x8xf32> to vector<2x8xf32>
    %72 = vector.shape_cast %71 : vector<2x8xf32> to vector<2x8x1xf32>
    %73 = arith.truncf %70 : vector<2x8x8xf32> to vector<2x8x8xbf16>
    "tpu.trace_start"() <{level = 10 : i32, message = "blm,bmd->bld"}> : () -> ()
    %cst_25 = arith.constant dense<0.000000e+00> : vector<2x8x128xf32>
    %74 = tpu.matmul %73, %64, %cst_25 {dimension_numbers = #tpu.dot_dimension_numbers<[2], [1], [1], [2], [0, 0, 0, 1, 1, 2], [0], [0]>} : vector<2x8x8xbf16>, vector<2x8x128xbf16>, vector<2x8x128xf32> -> vector<2x8x128xf32>
    "tpu.trace_stop"() : () -> ()
    %75 = tpu.reciprocal %72 {approx = true} : vector<2x8x1xf32> -> vector<2x8x1xf32>
    %76 = vector.broadcast %75 : vector<2x8x1xf32> to vector<2x8x128xf32>
    %77 = arith.mulf %74, %76 : vector<2x8x128xf32>
    %78 = arith.truncf %77 : vector<2x8x128xf32> to vector<2x8x128xbf16>
    %c0_26 = arith.constant 0 : index
    %c0_27 = arith.constant 0 : index
    %c128 = arith.constant 128 : index
    %79 = vector.load %arg15[%c0_26, %c0_27, %c128] : memref<2x8x256xbf16, #tpu.memory_space<vmem>>, vector<2x8x128xbf16>
    tpu.vector_store %arg15[%c0_26, %c0_27, %c128], %78 {strides = array<i32>} : memref<2x8x256xbf16, #tpu.memory_space<vmem>>, vector<2x8x128xbf16>,
    %c0_28 = arith.constant 0 : index
    %c0_29 = arith.constant 0 : index
    %c0_30 = arith.constant 0 : index
    %80 = vector.load %arg15[%c0_28, %c0_29, %c0_30] : memref<2x8x256xbf16, #tpu.memory_space<vmem>>, vector<2x8x256xbf16>
    %81 = vector.shape_cast %80 : vector<2x8x256xbf16> to vector<16x256xbf16>
    %c0_31 = arith.constant 0 : index
    %c0_32 = arith.constant 0 : index
    %82 = vector.load %arg6[%c0_31, %c0_32] : memref<256x256xbf16, #tpu.memory_space<vmem>>, vector<256x256xbf16>
    %cst_33 = arith.constant dense<0.000000e+00> : vector<16x256xf32>
    %83 = tpu.matmul %81, %82, %cst_33 {dimension_numbers = #tpu.dot_dimension_numbers<[1], [0], [0], [1], [0, 0, 1, 1], [], []>} : vector<16x256xbf16>, vector<256x256xbf16>, vector<16x256xf32> -> vector<16x256xf32>
    %c0_34 = arith.constant 0 : index
    %c0_35 = arith.constant 0 : index
    %84 = vector.load %arg7[%c0_34, %c0_35] : memref<1x256xf32, #tpu.memory_space<vmem>>, vector<1x256xf32>
    %85 = vector.broadcast %84 : vector<1x256xf32> to vector<16x256xf32>
    %86 = arith.addf %83, %85 : vector<16x256xf32>
    %87 = arith.addf %1, %86 : vector<16x256xf32>
    %c0_36 = arith.constant 0 : index
    %c0_37 = arith.constant 0 : index
    %88 = vector.load %arg8[%c0_36, %c0_37] : memref<1x256xf32, #tpu.memory_space<vmem>>, vector<1x256xf32>
    %c0_38 = arith.constant 0 : index
    %c0_39 = arith.constant 0 : index
    %89 = vector.load %arg9[%c0_38, %c0_39] : memref<1x256xf32, #tpu.memory_space<vmem>>, vector<1x256xf32>
    %cst_40 = arith.constant dense<0.000000e+00> : vector<16xf32>
    %90 = vector.multi_reduction <add>, %87, %cst_40 [1] : vector<16x256xf32> to vector<16xf32>
    %91 = vector.shape_cast %90 : vector<16xf32> to vector<16x1xf32>
    %cst_41 = arith.constant 2.560000e+02 : f32
    %92 = vector.broadcast %cst_41 : f32 to vector<16x1xf32>
    %93 = arith.divf %91, %92 : vector<16x1xf32>
    %94 = vector.broadcast %93 : vector<16x1xf32> to vector<16x256xf32>
    %95 = arith.subf %87, %94 : vector<16x256xf32>
    %96 = arith.mulf %95, %95 : vector<16x256xf32>
    %cst_42 = arith.constant dense<0.000000e+00> : vector<16xf32>
    %97 = vector.multi_reduction <add>, %96, %cst_42 [1] : vector<16x256xf32> to vector<16xf32>
    %98 = vector.shape_cast %97 : vector<16xf32> to vector<16x1xf32>
    %cst_43 = arith.constant 2.560000e+02 : f32
    %99 = vector.broadcast %cst_43 : f32 to vector<16x1xf32>
    %100 = arith.divf %98, %99 : vector<16x1xf32>
    %101 = vector.broadcast %93 : vector<16x1xf32> to vector<16x256xf32>
    %102 = arith.subf %87, %101 : vector<16x256xf32>
    %cst_44 = arith.constant 9.99999974E-6 : f32
    %103 = vector.broadcast %cst_44 : f32 to vector<16x1xf32>
    %104 = arith.addf %100, %103 : vector<16x1xf32>
    %105 = math.rsqrt %104 : vector<16x1xf32>
    %106 = vector.broadcast %105 : vector<16x1xf32> to vector<16x256xf32>
    %107 = arith.mulf %102, %106 : vector<16x256xf32>
    %108 = vector.broadcast %88 : vector<1x256xf32> to vector<16x256xf32>
    %109 = arith.mulf %107, %108 : vector<16x256xf32>
    %110 = vector.broadcast %89 : vector<1x256xf32> to vector<16x256xf32>
    %111 = arith.addf %109, %110 : vector<16x256xf32>
    %112 = arith.truncf %111 : vector<16x256xf32> to vector<16x256xbf16>
    %c0_45 = arith.constant 0 : index
    %c0_46 = arith.constant 0 : index
    %113 = vector.load %arg10[%c0_45, %c0_46] : memref<256x1024xbf16, #tpu.memory_space<vmem>>, vector<256x1024xbf16>
    %cst_47 = arith.constant dense<0.000000e+00> : vector<16x1024xf32>
    %114 = tpu.matmul %112, %113, %cst_47 {dimension_numbers = #tpu.dot_dimension_numbers<[1], [0], [0], [1], [0, 0, 1, 1], [], []>} : vector<16x256xbf16>, vector<256x1024xbf16>, vector<16x1024xf32> -> vector<16x1024xf32>
    %c0_48 = arith.constant 0 : index
    %c0_49 = arith.constant 0 : index
    %115 = vector.load %arg11[%c0_48, %c0_49] : memref<1x1024xf32, #tpu.memory_space<vmem>>, vector<1x1024xf32>
    %116 = vector.broadcast %115 : vector<1x1024xf32> to vector<16x1024xf32>
    %117 = arith.addf %114, %116 : vector<16x1024xf32>
    %cst_50 = arith.constant 5.000000e-01 : f32
    %118 = vector.broadcast %cst_50 : f32 to vector<16x1024xf32>
    %119 = arith.mulf %118, %117 : vector<16x1024xf32>
    %cst_51 = arith.constant 0.707106769 : f32
    %120 = vector.broadcast %cst_51 : f32 to vector<16x1024xf32>
    %121 = arith.mulf %117, %120 : vector<16x1024xf32>
    %122 = math.erf %121 : vector<16x1024xf32>
    %cst_52 = arith.constant 1.000000e+00 : f32
    %123 = vector.broadcast %cst_52 : f32 to vector<16x1024xf32>
    %124 = arith.addf %123, %122 : vector<16x1024xf32>
    %125 = arith.mulf %119, %124 : vector<16x1024xf32>
    %126 = arith.truncf %125 : vector<16x1024xf32> to vector<16x1024xbf16>
    %c0_53 = arith.constant 0 : index
    %c0_54 = arith.constant 0 : index
    %127 = vector.load %arg12[%c0_53, %c0_54] : memref<1024x256xbf16, #tpu.memory_space<vmem>>, vector<1024x256xbf16>
    %cst_55 = arith.constant dense<0.000000e+00> : vector<16x256xf32>
    %128 = tpu.matmul %126, %127, %cst_55 {dimension_numbers = #tpu.dot_dimension_numbers<[1], [0], [0], [1], [0, 0, 1, 1], [], []>} : vector<16x1024xbf16>, vector<1024x256xbf16>, vector<16x256xf32> -> vector<16x256xf32>
    %c0_56 = arith.constant 0 : index
    %c0_57 = arith.constant 0 : index
    %129 = vector.load %arg13[%c0_56, %c0_57] : memref<1x256xf32, #tpu.memory_space<vmem>>, vector<1x256xf32>
    %130 = vector.broadcast %129 : vector<1x256xf32> to vector<16x256xf32>
    %131 = arith.addf %128, %130 : vector<16x256xf32>
    %132 = arith.addf %87, %131 : vector<16x256xf32>
    %133 = vector.shape_cast %132 : vector<16x256xf32> to vector<2x8x256xf32>
    %c0_58 = arith.constant 0 : index
    %c0_59 = arith.constant 0 : index
    %c0_60 = arith.constant 0 : index
    %134 = vector.load %arg14[%c0_58, %c0_59, %c0_60] : memref<2x8x256xf32, #tpu.memory_space<vmem>>, vector<2x8x256xf32>
    tpu.vector_store %arg14[%c0_58, %c0_59, %c0_60], %133 {strides = array<i32>} : memref<2x8x256xf32, #tpu.memory_space<vmem>>, vector<2x8x256xf32>,
    return
  }
  func.func @transform_0(%arg0: i32) -> (i32, i32, i32) {
    %c0_i32 = arith.constant 0 : i32
    %c0_i32_0 = arith.constant 0 : i32
    %c0_i32_1 = arith.constant 0 : i32
    return %arg0, %c0_i32, %c0_i32_0 : i32, i32, i32
  }
  func.func @transform_1(%arg0: i32) -> (i32, i32) {
    %c0_i32 = arith.constant 0 : i32
    %c0_i32_0 = arith.constant 0 : i32
    %c0_i32_1 = arith.constant 0 : i32
    return %c0_i32, %c0_i32_0 : i32, i32
  }
  func.func @transform_2(%arg0: i32) -> (i32, i32) {
    %c0_i32 = arith.constant 0 : i32
    %c0_i32_0 = arith.constant 0 : i32
    %c0_i32_1 = arith.constant 0 : i32
    return %c0_i32, %c0_i32_0 : i32, i32
  }
  func.func @transform_3(%arg0: i32) -> (i32, i32) {
    %c0_i32 = arith.constant 0 : i32
    %c0_i32_0 = arith.constant 0 : i32
    %c0_i32_1 = arith.constant 0 : i32
    return %c0_i32, %c0_i32_0 : i32, i32
  }
  func.func @transform_4(%arg0: i32) -> (i32, i32) {
    %c0_i32 = arith.constant 0 : i32
    %c0_i32_0 = arith.constant 0 : i32
    %c0_i32_1 = arith.constant 0 : i32
    return %c0_i32, %c0_i32_0 : i32, i32
  }
  func.func @transform_5(%arg0: i32) -> (i32, i32) {
    %c0_i32 = arith.constant 0 : i32
    %c0_i32_0 = arith.constant 0 : i32
    %c0_i32_1 = arith.constant 0 : i32
    return %c0_i32, %c0_i32_0 : i32, i32
  }
  func.func @transform_6(%arg0: i32) -> (i32, i32) {
    %c0_i32 = arith.constant 0 : i32
    %c0_i32_0 = arith.constant 0 : i32
    %c0_i32_1 = arith.constant 0 : i32
    return %c0_i32, %c0_i32_0 : i32, i32
  }
  func.func @transform_7(%arg0: i32) -> (i32, i32) {
    %c0_i32 = arith.constant 0 : i32
    %c0_i32_0 = arith.constant 0 : i32
    %c0_i32_1 = arith.constant 0 : i32
    return %c0_i32, %c0_i32_0 : i32, i32
  }
  func.func @transform_8(%arg0: i32) -> (i32, i32) {
    %c0_i32 = arith.constant 0 : i32
    %c0_i32_0 = arith.constant 0 : i32
    %c0_i32_1 = arith.constant 0 : i32
    return %c0_i32, %c0_i32_0 : i32, i32
  }
  func.func @transform_9(%arg0: i32) -> (i32, i32) {
    %c0_i32 = arith.constant 0 : i32
    %c0_i32_0 = arith.constant 0 : i32
    %c0_i32_1 = arith.constant 0 : i32
    return %c0_i32, %c0_i32_0 : i32, i32
  }
  func.func @transform_10(%arg0: i32) -> (i32, i32) {
    %c0_i32 = arith.constant 0 : i32
    %c0_i32_0 = arith.constant 0 : i32
    %c0_i32_1 = arith.constant 0 : i32
    return %c0_i32, %c0_i32_0 : i32, i32
  }
  func.func @transform_11(%arg0: i32) -> (i32, i32) {
    %c0_i32 = arith.constant 0 : i32
    %c0_i32_0 = arith.constant 0 : i32
    %c0_i32_1 = arith.constant 0 : i32
    return %c0_i32, %c0_i32_0 : i32, i32
  }
  func.func @transform_12(%arg0: i32) -> (i32, i32) {
    %c0_i32 = arith.constant 0 : i32
    %c0_i32_0 = arith.constant 0 : i32
    %c0_i32_1 = arith.constant 0 : i32
    return %c0_i32, %c0_i32_0 : i32, i32
  }
  func.func @transform_13(%arg0: i32) -> (i32, i32, i32) {
    %c0_i32 = arith.constant 0 : i32
    %c0_i32_0 = arith.constant 0 : i32
    %c0_i32_1 = arith.constant 0 : i32
    return %arg0, %c0_i32, %c0_i32_0 : i32, i32, i32
  }
}

</mosaic_0001>

<llo_original>
// kernel: tpu_custom_call.1
$region0: #{tpu_custom_call.1}
  #allocation0 [shape = 'u32[]', space=smem, size = 0x4, offset = 0x4, fixed_abs, tag = 'smem constant byte address 0x4 - core index']
  #allocation1 [shape = 'u32[144,128]{1,0:T(1,128)}', space=vmem, size = 0x12000, scoped, tag = 'internal scratch']
  #allocation2 [shape = 'bf16[2,8,256]{2,1,0:T(8,128)(2,1)}', space=vmem, size = 0x2000, scoped, tag = 'scratch operand']
  %s0 = inlined_call_operand.hbm [shape: f32[4,8,256], index: 0, kind: input, shape index: {}]
  %s1 = inlined_call_operand.hbm [shape: f32[1,256], index: 1, kind: input, shape index: {}]
  %s2 = inlined_call_operand.hbm [shape: f32[1,256], index: 2, kind: input, shape index: {}]
  %s3 = inlined_call_operand.hbm [shape: bf16[256,768], index: 3, kind: input, shape index: {}]
  %s4 = inlined_call_operand.vmem [shape: f32[1,768], index: 4, kind: input, shape index: {}]
  %s5 = inlined_call_operand.hbm [shape: bf16[256,256], index: 5, kind: input, shape index: {}]
  %s6 = inlined_call_operand.vmem [shape: f32[1,256], index: 6, kind: input, shape index: {}]
  %s7 = inlined_call_operand.hbm [shape: f32[1,256], index: 7, kind: input, shape index: {}]
  %s8 = inlined_call_operand.hbm [shape: f32[1,256], index: 8, kind: input, shape index: {}]
  %s9 = inlined_call_operand.hbm [shape: bf16[256,1024], index: 9, kind: input, shape index: {}]
  %s10 = inlined_call_operand.vmem [shape: f32[1,1024], index: 10, kind: input, shape index: {}]
  %s11 = inlined_call_operand.hbm [shape: bf16[1024,256], index: 11, kind: input, shape index: {}]
  %s12 = inlined_call_operand.vmem [shape: f32[1,256], index: 12, kind: input, shape index: {}]
  %s13 = inlined_call_operand.hbm [shape: f32[4,8,256], index: 13, kind: output, shape index: {}]
  %s14 = sld [smem:[#allocation0]]
  $region121: #{tpu_custom_call.1} parent=0
    _
  %s16 = ssub.s32 1, %s14
  %s17 = scalar_select 0, %s16, %s14
  $region1: #{tpu_custom_call.1} parent=0
    #allocation3 [shape = 'u8[32768]{0}', space=vmem, size = 0x8000, scoped, tag = 'input window, operand 0']
    #allocation4 [shape = 's32[2]{0}', space=sflag, size = 0x8, scoped, tag = 'scoped memory for tpu_custom_call.1']
    #allocation5 [shape = 's32[2]{0}', space=sflag, size = 0x8, scoped, tag = 'scoped memory for tpu_custom_call.1']
    #allocation6 [shape = 'u8[1024]{0}', space=vmem, size = 0x400, scoped, tag = 'input window, operand 1, single buffered']
    #allocation7 [shape = 's32[1]{0}', space=sflag, size = 0x4, scoped, tag = 'scoped memory for tpu_custom_call.1']
    #allocation8 [shape = 'u8[1024]{0}', space=vmem, size = 0x400, scoped, tag = 'input window, operand 2, single buffered']
    #allocation9 [shape = 'u8[393216]{0}', space=vmem, size = 0x60000, scoped, tag = 'input window, operand 3, single buffered']
    #allocation10 [shape = 's32[1]{0}', space=sflag, size = 0x4, scoped, tag = 'scoped memory for tpu_custom_call.1']
    #allocation11 [shape = 'u8[131072]{0}', space=vmem, size = 0x20000, scoped, tag = 'input window, operand 5, single buffered']
    #allocation12 [shape = 'u8[1024]{0}', space=vmem, size = 0x400, scoped, tag = 'input window, operand 7, single buffered']
    #allocation13 [shape = 's32[1]{0}', space=sflag, size = 0x4, scoped, tag = 'scoped memory for tpu_custom_call.1']
    #allocation14 [shape = 'u8[1024]{0}', space=vmem, size = 0x400, scoped, tag = 'input window, operand 8, single buffered']
    #allocation15 [shape = 'u8[524288]{0}', space=vmem, size = 0x80000, scoped, tag = 'input window, operand 9, single buffered']
    #allocation16 [shape = 's32[1]{0}', space=sflag, size = 0x4, scoped, tag = 'scoped memory for tpu_custom_call.1']
    #allocation17 [shape = 'u8[524288]{0}', space=vmem, size = 0x80000, scoped, tag = 'input window, operand 11, single buffered']
    #allocation18 [shape = 'u8[32768]{0}', space=vmem, size = 0x8000, scoped, tag = 'output window, operand 0']
    %18 = vsyncpa [#allocation4], 0
    %s19 = scalar_lea.sflag [#allocation4], 1
    %20 = vsyncpa %s19, 0
    %21 = vsyncpa [#allocation7], 0
    %22 = vsyncpa [#allocation10], 0
    %23 = vsyncpa [#allocation13], 0
    %24 = vsyncpa [#allocation16], 0
    %25 = vsyncpa [#allocation5], 0
    %s26 = scalar_lea.sflag [#allocation5], 1
    %27 = vsyncpa %s26, 0
    loop: start=0, step=1, limit=4
    $region2: #{tpu_custom_call.1} parent=1 // loop_pre_header
      _
    $region3: #{tpu_custom_call.1} parent=1 // loop_header
      %s29 = sphi 0, %s33
      %p30 = scmp.ge.s32.totalorder %s29, 4
      %s39 = sphi 0, %s41
      %s42 = sphi 0, %s39
      %s43 = sphi 0, %s42
      %s59 = sphi 0, %s43
      %s63 = sphi 0, %s63
      %s65 = sphi 0, %s63
      %s66 = sphi 0, %s65
      %s80 = sphi 0, %s66
      %s84 = sphi 0, %s84
      %s86 = sphi 0, %s84
      %s87 = sphi 0, %s86
      %s101 = sphi 0, %s87
      %s105 = sphi 0, %s105
      %s107 = sphi 0, %s105
      %s108 = sphi 0, %s107
      %s122 = sphi 0, %s108
      %s126 = sphi 0, %s126
      %s128 = sphi 0, %s126
      %s129 = sphi 0, %s128
      %s143 = sphi 0, %s129
      %s147 = sphi 0, %s147
      %s149 = sphi 0, %s147
      %s150 = sphi 0, %s149
      %s164 = sphi 0, %s150
      %s168 = sphi 0, %s168
      %s170 = sphi 0, %s168
      %s171 = sphi 0, %s170
      %s185 = sphi 0, %s171
      %s189 = sphi 0, %s189
      %s191 = sphi 0, %s189
      %s192 = sphi 0, %s191
      %s206 = sphi 0, %s192
      %s210 = sphi 0, %s210
      %s212 = sphi 0, %s210
      %s213 = sphi 0, %s212
      %s227 = sphi 0, %s213
      %s231 = sphi 0, %s231
      %s233 = sphi 0, %s231
      %s234 = sphi 0, %s233
      %s248 = sphi 0, %s234
      %s252 = sphi 0, %s252
      %s254 = sphi 0, %s252
      %s255 = sphi 0, %s254
      %s269 = sphi 0, %s255
      %s273 = sphi 0, %s273
      %s275 = sphi 0, %s273
      %s276 = sphi 0, %s275
      %s290 = sphi 0, %s276
      %s294 = sphi 0, %s294
      %s296 = sphi 0, %s294
      %s297 = sphi 0, %s296
      %s311 = sphi 0, %s297
      %s317 = sphi 0, %s319
      %s320 = sphi 0, %s317
      %s321 = sphi 0, %s320
      %s337 = sphi 0, %s321
    $region4: #{tpu_custom_call.1} parent=1 // loop_header_branch
      %32 = sbr.rel (%p30) target = $region8
    $region5: #{tpu_custom_call.1} parent=1 // loop_body
      %s34 = ssub.s32 %s29, 1
      %s35 = ssub.s32 %s29, 2
      %s36 = sadd.s32 %s29, 1
      %s37 = ssub.s32 %s29, %s36
      %p38 = scmp.eq.s32.totalorder %s37, 0
      %s40 = sadd.s32 %s39, 1
      %s41 = scalar_select %p38, %s39, %s40
      %p44 = pneg %p38
      %p45 = scmp.eq.s32.totalorder %s29, 1
      %p46 = por %p44, %p45
      %p47 = scmp.ne.s32.totalorder %s39, %s42
      %p48 = scmp.eq.s32.totalorder %s29, 0
      %p49 = por %p47, %p48
      %p50 = scmp.ne.s32.totalorder %s39, %s42
      %p51 = scmp.eq.s32.totalorder %s34, 1
      %p52 = por %p50, %p51
      %p53 = scmp.ne.s32.totalorder %s42, %s43
      %p54 = scmp.eq.s32.totalorder %s34, 0
      %p55 = por %p53, %p54
      %p56 = scmp.ne.s32.totalorder %s42, %s43
      %p57 = scmp.eq.s32.totalorder %s35, 1
      %p58 = por %p56, %p57
      %p60 = scmp.ne.s32.totalorder %s43, %s59
      %p61 = scmp.eq.s32.totalorder %s35, 0
      %p62 = por %p60, %p61
      %s64 = sadd.s32 %s63, 1
      %p67 = scmp.eq.s32.totalorder %s29, 1
      %p68 = scmp.ne.s32.totalorder %s63, %s65
      %p69 = scmp.eq.s32.totalorder %s29, 0
      %p70 = por %p68, %p69
      %p71 = scmp.ne.s32.totalorder %s63, %s65
      %p72 = scmp.eq.s32.totalorder %s34, 1
      %p73 = por %p71, %p72
      %p74 = scmp.ne.s32.totalorder %s65, %s66
      %p75 = scmp.eq.s32.totalorder %s34, 0
      %p76 = por %p74, %p75
      %p77 = scmp.ne.s32.totalorder %s65, %s66
      %p78 = scmp.eq.s32.totalorder %s35, 1
      %p79 = por %p77, %p78
      %p81 = scmp.ne.s32.totalorder %s66, %s80
      %p82 = scmp.eq.s32.totalorder %s35, 0
      %p83 = por %p81, %p82
      %s85 = sadd.s32 %s84, 1
      %p88 = scmp.eq.s32.totalorder %s29, 1
      %p89 = scmp.ne.s32.totalorder %s84, %s86
      %p90 = scmp.eq.s32.totalorder %s29, 0
      %p91 = por %p89, %p90
      %p92 = scmp.ne.s32.totalorder %s84, %s86
      %p93 = scmp.eq.s32.totalorder %s34, 1
      %p94 = por %p92, %p93
      %p95 = scmp.ne.s32.totalorder %s86, %s87
      %p96 = scmp.eq.s32.totalorder %s34, 0
      %p97 = por %p95, %p96
      %p98 = scmp.ne.s32.totalorder %s86, %s87
      %p99 = scmp.eq.s32.totalorder %s35, 1
      %p100 = por %p98, %p99
      %p102 = scmp.ne.s32.totalorder %s87, %s101
      %p103 = scmp.eq.s32.totalorder %s35, 0
      %p104 = por %p102, %p103
      %s106 = sadd.s32 %s105, 1
      %p109 = scmp.eq.s32.totalorder %s29, 1
      %p110 = scmp.ne.s32.totalorder %s105, %s107
      %p111 = scmp.eq.s32.totalorder %s29, 0
      %p112 = por %p110, %p111
      %p113 = scmp.ne.s32.totalorder %s105, %s107
      %p114 = scmp.eq.s32.totalorder %s34, 1
      %p115 = por %p113, %p114
      %p116 = scmp.ne.s32.totalorder %s107, %s108
      %p117 = scmp.eq.s32.totalorder %s34, 0
      %p118 = por %p116, %p117
      %p119 = scmp.ne.s32.totalorder %s107, %s108
      %p120 = scmp.eq.s32.totalorder %s35, 1
      %p121 = por %p119, %p120
      %p123 = scmp.ne.s32.totalorder %s108, %s122
      %p124 = scmp.eq.s32.totalorder %s35, 0
      %p125 = por %p123, %p124
      %s127 = sadd.s32 %s126, 1
      %p130 = scmp.eq.s32.totalorder %s29, 1
      %p131 = scmp.ne.s32.totalorder %s126, %s128
      %p132 = scmp.eq.s32.totalorder %s29, 0
      %p133 = por %p131, %p132
      %p134 = scmp.ne.s32.totalorder %s126, %s128
      %p135 = scmp.eq.s32.totalorder %s34, 1
      %p136 = por %p134, %p135
      %p137 = scmp.ne.s32.totalorder %s128, %s129
      %p138 = scmp.eq.s32.totalorder %s34, 0
      %p139 = por %p137, %p138
      %p140 = scmp.ne.s32.totalorder %s128, %s129
      %p141 = scmp.eq.s32.totalorder %s35, 1
      %p142 = por %p140, %p141
      %p144 = scmp.ne.s32.totalorder %s129, %s143
      %p145 = scmp.eq.s32.totalorder %s35, 0
      %p146 = por %p144, %p145
      %s148 = sadd.s32 %s147, 1
      %p151 = scmp.eq.s32.totalorder %s29, 1
      %p152 = scmp.ne.s32.totalorder %s147, %s149
      %p153 = scmp.eq.s32.totalorder %s29, 0
      %p154 = por %p152, %p153
      %p155 = scmp.ne.s32.totalorder %s147, %s149
      %p156 = scmp.eq.s32.totalorder %s34, 1
      %p157 = por %p155, %p156
      %p158 = scmp.ne.s32.totalorder %s149, %s150
      %p159 = scmp.eq.s32.totalorder %s34, 0
      %p160 = por %p158, %p159
      %p161 = scmp.ne.s32.totalorder %s149, %s150
      %p162 = scmp.eq.s32.totalorder %s35, 1
      %p163 = por %p161, %p162
      %p165 = scmp.ne.s32.totalorder %s150, %s164
      %p166 = scmp.eq.s32.totalorder %s35, 0
      %p167 = por %p165, %p166
      %s169 = sadd.s32 %s168, 1
      %p172 = scmp.eq.s32.totalorder %s29, 1
      %p173 = scmp.ne.s32.totalorder %s168, %s170
      %p174 = scmp.eq.s32.totalorder %s29, 0
      %p175 = por %p173, %p174
      %p176 = scmp.ne.s32.totalorder %s168, %s170
      %p177 = scmp.eq.s32.totalorder %s34, 1
      %p178 = por %p176, %p177
      %p179 = scmp.ne.s32.totalorder %s170, %s171
      %p180 = scmp.eq.s32.totalorder %s34, 0
      %p181 = por %p179, %p180
      %p182 = scmp.ne.s32.totalorder %s170, %s171
      %p183 = scmp.eq.s32.totalorder %s35, 1
      %p184 = por %p182, %p183
      %p186 = scmp.ne.s32.totalorder %s171, %s185
      %p187 = scmp.eq.s32.totalorder %s35, 0
      %p188 = por %p186, %p187
      %s190 = sadd.s32 %s189, 1
      %p193 = scmp.eq.s32.totalorder %s29, 1
      %p194 = scmp.ne.s32.totalorder %s189, %s191
      %p195 = scmp.eq.s32.totalorder %s29, 0
      %p196 = por %p194, %p195
      %p197 = scmp.ne.s32.totalorder %s189, %s191
      %p198 = scmp.eq.s32.totalorder %s34, 1
      %p199 = por %p197, %p198
      %p200 = scmp.ne.s32.totalorder %s191, %s192
      %p201 = scmp.eq.s32.totalorder %s34, 0
      %p202 = por %p200, %p201
      %p203 = scmp.ne.s32.totalorder %s191, %s192
      %p204 = scmp.eq.s32.totalorder %s35, 1
      %p205 = por %p203, %p204
      %p207 = scmp.ne.s32.totalorder %s192, %s206
      %p208 = scmp.eq.s32.totalorder %s35, 0
      %p209 = por %p207, %p208
      %s211 = sadd.s32 %s210, 1
      %p214 = scmp.eq.s32.totalorder %s29, 1
      %p215 = scmp.ne.s32.totalorder %s210, %s212
      %p216 = scmp.eq.s32.totalorder %s29, 0
      %p217 = por %p215, %p216
      %p218 = scmp.ne.s32.totalorder %s210, %s212
      %p219 = scmp.eq.s32.totalorder %s34, 1
      %p220 = por %p218, %p219
      %p221 = scmp.ne.s32.totalorder %s212, %s213
      %p222 = scmp.eq.s32.totalorder %s34, 0
      %p223 = por %p221, %p222
      %p224 = scmp.ne.s32.totalorder %s212, %s213
      %p225 = scmp.eq.s32.totalorder %s35, 1
      %p226 = por %p224, %p225
      %p228 = scmp.ne.s32.totalorder %s213, %s227
      %p229 = scmp.eq.s32.totalorder %s35, 0
      %p230 = por %p228, %p229
      %s232 = sadd.s32 %s231, 1
      %p235 = scmp.eq.s32.totalorder %s29, 1
      %p236 = scmp.ne.s32.totalorder %s231, %s233
      %p237 = scmp.eq.s32.totalorder %s29, 0
      %p238 = por %p236, %p237
      %p239 = scmp.ne.s32.totalorder %s231, %s233
      %p240 = scmp.eq.s32.totalorder %s34, 1
      %p241 = por %p239, %p240
      %p242 = scmp.ne.s32.totalorder %s233, %s234
      %p243 = scmp.eq.s32.totalorder %s34, 0
      %p244 = por %p242, %p243
      %p245 = scmp.ne.s32.totalorder %s233, %s234
      %p246 = scmp.eq.s32.totalorder %s35, 1
      %p247 = por %p245, %p246
      %p249 = scmp.ne.s32.totalorder %s234, %s248
      %p250 = scmp.eq.s32.totalorder %s35, 0
      %p251 = por %p249, %p250
      %s253 = sadd.s32 %s252, 1
      %p256 = scmp.eq.s32.totalorder %s29, 1
      %p257 = scmp.ne.s32.totalorder %s252, %s254
      %p258 = scmp.eq.s32.totalorder %s29, 0
      %p259 = por %p257, %p258
      %p260 = scmp.ne.s32.totalorder %s252, %s254
      %p261 = scmp.eq.s32.totalorder %s34, 1
      %p262 = por %p260, %p261
      %p263 = scmp.ne.s32.totalorder %s254, %s255
      %p264 = scmp.eq.s32.totalorder %s34, 0
      %p265 = por %p263, %p264
      %p266 = scmp.ne.s32.totalorder %s254, %s255
      %p267 = scmp.eq.s32.totalorder %s35, 1
      %p268 = por %p266, %p267
      %p270 = scmp.ne.s32.totalorder %s255, %s269
      %p271 = scmp.eq.s32.totalorder %s35, 0
      %p272 = por %p270, %p271
      %s274 = sadd.s32 %s273, 1
      %p277 = scmp.eq.s32.totalorder %s29, 1
      %p278 = scmp.ne.s32.totalorder %s273, %s275
      %p279 = scmp.eq.s32.totalorder %s29, 0
      %p280 = por %p278, %p279
      %p281 = scmp.ne.s32.totalorder %s273, %s275
      %p282 = scmp.eq.s32.totalorder %s34, 1
      %p283 = por %p281, %p282
      %p284 = scmp.ne.s32.totalorder %s275, %s276
      %p285 = scmp.eq.s32.totalorder %s34, 0
      %p286 = por %p284, %p285
      %p287 = scmp.ne.s32.totalorder %s275, %s276
      %p288 = scmp.eq.s32.totalorder %s35, 1
      %p289 = por %p287, %p288
      %p291 = scmp.ne.s32.totalorder %s276, %s290
      %p292 = scmp.eq.s32.totalorder %s35, 0
      %p293 = por %p291, %p292
      %s295 = sadd.s32 %s294, 1
      %p298 = scmp.eq.s32.totalorder %s29, 1
      %p299 = scmp.ne.s32.totalorder %s294, %s296
      %p300 = scmp.eq.s32.totalorder %s29, 0
      %p301 = por %p299, %p300
      %p302 = scmp.ne.s32.totalorder %s294, %s296
      %p303 = scmp.eq.s32.totalorder %s34, 1
      %p304 = por %p302, %p303
      %p305 = scmp.ne.s32.totalorder %s296, %s297
      %p306 = scmp.eq.s32.totalorder %s34, 0
      %p307 = por %p305, %p306
      %p308 = scmp.ne.s32.totalorder %s296, %s297
      %p309 = scmp.eq.s32.totalorder %s35, 1
      %p310 = por %p308, %p309
      %p312 = scmp.ne.s32.totalorder %s297, %s311
      %p313 = scmp.eq.s32.totalorder %s35, 0
      %p314 = por %p312, %p313
      %s315 = ssub.s32 %s29, %s36
      %p316 = scmp.eq.s32.totalorder %s315, 0
      %s318 = sadd.s32 %s317, 1
      %s319 = scalar_select %p316, %s317, %s318
      %p322 = pneg %p316
      %p323 = scmp.eq.s32.totalorder %s29, 1
      %p324 = por %p322, %p323
      %p325 = scmp.ne.s32.totalorder %s317, %s320
      %p326 = scmp.eq.s32.totalorder %s29, 0
      %p327 = por %p325, %p326
      %p328 = scmp.ne.s32.totalorder %s317, %s320
      %p329 = scmp.eq.s32.totalorder %s34, 1
      %p330 = por %p328, %p329
      %p331 = scmp.ne.s32.totalorder %s320, %s321
      %p332 = scmp.eq.s32.totalorder %s34, 0
      %p333 = por %p331, %p332
      %p334 = scmp.ne.s32.totalorder %s320, %s321
      %p335 = scmp.eq.s32.totalorder %s35, 1
      %p336 = por %p334, %p335
      %p338 = scmp.ne.s32.totalorder %s321, %s337
      %p339 = scmp.eq.s32.totalorder %s35, 0
      %p340 = por %p338, %p339
      %p341 = scmp.le.s32.totalorder 1, %s29
      %p342 = scmp.lt.s32.totalorder %s29, 3
      %p343 = pnand %p341, %p342
      %p344 = pneg %p343
      // Predicated region
      $region9: #{tpu_custom_call.1} parent=5 // pred_check
        _
      $region10: #{tpu_custom_call.1} parent=5 // pred_check_branch
        %346 = sbr.rel (%p343) target = $region12
      $region11: #{tpu_custom_call.1} parent=5 // pred_region
        %s347 = ssub.s32 %s29, 1
        // Predicated region
        $region13: #{tpu_custom_call.1} parent=11 // pred_check
          %p348 = pneg %p76
        $region14: #{tpu_custom_call.1} parent=11 // pred_check_branch
          %350 = sbr.rel (%p348) target = $region16
        $region15: #{tpu_custom_call.1} parent=11 // pred_region
          %s352 = ssub.s32 32, 32
          %353 = vsyncadd [#allocation7], %s352
          %s355 = sshll.u32 [#allocation6], 4
          %s356 = int_to_ptr.vmem [resolvable:$true] %s355
          %358 = dma.hbm_to_vmem [thread:$0]  %s1, 32, %s356, [#allocation7]
        $region16: #{tpu_custom_call.1} parent=11 // pred_fallthru
          _
        // Predicated region
        $region17: #{tpu_custom_call.1} parent=11 // pred_check
          %p359 = pneg %p97
        $region18: #{tpu_custom_call.1} parent=11 // pred_check_branch
          %361 = sbr.rel (%p359) target = $region20
        $region19: #{tpu_custom_call.1} parent=11 // pred_region
          %s363 = ssub.s32 32, 32
          %364 = vsyncadd [#allocation7], %s363
          %s366 = sshll.u32 [#allocation8], 4
          %s367 = int_to_ptr.vmem [resolvable:$true] %s366
          %369 = dma.hbm_to_vmem [thread:$0]  %s2, 32, %s367, [#allocation7]
        $region20: #{tpu_custom_call.1} parent=11 // pred_fallthru
          _
        // Predicated region
        $region21: #{tpu_custom_call.1} parent=11 // pred_check
          %p370 = pneg %p118
        $region22: #{tpu_custom_call.1} parent=11 // pred_check_branch
          %372 = sbr.rel (%p370) target = $region24
        $region23: #{tpu_custom_call.1} parent=11 // pred_region
          %s374 = ssub.s32 12288, 12288
          %375 = vsyncadd [#allocation10], %s374
          %s376 = sshll.u32 [#allocation9], 4
          %s377 = int_to_ptr.vmem [resolvable:$true] %s376
          %382 = dma.hbm_to_vmem [thread:$0]  %s3, 12288, %s377, [#allocation10], 384, 384, 24
        $region24: #{tpu_custom_call.1} parent=11 // pred_fallthru
          _
        // Predicated region
        $region25: #{tpu_custom_call.1} parent=11 // pred_check
          %p383 = pneg %p139
        $region26: #{tpu_custom_call.1} parent=11 // pred_check_branch
          %385 = sbr.rel (%p383) target = $region28
        $region27: #{tpu_custom_call.1} parent=11 // pred_region
          _
        $region28: #{tpu_custom_call.1} parent=11 // pred_fallthru
          _
        // Predicated region
        $region29: #{tpu_custom_call.1} parent=11 // pred_check
          %p386 = pneg %p160
        $region30: #{tpu_custom_call.1} parent=11 // pred_check_branch
          %388 = sbr.rel (%p386) target = $region32
        $region31: #{tpu_custom_call.1} parent=11 // pred_region
          %s390 = ssub.s32 4096, 4096
          %391 = vsyncadd [#allocation10], %s390
          %s392 = sshll.u32 [#allocation11], 4
          %s393 = int_to_ptr.vmem [resolvable:$true] %s392
          %398 = dma.hbm_to_vmem [thread:$0]  %s5, 4096, %s393, [#allocation10], 128, 128, 8
        $region32: #{tpu_custom_call.1} parent=11 // pred_fallthru
          _
        // Predicated region
        $region33: #{tpu_custom_call.1} parent=11 // pred_check
          %p399 = pneg %p181
        $region34: #{tpu_custom_call.1} parent=11 // pred_check_branch
          %401 = sbr.rel (%p399) target = $region36
        $region35: #{tpu_custom_call.1} parent=11 // pred_region
          _
        $region36: #{tpu_custom_call.1} parent=11 // pred_fallthru
          _
        // Predicated region
        $region37: #{tpu_custom_call.1} parent=11 // pred_check
          %p402 = pneg %p202
        $region38: #{tpu_custom_call.1} parent=11 // pred_check_branch
          %404 = sbr.rel (%p402) target = $region40
        $region39: #{tpu_custom_call.1} parent=11 // pred_region
          %s406 = ssub.s32 32, 32
          %407 = vsyncadd [#allocation13], %s406
          %s409 = sshll.u32 [#allocation12], 4
          %s410 = int_to_ptr.vmem [resolvable:$true] %s409
          %412 = dma.hbm_to_vmem [thread:$0]  %s7, 32, %s410, [#allocation13]
        $region40: #{tpu_custom_call.1} parent=11 // pred_fallthru
          _
        // Predicated region
        $region41: #{tpu_custom_call.1} parent=11 // pred_check
          %p413 = pneg %p223
        $region42: #{tpu_custom_call.1} parent=11 // pred_check_branch
          %415 = sbr.rel (%p413) target = $region44
        $region43: #{tpu_custom_call.1} parent=11 // pred_region
          %s417 = ssub.s32 32, 32
          %418 = vsyncadd [#allocation13], %s417
          %s420 = sshll.u32 [#allocation14], 4
          %s421 = int_to_ptr.vmem [resolvable:$true] %s420
          %423 = dma.hbm_to_vmem [thread:$0]  %s8, 32, %s421, [#allocation13]
        $region44: #{tpu_custom_call.1} parent=11 // pred_fallthru
          _
        // Predicated region
        $region45: #{tpu_custom_call.1} parent=11 // pred_check
          %p424 = pneg %p244
        $region46: #{tpu_custom_call.1} parent=11 // pred_check_branch
          %426 = sbr.rel (%p424) target = $region48
        $region47: #{tpu_custom_call.1} parent=11 // pred_region
          %s428 = ssub.s32 16384, 16384
          %429 = vsyncadd [#allocation16], %s428
          %s430 = sshll.u32 [#allocation15], 4
          %s431 = int_to_ptr.vmem [resolvable:$true] %s430
          %436 = dma.hbm_to_vmem [thread:$0]  %s9, 16384, %s431, [#allocation16], 512, 512, 32
        $region48: #{tpu_custom_call.1} parent=11 // pred_fallthru
          _
        // Predicated region
        $region49: #{tpu_custom_call.1} parent=11 // pred_check
          %p437 = pneg %p265
        $region50: #{tpu_custom_call.1} parent=11 // pred_check_branch
          %439 = sbr.rel (%p437) target = $region52
        $region51: #{tpu_custom_call.1} parent=11 // pred_region
          _
        $region52: #{tpu_custom_call.1} parent=11 // pred_fallthru
          _
        // Predicated region
        $region53: #{tpu_custom_call.1} parent=11 // pred_check
          %p440 = pneg %p286
        $region54: #{tpu_custom_call.1} parent=11 // pred_check_branch
          %442 = sbr.rel (%p440) target = $region56
        $region55: #{tpu_custom_call.1} parent=11 // pred_region
          %s444 = ssub.s32 16384, 16384
          %445 = vsyncadd [#allocation16], %s444
          %s446 = sshll.u32 [#allocation17], 4
          %s447 = int_to_ptr.vmem [resolvable:$true] %s446
          %452 = dma.hbm_to_vmem [thread:$0]  %s11, 16384, %s447, [#allocation16], 128, 128, 8
        $region56: #{tpu_custom_call.1} parent=11 // pred_fallthru
          _
        // Predicated region
        $region57: #{tpu_custom_call.1} parent=11 // pred_check
          %p453 = pneg %p307
        $region58: #{tpu_custom_call.1} parent=11 // pred_check_branch
          %455 = sbr.rel (%p453) target = $region60
        $region59: #{tpu_custom_call.1} parent=11 // pred_region
          _
        $region60: #{tpu_custom_call.1} parent=11 // pred_fallthru
          _
      $region12: #{tpu_custom_call.1} parent=5 // pred_fallthru
        _
      %p456 = scmp.lt.s32.totalorder %s29, 2
      // Predicated region
      $region61: #{tpu_custom_call.1} parent=5 // pred_check
        %p457 = pneg %p456
      $region62: #{tpu_custom_call.1} parent=5 // pred_check_branch
        %459 = sbr.rel (%p457) target = $region64
      $region63: #{tpu_custom_call.1} parent=5 // pred_region
        // Predicated region
        $region65: #{tpu_custom_call.1} parent=63 // pred_check
          %p460 = pneg %p49
        $region66: #{tpu_custom_call.1} parent=63 // pred_check_branch
          %462 = sbr.rel (%p460) target = $region68
        $region67: #{tpu_custom_call.1} parent=63 // pred_region
          %s463 = sand.u32 %s39, 1
          %s464 = scalar_lea.sflag [#allocation4], %s463
          %s465 = sand.u32 %s39, 1
          %s466 = smul.addr %s465, 32
          %s467 = scalar_lea.vmem [#allocation3], %s466
          %s468 = smul.u32 2, %s29
          %s470 = ssub.s32 512, 512
          %471 = vsyncadd %s464, %s470
          %s472 = smul.addr %s468, 2
          %s473 = smul.addr %s472, 128
          %s474 = scalar_lea.hbm %s0, %s473
          %s475 = sshll.u32 %s467, 4
          %s476 = int_to_ptr.vmem [resolvable:$true] %s475
          %481 = dma.hbm_to_vmem [thread:$0]  %s474, 512, %s476, %s464, 256, 256, 16
        $region68: #{tpu_custom_call.1} parent=63 // pred_fallthru
          _
      $region64: #{tpu_custom_call.1} parent=5 // pred_fallthru
        _
      %p482 = scmp.le.s32.totalorder 1, %s29
      %p483 = scmp.lt.s32.totalorder %s29, 3
      %p484 = pnand %p482, %p483
      %p485 = pneg %p484
      // Predicated region
      $region69: #{tpu_custom_call.1} parent=5 // pred_check
        _
      $region70: #{tpu_custom_call.1} parent=5 // pred_check_branch
        %487 = sbr.rel (%p484) target = $region72
      $region71: #{tpu_custom_call.1} parent=5 // pred_region
        %s488 = ssub.s32 %s29, 1
        %s489 = sand.u32 %s42, 1
        %s490 = scalar_lea.sflag [#allocation4], %s489
        %s491 = sand.u32 %s42, 1
        %s492 = smul.addr %s491, 32
        %s493 = scalar_lea.vmem [#allocation3], %s492
        // Predicated region
        $region73: #{tpu_custom_call.1} parent=71 // pred_check
          %p494 = pneg %p55
        $region74: #{tpu_custom_call.1} parent=71 // pred_check_branch
          %496 = sbr.rel (%p494) target = $region76
        $region75: #{tpu_custom_call.1} parent=71 // pred_region
          %497 = dma.done %s490, 512
        $region76: #{tpu_custom_call.1} parent=71 // pred_fallthru
          _
        // Predicated region
        $region77: #{tpu_custom_call.1} parent=71 // pred_check
          %p498 = pneg %p76
        $region78: #{tpu_custom_call.1} parent=71 // pred_check_branch
          %500 = sbr.rel (%p498) target = $region80
        $region79: #{tpu_custom_call.1} parent=71 // pred_region
          %501 = dma.done [#allocation7], 32
        $region80: #{tpu_custom_call.1} parent=71 // pred_fallthru
          _
        // Predicated region
        $region81: #{tpu_custom_call.1} parent=71 // pred_check
          %p502 = pneg %p97
        $region82: #{tpu_custom_call.1} parent=71 // pred_check_branch
          %504 = sbr.rel (%p502) target = $region84
        $region83: #{tpu_custom_call.1} parent=71 // pred_region
          %505 = dma.done [#allocation7], 32
        $region84: #{tpu_custom_call.1} parent=71 // pred_fallthru
          _
        // Predicated region
        $region85: #{tpu_custom_call.1} parent=71 // pred_check
          %p506 = pneg %p118
        $region86: #{tpu_custom_call.1} parent=71 // pred_check_branch
          %508 = sbr.rel (%p506) target = $region88
        $region87: #{tpu_custom_call.1} parent=71 // pred_region
          %509 = dma.done [#allocation10], 12288
        $region88: #{tpu_custom_call.1} parent=71 // pred_fallthru
          _
        // Predicated region
        $region89: #{tpu_custom_call.1} parent=71 // pred_check
          %p510 = pneg %p160
        $region90: #{tpu_custom_call.1} parent=71 // pred_check_branch
          %512 = sbr.rel (%p510) target = $region92
        $region91: #{tpu_custom_call.1} parent=71 // pred_region
          %513 = dma.done [#allocation10], 4096
        $region92: #{tpu_custom_call.1} parent=71 // pred_fallthru
          _
        // Predicated region
        $region93: #{tpu_custom_call.1} parent=71 // pred_check
          %p514 = pneg %p202
        $region94: #{tpu_custom_call.1} parent=71 // pred_check_branch
          %516 = sbr.rel (%p514) target = $region96
        $region95: #{tpu_custom_call.1} parent=71 // pred_region
          %517 = dma.done [#allocation13], 32
        $region96: #{tpu_custom_call.1} parent=71 // pred_fallthru
          _
        // Predicated region
        $region97: #{tpu_custom_call.1} parent=71 // pred_check
          %p518 = pneg %p223
        $region98: #{tpu_custom_call.1} parent=71 // pred_check_branch
          %520 = sbr.rel (%p518) target = $region100
        $region99: #{tpu_custom_call.1} parent=71 // pred_region
          %521 = dma.done [#allocation13], 32
        $region100: #{tpu_custom_call.1} parent=71 // pred_fallthru
          _
        // Predicated region
        $region101: #{tpu_custom_call.1} parent=71 // pred_check
          %p522 = pneg %p244
        $region102: #{tpu_custom_call.1} parent=71 // pred_check_branch
          %524 = sbr.rel (%p522) target = $region104
        $region103: #{tpu_custom_call.1} parent=71 // pred_region
          %525 = dma.done [#allocation16], 16384
        $region104: #{tpu_custom_call.1} parent=71 // pred_fallthru
          _
        // Predicated region
        $region105: #{tpu_custom_call.1} parent=71 // pred_check
          %p526 = pneg %p286
        $region106: #{tpu_custom_call.1} parent=71 // pred_check_branch
          %528 = sbr.rel (%p526) target = $region108
        $region107: #{tpu_custom_call.1} parent=71 // pred_region
          %529 = dma.done [#allocation16], 16384
        $region108: #{tpu_custom_call.1} parent=71 // pred_fallthru
          _
        %s530 = sand.u32 %s42, 1
        %s531 = scalar_lea.sflag [#allocation4], %s530
        %s532 = sand.u32 %s42, 1
        %s533 = smul.addr %s532, 32
        %s534 = scalar_lea.vmem [#allocation3], %s533
        %p535 = pneg %p55
        %p536 = pneg %p52
        %p537 = pneg %p76
        %p538 = pneg %p73
        %p539 = pneg %p97
        %p540 = pneg %p94
        %p541 = pneg %p118
        %p542 = pneg %p115
        %p543 = pneg %p139
        %p544 = pneg %p136
        %p545 = pneg %p160
        %p546 = pneg %p157
        %p547 = pneg %p181
        %p548 = pneg %p178
        %p549 = pneg %p202
        %p550 = pneg %p199
        %p551 = pneg %p223
        %p552 = pneg %p220
        %p553 = pneg %p244
        %p554 = pneg %p241
        %p555 = pneg %p265
        %p556 = pneg %p262
        %p557 = pneg %p286
        %p558 = pneg %p283
        %p559 = pneg %p307
        %p560 = pneg %p304
        %p561 = pneg %p333
        %p562 = pneg %p330
        %s563 = sand.u32 %s320, 1
        %s564 = scalar_lea.sflag [#allocation5], %s563
        %s565 = sand.u32 %s320, 1
        %s566 = smul.addr %s565, 32
        %s567 = scalar_lea.vmem [#allocation18], %s566
        %s568 = smul.u32 2, %s34
        %s569 = smul.u32 2, %s34
        %v571 = vld [vmem:[%s493] sm:$0xff]
        %v572 = vld [vmem:[%s493 + $0x8] sm:$0xff]
        %v573 = vld [vmem:[%s493 + $0x10] sm:$0xff]
        %v574 = vld [vmem:[%s493 + $0x18] sm:$0xff]
        %v575 = vld [vmem:[#allocation6] sm:$0x3]
        %v576 = vld [vmem:[#allocation8] sm:$0x3]
        %v577 = vadd.f32 %v571, %v572
        %578 = vadd.xlane.f32.xlu0 %v577
        %v579 = vpop.xlane.xlu0 %578
        %v580 = vadd.f32 %v573, %v574
        %581 = vadd.xlane.f32.xlu0 %v580
        %v582 = vpop.xlane.xlu0 %581
        %v583 = vrcp.pop 256.0
        %v584 = vmul.f32 %v579, %v583
        %v585 = vmul.f32 %v582, %v583
        %v586 = vsub.f32 %v571, %v584
        %v587 = vsub.f32 %v572, %v584
        %v588 = vsub.f32 %v573, %v585
        %v589 = vsub.f32 %v574, %v585
        %v590 = vmul.f32 %v586, %v586
        %v591 = vmul.f32 %v587, %v587
        %v592 = vmul.f32 %v588, %v588
        %v593 = vmul.f32 %v589, %v589
        %v594 = vadd.f32 %v590, %v591
        %595 = vadd.xlane.f32.xlu0 %v594
        %v596 = vpop.xlane.xlu0 %595
        %v597 = vadd.f32 %v592, %v593
        %598 = vadd.xlane.f32.xlu0 %v597
        %v599 = vpop.xlane.xlu0 %598
        %v600 = vmul.f32 %v596, %v583
        %v601 = vmul.f32 %v599, %v583
        %v602 = vadd.f32 %v600, 1e-05
        %v603 = vadd.f32 %v601, 1e-05
        %v604 = vrsqrt.pop %v602
        %v605 = vrsqrt.pop %v603
        %v606 = vmul.f32 %v586, %v604
        %v607 = vmul.f32 %v587, %v604
        %v608 = vmul.f32 %v588, %v605
        %v609 = vmul.f32 %v589, %v605
        %v611 = vlaneseq
        %v612 = vshrl.u32 %v611, 7
        %v613 = vsub.s32 0, %v612
        %v614 = vrot.slane %v575, %v613
        %v615 = vlaneseq
        %v616 = vshrl.u32 %v615, 7
        %v617 = vsub.s32 1, %v616
        %v618 = vrot.slane %v575, %v617
        %v621 = vmul.f32 %v606, %v614
        %v622 = vmul.f32 %v607, %v618
        %v623 = vmul.f32 %v608, %v614
        %v624 = vmul.f32 %v609, %v618
        %v626 = vlaneseq
        %v627 = vshrl.u32 %v626, 7
        %v628 = vsub.s32 0, %v627
        %v629 = vrot.slane %v576, %v628
        %v630 = vlaneseq
        %v631 = vshrl.u32 %v630, 7
        %v632 = vsub.s32 1, %v631
        %v633 = vrot.slane %v576, %v632
        %v636 = vadd.f32 %v621, %v629
        %v637 = vadd.f32 %v622, %v633
        %v638 = vadd.f32 %v623, %v629
        %v639 = vadd.f32 %v624, %v633
        %v640 = vpack.c.bf16 %v638, %v636
        %v641 = vpack.c.bf16 %v639, %v637
        %v642 = vld [vmem:[#allocation9] sm:$0xff]
        %v643 = vld [vmem:[#allocation9 + $0x8] sm:$0xff]
        %v644 = vld [vmem:[#allocation9 + $0x10] sm:$0xff]
        %v645 = vld [vmem:[#allocation9 + $0x18] sm:$0xff]
        %v646 = vld [vmem:[#allocation9 + $0x20] sm:$0xff]
        %v647 = vld [vmem:[#allocation9 + $0x28] sm:$0xff]
        %v648 = vld [vmem:[#allocation9 + $0x30] sm:$0xff]
        %v649 = vld [vmem:[#allocation9 + $0x38] sm:$0xff]
        %v650 = vld [vmem:[#allocation9 + $0x40] sm:$0xff]
        %v651 = vld [vmem:[#allocation9 + $0x48] sm:$0xff]
        %v652 = vld [vmem:[#allocation9 + $0x50] sm:$0xff]
        %v653 = vld [vmem:[#allocation9 + $0x58] sm:$0xff]
        %v654 = vld [vmem:[#allocation9 + $0x60] sm:$0xff]
        %v655 = vld [vmem:[#allocation9 + $0x68] sm:$0xff]
        %v656 = vld [vmem:[#allocation9 + $0x70] sm:$0xff]
        %v657 = vld [vmem:[#allocation9 + $0x78] sm:$0xff]
        %v658 = vld [vmem:[#allocation9 + $0x80] sm:$0xff]
        %v659 = vld [vmem:[#allocation9 + $0x88] sm:$0xff]
        %v660 = vld [vmem:[#allocation9 + $0x90] sm:$0xff]
        %v661 = vld [vmem:[#allocation9 + $0x98] sm:$0xff]
        %v662 = vld [vmem:[#allocation9 + $0xa0] sm:$0xff]
        %v663 = vld [vmem:[#allocation9 + $0xa8] sm:$0xff]
        %v664 = vld [vmem:[#allocation9 + $0xb0] sm:$0xff]
        %v665 = vld [vmem:[#allocation9 + $0xb8] sm:$0xff]
        %v666 = vld [vmem:[#allocation9 + $0xc0] sm:$0xff]
        %v667 = vld [vmem:[#allocation9 + $0xc8] sm:$0xff]
        %v668 = vld [vmem:[#allocation9 + $0xd0] sm:$0xff]
        %v669 = vld [vmem:[#allocation9 + $0xd8] sm:$0xff]
        %v670 = vld [vmem:[#allocation9 + $0xe0] sm:$0xff]
        %v671 = vld [vmem:[#allocation9 + $0xe8] sm:$0xff]
        %v672 = vld [vmem:[#allocation9 + $0xf0] sm:$0xff]
        %v673 = vld [vmem:[#allocation9 + $0xf8] sm:$0xff]
        %v674 = vld [vmem:[#allocation9 + $0x100] sm:$0xff]
        %v675 = vld [vmem:[#allocation9 + $0x108] sm:$0xff]
        %v676 = vld [vmem:[#allocation9 + $0x110] sm:$0xff]
        %v677 = vld [vmem:[#allocation9 + $0x118] sm:$0xff]
        %v678 = vld [vmem:[#allocation9 + $0x120] sm:$0xff]
        %v679 = vld [vmem:[#allocation9 + $0x128] sm:$0xff]
        %v680 = vld [vmem:[#allocation9 + $0x130] sm:$0xff]
        %v681 = vld [vmem:[#allocation9 + $0x138] sm:$0xff]
        %v682 = vld [vmem:[#allocation9 + $0x140] sm:$0xff]
        %v683 = vld [vmem:[#allocation9 + $0x148] sm:$0xff]
        %v684 = vld [vmem:[#allocation9 + $0x150] sm:$0xff]
        %v685 = vld [vmem:[#allocation9 + $0x158] sm:$0xff]
        %v686 = vld [vmem:[#allocation9 + $0x160] sm:$0xff]
        %v687 = vld [vmem:[#allocation9 + $0x168] sm:$0xff]
        %v688 = vld [vmem:[#allocation9 + $0x170] sm:$0xff]
        %v689 = vld [vmem:[#allocation9 + $0x178] sm:$0xff]
        %v690 = vld [vmem:[#allocation9 + $0x180] sm:$0xff]
        %v691 = vld [vmem:[#allocation9 + $0x188] sm:$0xff]
        %v692 = vld [vmem:[#allocation9 + $0x190] sm:$0xff]
        %v693 = vld [vmem:[#allocation9 + $0x198] sm:$0xff]
        %v694 = vld [vmem:[#allocation9 + $0x1a0] sm:$0xff]
        %v695 = vld [vmem:[#allocation9 + $0x1a8] sm:$0xff]
        %v696 = vld [vmem:[#allocation9 + $0x1b0] sm:$0xff]
        %v697 = vld [vmem:[#allocation9 + $0x1b8] sm:$0xff]
        %v698 = vld [vmem:[#allocation9 + $0x1c0] sm:$0xff]
        %v699 = vld [vmem:[#allocation9 + $0x1c8] sm:$0xff]
        %v700 = vld [vmem:[#allocation9 + $0x1d0] sm:$0xff]
        %v701 = vld [vmem:[#allocation9 + $0x1d8] sm:$0xff]
        %v702 = vld [vmem:[#allocation9 + $0x1e0] sm:$0xff]
        %v703 = vld [vmem:[#allocation9 + $0x1e8] sm:$0xff]
        %v704 = vld [vmem:[#allocation9 + $0x1f0] sm:$0xff]
        %v705 = vld [vmem:[#allocation9 + $0x1f8] sm:$0xff]
        %v706 = vld [vmem:[#allocation9 + $0x200] sm:$0xff]
        %v707 = vld [vmem:[#allocation9 + $0x208] sm:$0xff]
        %v708 = vld [vmem:[#allocation9 + $0x210] sm:$0xff]
        %v709 = vld [vmem:[#allocation9 + $0x218] sm:$0xff]
        %v710 = vld [vmem:[#allocation9 + $0x220] sm:$0xff]
        %v711 = vld [vmem:[#allocation9 + $0x228] sm:$0xff]
        %v712 = vld [vmem:[#allocation9 + $0x230] sm:$0xff]
        %v713 = vld [vmem:[#allocation9 + $0x238] sm:$0xff]
        %v714 = vld [vmem:[#allocation9 + $0x240] sm:$0xff]
        %v715 = vld [vmem:[#allocation9 + $0x248] sm:$0xff]
        %v716 = vld [vmem:[#allocation9 + $0x250] sm:$0xff]
        %v717 = vld [vmem:[#allocation9 + $0x258] sm:$0xff]
        %v718 = vld [vmem:[#allocation9 + $0x260] sm:$0xff]
        %v719 = vld [vmem:[#allocation9 + $0x268] sm:$0xff]
        %v720 = vld [vmem:[#allocation9 + $0x270] sm:$0xff]
        %v721 = vld [vmem:[#allocation9 + $0x278] sm:$0xff]
        %v722 = vld [vmem:[#allocation9 + $0x280] sm:$0xff]
        %v723 = vld [vmem:[#allocation9 + $0x288] sm:$0xff]
        %v724 = vld [vmem:[#allocation9 + $0x290] sm:$0xff]
        %v725 = vld [vmem:[#allocation9 + $0x298] sm:$0xff]
        %v726 = vld [vmem:[#allocation9 + $0x2a0] sm:$0xff]
        %v727 = vld [vmem:[#allocation9 + $0x2a8] sm:$0xff]
        %v728 = vld [vmem:[#allocation9 + $0x2b0] sm:$0xff]
        %v729 = vld [vmem:[#allocation9 + $0x2b8] sm:$0xff]
        %v730 = vld [vmem:[#allocation9 + $0x2c0] sm:$0xff]
        %v731 = vld [vmem:[#allocation9 + $0x2c8] sm:$0xff]
        %v732 = vld [vmem:[#allocation9 + $0x2d0] sm:$0xff]
        %v733 = vld [vmem:[#allocation9 + $0x2d8] sm:$0xff]
        %v734 = vld [vmem:[#allocation9 + $0x2e0] sm:$0xff]
        %v735 = vld [vmem:[#allocation9 + $0x2e8] sm:$0xff]
        %v736 = vld [vmem:[#allocation9 + $0x2f0] sm:$0xff]
        %v737 = vld [vmem:[#allocation9 + $0x2f8] sm:$0xff]
        %v738 = vld [vmem:[%s4] sm:$0x3f]
        %v740 = vlaneseq
        %v741 = vshrl.u32 %v740, 7
        %v742 = vsub.s32 0, %v741
        %v743 = vrot.slane %v738, %v742
        %v744 = vlaneseq
        %v745 = vshrl.u32 %v744, 7
        %v746 = vsub.s32 1, %v745
        %v747 = vrot.slane %v738, %v746
        %v748 = vlaneseq
        %v749 = vshrl.u32 %v748, 7
        %v750 = vsub.s32 2, %v749
        %v751 = vrot.slane %v738, %v750
        %v752 = vlaneseq
        %v753 = vshrl.u32 %v752, 7
        %v754 = vsub.s32 3, %v753
        %v755 = vrot.slane %v738, %v754
        %v756 = vlaneseq
        %v757 = vshrl.u32 %v756, 7
        %v758 = vsub.s32 4, %v757
        %v759 = vrot.slane %v738, %v758
        %v760 = vlaneseq
        %v761 = vshrl.u32 %v760, 7
        %v762 = vsub.s32 5, %v761
        %v763 = vrot.slane %v738, %v762
        %v866 = vunpack.c.l.b16 %v642
        %v867 = vunpack.c.h.b16 %v642
        %v868 = vunpack.c.l.b16 %v643
        %v869 = vunpack.c.h.b16 %v643
        %v870 = vunpack.c.l.b16 %v644
        %v871 = vunpack.c.h.b16 %v644
        %v872 = vunpack.c.l.b16 %v645
        %v873 = vunpack.c.h.b16 %v645
        %v874 = vunpack.c.l.b16 %v646
        %v875 = vunpack.c.h.b16 %v646
        %v876 = vunpack.c.l.b16 %v647
        %v877 = vunpack.c.h.b16 %v647
        %v878 = vunpack.c.l.b16 %v648
        %v879 = vunpack.c.h.b16 %v648
        %v880 = vunpack.c.l.b16 %v649
        %v881 = vunpack.c.h.b16 %v649
        %v882 = vunpack.c.l.b16 %v650
        %v883 = vunpack.c.h.b16 %v650
        %v884 = vunpack.c.l.b16 %v651
        %v885 = vunpack.c.h.b16 %v651
        %v886 = vunpack.c.l.b16 %v652
        %v887 = vunpack.c.h.b16 %v652
        %v888 = vunpack.c.l.b16 %v653
        %v889 = vunpack.c.h.b16 %v653
        %v890 = vunpack.c.l.b16 %v654
        %v891 = vunpack.c.h.b16 %v654
        %v892 = vunpack.c.l.b16 %v655
        %v893 = vunpack.c.h.b16 %v655
        %v894 = vunpack.c.l.b16 %v656
        %v895 = vunpack.c.h.b16 %v656
        %v896 = vunpack.c.l.b16 %v657
        %v897 = vunpack.c.h.b16 %v657
        %v898 = vunpack.c.l.b16 %v658
        %v899 = vunpack.c.h.b16 %v658
        %v900 = vunpack.c.l.b16 %v659
        %v901 = vunpack.c.h.b16 %v659
        %v902 = vunpack.c.l.b16 %v660
        %v903 = vunpack.c.h.b16 %v660
        %v904 = vunpack.c.l.b16 %v661
        %v905 = vunpack.c.h.b16 %v661
        %v906 = vunpack.c.l.b16 %v662
        %v907 = vunpack.c.h.b16 %v662
        %v908 = vunpack.c.l.b16 %v663
        %v909 = vunpack.c.h.b16 %v663
        %v910 = vunpack.c.l.b16 %v664
        %v911 = vunpack.c.h.b16 %v664
        %v912 = vunpack.c.l.b16 %v665
        %v913 = vunpack.c.h.b16 %v665
        %v914 = vunpack.c.l.b16 %v666
        %v915 = vunpack.c.h.b16 %v666
        %v916 = vunpack.c.l.b16 %v667
        %v917 = vunpack.c.h.b16 %v667
        %v918 = vunpack.c.l.b16 %v668
        %v919 = vunpack.c.h.b16 %v668
        %v920 = vunpack.c.l.b16 %v669
        %v921 = vunpack.c.h.b16 %v669
        %v922 = vunpack.c.l.b16 %v670
        %v923 = vunpack.c.h.b16 %v670
        %v924 = vunpack.c.l.b16 %v671
        %v925 = vunpack.c.h.b16 %v671
        %v926 = vunpack.c.l.b16 %v672
        %v927 = vunpack.c.h.b16 %v672
        %v928 = vunpack.c.l.b16 %v673
        %v929 = vunpack.c.h.b16 %v673
        %v930 = vunpack.c.l.b16 %v674
        %v931 = vunpack.c.h.b16 %v674
        %v932 = vunpack.c.l.b16 %v675
        %v933 = vunpack.c.h.b16 %v675
        %v934 = vunpack.c.l.b16 %v676
        %v935 = vunpack.c.h.b16 %v676
        %v936 = vunpack.c.l.b16 %v677
        %v937 = vunpack.c.h.b16 %v677
        %v938 = vunpack.c.l.b16 %v678
        %v939 = vunpack.c.h.b16 %v678
        %v940 = vunpack.c.l.b16 %v679
        %v941 = vunpack.c.h.b16 %v679
        %v942 = vunpack.c.l.b16 %v680
        %v943 = vunpack.c.h.b16 %v680
        %v944 = vunpack.c.l.b16 %v681
        %v945 = vunpack.c.h.b16 %v681
        %v946 = vunpack.c.l.b16 %v682
        %v947 = vunpack.c.h.b16 %v682
        %v948 = vunpack.c.l.b16 %v683
        %v949 = vunpack.c.h.b16 %v683
        %v950 = vunpack.c.l.b16 %v684
        %v951 = vunpack.c.h.b16 %v684
        %v952 = vunpack.c.l.b16 %v685
        %v953 = vunpack.c.h.b16 %v685
        %v954 = vunpack.c.l.b16 %v686
        %v955 = vunpack.c.h.b16 %v686
        %v956 = vunpack.c.l.b16 %v687
        %v957 = vunpack.c.h.b16 %v687
        %v958 = vunpack.c.l.b16 %v688
        %v959 = vunpack.c.h.b16 %v688
        %v960 = vunpack.c.l.b16 %v689
        %v961 = vunpack.c.h.b16 %v689
        %v962 = vunpack.c.l.b16 %v690
        %v963 = vunpack.c.h.b16 %v690
        %v964 = vunpack.c.l.b16 %v691
        %v965 = vunpack.c.h.b16 %v691
        %v966 = vunpack.c.l.b16 %v692
        %v967 = vunpack.c.h.b16 %v692
        %v968 = vunpack.c.l.b16 %v693
        %v969 = vunpack.c.h.b16 %v693
        %v970 = vunpack.c.l.b16 %v694
        %v971 = vunpack.c.h.b16 %v694
        %v972 = vunpack.c.l.b16 %v695
        %v973 = vunpack.c.h.b16 %v695
        %v974 = vunpack.c.l.b16 %v696
        %v975 = vunpack.c.h.b16 %v696
        %v976 = vunpack.c.l.b16 %v697
        %v977 = vunpack.c.h.b16 %v697
        %v978 = vunpack.c.l.b16 %v698
        %v979 = vunpack.c.h.b16 %v698
        %v980 = vunpack.c.l.b16 %v699
        %v981 = vunpack.c.h.b16 %v699
        %v982 = vunpack.c.l.b16 %v700
        %v983 = vunpack.c.h.b16 %v700
        %v984 = vunpack.c.l.b16 %v701
        %v985 = vunpack.c.h.b16 %v701
        %v986 = vunpack.c.l.b16 %v702
        %v987 = vunpack.c.h.b16 %v702
        %v988 = vunpack.c.l.b16 %v703
        %v989 = vunpack.c.h.b16 %v703
        %v990 = vunpack.c.l.b16 %v704
        %v991 = vunpack.c.h.b16 %v704
        %v992 = vunpack.c.l.b16 %v705
        %v993 = vunpack.c.h.b16 %v705
        %v994 = vunpack.c.l.b16 %v706
        %v995 = vunpack.c.h.b16 %v706
        %v996 = vunpack.c.l.b16 %v707
        %v997 = vunpack.c.h.b16 %v707
        %v998 = vunpack.c.l.b16 %v708
        %v999 = vunpack.c.h.b16 %v708
        %v1000 = vunpack.c.l.b16 %v709
        %v1001 = vunpack.c.h.b16 %v709
        %v1002 = vunpack.c.l.b16 %v710
        %v1003 = vunpack.c.h.b16 %v710
        %v1004 = vunpack.c.l.b16 %v711
        %v1005 = vunpack.c.h.b16 %v711
        %v1006 = vunpack.c.l.b16 %v712
        %v1007 = vunpack.c.h.b16 %v712
        %v1008 = vunpack.c.l.b16 %v713
        %v1009 = vunpack.c.h.b16 %v713
        %v1010 = vunpack.c.l.b16 %v714
        %v1011 = vunpack.c.h.b16 %v714
        %v1012 = vunpack.c.l.b16 %v715
        %v1013 = vunpack.c.h.b16 %v715
        %v1014 = vunpack.c.l.b16 %v716
        %v1015 = vunpack.c.h.b16 %v716
        %v1016 = vunpack.c.l.b16 %v717
        %v1017 = vunpack.c.h.b16 %v717
        %v1018 = vunpack.c.l.b16 %v718
        %v1019 = vunpack.c.h.b16 %v718
        %v1020 = vunpack.c.l.b16 %v719
        %v1021 = vunpack.c.h.b16 %v719
        %v1022 = vunpack.c.l.b16 %v720
        %v1023 = vunpack.c.h.b16 %v720
        %v1024 = vunpack.c.l.b16 %v721
        %v1025 = vunpack.c.h.b16 %v721
        %v1026 = vunpack.c.l.b16 %v722
        %v1027 = vunpack.c.h.b16 %v722
        %v1028 = vunpack.c.l.b16 %v723
        %v1029 = vunpack.c.h.b16 %v723
        %v1030 = vunpack.c.l.b16 %v724
        %v1031 = vunpack.c.h.b16 %v724
        %v1032 = vunpack.c.l.b16 %v725
        %v1033 = vunpack.c.h.b16 %v725
        %v1034 = vunpack.c.l.b16 %v726
        %v1035 = vunpack.c.h.b16 %v726
        %v1036 = vunpack.c.l.b16 %v727
        %v1037 = vunpack.c.h.b16 %v727
        %v1038 = vunpack.c.l.b16 %v728
        %v1039 = vunpack.c.h.b16 %v728
        %v1040 = vunpack.c.l.b16 %v729
        %v1041 = vunpack.c.h.b16 %v729
        %v1042 = vunpack.c.l.b16 %v730
        %v1043 = vunpack.c.h.b16 %v730
        %v1044 = vunpack.c.l.b16 %v731
        %v1045 = vunpack.c.h.b16 %v731
        %v1046 = vunpack.c.l.b16 %v732
        %v1047 = vunpack.c.h.b16 %v732
        %v1048 = vunpack.c.l.b16 %v733
        %v1049 = vunpack.c.h.b16 %v733
        %v1050 = vunpack.c.l.b16 %v734
        %v1051 = vunpack.c.h.b16 %v734
        %v1052 = vunpack.c.l.b16 %v735
        %v1053 = vunpack.c.h.b16 %v735
        %v1054 = vunpack.c.l.b16 %v736
        %v1055 = vunpack.c.h.b16 %v736
        %v1056 = vunpack.c.l.b16 %v737
        %v1057 = vunpack.c.h.b16 %v737
        %v1058 = vpack.c.b16 %v872, %v866
        %v1059 = vpack.c.b16 %v873, %v867
        %v1060 = vpack.c.b16 %v874, %v868
        %v1061 = vpack.c.b16 %v875, %v869
        %v1062 = vpack.c.b16 %v876, %v870
        %v1063 = vpack.c.b16 %v877, %v871
        %v1064 = vpack.c.b16 %v884, %v878
        %v1065 = vpack.c.b16 %v885, %v879
        %v1066 = vpack.c.b16 %v886, %v880
        %v1067 = vpack.c.b16 %v887, %v881
        %v1068 = vpack.c.b16 %v888, %v882
        %v1069 = vpack.c.b16 %v889, %v883
        %v1070 = vpack.c.b16 %v896, %v890
        %v1071 = vpack.c.b16 %v897, %v891
        %v1072 = vpack.c.b16 %v898, %v892
        %v1073 = vpack.c.b16 %v899, %v893
        %v1074 = vpack.c.b16 %v900, %v894
        %v1075 = vpack.c.b16 %v901, %v895
        %v1076 = vpack.c.b16 %v908, %v902
        %v1077 = vpack.c.b16 %v909, %v903
        %v1078 = vpack.c.b16 %v910, %v904
        %v1079 = vpack.c.b16 %v911, %v905
        %v1080 = vpack.c.b16 %v912, %v906
        %v1081 = vpack.c.b16 %v913, %v907
        %v1082 = vpack.c.b16 %v920, %v914
        %v1083 = vpack.c.b16 %v921, %v915
        %v1084 = vpack.c.b16 %v922, %v916
        %v1085 = vpack.c.b16 %v923, %v917
        %v1086 = vpack.c.b16 %v924, %v918
        %v1087 = vpack.c.b16 %v925, %v919
        %v1088 = vpack.c.b16 %v932, %v926
        %v1089 = vpack.c.b16 %v933, %v927
        %v1090 = vpack.c.b16 %v934, %v928
        %v1091 = vpack.c.b16 %v935, %v929
        %v1092 = vpack.c.b16 %v936, %v930
        %v1093 = vpack.c.b16 %v937, %v931
        %v1094 = vpack.c.b16 %v944, %v938
        %v1095 = vpack.c.b16 %v945, %v939
        %v1096 = vpack.c.b16 %v946, %v940
        %v1097 = vpack.c.b16 %v947, %v941
        %v1098 = vpack.c.b16 %v948, %v942
        %v1099 = vpack.c.b16 %v949, %v943
        %v1100 = vpack.c.b16 %v956, %v950
        %v1101 = vpack.c.b16 %v957, %v951
        %v1102 = vpack.c.b16 %v958, %v952
        %v1103 = vpack.c.b16 %v959, %v953
        %v1104 = vpack.c.b16 %v960, %v954
        %v1105 = vpack.c.b16 %v961, %v955
        %v1106 = vpack.c.b16 %v968, %v962
        %v1107 = vpack.c.b16 %v969, %v963
        %v1108 = vpack.c.b16 %v970, %v964
        %v1109 = vpack.c.b16 %v971, %v965
        %v1110 = vpack.c.b16 %v972, %v966
        %v1111 = vpack.c.b16 %v973, %v967
        %v1112 = vpack.c.b16 %v980, %v974
        %v1113 = vpack.c.b16 %v981, %v975
        %v1114 = vpack.c.b16 %v982, %v976
        %v1115 = vpack.c.b16 %v983, %v977
        %v1116 = vpack.c.b16 %v984, %v978
        %v1117 = vpack.c.b16 %v985, %v979
        %v1118 = vpack.c.b16 %v992, %v986
        %v1119 = vpack.c.b16 %v993, %v987
        %v1120 = vpack.c.b16 %v994, %v988
        %v1121 = vpack.c.b16 %v995, %v989
        %v1122 = vpack.c.b16 %v996, %v990
        %v1123 = vpack.c.b16 %v997, %v991
        %v1124 = vpack.c.b16 %v1004, %v998
        %v1125 = vpack.c.b16 %v1005, %v999
        %v1126 = vpack.c.b16 %v1006, %v1000
        %v1127 = vpack.c.b16 %v1007, %v1001
        %v1128 = vpack.c.b16 %v1008, %v1002
        %v1129 = vpack.c.b16 %v1009, %v1003
        %v1130 = vpack.c.b16 %v1016, %v1010
        %v1131 = vpack.c.b16 %v1017, %v1011
        %v1132 = vpack.c.b16 %v1018, %v1012
        %v1133 = vpack.c.b16 %v1019, %v1013
        %v1134 = vpack.c.b16 %v1020, %v1014
        %v1135 = vpack.c.b16 %v1021, %v1015
        %v1136 = vpack.c.b16 %v1028, %v1022
        %v1137 = vpack.c.b16 %v1029, %v1023
        %v1138 = vpack.c.b16 %v1030, %v1024
        %v1139 = vpack.c.b16 %v1031, %v1025
        %v1140 = vpack.c.b16 %v1032, %v1026
        %v1141 = vpack.c.b16 %v1033, %v1027
        %v1142 = vpack.c.b16 %v1040, %v1034
        %v1143 = vpack.c.b16 %v1041, %v1035
        %v1144 = vpack.c.b16 %v1042, %v1036
        %v1145 = vpack.c.b16 %v1043, %v1037
        %v1146 = vpack.c.b16 %v1044, %v1038
        %v1147 = vpack.c.b16 %v1045, %v1039
        %v1148 = vpack.c.b16 %v1052, %v1046
        %v1149 = vpack.c.b16 %v1053, %v1047
        %v1150 = vpack.c.b16 %v1054, %v1048
        %v1151 = vpack.c.b16 %v1055, %v1049
        %v1152 = vpack.c.b16 %v1056, %v1050
        %v1153 = vpack.c.b16 %v1057, %v1051
        %1250 = vmatprep.subr.bf16.mxu0 %v1101
        %1251 = vmatpush1.bf16.msra.mxu0 %v1100
        %1252 = vmatprep.subr.bf16.mxu0 %v1095
        %1253 = vmatpush1.bf16.msra.mxu0 %v1094
        %1254 = vmatprep.subr.bf16.mxu0 %v1089
        %1255 = vmatpush1.bf16.msra.mxu0 %v1088
        %1256 = vmatprep.subr.bf16.mxu0 %v1083
        %1257 = vmatpush1.bf16.msra.mxu0 %v1082
        %1258 = vmatprep.subr.bf16.mxu0 %v1077
        %1259 = vmatpush1.bf16.msra.mxu0 %v1076
        %1260 = vmatprep.subr.bf16.mxu0 %v1071
        %1261 = vmatpush1.bf16.msra.mxu0 %v1070
        %1262 = vmatprep.subr.bf16.mxu0 %v1065
        %1263 = vmatpush1.bf16.msra.mxu0 %v1064
        %1264 = vmatprep.subr.bf16.mxu0 %v1059
        %1265 = vmatpush1.bf16.msra.mxu0 %v1058
        %1266 = vmatprep.subr.bf16.mxu0 %v1149
        %1267 = vmatpush2.bf16.msra.mxu0 %v1148
        %1268 = vmatprep.subr.bf16.mxu0 %v1143
        %1269 = vmatpush2.bf16.msra.mxu0 %v1142
        %1270 = vmatprep.subr.bf16.mxu0 %v1137
        %1271 = vmatpush2.bf16.msra.mxu0 %v1136
        %1272 = vmatprep.subr.bf16.mxu0 %v1131
        %1273 = vmatpush2.bf16.msra.mxu0 %v1130
        %1274 = vmatprep.subr.bf16.mxu0 %v1125
        %1275 = vmatpush2.bf16.msra.mxu0 %v1124
        %1276 = vmatprep.subr.bf16.mxu0 %v1119
        %1277 = vmatpush2.bf16.msra.mxu0 %v1118
        %1278 = vmatprep.subr.bf16.mxu0 %v1113
        %1279 = vmatpush2.bf16.msra.mxu0 %v1112
        %1280 = vmatprep.subr.bf16.mxu0 %v1107
        %1281 = vmatpush2.bf16.msra.mxu0 %v1106
        %1282 = vmatprep.mubr.bf16.mxu0 %v641
        %1283 = vmatmul.mubr.bf16.gmra.mxu0 %v640
        %v1284 = vpop.f32.mrf.mxu0
        %v1285 = vadd.f32 %v743, %v1284
        %v1286 = vpop.f32.mrf.mxu0
        %v1287 = vadd.f32 %v747, %v1286
        %v1288 = vpop.f32.mrf.mxu0
        %v1289 = vadd.f32 %v743, %v1288
        %v1290 = vpop.f32.mrf.mxu0
        %v1291 = vadd.f32 %v747, %v1290
        %1292 = vdwg.mxu0
        %1293 = vmatprep.subr.bf16.mxu0 %v1103
        %1294 = vmatpush1.bf16.msra.mxu0 %v1102
        %1295 = vmatprep.subr.bf16.mxu0 %v1097
        %1296 = vmatpush1.bf16.msra.mxu0 %v1096
        %1297 = vmatprep.subr.bf16.mxu0 %v1091
        %1298 = vmatpush1.bf16.msra.mxu0 %v1090
        %1299 = vmatprep.subr.bf16.mxu0 %v1085
        %1300 = vmatpush1.bf16.msra.mxu0 %v1084
        %1301 = vmatprep.subr.bf16.mxu0 %v1079
        %1302 = vmatpush1.bf16.msra.mxu0 %v1078
        %1303 = vmatprep.subr.bf16.mxu0 %v1073
        %1304 = vmatpush1.bf16.msra.mxu0 %v1072
        %1305 = vmatprep.subr.bf16.mxu0 %v1067
        %1306 = vmatpush1.bf16.msra.mxu0 %v1066
        %1307 = vmatprep.subr.bf16.mxu0 %v1061
        %1308 = vmatpush1.bf16.msra.mxu0 %v1060
        %1309 = vmatprep.subr.bf16.mxu0 %v1151
        %1310 = vmatpush2.bf16.msra.mxu0 %v1150
        %1311 = vmatprep.subr.bf16.mxu0 %v1145
        %1312 = vmatpush2.bf16.msra.mxu0 %v1144
        %1313 = vmatprep.subr.bf16.mxu0 %v1139
        %1314 = vmatpush2.bf16.msra.mxu0 %v1138
        %1315 = vmatprep.subr.bf16.mxu0 %v1133
        %1316 = vmatpush2.bf16.msra.mxu0 %v1132
        %1317 = vmatprep.subr.bf16.mxu0 %v1127
        %1318 = vmatpush2.bf16.msra.mxu0 %v1126
        %1319 = vmatprep.subr.bf16.mxu0 %v1121
        %1320 = vmatpush2.bf16.msra.mxu0 %v1120
        %1321 = vmatprep.subr.bf16.mxu0 %v1115
        %1322 = vmatpush2.bf16.msra.mxu0 %v1114
        %1323 = vmatprep.subr.bf16.mxu0 %v1109
        %1324 = vmatpush2.bf16.msra.mxu0 %v1108
        %1325 = vmatprep.mubr.bf16.mxu0 %v641
        %1326 = vmatmul.mubr.bf16.gmra.mxu0 %v640
        %v1327 = vpop.f32.mrf.mxu0
        %v1328 = vadd.f32 %v751, %v1327
        %v1329 = vpop.f32.mrf.mxu0
        %v1330 = vadd.f32 %v755, %v1329
        %v1331 = vpop.f32.mrf.mxu0
        %v1332 = vadd.f32 %v751, %v1331
        %v1333 = vpop.f32.mrf.mxu0
        %v1334 = vadd.f32 %v755, %v1333
        %1335 = vdwg.mxu0
        %1336 = vmatprep.subr.bf16.mxu0 %v1105
        %1337 = vmatpush1.bf16.msra.mxu0 %v1104
        %1338 = vmatprep.subr.bf16.mxu0 %v1099
        %1339 = vmatpush1.bf16.msra.mxu0 %v1098
        %1340 = vmatprep.subr.bf16.mxu0 %v1093
        %1341 = vmatpush1.bf16.msra.mxu0 %v1092
        %1342 = vmatprep.subr.bf16.mxu0 %v1087
        %1343 = vmatpush1.bf16.msra.mxu0 %v1086
        %1344 = vmatprep.subr.bf16.mxu0 %v1081
        %1345 = vmatpush1.bf16.msra.mxu0 %v1080
        %1346 = vmatprep.subr.bf16.mxu0 %v1075
        %1347 = vmatpush1.bf16.msra.mxu0 %v1074
        %1348 = vmatprep.subr.bf16.mxu0 %v1069
        %1349 = vmatpush1.bf16.msra.mxu0 %v1068
        %1350 = vmatprep.subr.bf16.mxu0 %v1063
        %1351 = vmatpush1.bf16.msra.mxu0 %v1062
        %1352 = vmatprep.subr.bf16.mxu0 %v1153
        %1353 = vmatpush2.bf16.msra.mxu0 %v1152
        %1354 = vmatprep.subr.bf16.mxu0 %v1147
        %1355 = vmatpush2.bf16.msra.mxu0 %v1146
        %1356 = vmatprep.subr.bf16.mxu0 %v1141
        %1357 = vmatpush2.bf16.msra.mxu0 %v1140
        %1358 = vmatprep.subr.bf16.mxu0 %v1135
        %1359 = vmatpush2.bf16.msra.mxu0 %v1134
        %1360 = vmatprep.subr.bf16.mxu0 %v1129
        %1361 = vmatpush2.bf16.msra.mxu0 %v1128
        %1362 = vmatprep.subr.bf16.mxu0 %v1123
        %1363 = vmatpush2.bf16.msra.mxu0 %v1122
        %1364 = vmatprep.subr.bf16.mxu0 %v1117
        %1365 = vmatpush2.bf16.msra.mxu0 %v1116
        %1366 = vmatprep.subr.bf16.mxu0 %v1111
        %1367 = vmatpush2.bf16.msra.mxu0 %v1110
        %1368 = vmatprep.mubr.bf16.mxu0 %v641
        %1369 = vmatmul.mubr.bf16.gmra.mxu0 %v640
        %v1370 = vpop.f32.mrf.mxu0
        %v1371 = vadd.f32 %v759, %v1370
        %v1372 = vpop.f32.mrf.mxu0
        %v1373 = vadd.f32 %v763, %v1372
        %v1374 = vpop.f32.mrf.mxu0
        %v1375 = vadd.f32 %v759, %v1374
        %v1376 = vpop.f32.mrf.mxu0
        %v1377 = vadd.f32 %v763, %v1376
        %1378 = vdwg.mxu0
        %v1379 = vpack.c.bf16 %v1285, %v1285
        %v1380 = vpack.c.bf16 %v1289, %v1289
        %v1381 = vpack.c.bf16 %v1328, %v1328
        %v1382 = vpack.c.bf16 %v1332, %v1332
        %v1383 = vpack.c.bf16 %v1371, %v1371
        %v1384 = vpack.c.bf16 %v1375, %v1375
        %1385 = vmatprep.subr.bf16.mxu0 0
        %1386 = vmatpush1.bf16.xpose.msra.mxu0 0
        %1387 = vmatprep.subr.bf16.mxu0 0
        %1388 = vmatpush1.bf16.xpose.msra.mxu0 0
        %1389 = vmatprep.subr.bf16.mxu0 0
        %1390 = vmatpush1.bf16.xpose.msra.mxu0 0
        %1391 = vmatprep.subr.bf16.mxu0 0
        %1392 = vmatpush1.bf16.xpose.msra.mxu0 0
        %1393 = vmatprep.subr.bf16.mxu0 0
        %1394 = vmatpush1.bf16.xpose.msra.mxu0 0
        %1395 = vmatprep.subr.bf16.mxu0 0
        %1396 = vmatpush1.bf16.xpose.msra.mxu0 0
        %1397 = vmatprep.subr.bf16.mxu0 0
        %1398 = vmatpush1.bf16.xpose.msra.mxu0 0
        %1399 = vmatprep.subr.bf16.mxu0 0
        %1400 = vmatpush1.bf16.xpose.msra.mxu0 %v1381
        %1401 = vmatprep.subr.bf16.mxu0 0
        %1402 = vmatpush2.bf16.xpose.msra.mxu0 0
        %1403 = vmatprep.subr.bf16.mxu0 0
        %1404 = vmatpush2.bf16.xpose.msra.mxu0 0
        %1405 = vmatprep.subr.bf16.mxu0 0
        %1406 = vmatpush2.bf16.xpose.msra.mxu0 0
        %1407 = vmatprep.subr.bf16.mxu0 0
        %1408 = vmatpush2.bf16.xpose.msra.mxu0 0
        %1409 = vmatprep.subr.bf16.mxu0 0
        %1410 = vmatpush2.bf16.xpose.msra.mxu0 0
        %1411 = vmatprep.subr.bf16.mxu0 0
        %1412 = vmatpush2.bf16.xpose.msra.mxu0 0
        %1413 = vmatprep.subr.bf16.mxu0 0
        %1414 = vmatpush2.bf16.xpose.msra.mxu0 0
        %1415 = vmatprep.subr.bf16.mxu0 0
        %1416 = vmatpush2.bf16.xpose.msra.mxu0 0
        %1417 = vmatprep.mubr.bf16.mxu0 0
        %1418 = vmatmul.mubr.bf16.gmra.mxu0 %v1379
        %v1419 = vpop.f32.mrf.mxu0
        %v1420 = vadd.f32 0.0, %v1419
        %v1421 = vpop.f32.mrf.mxu0
        %v1422 = vpop.f32.mrf.mxu0
        %v1423 = vpop.f32.mrf.mxu0
        %1424 = vdwg.mxu0
        %1425 = vmatprep.subr.bf16.mxu0 0
        %1426 = vmatpush1.bf16.xpose.msra.mxu0 0
        %1427 = vmatprep.subr.bf16.mxu0 0
        %1428 = vmatpush1.bf16.xpose.msra.mxu0 0
        %1429 = vmatprep.subr.bf16.mxu0 0
        %1430 = vmatpush1.bf16.xpose.msra.mxu0 0
        %1431 = vmatprep.subr.bf16.mxu0 0
        %1432 = vmatpush1.bf16.xpose.msra.mxu0 0
        %1433 = vmatprep.subr.bf16.mxu0 0
        %1434 = vmatpush1.bf16.xpose.msra.mxu0 0
        %1435 = vmatprep.subr.bf16.mxu0 0
        %1436 = vmatpush1.bf16.xpose.msra.mxu0 0
        %1437 = vmatprep.subr.bf16.mxu0 0
        %1438 = vmatpush1.bf16.xpose.msra.mxu0 0
        %1439 = vmatprep.subr.bf16.mxu0 0
        %1440 = vmatpush1.bf16.xpose.msra.mxu0 %v1382
        %1441 = vmatprep.subr.bf16.mxu0 0
        %1442 = vmatpush2.bf16.xpose.msra.mxu0 0
        %1443 = vmatprep.subr.bf16.mxu0 0
        %1444 = vmatpush2.bf16.xpose.msra.mxu0 0
        %1445 = vmatprep.subr.bf16.mxu0 0
        %1446 = vmatpush2.bf16.xpose.msra.mxu0 0
        %1447 = vmatprep.subr.bf16.mxu0 0
        %1448 = vmatpush2.bf16.xpose.msra.mxu0 0
        %1449 = vmatprep.subr.bf16.mxu0 0
        %1450 = vmatpush2.bf16.xpose.msra.mxu0 0
        %1451 = vmatprep.subr.bf16.mxu0 0
        %1452 = vmatpush2.bf16.xpose.msra.mxu0 0
        %1453 = vmatprep.subr.bf16.mxu0 0
        %1454 = vmatpush2.bf16.xpose.msra.mxu0 0
        %1455 = vmatprep.subr.bf16.mxu0 0
        %1456 = vmatpush2.bf16.xpose.msra.mxu0 0
        %1457 = vmatprep.mubr.bf16.mxu0 0
        %1458 = vmatmul.mubr.bf16.gmra.mxu0 %v1380
        %v1459 = vpop.f32.mrf.mxu0
        %v1460 = vadd.f32 0.0, %v1459
        %v1461 = vpop.f32.mrf.mxu0
        %v1462 = vpop.f32.mrf.mxu0
        %v1463 = vpop.f32.mrf.mxu0
        %1464 = vdwg.mxu0
        %vm1465 = vcmask 64512
        %v1466 = vsel %vm1465, %v1420, -inf
        %1467 = vmax.xlane.f32.xlu0 %v1466
        %v1468 = vpop.xlane.xlu0 %1467
        %v1469 = vsel %vm1465, %v1460, -inf
        %1470 = vmax.xlane.f32.xlu0 %v1469
        %v1471 = vpop.xlane.xlu0 %1470
        %v1472 = vsub.f32 %v1420, %v1468
        %v1473 = vsub.f32 %v1460, %v1471
        %v1474 = vmul.f32 %v1472, 1.442695
        %v1475 = vpow.pop %v1474
        %v1476 = vmul.f32 %v1473, 1.442695
        %v1477 = vpow.pop %v1476
        %v1478 = vsel %vm1465, %v1475, 0.0
        %1479 = vadd.xlane.f32.xlu0 %v1478
        %v1480 = vpop.xlane.xlu0 %1479
        %v1481 = vsel %vm1465, %v1477, 0.0
        %1482 = vadd.xlane.f32.xlu0 %v1481
        %v1483 = vpop.xlane.xlu0 %1482
        %v1484 = vpack.c.bf16 %v1475, %v1475
        %v1485 = vpack.c.bf16 %v1477, %v1477
        %v1487 = vsel %vm1465, %v1484, 0
        %vm1489 = vcmask 1043456
        %v1491 = vsel %vm1489, %v1383, 0
        %1493 = vmatprep.subr.bf16.mxu0 0
        %1494 = vmatpush1.bf16.msra.mxu0 0
        %1495 = vmatprep.subr.bf16.mxu0 0
        %1496 = vmatpush1.bf16.msra.mxu0 0
        %1497 = vmatprep.subr.bf16.mxu0 0
        %1498 = vmatpush1.bf16.msra.mxu0 0
        %1499 = vmatprep.subr.bf16.mxu0 0
        %1500 = vmatpush1.bf16.msra.mxu0 0
        %1501 = vmatprep.subr.bf16.mxu0 0
        %1502 = vmatpush1.bf16.msra.mxu0 0
        %1503 = vmatprep.subr.bf16.mxu0 0
        %1504 = vmatpush1.bf16.msra.mxu0 0
        %1505 = vmatprep.subr.bf16.mxu0 0
        %1506 = vmatpush1.bf16.msra.mxu0 0
        %1507 = vmatprep.subr.bf16.mxu0 0
        %1508 = vmatpush1.bf16.msra.mxu0 %v1491
        %1509 = vmatprep.subr.bf16.mxu0 0
        %1510 = vmatpush2.bf16.msra.mxu0 0
        %1511 = vmatprep.subr.bf16.mxu0 0
        %1512 = vmatpush2.bf16.msra.mxu0 0
        %1513 = vmatprep.subr.bf16.mxu0 0
        %1514 = vmatpush2.bf16.msra.mxu0 0
        %1515 = vmatprep.subr.bf16.mxu0 0
        %1516 = vmatpush2.bf16.msra.mxu0 0
        %1517 = vmatprep.subr.bf16.mxu0 0
        %1518 = vmatpush2.bf16.msra.mxu0 0
        %1519 = vmatprep.subr.bf16.mxu0 0
        %1520 = vmatpush2.bf16.msra.mxu0 0
        %1521 = vmatprep.subr.bf16.mxu0 0
        %1522 = vmatpush2.bf16.msra.mxu0 0
        %1523 = vmatprep.subr.bf16.mxu0 0
        %1524 = vmatpush2.bf16.msra.mxu0 0
        %1525 = vmatprep.mubr.bf16.mxu0 0
        %1526 = vmatmul.mubr.bf16.gmra.mxu0 %v1487
        %v1527 = vpop.f32.mrf.mxu0
        %v1528 = vadd.f32 0.0, %v1527
        %v1529 = vpop.f32.mrf.mxu0
        %v1530 = vpop.f32.mrf.mxu0
        %v1531 = vpop.f32.mrf.mxu0
        %1532 = vdwg.mxu0
        %v1534 = vsel %vm1465, %v1485, 0
        %v1537 = vsel %vm1489, %v1384, 0
        %1539 = vmatprep.subr.bf16.mxu0 0
        %1540 = vmatpush1.bf16.msra.mxu0 0
        %1541 = vmatprep.subr.bf16.mxu0 0
        %1542 = vmatpush1.bf16.msra.mxu0 0
        %1543 = vmatprep.subr.bf16.mxu0 0
        %1544 = vmatpush1.bf16.msra.mxu0 0
        %1545 = vmatprep.subr.bf16.mxu0 0
        %1546 = vmatpush1.bf16.msra.mxu0 0
        %1547 = vmatprep.subr.bf16.mxu0 0
        %1548 = vmatpush1.bf16.msra.mxu0 0
        %1549 = vmatprep.subr.bf16.mxu0 0
        %1550 = vmatpush1.bf16.msra.mxu0 0
        %1551 = vmatprep.subr.bf16.mxu0 0
        %1552 = vmatpush1.bf16.msra.mxu0 0
        %1553 = vmatprep.subr.bf16.mxu0 0
        %1554 = vmatpush1.bf16.msra.mxu0 %v1537
        %1555 = vmatprep.subr.bf16.mxu0 0
        %1556 = vmatpush2.bf16.msra.mxu0 0
        %1557 = vmatprep.subr.bf16.mxu0 0
        %1558 = vmatpush2.bf16.msra.mxu0 0
        %1559 = vmatprep.subr.bf16.mxu0 0
        %1560 = vmatpush2.bf16.msra.mxu0 0
        %1561 = vmatprep.subr.bf16.mxu0 0
        %1562 = vmatpush2.bf16.msra.mxu0 0
        %1563 = vmatprep.subr.bf16.mxu0 0
        %1564 = vmatpush2.bf16.msra.mxu0 0
        %1565 = vmatprep.subr.bf16.mxu0 0
        %1566 = vmatpush2.bf16.msra.mxu0 0
        %1567 = vmatprep.subr.bf16.mxu0 0
        %1568 = vmatpush2.bf16.msra.mxu0 0
        %1569 = vmatprep.subr.bf16.mxu0 0
        %1570 = vmatpush2.bf16.msra.mxu0 0
        %1571 = vmatprep.mubr.bf16.mxu0 0
        %1572 = vmatmul.mubr.bf16.gmra.mxu0 %v1534
        %v1573 = vpop.f32.mrf.mxu0
        %v1574 = vadd.f32 0.0, %v1573
        %v1575 = vpop.f32.mrf.mxu0
        %v1576 = vpop.f32.mrf.mxu0
        %v1577 = vpop.f32.mrf.mxu0
        %1578 = vdwg.mxu0
        %v1579 = vrcp.pop %v1480
        %v1580 = vrcp.pop %v1483
        %v1581 = vmul.f32 %v1528, %v1579
        %v1582 = vmul.f32 %v1574, %v1580
        %v1583 = vpack.c.bf16 %v1581, %v1581
        %v1584 = vpack.c.bf16 %v1582, %v1582
        %1585 = vst [vmem:[#allocation2] sm:$0xf] %v1583
        %1586 = vst [vmem:[#allocation2 + $0x8] sm:$0xf] %v1584
        %v1587 = vpack.c.bf16 %v1287, %v1287
        %v1588 = vpack.c.bf16 %v1291, %v1291
        %v1589 = vpack.c.bf16 %v1330, %v1330
        %v1590 = vpack.c.bf16 %v1334, %v1334
        %v1591 = vpack.c.bf16 %v1373, %v1373
        %v1592 = vpack.c.bf16 %v1377, %v1377
        %1593 = vmatprep.subr.bf16.mxu0 0
        %1594 = vmatpush1.bf16.xpose.msra.mxu0 0
        %1595 = vmatprep.subr.bf16.mxu0 0
        %1596 = vmatpush1.bf16.xpose.msra.mxu0 0
        %1597 = vmatprep.subr.bf16.mxu0 0
        %1598 = vmatpush1.bf16.xpose.msra.mxu0 0
        %1599 = vmatprep.subr.bf16.mxu0 0
        %1600 = vmatpush1.bf16.xpose.msra.mxu0 0
        %1601 = vmatprep.subr.bf16.mxu0 0
        %1602 = vmatpush1.bf16.xpose.msra.mxu0 0
        %1603 = vmatprep.subr.bf16.mxu0 0
        %1604 = vmatpush1.bf16.xpose.msra.mxu0 0
        %1605 = vmatprep.subr.bf16.mxu0 0
        %1606 = vmatpush1.bf16.xpose.msra.mxu0 0
        %1607 = vmatprep.subr.bf16.mxu0 0
        %1608 = vmatpush1.bf16.xpose.msra.mxu0 %v1589
        %1609 = vmatprep.subr.bf16.mxu0 0
        %1610 = vmatpush2.bf16.xpose.msra.mxu0 0
        %1611 = vmatprep.subr.bf16.mxu0 0
        %1612 = vmatpush2.bf16.xpose.msra.mxu0 0
        %1613 = vmatprep.subr.bf16.mxu0 0
        %1614 = vmatpush2.bf16.xpose.msra.mxu0 0
        %1615 = vmatprep.subr.bf16.mxu0 0
        %1616 = vmatpush2.bf16.xpose.msra.mxu0 0
        %1617 = vmatprep.subr.bf16.mxu0 0
        %1618 = vmatpush2.bf16.xpose.msra.mxu0 0
        %1619 = vmatprep.subr.bf16.mxu0 0
        %1620 = vmatpush2.bf16.xpose.msra.mxu0 0
        %1621 = vmatprep.subr.bf16.mxu0 0
        %1622 = vmatpush2.bf16.xpose.msra.mxu0 0
        %1623 = vmatprep.subr.bf16.mxu0 0
        %1624 = vmatpush2.bf16.xpose.msra.mxu0 0
        %1625 = vmatprep.mubr.bf16.mxu0 0
        %1626 = vmatmul.mubr.bf16.gmra.mxu0 %v1587
        %v1627 = vpop.f32.mrf.mxu0
        %v1628 = vadd.f32 0.0, %v1627
        %v1629 = vpop.f32.mrf.mxu0
        %v1630 = vpop.f32.mrf.mxu0
        %v1631 = vpop.f32.mrf.mxu0
        %1632 = vdwg.mxu0
        %1633 = vmatprep.subr.bf16.mxu0 0
        %1634 = vmatpush1.bf16.xpose.msra.mxu0 0
        %1635 = vmatprep.subr.bf16.mxu0 0
        %1636 = vmatpush1.bf16.xpose.msra.mxu0 0
        %1637 = vmatprep.subr.bf16.mxu0 0
        %1638 = vmatpush1.bf16.xpose.msra.mxu0 0
        %1639 = vmatprep.subr.bf16.mxu0 0
        %1640 = vmatpush1.bf16.xpose.msra.mxu0 0
        %1641 = vmatprep.subr.bf16.mxu0 0
        %1642 = vmatpush1.bf16.xpose.msra.mxu0 0
        %1643 = vmatprep.subr.bf16.mxu0 0
        %1644 = vmatpush1.bf16.xpose.msra.mxu0 0
        %1645 = vmatprep.subr.bf16.mxu0 0
        %1646 = vmatpush1.bf16.xpose.msra.mxu0 0
        %1647 = vmatprep.subr.bf16.mxu0 0
        %1648 = vmatpush1.bf16.xpose.msra.mxu0 %v1590
        %1649 = vmatprep.subr.bf16.mxu0 0
        %1650 = vmatpush2.bf16.xpose.msra.mxu0 0
        %1651 = vmatprep.subr.bf16.mxu0 0
        %1652 = vmatpush2.bf16.xpose.msra.mxu0 0
        %1653 = vmatprep.subr.bf16.mxu0 0
        %1654 = vmatpush2.bf16.xpose.msra.mxu0 0
        %1655 = vmatprep.subr.bf16.mxu0 0
        %1656 = vmatpush2.bf16.xpose.msra.mxu0 0
        %1657 = vmatprep.subr.bf16.mxu0 0
        %1658 = vmatpush2.bf16.xpose.msra.mxu0 0
        %1659 = vmatprep.subr.bf16.mxu0 0
        %1660 = vmatpush2.bf16.xpose.msra.mxu0 0
        %1661 = vmatprep.subr.bf16.mxu0 0
        %1662 = vmatpush2.bf16.xpose.msra.mxu0 0
        %1663 = vmatprep.subr.bf16.mxu0 0
        %1664 = vmatpush2.bf16.xpose.msra.mxu0 0
        %1665 = vmatprep.mubr.bf16.mxu0 0
        %1666 = vmatmul.mubr.bf16.gmra.mxu0 %v1588
        %v1667 = vpop.f32.mrf.mxu0
        %v1668 = vadd.f32 0.0, %v1667
        %v1669 = vpop.f32.mrf.mxu0
        %v1670 = vpop.f32.mrf.mxu0
        %v1671 = vpop.f32.mrf.mxu0
        %1672 = vdwg.mxu0
        %v1673 = vsel %vm1465, %v1628, -inf
        %1674 = vmax.xlane.f32.xlu0 %v1673
        %v1675 = vpop.xlane.xlu0 %1674
        %v1676 = vsel %vm1465, %v1668, -inf
        %1677 = vmax.xlane.f32.xlu0 %v1676
        %v1678 = vpop.xlane.xlu0 %1677
        %v1679 = vsub.f32 %v1628, %v1675
        %v1680 = vsub.f32 %v1668, %v1678
        %v1681 = vmul.f32 %v1679, 1.442695
        %v1682 = vpow.pop %v1681
        %v1683 = vmul.f32 %v1680, 1.442695
        %v1684 = vpow.pop %v1683
        %v1685 = vsel %vm1465, %v1682, 0.0
        %1686 = vadd.xlane.f32.xlu0 %v1685
        %v1687 = vpop.xlane.xlu0 %1686
        %v1688 = vsel %vm1465, %v1684, 0.0
        %1689 = vadd.xlane.f32.xlu0 %v1688
        %v1690 = vpop.xlane.xlu0 %1689
        %v1691 = vpack.c.bf16 %v1682, %v1682
        %v1692 = vpack.c.bf16 %v1684, %v1684
        %v1694 = vsel %vm1465, %v1691, 0
        %v1697 = vsel %vm1489, %v1591, 0
        %1699 = vmatprep.subr.bf16.mxu0 0
        %1700 = vmatpush1.bf16.msra.mxu0 0
        %1701 = vmatprep.subr.bf16.mxu0 0
        %1702 = vmatpush1.bf16.msra.mxu0 0
        %1703 = vmatprep.subr.bf16.mxu0 0
        %1704 = vmatpush1.bf16.msra.mxu0 0
        %1705 = vmatprep.subr.bf16.mxu0 0
        %1706 = vmatpush1.bf16.msra.mxu0 0
        %1707 = vmatprep.subr.bf16.mxu0 0
        %1708 = vmatpush1.bf16.msra.mxu0 0
        %1709 = vmatprep.subr.bf16.mxu0 0
        %1710 = vmatpush1.bf16.msra.mxu0 0
        %1711 = vmatprep.subr.bf16.mxu0 0
        %1712 = vmatpush1.bf16.msra.mxu0 0
        %1713 = vmatprep.subr.bf16.mxu0 0
        %1714 = vmatpush1.bf16.msra.mxu0 %v1697
        %1715 = vmatprep.subr.bf16.mxu0 0
        %1716 = vmatpush2.bf16.msra.mxu0 0
        %1717 = vmatprep.subr.bf16.mxu0 0
        %1718 = vmatpush2.bf16.msra.mxu0 0
        %1719 = vmatprep.subr.bf16.mxu0 0
        %1720 = vmatpush2.bf16.msra.mxu0 0
        %1721 = vmatprep.subr.bf16.mxu0 0
        %1722 = vmatpush2.bf16.msra.mxu0 0
        %1723 = vmatprep.subr.bf16.mxu0 0
        %1724 = vmatpush2.bf16.msra.mxu0 0
        %1725 = vmatprep.subr.bf16.mxu0 0
        %1726 = vmatpush2.bf16.msra.mxu0 0
        %1727 = vmatprep.subr.bf16.mxu0 0
        %1728 = vmatpush2.bf16.msra.mxu0 0
        %1729 = vmatprep.subr.bf16.mxu0 0
        %1730 = vmatpush2.bf16.msra.mxu0 0
        %1731 = vmatprep.mubr.bf16.mxu0 0
        %1732 = vmatmul.mubr.bf16.gmra.mxu0 %v1694
        %v1733 = vpop.f32.mrf.mxu0
        %v1734 = vadd.f32 0.0, %v1733
        %v1735 = vpop.f32.mrf.mxu0
        %v1736 = vpop.f32.mrf.mxu0
        %v1737 = vpop.f32.mrf.mxu0
        %1738 = vdwg.mxu0
        %v1740 = vsel %vm1465, %v1692, 0
        %v1743 = vsel %vm1489, %v1592, 0
        %1745 = vmatprep.subr.bf16.mxu0 0
        %1746 = vmatpush1.bf16.msra.mxu0 0
        %1747 = vmatprep.subr.bf16.mxu0 0
        %1748 = vmatpush1.bf16.msra.mxu0 0
        %1749 = vmatprep.subr.bf16.mxu0 0
        %1750 = vmatpush1.bf16.msra.mxu0 0
        %1751 = vmatprep.subr.bf16.mxu0 0
        %1752 = vmatpush1.bf16.msra.mxu0 0
        %1753 = vmatprep.subr.bf16.mxu0 0
        %1754 = vmatpush1.bf16.msra.mxu0 0
        %1755 = vmatprep.subr.bf16.mxu0 0
        %1756 = vmatpush1.bf16.msra.mxu0 0
        %1757 = vmatprep.subr.bf16.mxu0 0
        %1758 = vmatpush1.bf16.msra.mxu0 0
        %1759 = vmatprep.subr.bf16.mxu0 0
        %1760 = vmatpush1.bf16.msra.mxu0 %v1743
        %1761 = vmatprep.subr.bf16.mxu0 0
        %1762 = vmatpush2.bf16.msra.mxu0 0
        %1763 = vmatprep.subr.bf16.mxu0 0
        %1764 = vmatpush2.bf16.msra.mxu0 0
        %1765 = vmatprep.subr.bf16.mxu0 0
        %1766 = vmatpush2.bf16.msra.mxu0 0
        %1767 = vmatprep.subr.bf16.mxu0 0
        %1768 = vmatpush2.bf16.msra.mxu0 0
        %1769 = vmatprep.subr.bf16.mxu0 0
        %1770 = vmatpush2.bf16.msra.mxu0 0
        %1771 = vmatprep.subr.bf16.mxu0 0
        %1772 = vmatpush2.bf16.msra.mxu0 0
        %1773 = vmatprep.subr.bf16.mxu0 0
        %1774 = vmatpush2.bf16.msra.mxu0 0
        %1775 = vmatprep.subr.bf16.mxu0 0
        %1776 = vmatpush2.bf16.msra.mxu0 0
        %1777 = vmatprep.mubr.bf16.mxu0 0
        %1778 = vmatmul.mubr.bf16.gmra.mxu0 %v1740
        %v1779 = vpop.f32.mrf.mxu0
        %v1780 = vadd.f32 0.0, %v1779
        %v1781 = vpop.f32.mrf.mxu0
        %v1782 = vpop.f32.mrf.mxu0
        %v1783 = vpop.f32.mrf.mxu0
        %1784 = vdwg.mxu0
        %v1785 = vrcp.pop %v1687
        %v1786 = vrcp.pop %v1690
        %v1787 = vmul.f32 %v1734, %v1785
        %v1788 = vmul.f32 %v1780, %v1786
        %v1789 = vpack.c.bf16 %v1787, %v1787
        %v1790 = vpack.c.bf16 %v1788, %v1788
        %1791 = vst [vmem:[#allocation2 + $0x4] sm:$0xf] %v1789
        %1792 = vst [vmem:[#allocation2 + $0xc] sm:$0xf] %v1790
        %v1793 = vld [vmem:[#allocation2] sm:$0xff]
        %v1794 = vld [vmem:[#allocation2 + $0x8] sm:$0xff]
        %v1795 = vld [vmem:[#allocation11] sm:$0xff]
        %v1796 = vld [vmem:[#allocation11 + $0x8] sm:$0xff]
        %v1797 = vld [vmem:[#allocation11 + $0x10] sm:$0xff]
        %v1798 = vld [vmem:[#allocation11 + $0x18] sm:$0xff]
        %v1799 = vld [vmem:[#allocation11 + $0x20] sm:$0xff]
        %v1800 = vld [vmem:[#allocation11 + $0x28] sm:$0xff]
        %v1801 = vld [vmem:[#allocation11 + $0x30] sm:$0xff]
        %v1802 = vld [vmem:[#allocation11 + $0x38] sm:$0xff]
        %v1803 = vld [vmem:[#allocation11 + $0x40] sm:$0xff]
        %v1804 = vld [vmem:[#allocation11 + $0x48] sm:$0xff]
        %v1805 = vld [vmem:[#allocation11 + $0x50] sm:$0xff]
        %v1806 = vld [vmem:[#allocation11 + $0x58] sm:$0xff]
        %v1807 = vld [vmem:[#allocation11 + $0x60] sm:$0xff]
        %v1808 = vld [vmem:[#allocation11 + $0x68] sm:$0xff]
        %v1809 = vld [vmem:[#allocation11 + $0x70] sm:$0xff]
        %v1810 = vld [vmem:[#allocation11 + $0x78] sm:$0xff]
        %v1811 = vld [vmem:[#allocation11 + $0x80] sm:$0xff]
        %v1812 = vld [vmem:[#allocation11 + $0x88] sm:$0xff]
        %v1813 = vld [vmem:[#allocation11 + $0x90] sm:$0xff]
        %v1814 = vld [vmem:[#allocation11 + $0x98] sm:$0xff]
        %v1815 = vld [vmem:[#allocation11 + $0xa0] sm:$0xff]
        %v1816 = vld [vmem:[#allocation11 + $0xa8] sm:$0xff]
        %v1817 = vld [vmem:[#allocation11 + $0xb0] sm:$0xff]
        %v1818 = vld [vmem:[#allocation11 + $0xb8] sm:$0xff]
        %v1819 = vld [vmem:[#allocation11 + $0xc0] sm:$0xff]
        %v1820 = vld [vmem:[#allocation11 + $0xc8] sm:$0xff]
        %v1821 = vld [vmem:[#allocation11 + $0xd0] sm:$0xff]
        %v1822 = vld [vmem:[#allocation11 + $0xd8] sm:$0xff]
        %v1823 = vld [vmem:[#allocation11 + $0xe0] sm:$0xff]
        %v1824 = vld [vmem:[#allocation11 + $0xe8] sm:$0xff]
        %v1825 = vld [vmem:[#allocation11 + $0xf0] sm:$0xff]
        %v1826 = vld [vmem:[#allocation11 + $0xf8] sm:$0xff]
        %v1827 = vld [vmem:[%s6] sm:$0x3]
        %v1829 = vlaneseq
        %v1830 = vshrl.u32 %v1829, 7
        %v1831 = vsub.s32 0, %v1830
        %v1832 = vrot.slane %v1827, %v1831
        %v1833 = vlaneseq
        %v1834 = vshrl.u32 %v1833, 7
        %v1835 = vsub.s32 1, %v1834
        %v1836 = vrot.slane %v1827, %v1835
        %v1841 = vunpack.c.l.b16 %v1793
        %v1842 = vunpack.c.h.b16 %v1793
        %v1843 = vunpack.c.l.b16 %v1794
        %v1844 = vunpack.c.h.b16 %v1794
        %v1845 = vpack.c.b16 %v1843, %v1841
        %v1846 = vpack.c.b16 %v1844, %v1842
        %v1881 = vunpack.c.l.b16 %v1795
        %v1882 = vunpack.c.h.b16 %v1795
        %v1883 = vunpack.c.l.b16 %v1796
        %v1884 = vunpack.c.h.b16 %v1796
        %v1885 = vunpack.c.l.b16 %v1797
        %v1886 = vunpack.c.h.b16 %v1797
        %v1887 = vunpack.c.l.b16 %v1798
        %v1888 = vunpack.c.h.b16 %v1798
        %v1889 = vunpack.c.l.b16 %v1799
        %v1890 = vunpack.c.h.b16 %v1799
        %v1891 = vunpack.c.l.b16 %v1800
        %v1892 = vunpack.c.h.b16 %v1800
        %v1893 = vunpack.c.l.b16 %v1801
        %v1894 = vunpack.c.h.b16 %v1801
        %v1895 = vunpack.c.l.b16 %v1802
        %v1896 = vunpack.c.h.b16 %v1802
        %v1897 = vunpack.c.l.b16 %v1803
        %v1898 = vunpack.c.h.b16 %v1803
        %v1899 = vunpack.c.l.b16 %v1804
        %v1900 = vunpack.c.h.b16 %v1804
        %v1901 = vunpack.c.l.b16 %v1805
        %v1902 = vunpack.c.h.b16 %v1805
        %v1903 = vunpack.c.l.b16 %v1806
        %v1904 = vunpack.c.h.b16 %v1806
        %v1905 = vunpack.c.l.b16 %v1807
        %v1906 = vunpack.c.h.b16 %v1807
        %v1907 = vunpack.c.l.b16 %v1808
        %v1908 = vunpack.c.h.b16 %v1808
        %v1909 = vunpack.c.l.b16 %v1809
        %v1910 = vunpack.c.h.b16 %v1809
        %v1911 = vunpack.c.l.b16 %v1810
        %v1912 = vunpack.c.h.b16 %v1810
        %v1913 = vunpack.c.l.b16 %v1811
        %v1914 = vunpack.c.h.b16 %v1811
        %v1915 = vunpack.c.l.b16 %v1812
        %v1916 = vunpack.c.h.b16 %v1812
        %v1917 = vunpack.c.l.b16 %v1813
        %v1918 = vunpack.c.h.b16 %v1813
        %v1919 = vunpack.c.l.b16 %v1814
        %v1920 = vunpack.c.h.b16 %v1814
        %v1921 = vunpack.c.l.b16 %v1815
        %v1922 = vunpack.c.h.b16 %v1815
        %v1923 = vunpack.c.l.b16 %v1816
        %v1924 = vunpack.c.h.b16 %v1816
        %v1925 = vunpack.c.l.b16 %v1817
        %v1926 = vunpack.c.h.b16 %v1817
        %v1927 = vunpack.c.l.b16 %v1818
        %v1928 = vunpack.c.h.b16 %v1818
        %v1929 = vunpack.c.l.b16 %v1819
        %v1930 = vunpack.c.h.b16 %v1819
        %v1931 = vunpack.c.l.b16 %v1820
        %v1932 = vunpack.c.h.b16 %v1820
        %v1933 = vunpack.c.l.b16 %v1821
        %v1934 = vunpack.c.h.b16 %v1821
        %v1935 = vunpack.c.l.b16 %v1822
        %v1936 = vunpack.c.h.b16 %v1822
        %v1937 = vunpack.c.l.b16 %v1823
        %v1938 = vunpack.c.h.b16 %v1823
        %v1939 = vunpack.c.l.b16 %v1824
        %v1940 = vunpack.c.h.b16 %v1824
        %v1941 = vunpack.c.l.b16 %v1825
        %v1942 = vunpack.c.h.b16 %v1825
        %v1943 = vunpack.c.l.b16 %v1826
        %v1944 = vunpack.c.h.b16 %v1826
        %v1945 = vpack.c.b16 %v1883, %v1881
        %v1946 = vpack.c.b16 %v1884, %v1882
        %v1947 = vpack.c.b16 %v1887, %v1885
        %v1948 = vpack.c.b16 %v1888, %v1886
        %v1949 = vpack.c.b16 %v1891, %v1889
        %v1950 = vpack.c.b16 %v1892, %v1890
        %v1951 = vpack.c.b16 %v1895, %v1893
        %v1952 = vpack.c.b16 %v1896, %v1894
        %v1953 = vpack.c.b16 %v1899, %v1897
        %v1954 = vpack.c.b16 %v1900, %v1898
        %v1955 = vpack.c.b16 %v1903, %v1901
        %v1956 = vpack.c.b16 %v1904, %v1902
        %v1957 = vpack.c.b16 %v1907, %v1905
        %v1958 = vpack.c.b16 %v1908, %v1906
        %v1959 = vpack.c.b16 %v1911, %v1909
        %v1960 = vpack.c.b16 %v1912, %v1910
        %v1961 = vpack.c.b16 %v1915, %v1913
        %v1962 = vpack.c.b16 %v1916, %v1914
        %v1963 = vpack.c.b16 %v1919, %v1917
        %v1964 = vpack.c.b16 %v1920, %v1918
        %v1965 = vpack.c.b16 %v1923, %v1921
        %v1966 = vpack.c.b16 %v1924, %v1922
        %v1967 = vpack.c.b16 %v1927, %v1925
        %v1968 = vpack.c.b16 %v1928, %v1926
        %v1969 = vpack.c.b16 %v1931, %v1929
        %v1970 = vpack.c.b16 %v1932, %v1930
        %v1971 = vpack.c.b16 %v1935, %v1933
        %v1972 = vpack.c.b16 %v1936, %v1934
        %v1973 = vpack.c.b16 %v1939, %v1937
        %v1974 = vpack.c.b16 %v1940, %v1938
        %v1975 = vpack.c.b16 %v1943, %v1941
        %v1976 = vpack.c.b16 %v1944, %v1942
        %2009 = vmatprep.subr.bf16.mxu0 %v1960
        %2010 = vmatpush1.bf16.msra.mxu0 %v1959
        %2011 = vmatprep.subr.bf16.mxu0 %v1958
        %2012 = vmatpush1.bf16.msra.mxu0 %v1957
        %2013 = vmatprep.subr.bf16.mxu0 %v1956
        %2014 = vmatpush1.bf16.msra.mxu0 %v1955
        %2015 = vmatprep.subr.bf16.mxu0 %v1954
        %2016 = vmatpush1.bf16.msra.mxu0 %v1953
        %2017 = vmatprep.subr.bf16.mxu0 %v1952
        %2018 = vmatpush1.bf16.msra.mxu0 %v1951
        %2019 = vmatprep.subr.bf16.mxu0 %v1950
        %2020 = vmatpush1.bf16.msra.mxu0 %v1949
        %2021 = vmatprep.subr.bf16.mxu0 %v1948
        %2022 = vmatpush1.bf16.msra.mxu0 %v1947
        %2023 = vmatprep.subr.bf16.mxu0 %v1946
        %2024 = vmatpush1.bf16.msra.mxu0 %v1945
        %2025 = vmatprep.subr.bf16.mxu0 %v1976
        %2026 = vmatpush2.bf16.msra.mxu0 %v1975
        %2027 = vmatprep.subr.bf16.mxu0 %v1974
        %2028 = vmatpush2.bf16.msra.mxu0 %v1973
        %2029 = vmatprep.subr.bf16.mxu0 %v1972
        %2030 = vmatpush2.bf16.msra.mxu0 %v1971
        %2031 = vmatprep.subr.bf16.mxu0 %v1970
        %2032 = vmatpush2.bf16.msra.mxu0 %v1969
        %2033 = vmatprep.subr.bf16.mxu0 %v1968
        %2034 = vmatpush2.bf16.msra.mxu0 %v1967
        %2035 = vmatprep.subr.bf16.mxu0 %v1966
        %2036 = vmatpush2.bf16.msra.mxu0 %v1965
        %2037 = vmatprep.subr.bf16.mxu0 %v1964
        %2038 = vmatpush2.bf16.msra.mxu0 %v1963
        %2039 = vmatprep.subr.bf16.mxu0 %v1962
        %2040 = vmatpush2.bf16.msra.mxu0 %v1961
        %2041 = vmatprep.mubr.bf16.mxu0 %v1846
        %2042 = vmatmul.mubr.bf16.gmra.mxu0 %v1845
        %v2043 = vpop.f32.mrf.mxu0
        %v2044 = vadd.f32 %v1832, %v2043
        %v2045 = vpop.f32.mrf.mxu0
        %v2046 = vadd.f32 %v1836, %v2045
        %v2047 = vpop.f32.mrf.mxu0
        %v2048 = vadd.f32 %v1832, %v2047
        %v2049 = vpop.f32.mrf.mxu0
        %v2050 = vadd.f32 %v1836, %v2049
        %2051 = vdwg.mxu0
        %v2052 = vadd.f32 %v571, %v2044
        %v2053 = vadd.f32 %v572, %v2046
        %v2054 = vadd.f32 %v573, %v2048
        %v2055 = vadd.f32 %v574, %v2050
        %v2056 = vld [vmem:[#allocation12] sm:$0x3]
        %v2057 = vld [vmem:[#allocation14] sm:$0x3]
        %v2058 = vadd.f32 %v2052, %v2053
        %2059 = vadd.xlane.f32.xlu0 %v2058
        %v2060 = vpop.xlane.xlu0 %2059
        %v2061 = vadd.f32 %v2054, %v2055
        %2062 = vadd.xlane.f32.xlu0 %v2061
        %v2063 = vpop.xlane.xlu0 %2062
        %v2064 = vmul.f32 %v2060, %v583
        %v2065 = vmul.f32 %v2063, %v583
        %v2066 = vsub.f32 %v2052, %v2064
        %v2067 = vsub.f32 %v2053, %v2064
        %v2068 = vsub.f32 %v2054, %v2065
        %v2069 = vsub.f32 %v2055, %v2065
        %v2070 = vmul.f32 %v2066, %v2066
        %v2071 = vmul.f32 %v2067, %v2067
        %v2072 = vmul.f32 %v2068, %v2068
        %v2073 = vmul.f32 %v2069, %v2069
        %v2074 = vadd.f32 %v2070, %v2071
        %2075 = vadd.xlane.f32.xlu0 %v2074
        %v2076 = vpop.xlane.xlu0 %2075
        %v2077 = vadd.f32 %v2072, %v2073
        %2078 = vadd.xlane.f32.xlu0 %v2077
        %v2079 = vpop.xlane.xlu0 %2078
        %v2080 = vmul.f32 %v2076, %v583
        %v2081 = vmul.f32 %v2079, %v583
        %v2082 = vadd.f32 %v2080, 1e-05
        %v2083 = vadd.f32 %v2081, 1e-05
        %v2084 = vrsqrt.pop %v2082
        %v2085 = vrsqrt.pop %v2083
        %v2086 = vmul.f32 %v2066, %v2084
        %v2087 = vmul.f32 %v2067, %v2084
        %v2088 = vmul.f32 %v2068, %v2085
        %v2089 = vmul.f32 %v2069, %v2085
        %v2091 = vlaneseq
        %v2092 = vshrl.u32 %v2091, 7
        %v2093 = vsub.s32 0, %v2092
        %v2094 = vrot.slane %v2056, %v2093
        %v2095 = vlaneseq
        %v2096 = vshrl.u32 %v2095, 7
        %v2097 = vsub.s32 1, %v2096
        %v2098 = vrot.slane %v2056, %v2097
        %v2101 = vmul.f32 %v2086, %v2094
        %v2102 = vmul.f32 %v2087, %v2098
        %v2103 = vmul.f32 %v2088, %v2094
        %v2104 = vmul.f32 %v2089, %v2098
        %v2106 = vlaneseq
        %v2107 = vshrl.u32 %v2106, 7
        %v2108 = vsub.s32 0, %v2107
        %v2109 = vrot.slane %v2057, %v2108
        %v2110 = vlaneseq
        %v2111 = vshrl.u32 %v2110, 7
        %v2112 = vsub.s32 1, %v2111
        %v2113 = vrot.slane %v2057, %v2112
        %v2116 = vadd.f32 %v2101, %v2109
        %v2117 = vadd.f32 %v2102, %v2113
        %v2118 = vadd.f32 %v2103, %v2109
        %v2119 = vadd.f32 %v2104, %v2113
        %v2120 = vpack.c.bf16 %v2118, %v2116
        %v2121 = vpack.c.bf16 %v2119, %v2117
        %v2122 = vld [vmem:[#allocation15] sm:$0xff]
        %v2123 = vld [vmem:[#allocation15 + $0x8] sm:$0xff]
        %v2124 = vld [vmem:[#allocation15 + $0x10] sm:$0xff]
        %v2125 = vld [vmem:[#allocation15 + $0x18] sm:$0xff]
        %v2126 = vld [vmem:[#allocation15 + $0x20] sm:$0xff]
        %v2127 = vld [vmem:[#allocation15 + $0x28] sm:$0xff]
        %v2128 = vld [vmem:[#allocation15 + $0x30] sm:$0xff]
        %v2129 = vld [vmem:[#allocation15 + $0x38] sm:$0xff]
        %v2130 = vld [vmem:[#allocation15 + $0x40] sm:$0xff]
        %v2131 = vld [vmem:[#allocation15 + $0x48] sm:$0xff]
        %v2132 = vld [vmem:[#allocation15 + $0x50] sm:$0xff]
        %v2133 = vld [vmem:[#allocation15 + $0x58] sm:$0xff]
        %v2134 = vld [vmem:[#allocation15 + $0x60] sm:$0xff]
        %v2135 = vld [vmem:[#allocation15 + $0x68] sm:$0xff]
        %v2136 = vld [vmem:[#allocation15 + $0x70] sm:$0xff]
        %v2137 = vld [vmem:[#allocation15 + $0x78] sm:$0xff]
        %v2138 = vld [vmem:[#allocation15 + $0x80] sm:$0xff]
        %v2139 = vld [vmem:[#allocation15 + $0x88] sm:$0xff]
        %v2140 = vld [vmem:[#allocation15 + $0x90] sm:$0xff]
        %v2141 = vld [vmem:[#allocation15 + $0x98] sm:$0xff]
        %v2142 = vld [vmem:[#allocation15 + $0xa0] sm:$0xff]
        %v2143 = vld [vmem:[#allocation15 + $0xa8] sm:$0xff]
        %v2144 = vld [vmem:[#allocation15 + $0xb0] sm:$0xff]
        %v2145 = vld [vmem:[#allocation15 + $0xb8] sm:$0xff]
        %v2146 = vld [vmem:[#allocation15 + $0xc0] sm:$0xff]
        %v2147 = vld [vmem:[#allocation15 + $0xc8] sm:$0xff]
        %v2148 = vld [vmem:[#allocation15 + $0xd0] sm:$0xff]
        %v2149 = vld [vmem:[#allocation15 + $0xd8] sm:$0xff]
        %v2150 = vld [vmem:[#allocation15 + $0xe0] sm:$0xff]
        %v2151 = vld [vmem:[#allocation15 + $0xe8] sm:$0xff]
        %v2152 = vld [vmem:[#allocation15 + $0xf0] sm:$0xff]
        %v2153 = vld [vmem:[#allocation15 + $0xf8] sm:$0xff]
        %v2154 = vld [vmem:[#allocation15 + $0x100] sm:$0xff]
        %v2155 = vld [vmem:[#allocation15 + $0x108] sm:$0xff]
        %v2156 = vld [vmem:[#allocation15 + $0x110] sm:$0xff]
        %v2157 = vld [vmem:[#allocation15 + $0x118] sm:$0xff]
        %v2158 = vld [vmem:[#allocation15 + $0x120] sm:$0xff]
        %v2159 = vld [vmem:[#allocation15 + $0x128] sm:$0xff]
        %v2160 = vld [vmem:[#allocation15 + $0x130] sm:$0xff]
        %v2161 = vld [vmem:[#allocation15 + $0x138] sm:$0xff]
        %v2162 = vld [vmem:[#allocation15 + $0x140] sm:$0xff]
        %v2163 = vld [vmem:[#allocation15 + $0x148] sm:$0xff]
        %v2164 = vld [vmem:[#allocation15 + $0x150] sm:$0xff]
        %v2165 = vld [vmem:[#allocation15 + $0x158] sm:$0xff]
        %v2166 = vld [vmem:[#allocation15 + $0x160] sm:$0xff]
        %v2167 = vld [vmem:[#allocation15 + $0x168] sm:$0xff]
        %v2168 = vld [vmem:[#allocation15 + $0x170] sm:$0xff]
        %v2169 = vld [vmem:[#allocation15 + $0x178] sm:$0xff]
        %v2170 = vld [vmem:[#allocation15 + $0x180] sm:$0xff]
        %v2171 = vld [vmem:[#allocation15 + $0x188] sm:$0xff]
        %v2172 = vld [vmem:[#allocation15 + $0x190] sm:$0xff]
        %v2173 = vld [vmem:[#allocation15 + $0x198] sm:$0xff]
        %v2174 = vld [vmem:[#allocation15 + $0x1a0] sm:$0xff]
        %v2175 = vld [vmem:[#allocation15 + $0x1a8] sm:$0xff]
        %v2176 = vld [vmem:[#allocation15 + $0x1b0] sm:$0xff]
        %v2177 = vld [vmem:[#allocation15 + $0x1b8] sm:$0xff]
        %v2178 = vld [vmem:[#allocation15 + $0x1c0] sm:$0xff]
        %v2179 = vld [vmem:[#allocation15 + $0x1c8] sm:$0xff]
        %v2180 = vld [vmem:[#allocation15 + $0x1d0] sm:$0xff]
        %v2181 = vld [vmem:[#allocation15 + $0x1d8] sm:$0xff]
        %v2182 = vld [vmem:[#allocation15 + $0x1e0] sm:$0xff]
        %v2183 = vld [vmem:[#allocation15 + $0x1e8] sm:$0xff]
        %v2184 = vld [vmem:[#allocation15 + $0x1f0] sm:$0xff]
        %v2185 = vld [vmem:[#allocation15 + $0x1f8] sm:$0xff]
        %v2186 = vld [vmem:[#allocation15 + $0x200] sm:$0xff]
        %v2187 = vld [vmem:[#allocation15 + $0x208] sm:$0xff]
        %v2188 = vld [vmem:[#allocation15 + $0x210] sm:$0xff]
        %v2189 = vld [vmem:[#allocation15 + $0x218] sm:$0xff]
        %v2190 = vld [vmem:[#allocation15 + $0x220] sm:$0xff]
        %v2191 = vld [vmem:[#allocation15 + $0x228] sm:$0xff]
        %v2192 = vld [vmem:[#allocation15 + $0x230] sm:$0xff]
        %v2193 = vld [vmem:[#allocation15 + $0x238] sm:$0xff]
        %v2194 = vld [vmem:[#allocation15 + $0x240] sm:$0xff]
        %v2195 = vld [vmem:[#allocation15 + $0x248] sm:$0xff]
        %v2196 = vld [vmem:[#allocation15 + $0x250] sm:$0xff]
        %v2197 = vld [vmem:[#allocation15 + $0x258] sm:$0xff]
        %v2198 = vld [vmem:[#allocation15 + $0x260] sm:$0xff]
        %v2199 = vld [vmem:[#allocation15 + $0x268] sm:$0xff]
        %v2200 = vld [vmem:[#allocation15 + $0x270] sm:$0xff]
        %v2201 = vld [vmem:[#allocation15 + $0x278] sm:$0xff]
        %v2202 = vld [vmem:[#allocation15 + $0x280] sm:$0xff]
        %v2203 = vld [vmem:[#allocation15 + $0x288] sm:$0xff]
        %v2204 = vld [vmem:[#allocation15 + $0x290] sm:$0xff]
        %v2205 = vld [vmem:[#allocation15 + $0x298] sm:$0xff]
        %v2206 = vld [vmem:[#allocation15 + $0x2a0] sm:$0xff]
        %v2207 = vld [vmem:[#allocation15 + $0x2a8] sm:$0xff]
        %v2208 = vld [vmem:[#allocation15 + $0x2b0] sm:$0xff]
        %v2209 = vld [vmem:[#allocation15 + $0x2b8] sm:$0xff]
        %v2210 = vld [vmem:[#allocation15 + $0x2c0] sm:$0xff]
        %v2211 = vld [vmem:[#allocation15 + $0x2c8] sm:$0xff]
        %v2212 = vld [vmem:[#allocation15 + $0x2d0] sm:$0xff]
        %v2213 = vld [vmem:[#allocation15 + $0x2d8] sm:$0xff]
        %v2214 = vld [vmem:[#allocation15 + $0x2e0] sm:$0xff]
        %v2215 = vld [vmem:[#allocation15 + $0x2e8] sm:$0xff]
        %v2216 = vld [vmem:[#allocation15 + $0x2f0] sm:$0xff]
        %v2217 = vld [vmem:[#allocation15 + $0x2f8] sm:$0xff]
        %v2218 = vld [vmem:[#allocation15 + $0x300] sm:$0xff]
        %v2219 = vld [vmem:[#allocation15 + $0x308] sm:$0xff]
        %v2220 = vld [vmem:[#allocation15 + $0x310] sm:$0xff]
        %v2221 = vld [vmem:[#allocation15 + $0x318] sm:$0xff]
        %v2222 = vld [vmem:[#allocation15 + $0x320] sm:$0xff]
        %v2223 = vld [vmem:[#allocation15 + $0x328] sm:$0xff]
        %v2224 = vld [vmem:[#allocation15 + $0x330] sm:$0xff]
        %v2225 = vld [vmem:[#allocation15 + $0x338] sm:$0xff]
        %v2226 = vld [vmem:[#allocation15 + $0x340] sm:$0xff]
        %v2227 = vld [vmem:[#allocation15 + $0x348] sm:$0xff]
        %v2228 = vld [vmem:[#allocation15 + $0x350] sm:$0xff]
        %v2229 = vld [vmem:[#allocation15 + $0x358] sm:$0xff]
        %v2230 = vld [vmem:[#allocation15 + $0x360] sm:$0xff]
        %v2231 = vld [vmem:[#allocation15 + $0x368] sm:$0xff]
        %v2232 = vld [vmem:[#allocation15 + $0x370] sm:$0xff]
        %v2233 = vld [vmem:[#allocation15 + $0x378] sm:$0xff]
        %v2234 = vld [vmem:[#allocation15 + $0x380] sm:$0xff]
        %v2235 = vld [vmem:[#allocation15 + $0x388] sm:$0xff]
        %v2236 = vld [vmem:[#allocation15 + $0x390] sm:$0xff]
        %v2237 = vld [vmem:[#allocation15 + $0x398] sm:$0xff]
        %v2238 = vld [vmem:[#allocation15 + $0x3a0] sm:$0xff]
        %v2239 = vld [vmem:[#allocation15 + $0x3a8] sm:$0xff]
        %v2240 = vld [vmem:[#allocation15 + $0x3b0] sm:$0xff]
        %v2241 = vld [vmem:[#allocation15 + $0x3b8] sm:$0xff]
        %v2242 = vld [vmem:[#allocation15 + $0x3c0] sm:$0xff]
        %v2243 = vld [vmem:[#allocation15 + $0x3c8] sm:$0xff]
        %v2244 = vld [vmem:[#allocation15 + $0x3d0] sm:$0xff]
        %v2245 = vld [vmem:[#allocation15 + $0x3d8] sm:$0xff]
        %v2246 = vld [vmem:[#allocation15 + $0x3e0] sm:$0xff]
        %v2247 = vld [vmem:[#allocation15 + $0x3e8] sm:$0xff]
        %v2248 = vld [vmem:[#allocation15 + $0x3f0] sm:$0xff]
        %v2249 = vld [vmem:[#allocation15 + $0x3f8] sm:$0xff]
        %v2250 = vld [vmem:[%s10] sm:$0xff]
        %v2252 = vlaneseq
        %v2253 = vshrl.u32 %v2252, 7
        %v2254 = vsub.s32 0, %v2253
        %v2255 = vrot.slane %v2250, %v2254
        %v2256 = vlaneseq
        %v2257 = vshrl.u32 %v2256, 7
        %v2258 = vsub.s32 1, %v2257
        %v2259 = vrot.slane %v2250, %v2258
        %v2260 = vlaneseq
        %v2261 = vshrl.u32 %v2260, 7
        %v2262 = vsub.s32 2, %v2261
        %v2263 = vrot.slane %v2250, %v2262
        %v2264 = vlaneseq
        %v2265 = vshrl.u32 %v2264, 7
        %v2266 = vsub.s32 3, %v2265
        %v2267 = vrot.slane %v2250, %v2266
        %v2268 = vlaneseq
        %v2269 = vshrl.u32 %v2268, 7
        %v2270 = vsub.s32 4, %v2269
        %v2271 = vrot.slane %v2250, %v2270
        %v2272 = vlaneseq
        %v2273 = vshrl.u32 %v2272, 7
        %v2274 = vsub.s32 5, %v2273
        %v2275 = vrot.slane %v2250, %v2274
        %v2276 = vlaneseq
        %v2277 = vshrl.u32 %v2276, 7
        %v2278 = vsub.s32 6, %v2277
        %v2279 = vrot.slane %v2250, %v2278
        %v2280 = vlaneseq
        %v2281 = vshrl.u32 %v2280, 7
        %v2282 = vsub.s32 7, %v2281
        %v2283 = vrot.slane %v2250, %v2282
        %v2420 = vunpack.c.l.b16 %v2122
        %v2421 = vunpack.c.h.b16 %v2122
        %v2422 = vunpack.c.l.b16 %v2123
        %v2423 = vunpack.c.h.b16 %v2123
        %v2424 = vunpack.c.l.b16 %v2124
        %v2425 = vunpack.c.h.b16 %v2124
        %v2426 = vunpack.c.l.b16 %v2125
        %v2427 = vunpack.c.h.b16 %v2125
        %v2428 = vunpack.c.l.b16 %v2126
        %v2429 = vunpack.c.h.b16 %v2126
        %v2430 = vunpack.c.l.b16 %v2127
        %v2431 = vunpack.c.h.b16 %v2127
        %v2432 = vunpack.c.l.b16 %v2128
        %v2433 = vunpack.c.h.b16 %v2128
        %v2434 = vunpack.c.l.b16 %v2129
        %v2435 = vunpack.c.h.b16 %v2129
        %v2436 = vunpack.c.l.b16 %v2130
        %v2437 = vunpack.c.h.b16 %v2130
        %v2438 = vunpack.c.l.b16 %v2131
        %v2439 = vunpack.c.h.b16 %v2131
        %v2440 = vunpack.c.l.b16 %v2132
        %v2441 = vunpack.c.h.b16 %v2132
        %v2442 = vunpack.c.l.b16 %v2133
        %v2443 = vunpack.c.h.b16 %v2133
        %v2444 = vunpack.c.l.b16 %v2134
        %v2445 = vunpack.c.h.b16 %v2134
        %v2446 = vunpack.c.l.b16 %v2135
        %v2447 = vunpack.c.h.b16 %v2135
        %v2448 = vunpack.c.l.b16 %v2136
        %v2449 = vunpack.c.h.b16 %v2136
        %v2450 = vunpack.c.l.b16 %v2137
        %v2451 = vunpack.c.h.b16 %v2137
        %v2452 = vunpack.c.l.b16 %v2138
        %v2453 = vunpack.c.h.b16 %v2138
        %v2454 = vunpack.c.l.b16 %v2139
        %v2455 = vunpack.c.h.b16 %v2139
        %v2456 = vunpack.c.l.b16 %v2140
        %v2457 = vunpack.c.h.b16 %v2140
        %v2458 = vunpack.c.l.b16 %v2141
        %v2459 = vunpack.c.h.b16 %v2141
        %v2460 = vunpack.c.l.b16 %v2142
        %v2461 = vunpack.c.h.b16 %v2142
        %v2462 = vunpack.c.l.b16 %v2143
        %v2463 = vunpack.c.h.b16 %v2143
        %v2464 = vunpack.c.l.b16 %v2144
        %v2465 = vunpack.c.h.b16 %v2144
        %v2466 = vunpack.c.l.b16 %v2145
        %v2467 = vunpack.c.h.b16 %v2145
        %v2468 = vunpack.c.l.b16 %v2146
        %v2469 = vunpack.c.h.b16 %v2146
        %v2470 = vunpack.c.l.b16 %v2147
        %v2471 = vunpack.c.h.b16 %v2147
        %v2472 = vunpack.c.l.b16 %v2148
        %v2473 = vunpack.c.h.b16 %v2148
        %v2474 = vunpack.c.l.b16 %v2149
        %v2475 = vunpack.c.h.b16 %v2149
        %v2476 = vunpack.c.l.b16 %v2150
        %v2477 = vunpack.c.h.b16 %v2150
        %v2478 = vunpack.c.l.b16 %v2151
        %v2479 = vunpack.c.h.b16 %v2151
        %v2480 = vunpack.c.l.b16 %v2152
        %v2481 = vunpack.c.h.b16 %v2152
        %v2482 = vunpack.c.l.b16 %v2153
        %v2483 = vunpack.c.h.b16 %v2153
        %v2484 = vunpack.c.l.b16 %v2154
        %v2485 = vunpack.c.h.b16 %v2154
        %v2486 = vunpack.c.l.b16 %v2155
        %v2487 = vunpack.c.h.b16 %v2155
        %v2488 = vunpack.c.l.b16 %v2156
        %v2489 = vunpack.c.h.b16 %v2156
        %v2490 = vunpack.c.l.b16 %v2157
        %v2491 = vunpack.c.h.b16 %v2157
        %v2492 = vunpack.c.l.b16 %v2158
        %v2493 = vunpack.c.h.b16 %v2158
        %v2494 = vunpack.c.l.b16 %v2159
        %v2495 = vunpack.c.h.b16 %v2159
        %v2496 = vunpack.c.l.b16 %v2160
        %v2497 = vunpack.c.h.b16 %v2160
        %v2498 = vunpack.c.l.b16 %v2161
        %v2499 = vunpack.c.h.b16 %v2161
        %v2500 = vunpack.c.l.b16 %v2162
        %v2501 = vunpack.c.h.b16 %v2162
        %v2502 = vunpack.c.l.b16 %v2163
        %v2503 = vunpack.c.h.b16 %v2163
        %v2504 = vunpack.c.l.b16 %v2164
        %v2505 = vunpack.c.h.b16 %v2164
        %v2506 = vunpack.c.l.b16 %v2165
        %v2507 = vunpack.c.h.b16 %v2165
        %v2508 = vunpack.c.l.b16 %v2166
        %v2509 = vunpack.c.h.b16 %v2166
        %v2510 = vunpack.c.l.b16 %v2167
        %v2511 = vunpack.c.h.b16 %v2167
        %v2512 = vunpack.c.l.b16 %v2168
        %v2513 = vunpack.c.h.b16 %v2168
        %v2514 = vunpack.c.l.b16 %v2169
        %v2515 = vunpack.c.h.b16 %v2169
        %v2516 = vunpack.c.l.b16 %v2170
        %v2517 = vunpack.c.h.b16 %v2170
        %v2518 = vunpack.c.l.b16 %v2171
        %v2519 = vunpack.c.h.b16 %v2171
        %v2520 = vunpack.c.l.b16 %v2172
        %v2521 = vunpack.c.h.b16 %v2172
        %v2522 = vunpack.c.l.b16 %v2173
        %v2523 = vunpack.c.h.b16 %v2173
        %v2524 = vunpack.c.l.b16 %v2174
        %v2525 = vunpack.c.h.b16 %v2174
        %v2526 = vunpack.c.l.b16 %v2175
        %v2527 = vunpack.c.h.b16 %v2175
        %v2528 = vunpack.c.l.b16 %v2176
        %v2529 = vunpack.c.h.b16 %v2176
        %v2530 = vunpack.c.l.b16 %v2177
        %v2531 = vunpack.c.h.b16 %v2177
        %v2532 = vunpack.c.l.b16 %v2178
        %v2533 = vunpack.c.h.b16 %v2178
        %v2534 = vunpack.c.l.b16 %v2179
        %v2535 = vunpack.c.h.b16 %v2179
        %v2536 = vunpack.c.l.b16 %v2180
        %v2537 = vunpack.c.h.b16 %v2180
        %v2538 = vunpack.c.l.b16 %v2181
        %v2539 = vunpack.c.h.b16 %v2181
        %v2540 = vunpack.c.l.b16 %v2182
        %v2541 = vunpack.c.h.b16 %v2182
        %v2542 = vunpack.c.l.b16 %v2183
        %v2543 = vunpack.c.h.b16 %v2183
        %v2544 = vunpack.c.l.b16 %v2184
        %v2545 = vunpack.c.h.b16 %v2184
        %v2546 = vunpack.c.l.b16 %v2185
        %v2547 = vunpack.c.h.b16 %v2185
        %v2548 = vunpack.c.l.b16 %v2186
        %v2549 = vunpack.c.h.b16 %v2186
        %v2550 = vunpack.c.l.b16 %v2187
        %v2551 = vunpack.c.h.b16 %v2187
        %v2552 = vunpack.c.l.b16 %v2188
        %v2553 = vunpack.c.h.b16 %v2188
        %v2554 = vunpack.c.l.b16 %v2189
        %v2555 = vunpack.c.h.b16 %v2189
        %v2556 = vunpack.c.l.b16 %v2190
        %v2557 = vunpack.c.h.b16 %v2190
        %v2558 = vunpack.c.l.b16 %v2191
        %v2559 = vunpack.c.h.b16 %v2191
        %v2560 = vunpack.c.l.b16 %v2192
        %v2561 = vunpack.c.h.b16 %v2192
        %v2562 = vunpack.c.l.b16 %v2193
        %v2563 = vunpack.c.h.b16 %v2193
        %v2564 = vunpack.c.l.b16 %v2194
        %v2565 = vunpack.c.h.b16 %v2194
        %v2566 = vunpack.c.l.b16 %v2195
        %v2567 = vunpack.c.h.b16 %v2195
        %v2568 = vunpack.c.l.b16 %v2196
        %v2569 = vunpack.c.h.b16 %v2196
        %v2570 = vunpack.c.l.b16 %v2197
        %v2571 = vunpack.c.h.b16 %v2197
        %v2572 = vunpack.c.l.b16 %v2198
        %v2573 = vunpack.c.h.b16 %v2198
        %v2574 = vunpack.c.l.b16 %v2199
        %v2575 = vunpack.c.h.b16 %v2199
        %v2576 = vunpack.c.l.b16 %v2200
        %v2577 = vunpack.c.h.b16 %v2200
        %v2578 = vunpack.c.l.b16 %v2201
        %v2579 = vunpack.c.h.b16 %v2201
        %v2580 = vunpack.c.l.b16 %v2202
        %v2581 = vunpack.c.h.b16 %v2202
        %v2582 = vunpack.c.l.b16 %v2203
        %v2583 = vunpack.c.h.b16 %v2203
        %v2584 = vunpack.c.l.b16 %v2204
        %v2585 = vunpack.c.h.b16 %v2204
        %v2586 = vunpack.c.l.b16 %v2205
        %v2587 = vunpack.c.h.b16 %v2205
        %v2588 = vunpack.c.l.b16 %v2206
        %v2589 = vunpack.c.h.b16 %v2206
        %v2590 = vunpack.c.l.b16 %v2207
        %v2591 = vunpack.c.h.b16 %v2207
        %v2592 = vunpack.c.l.b16 %v2208
        %v2593 = vunpack.c.h.b16 %v2208
        %v2594 = vunpack.c.l.b16 %v2209
        %v2595 = vunpack.c.h.b16 %v2209
        %v2596 = vunpack.c.l.b16 %v2210
        %v2597 = vunpack.c.h.b16 %v2210
        %v2598 = vunpack.c.l.b16 %v2211
        %v2599 = vunpack.c.h.b16 %v2211
        %v2600 = vunpack.c.l.b16 %v2212
        %v2601 = vunpack.c.h.b16 %v2212
        %v2602 = vunpack.c.l.b16 %v2213
        %v2603 = vunpack.c.h.b16 %v2213
        %v2604 = vunpack.c.l.b16 %v2214
        %v2605 = vunpack.c.h.b16 %v2214
        %v2606 = vunpack.c.l.b16 %v2215
        %v2607 = vunpack.c.h.b16 %v2215
        %v2608 = vunpack.c.l.b16 %v2216
        %v2609 = vunpack.c.h.b16 %v2216
        %v2610 = vunpack.c.l.b16 %v2217
        %v2611 = vunpack.c.h.b16 %v2217
        %v2612 = vunpack.c.l.b16 %v2218
        %v2613 = vunpack.c.h.b16 %v2218
        %v2614 = vunpack.c.l.b16 %v2219
        %v2615 = vunpack.c.h.b16 %v2219
        %v2616 = vunpack.c.l.b16 %v2220
        %v2617 = vunpack.c.h.b16 %v2220
        %v2618 = vunpack.c.l.b16 %v2221
        %v2619 = vunpack.c.h.b16 %v2221
        %v2620 = vunpack.c.l.b16 %v2222
        %v2621 = vunpack.c.h.b16 %v2222
        %v2622 = vunpack.c.l.b16 %v2223
        %v2623 = vunpack.c.h.b16 %v2223
        %v2624 = vunpack.c.l.b16 %v2224
        %v2625 = vunpack.c.h.b16 %v2224
        %v2626 = vunpack.c.l.b16 %v2225
        %v2627 = vunpack.c.h.b16 %v2225
        %v2628 = vunpack.c.l.b16 %v2226
        %v2629 = vunpack.c.h.b16 %v2226
        %v2630 = vunpack.c.l.b16 %v2227
        %v2631 = vunpack.c.h.b16 %v2227
        %v2632 = vunpack.c.l.b16 %v2228
        %v2633 = vunpack.c.h.b16 %v2228
        %v2634 = vunpack.c.l.b16 %v2229
        %v2635 = vunpack.c.h.b16 %v2229
        %v2636 = vunpack.c.l.b16 %v2230
        %v2637 = vunpack.c.h.b16 %v2230
        %v2638 = vunpack.c.l.b16 %v2231
        %v2639 = vunpack.c.h.b16 %v2231
        %v2640 = vunpack.c.l.b16 %v2232
        %v2641 = vunpack.c.h.b16 %v2232
        %v2642 = vunpack.c.l.b16 %v2233
        %v2643 = vunpack.c.h.b16 %v2233
        %v2644 = vunpack.c.l.b16 %v2234
        %v2645 = vunpack.c.h.b16 %v2234
        %v2646 = vunpack.c.l.b16 %v2235
        %v2647 = vunpack.c.h.b16 %v2235
        %v2648 = vunpack.c.l.b16 %v2236
        %v2649 = vunpack.c.h.b16 %v2236
        %v2650 = vunpack.c.l.b16 %v2237
        %v2651 = vunpack.c.h.b16 %v2237
        %v2652 = vunpack.c.l.b16 %v2238
        %v2653 = vunpack.c.h.b16 %v2238
        %v2654 = vunpack.c.l.b16 %v2239
        %v2655 = vunpack.c.h.b16 %v2239
        %v2656 = vunpack.c.l.b16 %v2240
        %v2657 = vunpack.c.h.b16 %v2240
        %v2658 = vunpack.c.l.b16 %v2241
        %v2659 = vunpack.c.h.b16 %v2241
        %v2660 = vunpack.c.l.b16 %v2242
        %v2661 = vunpack.c.h.b16 %v2242
        %v2662 = vunpack.c.l.b16 %v2243
        %v2663 = vunpack.c.h.b16 %v2243
        %v2664 = vunpack.c.l.b16 %v2244
        %v2665 = vunpack.c.h.b16 %v2244
        %v2666 = vunpack.c.l.b16 %v2245
        %v2667 = vunpack.c.h.b16 %v2245
        %v2668 = vunpack.c.l.b16 %v2246
        %v2669 = vunpack.c.h.b16 %v2246
        %v2670 = vunpack.c.l.b16 %v2247
        %v2671 = vunpack.c.h.b16 %v2247
        %v2672 = vunpack.c.l.b16 %v2248
        %v2673 = vunpack.c.h.b16 %v2248
        %v2674 = vunpack.c.l.b16 %v2249
        %v2675 = vunpack.c.h.b16 %v2249
        %v2676 = vpack.c.b16 %v2428, %v2420
        %v2677 = vpack.c.b16 %v2429, %v2421
        %v2678 = vpack.c.b16 %v2430, %v2422
        %v2679 = vpack.c.b16 %v2431, %v2423
        %v2680 = vpack.c.b16 %v2432, %v2424
        %v2681 = vpack.c.b16 %v2433, %v2425
        %v2682 = vpack.c.b16 %v2434, %v2426
        %v2683 = vpack.c.b16 %v2435, %v2427
        %v2684 = vpack.c.b16 %v2444, %v2436
        %v2685 = vpack.c.b16 %v2445, %v2437
        %v2686 = vpack.c.b16 %v2446, %v2438
        %v2687 = vpack.c.b16 %v2447, %v2439
        %v2688 = vpack.c.b16 %v2448, %v2440
        %v2689 = vpack.c.b16 %v2449, %v2441
        %v2690 = vpack.c.b16 %v2450, %v2442
        %v2691 = vpack.c.b16 %v2451, %v2443
        %v2692 = vpack.c.b16 %v2460, %v2452
        %v2693 = vpack.c.b16 %v2461, %v2453
        %v2694 = vpack.c.b16 %v2462, %v2454
        %v2695 = vpack.c.b16 %v2463, %v2455
        %v2696 = vpack.c.b16 %v2464, %v2456
        %v2697 = vpack.c.b16 %v2465, %v2457
        %v2698 = vpack.c.b16 %v2466, %v2458
        %v2699 = vpack.c.b16 %v2467, %v2459
        %v2700 = vpack.c.b16 %v2476, %v2468
        %v2701 = vpack.c.b16 %v2477, %v2469
        %v2702 = vpack.c.b16 %v2478, %v2470
        %v2703 = vpack.c.b16 %v2479, %v2471
        %v2704 = vpack.c.b16 %v2480, %v2472
        %v2705 = vpack.c.b16 %v2481, %v2473
        %v2706 = vpack.c.b16 %v2482, %v2474
        %v2707 = vpack.c.b16 %v2483, %v2475
        %v2708 = vpack.c.b16 %v2492, %v2484
        %v2709 = vpack.c.b16 %v2493, %v2485
        %v2710 = vpack.c.b16 %v2494, %v2486
        %v2711 = vpack.c.b16 %v2495, %v2487
        %v2712 = vpack.c.b16 %v2496, %v2488
        %v2713 = vpack.c.b16 %v2497, %v2489
        %v2714 = vpack.c.b16 %v2498, %v2490
        %v2715 = vpack.c.b16 %v2499, %v2491
        %v2716 = vpack.c.b16 %v2508, %v2500
        %v2717 = vpack.c.b16 %v2509, %v2501
        %v2718 = vpack.c.b16 %v2510, %v2502
        %v2719 = vpack.c.b16 %v2511, %v2503
        %v2720 = vpack.c.b16 %v2512, %v2504
        %v2721 = vpack.c.b16 %v2513, %v2505
        %v2722 = vpack.c.b16 %v2514, %v2506
        %v2723 = vpack.c.b16 %v2515, %v2507
        %v2724 = vpack.c.b16 %v2524, %v2516
        %v2725 = vpack.c.b16 %v2525, %v2517
        %v2726 = vpack.c.b16 %v2526, %v2518
        %v2727 = vpack.c.b16 %v2527, %v2519
        %v2728 = vpack.c.b16 %v2528, %v2520
        %v2729 = vpack.c.b16 %v2529, %v2521
        %v2730 = vpack.c.b16 %v2530, %v2522
        %v2731 = vpack.c.b16 %v2531, %v2523
        %v2732 = vpack.c.b16 %v2540, %v2532
        %v2733 = vpack.c.b16 %v2541, %v2533
        %v2734 = vpack.c.b16 %v2542, %v2534
        %v2735 = vpack.c.b16 %v2543, %v2535
        %v2736 = vpack.c.b16 %v2544, %v2536
        %v2737 = vpack.c.b16 %v2545, %v2537
        %v2738 = vpack.c.b16 %v2546, %v2538
        %v2739 = vpack.c.b16 %v2547, %v2539
        %v2740 = vpack.c.b16 %v2556, %v2548
        %v2741 = vpack.c.b16 %v2557, %v2549
        %v2742 = vpack.c.b16 %v2558, %v2550
        %v2743 = vpack.c.b16 %v2559, %v2551
        %v2744 = vpack.c.b16 %v2560, %v2552
        %v2745 = vpack.c.b16 %v2561, %v2553
        %v2746 = vpack.c.b16 %v2562, %v2554
        %v2747 = vpack.c.b16 %v2563, %v2555
        %v2748 = vpack.c.b16 %v2572, %v2564
        %v2749 = vpack.c.b16 %v2573, %v2565
        %v2750 = vpack.c.b16 %v2574, %v2566
        %v2751 = vpack.c.b16 %v2575, %v2567
        %v2752 = vpack.c.b16 %v2576, %v2568
        %v2753 = vpack.c.b16 %v2577, %v2569
        %v2754 = vpack.c.b16 %v2578, %v2570
        %v2755 = vpack.c.b16 %v2579, %v2571
        %v2756 = vpack.c.b16 %v2588, %v2580
        %v2757 = vpack.c.b16 %v2589, %v2581
        %v2758 = vpack.c.b16 %v2590, %v2582
        %v2759 = vpack.c.b16 %v2591, %v2583
        %v2760 = vpack.c.b16 %v2592, %v2584
        %v2761 = vpack.c.b16 %v2593, %v2585
        %v2762 = vpack.c.b16 %v2594, %v2586
        %v2763 = vpack.c.b16 %v2595, %v2587
        %v2764 = vpack.c.b16 %v2604, %v2596
        %v2765 = vpack.c.b16 %v2605, %v2597
        %v2766 = vpack.c.b16 %v2606, %v2598
        %v2767 = vpack.c.b16 %v2607, %v2599
        %v2768 = vpack.c.b16 %v2608, %v2600
        %v2769 = vpack.c.b16 %v2609, %v2601
        %v2770 = vpack.c.b16 %v2610, %v2602
        %v2771 = vpack.c.b16 %v2611, %v2603
        %v2772 = vpack.c.b16 %v2620, %v2612
        %v2773 = vpack.c.b16 %v2621, %v2613
        %v2774 = vpack.c.b16 %v2622, %v2614
        %v2775 = vpack.c.b16 %v2623, %v2615
        %v2776 = vpack.c.b16 %v2624, %v2616
        %v2777 = vpack.c.b16 %v2625, %v2617
        %v2778 = vpack.c.b16 %v2626, %v2618
        %v2779 = vpack.c.b16 %v2627, %v2619
        %v2780 = vpack.c.b16 %v2636, %v2628
        %v2781 = vpack.c.b16 %v2637, %v2629
        %v2782 = vpack.c.b16 %v2638, %v2630
        %v2783 = vpack.c.b16 %v2639, %v2631
        %v2784 = vpack.c.b16 %v2640, %v2632
        %v2785 = vpack.c.b16 %v2641, %v2633
        %v2786 = vpack.c.b16 %v2642, %v2634
        %v2787 = vpack.c.b16 %v2643, %v2635
        %v2788 = vpack.c.b16 %v2652, %v2644
        %v2789 = vpack.c.b16 %v2653, %v2645
        %v2790 = vpack.c.b16 %v2654, %v2646
        %v2791 = vpack.c.b16 %v2655, %v2647
        %v2792 = vpack.c.b16 %v2656, %v2648
        %v2793 = vpack.c.b16 %v2657, %v2649
        %v2794 = vpack.c.b16 %v2658, %v2650
        %v2795 = vpack.c.b16 %v2659, %v2651
        %v2796 = vpack.c.b16 %v2668, %v2660
        %v2797 = vpack.c.b16 %v2669, %v2661
        %v2798 = vpack.c.b16 %v2670, %v2662
        %v2799 = vpack.c.b16 %v2671, %v2663
        %v2800 = vpack.c.b16 %v2672, %v2664
        %v2801 = vpack.c.b16 %v2673, %v2665
        %v2802 = vpack.c.b16 %v2674, %v2666
        %v2803 = vpack.c.b16 %v2675, %v2667
        %2932 = vmatprep.subr.bf16.mxu0 %v2733
        %2933 = vmatpush1.bf16.msra.mxu0 %v2732
        %2934 = vmatprep.subr.bf16.mxu0 %v2725
        %2935 = vmatpush1.bf16.msra.mxu0 %v2724
        %2936 = vmatprep.subr.bf16.mxu0 %v2717
        %2937 = vmatpush1.bf16.msra.mxu0 %v2716
        %2938 = vmatprep.subr.bf16.mxu0 %v2709
        %2939 = vmatpush1.bf16.msra.mxu0 %v2708
        %2940 = vmatprep.subr.bf16.mxu0 %v2701
        %2941 = vmatpush1.bf16.msra.mxu0 %v2700
        %2942 = vmatprep.subr.bf16.mxu0 %v2693
        %2943 = vmatpush1.bf16.msra.mxu0 %v2692
        %2944 = vmatprep.subr.bf16.mxu0 %v2685
        %2945 = vmatpush1.bf16.msra.mxu0 %v2684
        %2946 = vmatprep.subr.bf16.mxu0 %v2677
        %2947 = vmatpush1.bf16.msra.mxu0 %v2676
        %2948 = vmatprep.subr.bf16.mxu0 %v2797
        %2949 = vmatpush2.bf16.msra.mxu0 %v2796
        %2950 = vmatprep.subr.bf16.mxu0 %v2789
        %2951 = vmatpush2.bf16.msra.mxu0 %v2788
        %2952 = vmatprep.subr.bf16.mxu0 %v2781
        %2953 = vmatpush2.bf16.msra.mxu0 %v2780
        %2954 = vmatprep.subr.bf16.mxu0 %v2773
        %2955 = vmatpush2.bf16.msra.mxu0 %v2772
        %2956 = vmatprep.subr.bf16.mxu0 %v2765
        %2957 = vmatpush2.bf16.msra.mxu0 %v2764
        %2958 = vmatprep.subr.bf16.mxu0 %v2757
        %2959 = vmatpush2.bf16.msra.mxu0 %v2756
        %2960 = vmatprep.subr.bf16.mxu0 %v2749
        %2961 = vmatpush2.bf16.msra.mxu0 %v2748
        %2962 = vmatprep.subr.bf16.mxu0 %v2741
        %2963 = vmatpush2.bf16.msra.mxu0 %v2740
        %2964 = vmatprep.mubr.bf16.mxu0 %v2121
        %2965 = vmatmul.mubr.bf16.gmra.mxu0 %v2120
        %v2966 = vpop.f32.mrf.mxu0
        %v2967 = vadd.f32 %v2255, %v2966
        %v2968 = vpop.f32.mrf.mxu0
        %v2969 = vadd.f32 %v2259, %v2968
        %v2970 = vpop.f32.mrf.mxu0
        %v2971 = vadd.f32 %v2255, %v2970
        %v2972 = vpop.f32.mrf.mxu0
        %v2973 = vadd.f32 %v2259, %v2972
        %2974 = vdwg.mxu0
        %2975 = vmatprep.subr.bf16.mxu0 %v2735
        %2976 = vmatpush1.bf16.msra.mxu0 %v2734
        %2977 = vmatprep.subr.bf16.mxu0 %v2727
        %2978 = vmatpush1.bf16.msra.mxu0 %v2726
        %2979 = vmatprep.subr.bf16.mxu0 %v2719
        %2980 = vmatpush1.bf16.msra.mxu0 %v2718
        %2981 = vmatprep.subr.bf16.mxu0 %v2711
        %2982 = vmatpush1.bf16.msra.mxu0 %v2710
        %2983 = vmatprep.subr.bf16.mxu0 %v2703
        %2984 = vmatpush1.bf16.msra.mxu0 %v2702
        %2985 = vmatprep.subr.bf16.mxu0 %v2695
        %2986 = vmatpush1.bf16.msra.mxu0 %v2694
        %2987 = vmatprep.subr.bf16.mxu0 %v2687
        %2988 = vmatpush1.bf16.msra.mxu0 %v2686
        %2989 = vmatprep.subr.bf16.mxu0 %v2679
        %2990 = vmatpush1.bf16.msra.mxu0 %v2678
        %2991 = vmatprep.subr.bf16.mxu0 %v2799
        %2992 = vmatpush2.bf16.msra.mxu0 %v2798
        %2993 = vmatprep.subr.bf16.mxu0 %v2791
        %2994 = vmatpush2.bf16.msra.mxu0 %v2790
        %2995 = vmatprep.subr.bf16.mxu0 %v2783
        %2996 = vmatpush2.bf16.msra.mxu0 %v2782
        %2997 = vmatprep.subr.bf16.mxu0 %v2775
        %2998 = vmatpush2.bf16.msra.mxu0 %v2774
        %2999 = vmatprep.subr.bf16.mxu0 %v2767
        %3000 = vmatpush2.bf16.msra.mxu0 %v2766
        %3001 = vmatprep.subr.bf16.mxu0 %v2759
        %3002 = vmatpush2.bf16.msra.mxu0 %v2758
        %3003 = vmatprep.subr.bf16.mxu0 %v2751
        %3004 = vmatpush2.bf16.msra.mxu0 %v2750
        %3005 = vmatprep.subr.bf16.mxu0 %v2743
        %3006 = vmatpush2.bf16.msra.mxu0 %v2742
        %3007 = vmatprep.mubr.bf16.mxu0 %v2121
        %3008 = vmatmul.mubr.bf16.gmra.mxu0 %v2120
        %v3009 = vpop.f32.mrf.mxu0
        %v3010 = vadd.f32 %v2263, %v3009
        %v3011 = vpop.f32.mrf.mxu0
        %v3012 = vadd.f32 %v2267, %v3011
        %v3013 = vpop.f32.mrf.mxu0
        %v3014 = vadd.f32 %v2263, %v3013
        %v3015 = vpop.f32.mrf.mxu0
        %v3016 = vadd.f32 %v2267, %v3015
        %3017 = vdwg.mxu0
        %3018 = vmatprep.subr.bf16.mxu0 %v2737
        %3019 = vmatpush1.bf16.msra.mxu0 %v2736
        %3020 = vmatprep.subr.bf16.mxu0 %v2729
        %3021 = vmatpush1.bf16.msra.mxu0 %v2728
        %3022 = vmatprep.subr.bf16.mxu0 %v2721
        %3023 = vmatpush1.bf16.msra.mxu0 %v2720
        %3024 = vmatprep.subr.bf16.mxu0 %v2713
        %3025 = vmatpush1.bf16.msra.mxu0 %v2712
        %3026 = vmatprep.subr.bf16.mxu0 %v2705
        %3027 = vmatpush1.bf16.msra.mxu0 %v2704
        %3028 = vmatprep.subr.bf16.mxu0 %v2697
        %3029 = vmatpush1.bf16.msra.mxu0 %v2696
        %3030 = vmatprep.subr.bf16.mxu0 %v2689
        %3031 = vmatpush1.bf16.msra.mxu0 %v2688
        %3032 = vmatprep.subr.bf16.mxu0 %v2681
        %3033 = vmatpush1.bf16.msra.mxu0 %v2680
        %3034 = vmatprep.subr.bf16.mxu0 %v2801
        %3035 = vmatpush2.bf16.msra.mxu0 %v2800
        %3036 = vmatprep.subr.bf16.mxu0 %v2793
        %3037 = vmatpush2.bf16.msra.mxu0 %v2792
        %3038 = vmatprep.subr.bf16.mxu0 %v2785
        %3039 = vmatpush2.bf16.msra.mxu0 %v2784
        %3040 = vmatprep.subr.bf16.mxu0 %v2777
        %3041 = vmatpush2.bf16.msra.mxu0 %v2776
        %3042 = vmatprep.subr.bf16.mxu0 %v2769
        %3043 = vmatpush2.bf16.msra.mxu0 %v2768
        %3044 = vmatprep.subr.bf16.mxu0 %v2761
        %3045 = vmatpush2.bf16.msra.mxu0 %v2760
        %3046 = vmatprep.subr.bf16.mxu0 %v2753
        %3047 = vmatpush2.bf16.msra.mxu0 %v2752
        %3048 = vmatprep.subr.bf16.mxu0 %v2745
        %3049 = vmatpush2.bf16.msra.mxu0 %v2744
        %3050 = vmatprep.mubr.bf16.mxu0 %v2121
        %3051 = vmatmul.mubr.bf16.gmra.mxu0 %v2120
        %v3052 = vpop.f32.mrf.mxu0
        %v3053 = vadd.f32 %v2271, %v3052
        %v3054 = vpop.f32.mrf.mxu0
        %v3055 = vadd.f32 %v2275, %v3054
        %v3056 = vpop.f32.mrf.mxu0
        %v3057 = vadd.f32 %v2271, %v3056
        %v3058 = vpop.f32.mrf.mxu0
        %v3059 = vadd.f32 %v2275, %v3058
        %3060 = vdwg.mxu0
        %3061 = vmatprep.subr.bf16.mxu0 %v2739
        %3062 = vmatpush1.bf16.msra.mxu0 %v2738
        %3063 = vmatprep.subr.bf16.mxu0 %v2731
        %3064 = vmatpush1.bf16.msra.mxu0 %v2730
        %3065 = vmatprep.subr.bf16.mxu0 %v2723
        %3066 = vmatpush1.bf16.msra.mxu0 %v2722
        %3067 = vmatprep.subr.bf16.mxu0 %v2715
        %3068 = vmatpush1.bf16.msra.mxu0 %v2714
        %3069 = vmatprep.subr.bf16.mxu0 %v2707
        %3070 = vmatpush1.bf16.msra.mxu0 %v2706
        %3071 = vmatprep.subr.bf16.mxu0 %v2699
        %3072 = vmatpush1.bf16.msra.mxu0 %v2698
        %3073 = vmatprep.subr.bf16.mxu0 %v2691
        %3074 = vmatpush1.bf16.msra.mxu0 %v2690
        %3075 = vmatprep.subr.bf16.mxu0 %v2683
        %3076 = vmatpush1.bf16.msra.mxu0 %v2682
        %3077 = vmatprep.subr.bf16.mxu0 %v2803
        %3078 = vmatpush2.bf16.msra.mxu0 %v2802
        %3079 = vmatprep.subr.bf16.mxu0 %v2795
        %3080 = vmatpush2.bf16.msra.mxu0 %v2794
        %3081 = vmatprep.subr.bf16.mxu0 %v2787
        %3082 = vmatpush2.bf16.msra.mxu0 %v2786
        %3083 = vmatprep.subr.bf16.mxu0 %v2779
        %3084 = vmatpush2.bf16.msra.mxu0 %v2778
        %3085 = vmatprep.subr.bf16.mxu0 %v2771
        %3086 = vmatpush2.bf16.msra.mxu0 %v2770
        %3087 = vmatprep.subr.bf16.mxu0 %v2763
        %3088 = vmatpush2.bf16.msra.mxu0 %v2762
        %3089 = vmatprep.subr.bf16.mxu0 %v2755
        %3090 = vmatpush2.bf16.msra.mxu0 %v2754
        %3091 = vmatprep.subr.bf16.mxu0 %v2747
        %3092 = vmatpush2.bf16.msra.mxu0 %v2746
        %3093 = vmatprep.mubr.bf16.mxu0 %v2121
        %3094 = vmatmul.mubr.bf16.gmra.mxu0 %v2120
        %v3095 = vpop.f32.mrf.mxu0
        %v3096 = vadd.f32 %v2279, %v3095
        %v3097 = vpop.f32.mrf.mxu0
        %v3098 = vadd.f32 %v2283, %v3097
        %v3099 = vpop.f32.mrf.mxu0
        %v3100 = vadd.f32 %v2279, %v3099
        %v3101 = vpop.f32.mrf.mxu0
        %v3102 = vadd.f32 %v2283, %v3101
        %3103 = vdwg.mxu0
        %v3104 = vmul.f32 %v2967, 0.5
        %v3105 = vmul.f32 %v2969, 0.5
        %v3106 = vmul.f32 %v3010, 0.5
        %v3107 = vmul.f32 %v3012, 0.5
        %v3108 = vmul.f32 %v3053, 0.5
        %v3109 = vmul.f32 %v3055, 0.5
        %v3110 = vmul.f32 %v3096, 0.5
        %v3111 = vmul.f32 %v3098, 0.5
        %v3112 = vmul.f32 %v2971, 0.5
        %v3113 = vmul.f32 %v2973, 0.5
        %v3114 = vmul.f32 %v3014, 0.5
        %v3115 = vmul.f32 %v3016, 0.5
        %v3116 = vmul.f32 %v3057, 0.5
        %v3117 = vmul.f32 %v3059, 0.5
        %v3118 = vmul.f32 %v3100, 0.5
        %v3119 = vmul.f32 %v3102, 0.5
        %v3120 = vmul.f32 %v2967, 0.70710677
        %v3121 = vmul.f32 %v2969, 0.70710677
        %v3122 = vmul.f32 %v3010, 0.70710677
        %v3123 = vmul.f32 %v3012, 0.70710677
        %v3124 = vmul.f32 %v3053, 0.70710677
        %v3125 = vmul.f32 %v3055, 0.70710677
        %v3126 = vmul.f32 %v3096, 0.70710677
        %v3127 = vmul.f32 %v3098, 0.70710677
        %v3128 = vmul.f32 %v2971, 0.70710677
        %v3129 = vmul.f32 %v2973, 0.70710677
        %v3130 = vmul.f32 %v3014, 0.70710677
        %v3131 = vmul.f32 %v3016, 0.70710677
        %v3132 = vmul.f32 %v3057, 0.70710677
        %v3133 = vmul.f32 %v3059, 0.70710677
        %v3134 = vmul.f32 %v3100, 0.70710677
        %v3135 = vmul.f32 %v3102, 0.70710677
        %v3136 = verf.f32.pop %v3120
        %v3137 = verf.f32.pop %v3121
        %v3138 = verf.f32.pop %v3122
        %v3139 = verf.f32.pop %v3123
        %v3140 = verf.f32.pop %v3124
        %v3141 = verf.f32.pop %v3125
        %v3142 = verf.f32.pop %v3126
        %v3143 = verf.f32.pop %v3127
        %v3144 = verf.f32.pop %v3128
        %v3145 = verf.f32.pop %v3129
        %v3146 = verf.f32.pop %v3130
        %v3147 = verf.f32.pop %v3131
        %v3148 = verf.f32.pop %v3132
        %v3149 = verf.f32.pop %v3133
        %v3150 = verf.f32.pop %v3134
        %v3151 = verf.f32.pop %v3135
        %v3152 = vadd.f32 %v3136, 1.0
        %v3153 = vadd.f32 %v3137, 1.0
        %v3154 = vadd.f32 %v3138, 1.0
        %v3155 = vadd.f32 %v3139, 1.0
        %v3156 = vadd.f32 %v3140, 1.0
        %v3157 = vadd.f32 %v3141, 1.0
        %v3158 = vadd.f32 %v3142, 1.0
        %v3159 = vadd.f32 %v3143, 1.0
        %v3160 = vadd.f32 %v3144, 1.0
        %v3161 = vadd.f32 %v3145, 1.0
        %v3162 = vadd.f32 %v3146, 1.0
        %v3163 = vadd.f32 %v3147, 1.0
        %v3164 = vadd.f32 %v3148, 1.0
        %v3165 = vadd.f32 %v3149, 1.0
        %v3166 = vadd.f32 %v3150, 1.0
        %v3167 = vadd.f32 %v3151, 1.0
        %v3168 = vmul.f32 %v3104, %v3152
        %v3169 = vmul.f32 %v3105, %v3153
        %v3170 = vmul.f32 %v3106, %v3154
        %v3171 = vmul.f32 %v3107, %v3155
        %v3172 = vmul.f32 %v3108, %v3156
        %v3173 = vmul.f32 %v3109, %v3157
        %v3174 = vmul.f32 %v3110, %v3158
        %v3175 = vmul.f32 %v3111, %v3159
        %v3176 = vmul.f32 %v3112, %v3160
        %v3177 = vmul.f32 %v3113, %v3161
        %v3178 = vmul.f32 %v3114, %v3162
        %v3179 = vmul.f32 %v3115, %v3163
        %v3180 = vmul.f32 %v3116, %v3164
        %v3181 = vmul.f32 %v3117, %v3165
        %v3182 = vmul.f32 %v3118, %v3166
        %v3183 = vmul.f32 %v3119, %v3167
        %v3184 = vpack.c.bf16 %v3176, %v3168
        %v3185 = vpack.c.bf16 %v3177, %v3169
        %v3186 = vpack.c.bf16 %v3178, %v3170
        %v3187 = vpack.c.bf16 %v3179, %v3171
        %v3188 = vpack.c.bf16 %v3180, %v3172
        %v3189 = vpack.c.bf16 %v3181, %v3173
        %v3190 = vpack.c.bf16 %v3182, %v3174
        %v3191 = vpack.c.bf16 %v3183, %v3175
        %v3192 = vld [vmem:[#allocation17] sm:$0xff]
        %v3193 = vld [vmem:[#allocation17 + $0x8] sm:$0xff]
        %v3194 = vld [vmem:[#allocation17 + $0x10] sm:$0xff]
        %v3195 = vld [vmem:[#allocation17 + $0x18] sm:$0xff]
        %v3196 = vld [vmem:[#allocation17 + $0x20] sm:$0xff]
        %v3197 = vld [vmem:[#allocation17 + $0x28] sm:$0xff]
        %v3198 = vld [vmem:[#allocation17 + $0x30] sm:$0xff]
        %v3199 = vld [vmem:[#allocation17 + $0x38] sm:$0xff]
        %v3200 = vld [vmem:[#allocation17 + $0x40] sm:$0xff]
        %v3201 = vld [vmem:[#allocation17 + $0x48] sm:$0xff]
        %v3202 = vld [vmem:[#allocation17 + $0x50] sm:$0xff]
        %v3203 = vld [vmem:[#allocation17 + $0x58] sm:$0xff]
        %v3204 = vld [vmem:[#allocation17 + $0x60] sm:$0xff]
        %v3205 = vld [vmem:[#allocation17 + $0x68] sm:$0xff]
        %v3206 = vld [vmem:[#allocation17 + $0x70] sm:$0xff]
        %v3207 = vld [vmem:[#allocation17 + $0x78] sm:$0xff]
        %v3208 = vld [vmem:[#allocation17 + $0x80] sm:$0xff]
        %v3209 = vld [vmem:[#allocation17 + $0x88] sm:$0xff]
        %v3210 = vld [vmem:[#allocation17 + $0x90] sm:$0xff]
        %v3211 = vld [vmem:[#allocation17 + $0x98] sm:$0xff]
        %v3212 = vld [vmem:[#allocation17 + $0xa0] sm:$0xff]
        %v3213 = vld [vmem:[#allocation17 + $0xa8] sm:$0xff]
        %v3214 = vld [vmem:[#allocation17 + $0xb0] sm:$0xff]
        %v3215 = vld [vmem:[#allocation17 + $0xb8] sm:$0xff]
        %v3216 = vld [vmem:[#allocation17 + $0xc0] sm:$0xff]
        %v3217 = vld [vmem:[#allocation17 + $0xc8] sm:$0xff]
        %v3218 = vld [vmem:[#allocation17 + $0xd0] sm:$0xff]
        %v3219 = vld [vmem:[#allocation17 + $0xd8] sm:$0xff]
        %v3220 = vld [vmem:[#allocation17 + $0xe0] sm:$0xff]
        %v3221 = vld [vmem:[#allocation17 + $0xe8] sm:$0xff]
        %v3222 = vld [vmem:[#allocation17 + $0xf0] sm:$0xff]
        %v3223 = vld [vmem:[#allocation17 + $0xf8] sm:$0xff]
        %v3224 = vld [vmem:[#allocation17 + $0x100] sm:$0xff]
        %v3225 = vld [vmem:[#allocation17 + $0x108] sm:$0xff]
        %v3226 = vld [vmem:[#allocation17 + $0x110] sm:$0xff]
        %v3227 = vld [vmem:[#allocation17 + $0x118] sm:$0xff]
        %v3228 = vld [vmem:[#allocation17 + $0x120] sm:$0xff]
        %v3229 = vld [vmem:[#allocation17 + $0x128] sm:$0xff]
        %v3230 = vld [vmem:[#allocation17 + $0x130] sm:$0xff]
        %v3231 = vld [vmem:[#allocation17 + $0x138] sm:$0xff]
        %v3232 = vld [vmem:[#allocation17 + $0x140] sm:$0xff]
        %v3233 = vld [vmem:[#allocation17 + $0x148] sm:$0xff]
        %v3234 = vld [vmem:[#allocation17 + $0x150] sm:$0xff]
        %v3235 = vld [vmem:[#allocation17 + $0x158] sm:$0xff]
        %v3236 = vld [vmem:[#allocation17 + $0x160] sm:$0xff]
        %v3237 = vld [vmem:[#allocation17 + $0x168] sm:$0xff]
        %v3238 = vld [vmem:[#allocation17 + $0x170] sm:$0xff]
        %v3239 = vld [vmem:[#allocation17 + $0x178] sm:$0xff]
        %v3240 = vld [vmem:[#allocation17 + $0x180] sm:$0xff]
        %v3241 = vld [vmem:[#allocation17 + $0x188] sm:$0xff]
        %v3242 = vld [vmem:[#allocation17 + $0x190] sm:$0xff]
        %v3243 = vld [vmem:[#allocation17 + $0x198] sm:$0xff]
        %v3244 = vld [vmem:[#allocation17 + $0x1a0] sm:$0xff]
        %v3245 = vld [vmem:[#allocation17 + $0x1a8] sm:$0xff]
        %v3246 = vld [vmem:[#allocation17 + $0x1b0] sm:$0xff]
        %v3247 = vld [vmem:[#allocation17 + $0x1b8] sm:$0xff]
        %v3248 = vld [vmem:[#allocation17 + $0x1c0] sm:$0xff]
        %v3249 = vld [vmem:[#allocation17 + $0x1c8] sm:$0xff]
        %v3250 = vld [vmem:[#allocation17 + $0x1d0] sm:$0xff]
        %v3251 = vld [vmem:[#allocation17 + $0x1d8] sm:$0xff]
        %v3252 = vld [vmem:[#allocation17 + $0x1e0] sm:$0xff]
        %v3253 = vld [vmem:[#allocation17 + $0x1e8] sm:$0xff]
        %v3254 = vld [vmem:[#allocation17 + $0x1f0] sm:$0xff]
        %v3255 = vld [vmem:[#allocation17 + $0x1f8] sm:$0xff]
        %v3256 = vld [vmem:[#allocation17 + $0x200] sm:$0xff]
        %v3257 = vld [vmem:[#allocation17 + $0x208] sm:$0xff]
        %v3258 = vld [vmem:[#allocation17 + $0x210] sm:$0xff]
        %v3259 = vld [vmem:[#allocation17 + $0x218] sm:$0xff]
        %v3260 = vld [vmem:[#allocation17 + $0x220] sm:$0xff]
        %v3261 = vld [vmem:[#allocation17 + $0x228] sm:$0xff]
        %v3262 = vld [vmem:[#allocation17 + $0x230] sm:$0xff]
        %v3263 = vld [vmem:[#allocation17 + $0x238] sm:$0xff]
        %v3264 = vld [vmem:[#allocation17 + $0x240] sm:$0xff]
        %v3265 = vld [vmem:[#allocation17 + $0x248] sm:$0xff]
        %v3266 = vld [vmem:[#allocation17 + $0x250] sm:$0xff]
        %v3267 = vld [vmem:[#allocation17 + $0x258] sm:$0xff]
        %v3268 = vld [vmem:[#allocation17 + $0x260] sm:$0xff]
        %v3269 = vld [vmem:[#allocation17 + $0x268] sm:$0xff]
        %v3270 = vld [vmem:[#allocation17 + $0x270] sm:$0xff]
        %v3271 = vld [vmem:[#allocation17 + $0x278] sm:$0xff]
        %v3272 = vld [vmem:[#allocation17 + $0x280] sm:$0xff]
        %v3273 = vld [vmem:[#allocation17 + $0x288] sm:$0xff]
        %v3274 = vld [vmem:[#allocation17 + $0x290] sm:$0xff]
        %v3275 = vld [vmem:[#allocation17 + $0x298] sm:$0xff]
        %v3276 = vld [vmem:[#allocation17 + $0x2a0] sm:$0xff]
        %v3277 = vld [vmem:[#allocation17 + $0x2a8] sm:$0xff]
        %v3278 = vld [vmem:[#allocation17 + $0x2b0] sm:$0xff]
        %v3279 = vld [vmem:[#allocation17 + $0x2b8] sm:$0xff]
        %v3280 = vld [vmem:[#allocation17 + $0x2c0] sm:$0xff]
        %v3281 = vld [vmem:[#allocation17 + $0x2c8] sm:$0xff]
        %v3282 = vld [vmem:[#allocation17 + $0x2d0] sm:$0xff]
        %v3283 = vld [vmem:[#allocation17 + $0x2d8] sm:$0xff]
        %v3284 = vld [vmem:[#allocation17 + $0x2e0] sm:$0xff]
        %v3285 = vld [vmem:[#allocation17 + $0x2e8] sm:$0xff]
        %v3286 = vld [vmem:[#allocation17 + $0x2f0] sm:$0xff]
        %v3287 = vld [vmem:[#allocation17 + $0x2f8] sm:$0xff]
        %v3288 = vld [vmem:[#allocation17 + $0x300] sm:$0xff]
        %v3289 = vld [vmem:[#allocation17 + $0x308] sm:$0xff]
        %v3290 = vld [vmem:[#allocation17 + $0x310] sm:$0xff]
        %v3291 = vld [vmem:[#allocation17 + $0x318] sm:$0xff]
        %v3292 = vld [vmem:[#allocation17 + $0x320] sm:$0xff]
        %v3293 = vld [vmem:[#allocation17 + $0x328] sm:$0xff]
        %v3294 = vld [vmem:[#allocation17 + $0x330] sm:$0xff]
        %v3295 = vld [vmem:[#allocation17 + $0x338] sm:$0xff]
        %v3296 = vld [vmem:[#allocation17 + $0x340] sm:$0xff]
        %v3297 = vld [vmem:[#allocation17 + $0x348] sm:$0xff]
        %v3298 = vld [vmem:[#allocation17 + $0x350] sm:$0xff]
        %v3299 = vld [vmem:[#allocation17 + $0x358] sm:$0xff]
        %v3300 = vld [vmem:[#allocation17 + $0x360] sm:$0xff]
        %v3301 = vld [vmem:[#allocation17 + $0x368] sm:$0xff]
        %v3302 = vld [vmem:[#allocation17 + $0x370] sm:$0xff]
        %v3303 = vld [vmem:[#allocation17 + $0x378] sm:$0xff]
        %v3304 = vld [vmem:[#allocation17 + $0x380] sm:$0xff]
        %v3305 = vld [vmem:[#allocation17 + $0x388] sm:$0xff]
        %v3306 = vld [vmem:[#allocation17 + $0x390] sm:$0xff]
        %v3307 = vld [vmem:[#allocation17 + $0x398] sm:$0xff]
        %v3308 = vld [vmem:[#allocation17 + $0x3a0] sm:$0xff]
        %v3309 = vld [vmem:[#allocation17 + $0x3a8] sm:$0xff]
        %v3310 = vld [vmem:[#allocation17 + $0x3b0] sm:$0xff]
        %v3311 = vld [vmem:[#allocation17 + $0x3b8] sm:$0xff]
        %v3312 = vld [vmem:[#allocation17 + $0x3c0] sm:$0xff]
        %v3313 = vld [vmem:[#allocation17 + $0x3c8] sm:$0xff]
        %v3314 = vld [vmem:[#allocation17 + $0x3d0] sm:$0xff]
        %v3315 = vld [vmem:[#allocation17 + $0x3d8] sm:$0xff]
        %v3316 = vld [vmem:[#allocation17 + $0x3e0] sm:$0xff]
        %v3317 = vld [vmem:[#allocation17 + $0x3e8] sm:$0xff]
        %v3318 = vld [vmem:[#allocation17 + $0x3f0] sm:$0xff]
        %v3319 = vld [vmem:[#allocation17 + $0x3f8] sm:$0xff]
        %v3320 = vld [vmem:[%s12] sm:$0x3]
        %v3322 = vlaneseq
        %v3323 = vshrl.u32 %v3322, 7
        %v3324 = vsub.s32 0, %v3323
        %v3325 = vrot.slane %v3320, %v3324
        %v3326 = vlaneseq
        %v3327 = vshrl.u32 %v3326, 7
        %v3328 = vsub.s32 1, %v3327
        %v3329 = vrot.slane %v3320, %v3328
        %v3460 = vunpack.c.l.b16 %v3192
        %v3461 = vunpack.c.h.b16 %v3192
        %v3462 = vunpack.c.l.b16 %v3193
        %v3463 = vunpack.c.h.b16 %v3193
        %v3464 = vunpack.c.l.b16 %v3194
        %v3465 = vunpack.c.h.b16 %v3194
        %v3466 = vunpack.c.l.b16 %v3195
        %v3467 = vunpack.c.h.b16 %v3195
        %v3468 = vunpack.c.l.b16 %v3196
        %v3469 = vunpack.c.h.b16 %v3196
        %v3470 = vunpack.c.l.b16 %v3197
        %v3471 = vunpack.c.h.b16 %v3197
        %v3472 = vunpack.c.l.b16 %v3198
        %v3473 = vunpack.c.h.b16 %v3198
        %v3474 = vunpack.c.l.b16 %v3199
        %v3475 = vunpack.c.h.b16 %v3199
        %v3476 = vunpack.c.l.b16 %v3200
        %v3477 = vunpack.c.h.b16 %v3200
        %v3478 = vunpack.c.l.b16 %v3201
        %v3479 = vunpack.c.h.b16 %v3201
        %v3480 = vunpack.c.l.b16 %v3202
        %v3481 = vunpack.c.h.b16 %v3202
        %v3482 = vunpack.c.l.b16 %v3203
        %v3483 = vunpack.c.h.b16 %v3203
        %v3484 = vunpack.c.l.b16 %v3204
        %v3485 = vunpack.c.h.b16 %v3204
        %v3486 = vunpack.c.l.b16 %v3205
        %v3487 = vunpack.c.h.b16 %v3205
        %v3488 = vunpack.c.l.b16 %v3206
        %v3489 = vunpack.c.h.b16 %v3206
        %v3490 = vunpack.c.l.b16 %v3207
        %v3491 = vunpack.c.h.b16 %v3207
        %v3492 = vunpack.c.l.b16 %v3208
        %v3493 = vunpack.c.h.b16 %v3208
        %v3494 = vunpack.c.l.b16 %v3209
        %v3495 = vunpack.c.h.b16 %v3209
        %v3496 = vunpack.c.l.b16 %v3210
        %v3497 = vunpack.c.h.b16 %v3210
        %v3498 = vunpack.c.l.b16 %v3211
        %v3499 = vunpack.c.h.b16 %v3211
        %v3500 = vunpack.c.l.b16 %v3212
        %v3501 = vunpack.c.h.b16 %v3212
        %v3502 = vunpack.c.l.b16 %v3213
        %v3503 = vunpack.c.h.b16 %v3213
        %v3504 = vunpack.c.l.b16 %v3214
        %v3505 = vunpack.c.h.b16 %v3214
        %v3506 = vunpack.c.l.b16 %v3215
        %v3507 = vunpack.c.h.b16 %v3215
        %v3508 = vunpack.c.l.b16 %v3216
        %v3509 = vunpack.c.h.b16 %v3216
        %v3510 = vunpack.c.l.b16 %v3217
        %v3511 = vunpack.c.h.b16 %v3217
        %v3512 = vunpack.c.l.b16 %v3218
        %v3513 = vunpack.c.h.b16 %v3218
        %v3514 = vunpack.c.l.b16 %v3219
        %v3515 = vunpack.c.h.b16 %v3219
        %v3516 = vunpack.c.l.b16 %v3220
        %v3517 = vunpack.c.h.b16 %v3220
        %v3518 = vunpack.c.l.b16 %v3221
        %v3519 = vunpack.c.h.b16 %v3221
        %v3520 = vunpack.c.l.b16 %v3222
        %v3521 = vunpack.c.h.b16 %v3222
        %v3522 = vunpack.c.l.b16 %v3223
        %v3523 = vunpack.c.h.b16 %v3223
        %v3524 = vunpack.c.l.b16 %v3224
        %v3525 = vunpack.c.h.b16 %v3224
        %v3526 = vunpack.c.l.b16 %v3225
        %v3527 = vunpack.c.h.b16 %v3225
        %v3528 = vunpack.c.l.b16 %v3226
        %v3529 = vunpack.c.h.b16 %v3226
        %v3530 = vunpack.c.l.b16 %v3227
        %v3531 = vunpack.c.h.b16 %v3227
        %v3532 = vunpack.c.l.b16 %v3228
        %v3533 = vunpack.c.h.b16 %v3228
        %v3534 = vunpack.c.l.b16 %v3229
        %v3535 = vunpack.c.h.b16 %v3229
        %v3536 = vunpack.c.l.b16 %v3230
        %v3537 = vunpack.c.h.b16 %v3230
        %v3538 = vunpack.c.l.b16 %v3231
        %v3539 = vunpack.c.h.b16 %v3231
        %v3540 = vunpack.c.l.b16 %v3232
        %v3541 = vunpack.c.h.b16 %v3232
        %v3542 = vunpack.c.l.b16 %v3233
        %v3543 = vunpack.c.h.b16 %v3233
        %v3544 = vunpack.c.l.b16 %v3234
        %v3545 = vunpack.c.h.b16 %v3234
        %v3546 = vunpack.c.l.b16 %v3235
        %v3547 = vunpack.c.h.b16 %v3235
        %v3548 = vunpack.c.l.b16 %v3236
        %v3549 = vunpack.c.h.b16 %v3236
        %v3550 = vunpack.c.l.b16 %v3237
        %v3551 = vunpack.c.h.b16 %v3237
        %v3552 = vunpack.c.l.b16 %v3238
        %v3553 = vunpack.c.h.b16 %v3238
        %v3554 = vunpack.c.l.b16 %v3239
        %v3555 = vunpack.c.h.b16 %v3239
        %v3556 = vunpack.c.l.b16 %v3240
        %v3557 = vunpack.c.h.b16 %v3240
        %v3558 = vunpack.c.l.b16 %v3241
        %v3559 = vunpack.c.h.b16 %v3241
        %v3560 = vunpack.c.l.b16 %v3242
        %v3561 = vunpack.c.h.b16 %v3242
        %v3562 = vunpack.c.l.b16 %v3243
        %v3563 = vunpack.c.h.b16 %v3243
        %v3564 = vunpack.c.l.b16 %v3244
        %v3565 = vunpack.c.h.b16 %v3244
        %v3566 = vunpack.c.l.b16 %v3245
        %v3567 = vunpack.c.h.b16 %v3245
        %v3568 = vunpack.c.l.b16 %v3246
        %v3569 = vunpack.c.h.b16 %v3246
        %v3570 = vunpack.c.l.b16 %v3247
        %v3571 = vunpack.c.h.b16 %v3247
        %v3572 = vunpack.c.l.b16 %v3248
        %v3573 = vunpack.c.h.b16 %v3248
        %v3574 = vunpack.c.l.b16 %v3249
        %v3575 = vunpack.c.h.b16 %v3249
        %v3576 = vunpack.c.l.b16 %v3250
        %v3577 = vunpack.c.h.b16 %v3250
        %v3578 = vunpack.c.l.b16 %v3251
        %v3579 = vunpack.c.h.b16 %v3251
        %v3580 = vunpack.c.l.b16 %v3252
        %v3581 = vunpack.c.h.b16 %v3252
        %v3582 = vunpack.c.l.b16 %v3253
        %v3583 = vunpack.c.h.b16 %v3253
        %v3584 = vunpack.c.l.b16 %v3254
        %v3585 = vunpack.c.h.b16 %v3254
        %v3586 = vunpack.c.l.b16 %v3255
        %v3587 = vunpack.c.h.b16 %v3255
        %v3588 = vunpack.c.l.b16 %v3256
        %v3589 = vunpack.c.h.b16 %v3256
        %v3590 = vunpack.c.l.b16 %v3257
        %v3591 = vunpack.c.h.b16 %v3257
        %v3592 = vunpack.c.l.b16 %v3258
        %v3593 = vunpack.c.h.b16 %v3258
        %v3594 = vunpack.c.l.b16 %v3259
        %v3595 = vunpack.c.h.b16 %v3259
        %v3596 = vunpack.c.l.b16 %v3260
        %v3597 = vunpack.c.h.b16 %v3260
        %v3598 = vunpack.c.l.b16 %v3261
        %v3599 = vunpack.c.h.b16 %v3261
        %v3600 = vunpack.c.l.b16 %v3262
        %v3601 = vunpack.c.h.b16 %v3262
        %v3602 = vunpack.c.l.b16 %v3263
        %v3603 = vunpack.c.h.b16 %v3263
        %v3604 = vunpack.c.l.b16 %v3264
        %v3605 = vunpack.c.h.b16 %v3264
        %v3606 = vunpack.c.l.b16 %v3265
        %v3607 = vunpack.c.h.b16 %v3265
        %v3608 = vunpack.c.l.b16 %v3266
        %v3609 = vunpack.c.h.b16 %v3266
        %v3610 = vunpack.c.l.b16 %v3267
        %v3611 = vunpack.c.h.b16 %v3267
        %v3612 = vunpack.c.l.b16 %v3268
        %v3613 = vunpack.c.h.b16 %v3268
        %v3614 = vunpack.c.l.b16 %v3269
        %v3615 = vunpack.c.h.b16 %v3269
        %v3616 = vunpack.c.l.b16 %v3270
        %v3617 = vunpack.c.h.b16 %v3270
        %v3618 = vunpack.c.l.b16 %v3271
        %v3619 = vunpack.c.h.b16 %v3271
        %v3620 = vunpack.c.l.b16 %v3272
        %v3621 = vunpack.c.h.b16 %v3272
        %v3622 = vunpack.c.l.b16 %v3273
        %v3623 = vunpack.c.h.b16 %v3273
        %v3624 = vunpack.c.l.b16 %v3274
        %v3625 = vunpack.c.h.b16 %v3274
        %v3626 = vunpack.c.l.b16 %v3275
        %v3627 = vunpack.c.h.b16 %v3275
        %v3628 = vunpack.c.l.b16 %v3276
        %v3629 = vunpack.c.h.b16 %v3276
        %v3630 = vunpack.c.l.b16 %v3277
        %v3631 = vunpack.c.h.b16 %v3277
        %v3632 = vunpack.c.l.b16 %v3278
        %v3633 = vunpack.c.h.b16 %v3278
        %v3634 = vunpack.c.l.b16 %v3279
        %v3635 = vunpack.c.h.b16 %v3279
        %v3636 = vunpack.c.l.b16 %v3280
        %v3637 = vunpack.c.h.b16 %v3280
        %v3638 = vunpack.c.l.b16 %v3281
        %v3639 = vunpack.c.h.b16 %v3281
        %v3640 = vunpack.c.l.b16 %v3282
        %v3641 = vunpack.c.h.b16 %v3282
        %v3642 = vunpack.c.l.b16 %v3283
        %v3643 = vunpack.c.h.b16 %v3283
        %v3644 = vunpack.c.l.b16 %v3284
        %v3645 = vunpack.c.h.b16 %v3284
        %v3646 = vunpack.c.l.b16 %v3285
        %v3647 = vunpack.c.h.b16 %v3285
        %v3648 = vunpack.c.l.b16 %v3286
        %v3649 = vunpack.c.h.b16 %v3286
        %v3650 = vunpack.c.l.b16 %v3287
        %v3651 = vunpack.c.h.b16 %v3287
        %v3652 = vunpack.c.l.b16 %v3288
        %v3653 = vunpack.c.h.b16 %v3288
        %v3654 = vunpack.c.l.b16 %v3289
        %v3655 = vunpack.c.h.b16 %v3289
        %v3656 = vunpack.c.l.b16 %v3290
        %v3657 = vunpack.c.h.b16 %v3290
        %v3658 = vunpack.c.l.b16 %v3291
        %v3659 = vunpack.c.h.b16 %v3291
        %v3660 = vunpack.c.l.b16 %v3292
        %v3661 = vunpack.c.h.b16 %v3292
        %v3662 = vunpack.c.l.b16 %v3293
        %v3663 = vunpack.c.h.b16 %v3293
        %v3664 = vunpack.c.l.b16 %v3294
        %v3665 = vunpack.c.h.b16 %v3294
        %v3666 = vunpack.c.l.b16 %v3295
        %v3667 = vunpack.c.h.b16 %v3295
        %v3668 = vunpack.c.l.b16 %v3296
        %v3669 = vunpack.c.h.b16 %v3296
        %v3670 = vunpack.c.l.b16 %v3297
        %v3671 = vunpack.c.h.b16 %v3297
        %v3672 = vunpack.c.l.b16 %v3298
        %v3673 = vunpack.c.h.b16 %v3298
        %v3674 = vunpack.c.l.b16 %v3299
        %v3675 = vunpack.c.h.b16 %v3299
        %v3676 = vunpack.c.l.b16 %v3300
        %v3677 = vunpack.c.h.b16 %v3300
        %v3678 = vunpack.c.l.b16 %v3301
        %v3679 = vunpack.c.h.b16 %v3301
        %v3680 = vunpack.c.l.b16 %v3302
        %v3681 = vunpack.c.h.b16 %v3302
        %v3682 = vunpack.c.l.b16 %v3303
        %v3683 = vunpack.c.h.b16 %v3303
        %v3684 = vunpack.c.l.b16 %v3304
        %v3685 = vunpack.c.h.b16 %v3304
        %v3686 = vunpack.c.l.b16 %v3305
        %v3687 = vunpack.c.h.b16 %v3305
        %v3688 = vunpack.c.l.b16 %v3306
        %v3689 = vunpack.c.h.b16 %v3306
        %v3690 = vunpack.c.l.b16 %v3307
        %v3691 = vunpack.c.h.b16 %v3307
        %v3692 = vunpack.c.l.b16 %v3308
        %v3693 = vunpack.c.h.b16 %v3308
        %v3694 = vunpack.c.l.b16 %v3309
        %v3695 = vunpack.c.h.b16 %v3309
        %v3696 = vunpack.c.l.b16 %v3310
        %v3697 = vunpack.c.h.b16 %v3310
        %v3698 = vunpack.c.l.b16 %v3311
        %v3699 = vunpack.c.h.b16 %v3311
        %v3700 = vunpack.c.l.b16 %v3312
        %v3701 = vunpack.c.h.b16 %v3312
        %v3702 = vunpack.c.l.b16 %v3313
        %v3703 = vunpack.c.h.b16 %v3313
        %v3704 = vunpack.c.l.b16 %v3314
        %v3705 = vunpack.c.h.b16 %v3314
        %v3706 = vunpack.c.l.b16 %v3315
        %v3707 = vunpack.c.h.b16 %v3315
        %v3708 = vunpack.c.l.b16 %v3316
        %v3709 = vunpack.c.h.b16 %v3316
        %v3710 = vunpack.c.l.b16 %v3317
        %v3711 = vunpack.c.h.b16 %v3317
        %v3712 = vunpack.c.l.b16 %v3318
        %v3713 = vunpack.c.h.b16 %v3318
        %v3714 = vunpack.c.l.b16 %v3319
        %v3715 = vunpack.c.h.b16 %v3319
        %v3716 = vpack.c.b16 %v3462, %v3460
        %v3717 = vpack.c.b16 %v3463, %v3461
        %v3718 = vpack.c.b16 %v3466, %v3464
        %v3719 = vpack.c.b16 %v3467, %v3465
        %v3720 = vpack.c.b16 %v3470, %v3468
        %v3721 = vpack.c.b16 %v3471, %v3469
        %v3722 = vpack.c.b16 %v3474, %v3472
        %v3723 = vpack.c.b16 %v3475, %v3473
        %v3724 = vpack.c.b16 %v3478, %v3476
        %v3725 = vpack.c.b16 %v3479, %v3477
        %v3726 = vpack.c.b16 %v3482, %v3480
        %v3727 = vpack.c.b16 %v3483, %v3481
        %v3728 = vpack.c.b16 %v3486, %v3484
        %v3729 = vpack.c.b16 %v3487, %v3485
        %v3730 = vpack.c.b16 %v3490, %v3488
        %v3731 = vpack.c.b16 %v3491, %v3489
        %v3732 = vpack.c.b16 %v3494, %v3492
        %v3733 = vpack.c.b16 %v3495, %v3493
        %v3734 = vpack.c.b16 %v3498, %v3496
        %v3735 = vpack.c.b16 %v3499, %v3497
        %v3736 = vpack.c.b16 %v3502, %v3500
        %v3737 = vpack.c.b16 %v3503, %v3501
        %v3738 = vpack.c.b16 %v3506, %v3504
        %v3739 = vpack.c.b16 %v3507, %v3505
        %v3740 = vpack.c.b16 %v3510, %v3508
        %v3741 = vpack.c.b16 %v3511, %v3509
        %v3742 = vpack.c.b16 %v3514, %v3512
        %v3743 = vpack.c.b16 %v3515, %v3513
        %v3744 = vpack.c.b16 %v3518, %v3516
        %v3745 = vpack.c.b16 %v3519, %v3517
        %v3746 = vpack.c.b16 %v3522, %v3520
        %v3747 = vpack.c.b16 %v3523, %v3521
        %v3748 = vpack.c.b16 %v3526, %v3524
        %v3749 = vpack.c.b16 %v3527, %v3525
        %v3750 = vpack.c.b16 %v3530, %v3528
        %v3751 = vpack.c.b16 %v3531, %v3529
        %v3752 = vpack.c.b16 %v3534, %v3532
        %v3753 = vpack.c.b16 %v3535, %v3533
        %v3754 = vpack.c.b16 %v3538, %v3536
        %v3755 = vpack.c.b16 %v3539, %v3537
        %v3756 = vpack.c.b16 %v3542, %v3540
        %v3757 = vpack.c.b16 %v3543, %v3541
        %v3758 = vpack.c.b16 %v3546, %v3544
        %v3759 = vpack.c.b16 %v3547, %v3545
        %v3760 = vpack.c.b16 %v3550, %v3548
        %v3761 = vpack.c.b16 %v3551, %v3549
        %v3762 = vpack.c.b16 %v3554, %v3552
        %v3763 = vpack.c.b16 %v3555, %v3553
        %v3764 = vpack.c.b16 %v3558, %v3556
        %v3765 = vpack.c.b16 %v3559, %v3557
        %v3766 = vpack.c.b16 %v3562, %v3560
        %v3767 = vpack.c.b16 %v3563, %v3561
        %v3768 = vpack.c.b16 %v3566, %v3564
        %v3769 = vpack.c.b16 %v3567, %v3565
        %v3770 = vpack.c.b16 %v3570, %v3568
        %v3771 = vpack.c.b16 %v3571, %v3569
        %v3772 = vpack.c.b16 %v3574, %v3572
        %v3773 = vpack.c.b16 %v3575, %v3573
        %v3774 = vpack.c.b16 %v3578, %v3576
        %v3775 = vpack.c.b16 %v3579, %v3577
        %v3776 = vpack.c.b16 %v3582, %v3580
        %v3777 = vpack.c.b16 %v3583, %v3581
        %v3778 = vpack.c.b16 %v3586, %v3584
        %v3779 = vpack.c.b16 %v3587, %v3585
        %v3780 = vpack.c.b16 %v3590, %v3588
        %v3781 = vpack.c.b16 %v3591, %v3589
        %v3782 = vpack.c.b16 %v3594, %v3592
        %v3783 = vpack.c.b16 %v3595, %v3593
        %v3784 = vpack.c.b16 %v3598, %v3596
        %v3785 = vpack.c.b16 %v3599, %v3597
        %v3786 = vpack.c.b16 %v3602, %v3600
        %v3787 = vpack.c.b16 %v3603, %v3601
        %v3788 = vpack.c.b16 %v3606, %v3604
        %v3789 = vpack.c.b16 %v3607, %v3605
        %v3790 = vpack.c.b16 %v3610, %v3608
        %v3791 = vpack.c.b16 %v3611, %v3609
        %v3792 = vpack.c.b16 %v3614, %v3612
        %v3793 = vpack.c.b16 %v3615, %v3613
        %v3794 = vpack.c.b16 %v3618, %v3616
        %v3795 = vpack.c.b16 %v3619, %v3617
        %v3796 = vpack.c.b16 %v3622, %v3620
        %v3797 = vpack.c.b16 %v3623, %v3621
        %v3798 = vpack.c.b16 %v3626, %v3624
        %v3799 = vpack.c.b16 %v3627, %v3625
        %v3800 = vpack.c.b16 %v3630, %v3628
        %v3801 = vpack.c.b16 %v3631, %v3629
        %v3802 = vpack.c.b16 %v3634, %v3632
        %v3803 = vpack.c.b16 %v3635, %v3633
        %v3804 = vpack.c.b16 %v3638, %v3636
        %v3805 = vpack.c.b16 %v3639, %v3637
        %v3806 = vpack.c.b16 %v3642, %v3640
        %v3807 = vpack.c.b16 %v3643, %v3641
        %v3808 = vpack.c.b16 %v3646, %v3644
        %v3809 = vpack.c.b16 %v3647, %v3645
        %v3810 = vpack.c.b16 %v3650, %v3648
        %v3811 = vpack.c.b16 %v3651, %v3649
        %v3812 = vpack.c.b16 %v3654, %v3652
        %v3813 = vpack.c.b16 %v3655, %v3653
        %v3814 = vpack.c.b16 %v3658, %v3656
        %v3815 = vpack.c.b16 %v3659, %v3657
        %v3816 = vpack.c.b16 %v3662, %v3660
        %v3817 = vpack.c.b16 %v3663, %v3661
        %v3818 = vpack.c.b16 %v3666, %v3664
        %v3819 = vpack.c.b16 %v3667, %v3665
        %v3820 = vpack.c.b16 %v3670, %v3668
        %v3821 = vpack.c.b16 %v3671, %v3669
        %v3822 = vpack.c.b16 %v3674, %v3672
        %v3823 = vpack.c.b16 %v3675, %v3673
        %v3824 = vpack.c.b16 %v3678, %v3676
        %v3825 = vpack.c.b16 %v3679, %v3677
        %v3826 = vpack.c.b16 %v3682, %v3680
        %v3827 = vpack.c.b16 %v3683, %v3681
        %v3828 = vpack.c.b16 %v3686, %v3684
        %v3829 = vpack.c.b16 %v3687, %v3685
        %v3830 = vpack.c.b16 %v3690, %v3688
        %v3831 = vpack.c.b16 %v3691, %v3689
        %v3832 = vpack.c.b16 %v3694, %v3692
        %v3833 = vpack.c.b16 %v3695, %v3693
        %v3834 = vpack.c.b16 %v3698, %v3696
        %v3835 = vpack.c.b16 %v3699, %v3697
        %v3836 = vpack.c.b16 %v3702, %v3700
        %v3837 = vpack.c.b16 %v3703, %v3701
        %v3838 = vpack.c.b16 %v3706, %v3704
        %v3839 = vpack.c.b16 %v3707, %v3705
        %v3840 = vpack.c.b16 %v3710, %v3708
        %v3841 = vpack.c.b16 %v3711, %v3709
        %v3842 = vpack.c.b16 %v3714, %v3712
        %v3843 = vpack.c.b16 %v3715, %v3713
        %3972 = vmatprep.subr.bf16.mxu0 %v3731
        %3973 = vmatpush1.bf16.msra.mxu0 %v3730
        %3974 = vmatprep.subr.bf16.mxu0 %v3729
        %3975 = vmatpush1.bf16.msra.mxu0 %v3728
        %3976 = vmatprep.subr.bf16.mxu0 %v3727
        %3977 = vmatpush1.bf16.msra.mxu0 %v3726
        %3978 = vmatprep.subr.bf16.mxu0 %v3725
        %3979 = vmatpush1.bf16.msra.mxu0 %v3724
        %3980 = vmatprep.subr.bf16.mxu0 %v3723
        %3981 = vmatpush1.bf16.msra.mxu0 %v3722
        %3982 = vmatprep.subr.bf16.mxu0 %v3721
        %3983 = vmatpush1.bf16.msra.mxu0 %v3720
        %3984 = vmatprep.subr.bf16.mxu0 %v3719
        %3985 = vmatpush1.bf16.msra.mxu0 %v3718
        %3986 = vmatprep.subr.bf16.mxu0 %v3717
        %3987 = vmatpush1.bf16.msra.mxu0 %v3716
        %3988 = vmatprep.subr.bf16.mxu0 %v3747
        %3989 = vmatpush2.bf16.msra.mxu0 %v3746
        %3990 = vmatprep.subr.bf16.mxu0 %v3745
        %3991 = vmatpush2.bf16.msra.mxu0 %v3744
        %3992 = vmatprep.subr.bf16.mxu0 %v3743
        %3993 = vmatpush2.bf16.msra.mxu0 %v3742
        %3994 = vmatprep.subr.bf16.mxu0 %v3741
        %3995 = vmatpush2.bf16.msra.mxu0 %v3740
        %3996 = vmatprep.subr.bf16.mxu0 %v3739
        %3997 = vmatpush2.bf16.msra.mxu0 %v3738
        %3998 = vmatprep.subr.bf16.mxu0 %v3737
        %3999 = vmatpush2.bf16.msra.mxu0 %v3736
        %4000 = vmatprep.subr.bf16.mxu0 %v3735
        %4001 = vmatpush2.bf16.msra.mxu0 %v3734
        %4002 = vmatprep.subr.bf16.mxu0 %v3733
        %4003 = vmatpush2.bf16.msra.mxu0 %v3732
        %4004 = vmatprep.mubr.bf16.mxu0 %v3185
        %4005 = vmatmul.mubr.bf16.gmra.mxu0 %v3184
        %v4006 = vpop.f32.mrf.mxu0
        %v4007 = vadd.f32 %v3325, %v4006
        %v4008 = vpop.f32.mrf.mxu0
        %v4009 = vadd.f32 %v3329, %v4008
        %v4010 = vpop.f32.mrf.mxu0
        %v4011 = vadd.f32 %v3325, %v4010
        %v4012 = vpop.f32.mrf.mxu0
        %v4013 = vadd.f32 %v3329, %v4012
        %4014 = vdwg.mxu0
        %4015 = vmatprep.subr.bf16.mxu0 %v3763
        %4016 = vmatpush1.bf16.msra.mxu0 %v3762
        %4017 = vmatprep.subr.bf16.mxu0 %v3761
        %4018 = vmatpush1.bf16.msra.mxu0 %v3760
        %4019 = vmatprep.subr.bf16.mxu0 %v3759
        %4020 = vmatpush1.bf16.msra.mxu0 %v3758
        %4021 = vmatprep.subr.bf16.mxu0 %v3757
        %4022 = vmatpush1.bf16.msra.mxu0 %v3756
        %4023 = vmatprep.subr.bf16.mxu0 %v3755
        %4024 = vmatpush1.bf16.msra.mxu0 %v3754
        %4025 = vmatprep.subr.bf16.mxu0 %v3753
        %4026 = vmatpush1.bf16.msra.mxu0 %v3752
        %4027 = vmatprep.subr.bf16.mxu0 %v3751
        %4028 = vmatpush1.bf16.msra.mxu0 %v3750
        %4029 = vmatprep.subr.bf16.mxu0 %v3749
        %4030 = vmatpush1.bf16.msra.mxu0 %v3748
        %4031 = vmatprep.subr.bf16.mxu0 %v3779
        %4032 = vmatpush2.bf16.msra.mxu0 %v3778
        %4033 = vmatprep.subr.bf16.mxu0 %v3777
        %4034 = vmatpush2.bf16.msra.mxu0 %v3776
        %4035 = vmatprep.subr.bf16.mxu0 %v3775
        %4036 = vmatpush2.bf16.msra.mxu0 %v3774
        %4037 = vmatprep.subr.bf16.mxu0 %v3773
        %4038 = vmatpush2.bf16.msra.mxu0 %v3772
        %4039 = vmatprep.subr.bf16.mxu0 %v3771
        %4040 = vmatpush2.bf16.msra.mxu0 %v3770
        %4041 = vmatprep.subr.bf16.mxu0 %v3769
        %4042 = vmatpush2.bf16.msra.mxu0 %v3768
        %4043 = vmatprep.subr.bf16.mxu0 %v3767
        %4044 = vmatpush2.bf16.msra.mxu0 %v3766
        %4045 = vmatprep.subr.bf16.mxu0 %v3765
        %4046 = vmatpush2.bf16.msra.mxu0 %v3764
        %4047 = vmatprep.mubr.bf16.mxu0 %v3187
        %4048 = vmatmul.mubr.bf16.gmra.mxu0 %v3186
        %v4049 = vpop.f32.mrf.mxu0
        %v4050 = vadd.f32 %v4007, %v4049
        %v4051 = vpop.f32.mrf.mxu0
        %v4052 = vadd.f32 %v4009, %v4051
        %v4053 = vpop.f32.mrf.mxu0
        %v4054 = vadd.f32 %v4011, %v4053
        %v4055 = vpop.f32.mrf.mxu0
        %v4056 = vadd.f32 %v4013, %v4055
        %4057 = vdwg.mxu0
        %4058 = vmatprep.subr.bf16.mxu0 %v3795
        %4059 = vmatpush1.bf16.msra.mxu0 %v3794
        %4060 = vmatprep.subr.bf16.mxu0 %v3793
        %4061 = vmatpush1.bf16.msra.mxu0 %v3792
        %4062 = vmatprep.subr.bf16.mxu0 %v3791
        %4063 = vmatpush1.bf16.msra.mxu0 %v3790
        %4064 = vmatprep.subr.bf16.mxu0 %v3789
        %4065 = vmatpush1.bf16.msra.mxu0 %v3788
        %4066 = vmatprep.subr.bf16.mxu0 %v3787
        %4067 = vmatpush1.bf16.msra.mxu0 %v3786
        %4068 = vmatprep.subr.bf16.mxu0 %v3785
        %4069 = vmatpush1.bf16.msra.mxu0 %v3784
        %4070 = vmatprep.subr.bf16.mxu0 %v3783
        %4071 = vmatpush1.bf16.msra.mxu0 %v3782
        %4072 = vmatprep.subr.bf16.mxu0 %v3781
        %4073 = vmatpush1.bf16.msra.mxu0 %v3780
        %4074 = vmatprep.subr.bf16.mxu0 %v3811
        %4075 = vmatpush2.bf16.msra.mxu0 %v3810
        %4076 = vmatprep.subr.bf16.mxu0 %v3809
        %4077 = vmatpush2.bf16.msra.mxu0 %v3808
        %4078 = vmatprep.subr.bf16.mxu0 %v3807
        %4079 = vmatpush2.bf16.msra.mxu0 %v3806
        %4080 = vmatprep.subr.bf16.mxu0 %v3805
        %4081 = vmatpush2.bf16.msra.mxu0 %v3804
        %4082 = vmatprep.subr.bf16.mxu0 %v3803
        %4083 = vmatpush2.bf16.msra.mxu0 %v3802
        %4084 = vmatprep.subr.bf16.mxu0 %v3801
        %4085 = vmatpush2.bf16.msra.mxu0 %v3800
        %4086 = vmatprep.subr.bf16.mxu0 %v3799
        %4087 = vmatpush2.bf16.msra.mxu0 %v3798
        %4088 = vmatprep.subr.bf16.mxu0 %v3797
        %4089 = vmatpush2.bf16.msra.mxu0 %v3796
        %4090 = vmatprep.mubr.bf16.mxu0 %v3189
        %4091 = vmatmul.mubr.bf16.gmra.mxu0 %v3188
        %v4092 = vpop.f32.mrf.mxu0
        %v4093 = vadd.f32 %v4050, %v4092
        %v4094 = vpop.f32.mrf.mxu0
        %v4095 = vadd.f32 %v4052, %v4094
        %v4096 = vpop.f32.mrf.mxu0
        %v4097 = vadd.f32 %v4054, %v4096
        %v4098 = vpop.f32.mrf.mxu0
        %v4099 = vadd.f32 %v4056, %v4098
        %4100 = vdwg.mxu0
        %4101 = vmatprep.subr.bf16.mxu0 %v3827
        %4102 = vmatpush1.bf16.msra.mxu0 %v3826
        %4103 = vmatprep.subr.bf16.mxu0 %v3825
        %4104 = vmatpush1.bf16.msra.mxu0 %v3824
        %4105 = vmatprep.subr.bf16.mxu0 %v3823
        %4106 = vmatpush1.bf16.msra.mxu0 %v3822
        %4107 = vmatprep.subr.bf16.mxu0 %v3821
        %4108 = vmatpush1.bf16.msra.mxu0 %v3820
        %4109 = vmatprep.subr.bf16.mxu0 %v3819
        %4110 = vmatpush1.bf16.msra.mxu0 %v3818
        %4111 = vmatprep.subr.bf16.mxu0 %v3817
        %4112 = vmatpush1.bf16.msra.mxu0 %v3816
        %4113 = vmatprep.subr.bf16.mxu0 %v3815
        %4114 = vmatpush1.bf16.msra.mxu0 %v3814
        %4115 = vmatprep.subr.bf16.mxu0 %v3813
        %4116 = vmatpush1.bf16.msra.mxu0 %v3812
        %4117 = vmatprep.subr.bf16.mxu0 %v3843
        %4118 = vmatpush2.bf16.msra.mxu0 %v3842
        %4119 = vmatprep.subr.bf16.mxu0 %v3841
        %4120 = vmatpush2.bf16.msra.mxu0 %v3840
        %4121 = vmatprep.subr.bf16.mxu0 %v3839
        %4122 = vmatpush2.bf16.msra.mxu0 %v3838
        %4123 = vmatprep.subr.bf16.mxu0 %v3837
        %4124 = vmatpush2.bf16.msra.mxu0 %v3836
        %4125 = vmatprep.subr.bf16.mxu0 %v3835
        %4126 = vmatpush2.bf16.msra.mxu0 %v3834
        %4127 = vmatprep.subr.bf16.mxu0 %v3833
        %4128 = vmatpush2.bf16.msra.mxu0 %v3832
        %4129 = vmatprep.subr.bf16.mxu0 %v3831
        %4130 = vmatpush2.bf16.msra.mxu0 %v3830
        %4131 = vmatprep.subr.bf16.mxu0 %v3829
        %4132 = vmatpush2.bf16.msra.mxu0 %v3828
        %4133 = vmatprep.mubr.bf16.mxu0 %v3191
        %4134 = vmatmul.mubr.bf16.gmra.mxu0 %v3190
        %v4135 = vpop.f32.mrf.mxu0
        %v4136 = vadd.f32 %v4093, %v4135
        %v4137 = vpop.f32.mrf.mxu0
        %v4138 = vadd.f32 %v4095, %v4137
        %v4139 = vpop.f32.mrf.mxu0
        %v4140 = vadd.f32 %v4097, %v4139
        %v4141 = vpop.f32.mrf.mxu0
        %v4142 = vadd.f32 %v4099, %v4141
        %4143 = vdwg.mxu0
        %v4144 = vadd.f32 %v2052, %v4136
        %v4145 = vadd.f32 %v2053, %v4138
        %v4146 = vadd.f32 %v2054, %v4140
        %v4147 = vadd.f32 %v2055, %v4142
        %4148 = vst [vmem:[%s567] sm:$0xff] %v4144
        %4149 = vst [vmem:[%s567 + $0x8] sm:$0xff] %v4145
        %4150 = vst [vmem:[%s567 + $0x10] sm:$0xff] %v4146
        %4151 = vst [vmem:[%s567 + $0x18] sm:$0xff] %v4147
        %s4152 = sand.u32 %s320, 1
        %s4153 = scalar_lea.sflag [#allocation5], %s4152
        %s4154 = sand.u32 %s320, 1
        %s4155 = smul.addr %s4154, 32
        %s4156 = scalar_lea.vmem [#allocation18], %s4155
        // Predicated region
        $region109: #{tpu_custom_call.1} parent=71 // pred_check
          %p4157 = pneg %p330
        $region110: #{tpu_custom_call.1} parent=71 // pred_check_branch
          %4159 = sbr.rel (%p4157) target = $region112
        $region111: #{tpu_custom_call.1} parent=71 // pred_region
          %s4160 = smul.u32 2, %s34
          %s4162 = ssub.s32 512, 512
          %4163 = vsyncadd %s4153, %s4162
          %s4164 = smul.addr %s4160, 2
          %s4165 = smul.addr %s4164, 128
          %s4166 = scalar_lea.hbm %s13, %s4165
          %s4167 = sshll.u32 %s4156, 4
          %s4168 = int_to_ptr.vmem [resolvable:$true] %s4167
          %4173 = dma.vmem_to_hbm [thread:$0]  %s4168, 512, %s4166, %s4153, 256, 256, 16
        $region112: #{tpu_custom_call.1} parent=71 // pred_fallthru
          _
      $region72: #{tpu_custom_call.1} parent=5 // pred_fallthru
        _
      %p4174 = scmp.le.s32.totalorder 2, %s29
      // Predicated region
      $region113: #{tpu_custom_call.1} parent=5 // pred_check
        %p4175 = pneg %p4174
      $region114: #{tpu_custom_call.1} parent=5 // pred_check_branch
        %4177 = sbr.rel (%p4175) target = $region116
      $region115: #{tpu_custom_call.1} parent=5 // pred_region
        %s4178 = ssub.s32 %s29, 2
        // Predicated region
        $region117: #{tpu_custom_call.1} parent=115 // pred_check
          %p4179 = pneg %p336
        $region118: #{tpu_custom_call.1} parent=115 // pred_check_branch
          %4181 = sbr.rel (%p4179) target = $region120
        $region119: #{tpu_custom_call.1} parent=115 // pred_region
          %s4182 = sand.u32 %s321, 1
          %s4183 = scalar_lea.sflag [#allocation5], %s4182
          %s4184 = sand.u32 %s321, 1
          %s4185 = smul.addr %s4184, 32
          %s4186 = scalar_lea.vmem [#allocation18], %s4185
          %4187 = dma.done %s4183, 512
        $region120: #{tpu_custom_call.1} parent=115 // pred_fallthru
          _
      $region116: #{tpu_custom_call.1} parent=5 // pred_fallthru
        _
    $region6: #{tpu_custom_call.1} parent=1 // loop_footer
      %s33 = sadd.s32 1, %s29
    $region7: #{tpu_custom_call.1} parent=1 // loop_footer_branch
      %28 = sbr.rel target = $region3
    $region8: #{tpu_custom_call.1} parent=1 // loop_exit
      _
    %4188 = vsyncpa [#allocation4], 1
    %s4189 = scalar_lea.sflag [#allocation4], 1
    %4190 = vsyncpa %s4189, 1
    %4191 = vsyncpa [#allocation7], 1
    %4192 = vsyncpa [#allocation10], 1
    %4193 = vsyncpa [#allocation13], 1
    %4194 = vsyncpa [#allocation16], 1
    %4195 = vsyncpa [#allocation5], 1
    %s4196 = scalar_lea.sflag [#allocation5], 1
    %4197 = vsyncpa %s4196, 1

// kernel: tpu_custom_call.1
$region0: #{tpu_custom_call.1}
  #allocation0 [shape = 'u32[]', space=smem, size = 0x4, offset = 0x4, fixed_abs, tag = 'smem constant byte address 0x4 - core index']
  #allocation1 [shape = 'u32[144,128]{1,0:T(1,128)}', space=vmem, size = 0x12000, scoped, tag = 'internal scratch']
  #allocation2 [shape = 'bf16[2,8,256]{2,1,0:T(8,128)(2,1)}', space=vmem, size = 0x2000, scoped, tag = 'scratch operand']
  %s0 = inlined_call_operand.hbm [shape: f32[4,8,256], index: 0, kind: input, shape index: {}]
  %s1 = inlined_call_operand.hbm [shape: f32[1,256], index: 1, kind: input, shape index: {}]
  %s2 = inlined_call_operand.hbm [shape: f32[1,256], index: 2, kind: input, shape index: {}]
  %s3 = inlined_call_operand.hbm [shape: bf16[256,768], index: 3, kind: input, shape index: {}]
  %s4 = inlined_call_operand.vmem [shape: f32[1,768], index: 4, kind: input, shape index: {}]
  %s5 = inlined_call_operand.hbm [shape: bf16[256,256], index: 5, kind: input, shape index: {}]
  %s6 = inlined_call_operand.vmem [shape: f32[1,256], index: 6, kind: input, shape index: {}]
  %s7 = inlined_call_operand.hbm [shape: f32[1,256], index: 7, kind: input, shape index: {}]
  %s8 = inlined_call_operand.hbm [shape: f32[1,256], index: 8, kind: input, shape index: {}]
  %s9 = inlined_call_operand.hbm [shape: bf16[256,1024], index: 9, kind: input, shape index: {}]
  %s10 = inlined_call_operand.vmem [shape: f32[1,1024], index: 10, kind: input, shape index: {}]
  %s11 = inlined_call_operand.hbm [shape: bf16[1024,256], index: 11, kind: input, shape index: {}]
  %s12 = inlined_call_operand.vmem [shape: f32[1,256], index: 12, kind: input, shape index: {}]
  %s13 = inlined_call_operand.hbm [shape: f32[4,8,256], index: 13, kind: output, shape index: {}]
  %s14 = sld [smem:[#allocation0]]
  $region121: #{tpu_custom_call.1} parent=0
    _
  %s16 = ssub.s32 1, %s14
  %s17 = scalar_select 0, %s16, %s14
  $region1: #{tpu_custom_call.1} parent=0
    #allocation3 [shape = 'u8[32768]{0}', space=vmem, size = 0x8000, scoped, tag = 'input window, operand 0']
    #allocation4 [shape = 's32[2]{0}', space=sflag, size = 0x8, scoped, tag = 'scoped memory for tpu_custom_call.1']
    #allocation5 [shape = 's32[2]{0}', space=sflag, size = 0x8, scoped, tag = 'scoped memory for tpu_custom_call.1']
    #allocation6 [shape = 'u8[1024]{0}', space=vmem, size = 0x400, scoped, tag = 'input window, operand 1, single buffered']
    #allocation7 [shape = 's32[1]{0}', space=sflag, size = 0x4, scoped, tag = 'scoped memory for tpu_custom_call.1']
    #allocation8 [shape = 'u8[1024]{0}', space=vmem, size = 0x400, scoped, tag = 'input window, operand 2, single buffered']
    #allocation9 [shape = 'u8[393216]{0}', space=vmem, size = 0x60000, scoped, tag = 'input window, operand 3, single buffered']
    #allocation10 [shape = 's32[1]{0}', space=sflag, size = 0x4, scoped, tag = 'scoped memory for tpu_custom_call.1']
    #allocation11 [shape = 'u8[131072]{0}', space=vmem, size = 0x20000, scoped, tag = 'input window, operand 5, single buffered']
    #allocation12 [shape = 'u8[1024]{0}', space=vmem, size = 0x400, scoped, tag = 'input window, operand 7, single buffered']
    #allocation13 [shape = 's32[1]{0}', space=sflag, size = 0x4, scoped, tag = 'scoped memory for tpu_custom_call.1']
    #allocation14 [shape = 'u8[1024]{0}', space=vmem, size = 0x400, scoped, tag = 'input window, operand 8, single buffered']
    #allocation15 [shape = 'u8[524288]{0}', space=vmem, size = 0x80000, scoped, tag = 'input window, operand 9, single buffered']
    #allocation16 [shape = 's32[1]{0}', space=sflag, size = 0x4, scoped, tag = 'scoped memory for tpu_custom_call.1']
    #allocation17 [shape = 'u8[524288]{0}', space=vmem, size = 0x80000, scoped, tag = 'input window, operand 11, single buffered']
    #allocation18 [shape = 'u8[32768]{0}', space=vmem, size = 0x8000, scoped, tag = 'output window, operand 0']
    %18 = vsyncpa [#allocation4], 0
    %s19 = scalar_lea.sflag [#allocation4], 1
    %20 = vsyncpa %s19, 0
    %21 = vsyncpa [#allocation7], 0
    %22 = vsyncpa [#allocation10], 0
    %23 = vsyncpa [#allocation13], 0
    %24 = vsyncpa [#allocation16], 0
    %25 = vsyncpa [#allocation5], 0
    %s26 = scalar_lea.sflag [#allocation5], 1
    %27 = vsyncpa %s26, 0
    loop: start=0, step=1, limit=4
    $region2: #{tpu_custom_call.1} parent=1 // loop_pre_header
      _
    $region3: #{tpu_custom_call.1} parent=1 // loop_header
      %s29 = sphi 0, %s33
      %p30 = scmp.ge.s32.totalorder %s29, 4
      %s39 = sphi 0, %s41
      %s42 = sphi 0, %s39
      %s43 = sphi 0, %s42
      %s59 = sphi 0, %s43
      %s63 = sphi 0, %s63
      %s65 = sphi 0, %s63
      %s66 = sphi 0, %s65
      %s80 = sphi 0, %s66
      %s84 = sphi 0, %s84
      %s86 = sphi 0, %s84
      %s87 = sphi 0, %s86
      %s101 = sphi 0, %s87
      %s105 = sphi 0, %s105
      %s107 = sphi 0, %s105
      %s108 = sphi 0, %s107
      %s122 = sphi 0, %s108
      %s126 = sphi 0, %s126
      %s128 = sphi 0, %s126
      %s129 = sphi 0, %s128
      %s143 = sphi 0, %s129
      %s147 = sphi 0, %s147
      %s149 = sphi 0, %s147
      %s150 = sphi 0, %s149
      %s164 = sphi 0, %s150
      %s168 = sphi 0, %s168
      %s170 = sphi 0, %s168
      %s171 = sphi 0, %s170
      %s185 = sphi 0, %s171
      %s189 = sphi 0, %s189
      %s191 = sphi 0, %s189
      %s192 = sphi 0, %s191
      %s206 = sphi 0, %s192
      %s210 = sphi 0, %s210
      %s212 = sphi 0, %s210
      %s213 = sphi 0, %s212
      %s227 = sphi 0, %s213
      %s231 = sphi 0, %s231
      %s233 = sphi 0, %s231
      %s234 = sphi 0, %s233
      %s248 = sphi 0, %s234
      %s252 = sphi 0, %s252
      %s254 = sphi 0, %s252
      %s255 = sphi 0, %s254
      %s269 = sphi 0, %s255
      %s273 = sphi 0, %s273
      %s275 = sphi 0, %s273
      %s276 = sphi 0, %s275
      %s290 = sphi 0, %s276
      %s294 = sphi 0, %s294
      %s296 = sphi 0, %s294
      %s297 = sphi 0, %s296
      %s311 = sphi 0, %s297
      %s317 = sphi 0, %s319
      %s320 = sphi 0, %s317
      %s321 = sphi 0, %s320
      %s337 = sphi 0, %s321
    $region4: #{tpu_custom_call.1} parent=1 // loop_header_branch
      %32 = sbr.rel (%p30) target = $region8
    $region5: #{tpu_custom_call.1} parent=1 // loop_body
      %s34 = ssub.s32 %s29, 1
      %s35 = ssub.s32 %s29, 2
      %s36 = sadd.s32 %s29, 1
      %s37 = ssub.s32 %s29, %s36
      %p38 = scmp.eq.s32.totalorder %s37, 0
      %s40 = sadd.s32 %s39, 1
      %s41 = scalar_select %p38, %s39, %s40
      %p44 = pneg %p38
      %p45 = scmp.eq.s32.totalorder %s29, 1
      %p46 = por %p44, %p45
      %p47 = scmp.ne.s32.totalorder %s39, %s42
      %p48 = scmp.eq.s32.totalorder %s29, 0
      %p49 = por %p47, %p48
      %p50 = scmp.ne.s32.totalorder %s39, %s42
      %p51 = scmp.eq.s32.totalorder %s34, 1
      %p52 = por %p50, %p51
      %p53 = scmp.ne.s32.totalorder %s42, %s43
      %p54 = scmp.eq.s32.totalorder %s34, 0
      %p55 = por %p53, %p54
      %p56 = scmp.ne.s32.totalorder %s42, %s43
      %p57 = scmp.eq.s32.totalorder %s35, 1
      %p58 = por %p56, %p57
      %p60 = scmp.ne.s32.totalorder %s43, %s59
      %p61 = scmp.eq.s32.totalorder %s35, 0
      %p62 = por %p60, %p61
      %s64 = sadd.s32 %s63, 1
      %p67 = scmp.eq.s32.totalorder %s29, 1
      %p68 = scmp.ne.s32.totalorder %s63, %s65
      %p69 = scmp.eq.s32.totalorder %s29, 0
      %p70 = por %p68, %p69
      %p71 = scmp.ne.s32.totalorder %s63, %s65
      %p72 = scmp.eq.s32.totalorder %s34, 1
      %p73 = por %p71, %p72
      %p74 = scmp.ne.s32.totalorder %s65, %s66
      %p75 = scmp.eq.s32.totalorder %s34, 0
      %p76 = por %p74, %p75
      %p77 = scmp.ne.s32.totalorder %s65, %s66
      %p78 = scmp.eq.s32.totalorder %s35, 1
      %p79 = por %p77, %p78
      %p81 = scmp.ne.s32.totalorder %s66, %s80
      %p82 = scmp.eq.s32.totalorder %s35, 0
      %p83 = por %p81, %p82
      %s85 = sadd.s32 %s84, 1
      %p88 = scmp.eq.s32.totalorder %s29, 1
      %p89 = scmp.ne.s32.totalorder %s84, %s86
      %p90 = scmp.eq.s32.totalorder %s29, 0
      %p91 = por %p89, %p90
      %p92 = scmp.ne.s32.totalorder %s84, %s86
      %p93 = scmp.eq.s32.totalorder %s34, 1
      %p94 = por %p92, %p93
      %p95 = scmp.ne.s32.totalorder %s86, %s87
      %p96 = scmp.eq.s32.totalorder %s34, 0
      %p97 = por %p95, %p96
      %p98 = scmp.ne.s32.totalorder %s86, %s87
      %p99 = scmp.eq.s32.totalorder %s35, 1
      %p100 = por %p98, %p99
      %p102 = scmp.ne.s32.totalorder %s87, %s101
      %p103 = scmp.eq.s32.totalorder %s35, 0
      %p104 = por %p102, %p103
      %s106 = sadd.s32 %s105, 1
      %p109 = scmp.eq.s32.totalorder %s29, 1
      %p110 = scmp.ne.s32.totalorder %s105, %s107
      %p111 = scmp.eq.s32.totalorder %s29, 0
      %p112 = por %p110, %p111
      %p113 = scmp.ne.s32.totalorder %s105, %s107
      %p114 = scmp.eq.s32.totalorder %s34, 1
      %p115 = por %p113, %p114
      %p116 = scmp.ne.s32.totalorder %s107, %s108
      %p117 = scmp.eq.s32.totalorder %s34, 0
      %p118 = por %p116, %p117
      %p119 = scmp.ne.s32.totalorder %s107, %s108
      %p120 = scmp.eq.s32.totalorder %s35, 1
      %p121 = por %p119, %p120
      %p123 = scmp.ne.s32.totalorder %s108, %s122
      %p124 = scmp.eq.s32.totalorder %s35, 0
      %p125 = por %p123, %p124
      %s127 = sadd.s32 %s126, 1
      %p130 = scmp.eq.s32.totalorder %s29, 1
      %p131 = scmp.ne.s32.totalorder %s126, %s128
      %p132 = scmp.eq.s32.totalorder %s29, 0
      %p133 = por %p131, %p132
      %p134 = scmp.ne.s32.totalorder %s126, %s128
      %p135 = scmp.eq.s32.totalorder %s34, 1
      %p136 = por %p134, %p135
      %p137 = scmp.ne.s32.totalorder %s128, %s129
      %p138 = scmp.eq.s32.totalorder %s34, 0
      %p139 = por %p137, %p138
      %p140 = scmp.ne.s32.totalorder %s128, %s129
      %p141 = scmp.eq.s32.totalorder %s35, 1
      %p142 = por %p140, %p141
      %p144 = scmp.ne.s32.totalorder %s129, %s143
      %p145 = scmp.eq.s32.totalorder %s35, 0
      %p146 = por %p144, %p145
      %s148 = sadd.s32 %s147, 1
      %p151 = scmp.eq.s32.totalorder %s29, 1
      %p152 = scmp.ne.s32.totalorder %s147, %s149
      %p153 = scmp.eq.s32.totalorder %s29, 0
      %p154 = por %p152, %p153
      %p155 = scmp.ne.s32.totalorder %s147, %s149
      %p156 = scmp.eq.s32.totalorder %s34, 1
      %p157 = por %p155, %p156
      %p158 = scmp.ne.s32.totalorder %s149, %s150
      %p159 = scmp.eq.s32.totalorder %s34, 0
      %p160 = por %p158, %p159
      %p161 = scmp.ne.s32.totalorder %s149, %s150
      %p162 = scmp.eq.s32.totalorder %s35, 1
      %p163 = por %p161, %p162
      %p165 = scmp.ne.s32.totalorder %s150, %s164
      %p166 = scmp.eq.s32.totalorder %s35, 0
      %p167 = por %p165, %p166
      %s169 = sadd.s32 %s168, 1
      %p172 = scmp.eq.s32.totalorder %s29, 1
      %p173 = scmp.ne.s32.totalorder %s168, %s170
      %p174 = scmp.eq.s32.totalorder %s29, 0
      %p175 = por %p173, %p174
      %p176 = scmp.ne.s32.totalorder %s168, %s170
      %p177 = scmp.eq.s32.totalorder %s34, 1
      %p178 = por %p176, %p177
      %p179 = scmp.ne.s32.totalorder %s170, %s171
      %p180 = scmp.eq.s32.totalorder %s34, 0
      %p181 = por %p179, %p180
      %p182 = scmp.ne.s32.totalorder %s170, %s171
      %p183 = scmp.eq.s32.totalorder %s35, 1
      %p184 = por %p182, %p183
      %p186 = scmp.ne.s32.totalorder %s171, %s185
      %p187 = scmp.eq.s32.totalorder %s35, 0
      %p188 = por %p186, %p187
      %s190 = sadd.s32 %s189, 1
      %p193 = scmp.eq.s32.totalorder %s29, 1
      %p194 = scmp.ne.s32.totalorder %s189, %s191
      %p195 = scmp.eq.s32.totalorder %s29, 0
      %p196 = por %p194, %p195
      %p197 = scmp.ne.s32.totalorder %s189, %s191
      %p198 = scmp.eq.s32.totalorder %s34, 1
      %p199 = por %p197, %p198
      %p200 = scmp.ne.s32.totalorder %s191, %s192
      %p201 = scmp.eq.s32.totalorder %s34, 0
      %p202 = por %p200, %p201
      %p203 = scmp.ne.s32.totalorder %s191, %s192
      %p204 = scmp.eq.s32.totalorder %s35, 1
      %p205 = por %p203, %p204
      %p207 = scmp.ne.s32.totalorder %s192, %s206
      %p208 = scmp.eq.s32.totalorder %s35, 0
      %p209 = por %p207, %p208
      %s211 = sadd.s32 %s210, 1
      %p214 = scmp.eq.s32.totalorder %s29, 1
      %p215 = scmp.ne.s32.totalorder %s210, %s212
      %p216 = scmp.eq.s32.totalorder %s29, 0
      %p217 = por %p215, %p216
      %p218 = scmp.ne.s32.totalorder %s210, %s212
      %p219 = scmp.eq.s32.totalorder %s34, 1
      %p220 = por %p218, %p219
      %p221 = scmp.ne.s32.totalorder %s212, %s213
      %p222 = scmp.eq.s32.totalorder %s34, 0
      %p223 = por %p221, %p222
      %p224 = scmp.ne.s32.totalorder %s212, %s213
      %p225 = scmp.eq.s32.totalorder %s35, 1
      %p226 = por %p224, %p225
      %p228 = scmp.ne.s32.totalorder %s213, %s227
      %p229 = scmp.eq.s32.totalorder %s35, 0
      %p230 = por %p228, %p229
      %s232 = sadd.s32 %s231, 1
      %p235 = scmp.eq.s32.totalorder %s29, 1
      %p236 = scmp.ne.s32.totalorder %s231, %s233
      %p237 = scmp.eq.s32.totalorder %s29, 0
      %p238 = por %p236, %p237
      %p239 = scmp.ne.s32.totalorder %s231, %s233
      %p240 = scmp.eq.s32.totalorder %s34, 1
      %p241 = por %p239, %p240
      %p242 = scmp.ne.s32.totalorder %s233, %s234
      %p243 = scmp.eq.s32.totalorder %s34, 0
      %p244 = por %p242, %p243
      %p245 = scmp.ne.s32.totalorder %s233, %s234
      %p246 = scmp.eq.s32.totalorder %s35, 1
      %p247 = por %p245, %p246
      %p249 = scmp.ne.s32.totalorder %s234, %s248
      %p250 = scmp.eq.s32.totalorder %s35, 0
      %p251 = por %p249, %p250
      %s253 = sadd.s32 %s252, 1
      %p256 = scmp.eq.s32.totalorder %s29, 1
      %p257 = scmp.ne.s32.totalorder %s252, %s254
      %p258 = scmp.eq.s32.totalorder %s29, 0
      %p259 = por %p257, %p258
      %p260 = scmp.ne.s32.totalorder %s252, %s254
      %p261 = scmp.eq.s32.totalorder %s34, 1
      %p262 = por %p260, %p261
      %p263 = scmp.ne.s32.totalorder %s254, %s255
      %p264 = scmp.eq.s32.totalorder %s34, 0
      %p265 = por %p263, %p264
      %p266 = scmp.ne.s32.totalorder %s254, %s255
      %p267 = scmp.eq.s32.totalorder %s35, 1
      %p268 = por %p266, %p267
      %p270 = scmp.ne.s32.totalorder %s255, %s269
      %p271 = scmp.eq.s32.totalorder %s35, 0
      %p272 = por %p270, %p271
      %s274 = sadd.s32 %s273, 1
      %p277 = scmp.eq.s32.totalorder %s29, 1
      %p278 = scmp.ne.s32.totalorder %s273, %s275
      %p279 = scmp.eq.s32.totalorder %s29, 0
      %p280 = por %p278, %p279
      %p281 = scmp.ne.s32.totalorder %s273, %s275
      %p282 = scmp.eq.s32.totalorder %s34, 1
      %p283 = por %p281, %p282
      %p284 = scmp.ne.s32.totalorder %s275, %s276
      %p285 = scmp.eq.s32.totalorder %s34, 0
      %p286 = por %p284, %p285
      %p287 = scmp.ne.s32.totalorder %s275, %s276
      %p288 = scmp.eq.s32.totalorder %s35, 1
      %p289 = por %p287, %p288
      %p291 = scmp.ne.s32.totalorder %s276, %s290
      %p292 = scmp.eq.s32.totalorder %s35, 0
      %p293 = por %p291, %p292
      %s295 = sadd.s32 %s294, 1
      %p298 = scmp.eq.s32.totalorder %s29, 1
      %p299 = scmp.ne.s32.totalorder %s294, %s296
      %p300 = scmp.eq.s32.totalorder %s29, 0
      %p301 = por %p299, %p300
      %p302 = scmp.ne.s32.totalorder %s294, %s296
      %p303 = scmp.eq.s32.totalorder %s34, 1
      %p304 = por %p302, %p303
      %p305 = scmp.ne.s32.totalorder %s296, %s297
      %p306 = scmp.eq.s32.totalorder %s34, 0
      %p307 = por %p305, %p306
      %p308 = scmp.ne.s32.totalorder %s296, %s297
      %p309 = scmp.eq.s32.totalorder %s35, 1
      %p310 = por %p308, %p309
      %p312 = scmp.ne.s32.totalorder %s297, %s311
      %p313 = scmp.eq.s32.totalorder %s35, 0
      %p314 = por %p312, %p313
      %s315 = ssub.s32 %s29, %s36
      %p316 = scmp.eq.s32.totalorder %s315, 0
      %s318 = sadd.s32 %s317, 1
      %s319 = scalar_select %p316, %s317, %s318
      %p322 = pneg %p316
      %p323 = scmp.eq.s32.totalorder %s29, 1
      %p324 = por %p322, %p323
      %p325 = scmp.ne.s32.totalorder %s317, %s320
      %p326 = scmp.eq.s32.totalorder %s29, 0
      %p327 = por %p325, %p326
      %p328 = scmp.ne.s32.totalorder %s317, %s320
      %p329 = scmp.eq.s32.totalorder %s34, 1
      %p330 = por %p328, %p329
      %p331 = scmp.ne.s32.totalorder %s320, %s321
      %p332 = scmp.eq.s32.totalorder %s34, 0
      %p333 = por %p331, %p332
      %p334 = scmp.ne.s32.totalorder %s320, %s321
      %p335 = scmp.eq.s32.totalorder %s35, 1
      %p336 = por %p334, %p335
      %p338 = scmp.ne.s32.totalorder %s321, %s337
      %p339 = scmp.eq.s32.totalorder %s35, 0
      %p340 = por %p338, %p339
      %p341 = scmp.le.s32.totalorder 1, %s29
      %p342 = scmp.lt.s32.totalorder %s29, 3
      %p343 = pnand %p341, %p342
      %p344 = pneg %p343
      // Predicated region
      $region9: #{tpu_custom_call.1} parent=5 // pred_check
        _
      $region10: #{tpu_custom_call.1} parent=5 // pred_check_branch
        %346 = sbr.rel (%p343) target = $region12
      $region11: #{tpu_custom_call.1} parent=5 // pred_region
        %s347 = ssub.s32 %s29, 1
        // Predicated region
        $region13: #{tpu_custom_call.1} parent=11 // pred_check
          %p348 = pneg %p76
        $region14: #{tpu_custom_call.1} parent=11 // pred_check_branch
          %350 = sbr.rel (%p348) target = $region16
        $region15: #{tpu_custom_call.1} parent=11 // pred_region
          %s352 = ssub.s32 32, 32
          %353 = vsyncadd [#allocation7], %s352
          %s355 = sshll.u32 [#allocation6], 4
          %s356 = int_to_ptr.vmem [resolvable:$true] %s355
          %358 = dma.hbm_to_vmem [thread:$0]  %s1, 32, %s356, [#allocation7]
        $region16: #{tpu_custom_call.1} parent=11 // pred_fallthru
          _
        // Predicated region
        $region17: #{tpu_custom_call.1} parent=11 // pred_check
          %p359 = pneg %p97
        $region18: #{tpu_custom_call.1} parent=11 // pred_check_branch
          %361 = sbr.rel (%p359) target = $region20
        $region19: #{tpu_custom_call.1} parent=11 // pred_region
          %s363 = ssub.s32 32, 32
          %364 = vsyncadd [#allocation7], %s363
          %s366 = sshll.u32 [#allocation8], 4
          %s367 = int_to_ptr.vmem [resolvable:$true] %s366
          %369 = dma.hbm_to_vmem [thread:$0]  %s2, 32, %s367, [#allocation7]
        $region20: #{tpu_custom_call.1} parent=11 // pred_fallthru
          _
        // Predicated region
        $region21: #{tpu_custom_call.1} parent=11 // pred_check
          %p370 = pneg %p118
        $region22: #{tpu_custom_call.1} parent=11 // pred_check_branch
          %372 = sbr.rel (%p370) target = $region24
        $region23: #{tpu_custom_call.1} parent=11 // pred_region
          %s374 = ssub.s32 12288, 12288
          %375 = vsyncadd [#allocation10], %s374
          %s376 = sshll.u32 [#allocation9], 4
          %s377 = int_to_ptr.vmem [resolvable:$true] %s376
          %382 = dma.hbm_to_vmem [thread:$0]  %s3, 12288, %s377, [#allocation10], 384, 384, 24
        $region24: #{tpu_custom_call.1} parent=11 // pred_fallthru
          _
        // Predicated region
        $region25: #{tpu_custom_call.1} parent=11 // pred_check
          %p383 = pneg %p139
        $region26: #{tpu_custom_call.1} parent=11 // pred_check_branch
          %385 = sbr.rel (%p383) target = $region28
        $region27: #{tpu_custom_call.1} parent=11 // pred_region
          _
        $region28: #{tpu_custom_call.1} parent=11 // pred_fallthru
          _
        // Predicated region
        $region29: #{tpu_custom_call.1} parent=11 // pred_check
          %p386 = pneg %p160
        $region30: #{tpu_custom_call.1} parent=11 // pred_check_branch
          %388 = sbr.rel (%p386) target = $region32
        $region31: #{tpu_custom_call.1} parent=11 // pred_region
          %s390 = ssub.s32 4096, 4096
          %391 = vsyncadd [#allocation10], %s390
          %s392 = sshll.u32 [#allocation11], 4
          %s393 = int_to_ptr.vmem [resolvable:$true] %s392
          %398 = dma.hbm_to_vmem [thread:$0]  %s5, 4096, %s393, [#allocation10], 128, 128, 8
        $region32: #{tpu_custom_call.1} parent=11 // pred_fallthru
          _
        // Predicated region
        $region33: #{tpu_custom_call.1} parent=11 // pred_check
          %p399 = pneg %p181
        $region34: #{tpu_custom_call.1} parent=11 // pred_check_branch
          %401 = sbr.rel (%p399) target = $region36
        $region35: #{tpu_custom_call.1} parent=11 // pred_region
          _
        $region36: #{tpu_custom_call.1} parent=11 // pred_fallthru
          _
        // Predicated region
        $region37: #{tpu_custom_call.1} parent=11 // pred_check
          %p402 = pneg %p202
        $region38: #{tpu_custom_call.1} parent=11 // pred_check_branch
          %404 = sbr.rel (%p402) target = $region40
        $region39: #{tpu_custom_call.1} parent=11 // pred_region
          %s406 = ssub.s32 32, 32
          %407 = vsyncadd [#allocation13], %s406
          %s409 = sshll.u32 [#allocation12], 4
          %s410 = int_to_ptr.vmem [resolvable:$true] %s409
          %412 = dma.hbm_to_vmem [thread:$0]  %s7, 32, %s410, [#allocation13]
        $region40: #{tpu_custom_call.1} parent=11 // pred_fallthru
          _
        // Predicated region
        $region41: #{tpu_custom_call.1} parent=11 // pred_check
          %p413 = pneg %p223
        $region42: #{tpu_custom_call.1} parent=11 // pred_check_branch
          %415 = sbr.rel (%p413) target = $region44
        $region43: #{tpu_custom_call.1} parent=11 // pred_region
          %s417 = ssub.s32 32, 32
          %418 = vsyncadd [#allocation13], %s417
          %s420 = sshll.u32 [#allocation14], 4
          %s421 = int_to_ptr.vmem [resolvable:$true] %s420
          %423 = dma.hbm_to_vmem [thread:$0]  %s8, 32, %s421, [#allocation13]
        $region44: #{tpu_custom_call.1} parent=11 // pred_fallthru
          _
        // Predicated region
        $region45: #{tpu_custom_call.1} parent=11 // pred_check
          %p424 = pneg %p244
        $region46: #{tpu_custom_call.1} parent=11 // pred_check_branch
          %426 = sbr.rel (%p424) target = $region48
        $region47: #{tpu_custom_call.1} parent=11 // pred_region
          %s428 = ssub.s32 16384, 16384
          %429 = vsyncadd [#allocation16], %s428
          %s430 = sshll.u32 [#allocation15], 4
          %s431 = int_to_ptr.vmem [resolvable:$true] %s430
          %436 = dma.hbm_to_vmem [thread:$0]  %s9, 16384, %s431, [#allocation16], 512, 512, 32
        $region48: #{tpu_custom_call.1} parent=11 // pred_fallthru
          _
        // Predicated region
        $region49: #{tpu_custom_call.1} parent=11 // pred_check
          %p437 = pneg %p265
        $region50: #{tpu_custom_call.1} parent=11 // pred_check_branch
          %439 = sbr.rel (%p437) target = $region52
        $region51: #{tpu_custom_call.1} parent=11 // pred_region
          _
        $region52: #{tpu_custom_call.1} parent=11 // pred_fallthru
          _
        // Predicated region
        $region53: #{tpu_custom_call.1} parent=11 // pred_check
          %p440 = pneg %p286
        $region54: #{tpu_custom_call.1} parent=11 // pred_check_branch
          %442 = sbr.rel (%p440) target = $region56
        $region55: #{tpu_custom_call.1} parent=11 // pred_region
          %s444 = ssub.s32 16384, 16384
          %445 = vsyncadd [#allocation16], %s444
          %s446 = sshll.u32 [#allocation17], 4
          %s447 = int_to_ptr.vmem [resolvable:$true] %s446
          %452 = dma.hbm_to_vmem [thread:$0]  %s11, 16384, %s447, [#allocation16], 128, 128, 8
        $region56: #{tpu_custom_call.1} parent=11 // pred_fallthru
          _
        // Predicated region
        $region57: #{tpu_custom_call.1} parent=11 // pred_check
          %p453 = pneg %p307
        $region58: #{tpu_custom_call.1} parent=11 // pred_check_branch
          %455 = sbr.rel (%p453) target = $region60
        $region59: #{tpu_custom_call.1} parent=11 // pred_region
          _
        $region60: #{tpu_custom_call.1} parent=11 // pred_fallthru
          _
      $region12: #{tpu_custom_call.1} parent=5 // pred_fallthru
        _
      %p456 = scmp.lt.s32.totalorder %s29, 2
      // Predicated region
      $region61: #{tpu_custom_call.1} parent=5 // pred_check
        %p457 = pneg %p456
      $region62: #{tpu_custom_call.1} parent=5 // pred_check_branch
        %459 = sbr.rel (%p457) target = $region64
      $region63: #{tpu_custom_call.1} parent=5 // pred_region
        // Predicated region
        $region65: #{tpu_custom_call.1} parent=63 // pred_check
          %p460 = pneg %p49
        $region66: #{tpu_custom_call.1} parent=63 // pred_check_branch
          %462 = sbr.rel (%p460) target = $region68
        $region67: #{tpu_custom_call.1} parent=63 // pred_region
          %s463 = sand.u32 %s39, 1
          %s464 = scalar_lea.sflag [#allocation4], %s463
          %s465 = sand.u32 %s39, 1
          %s466 = smul.addr %s465, 32
          %s467 = scalar_lea.vmem [#allocation3], %s466
          %s468 = smul.u32 2, %s29
          %s470 = ssub.s32 512, 512
          %471 = vsyncadd %s464, %s470
          %s472 = smul.addr %s468, 2
          %s473 = smul.addr %s472, 128
          %s474 = scalar_lea.hbm %s0, %s473
          %s475 = sshll.u32 %s467, 4
          %s476 = int_to_ptr.vmem [resolvable:$true] %s475
          %481 = dma.hbm_to_vmem [thread:$0]  %s474, 512, %s476, %s464, 256, 256, 16
        $region68: #{tpu_custom_call.1} parent=63 // pred_fallthru
          _
      $region64: #{tpu_custom_call.1} parent=5 // pred_fallthru
        _
      %p482 = scmp.le.s32.totalorder 1, %s29
      %p483 = scmp.lt.s32.totalorder %s29, 3
      %p484 = pnand %p482, %p483
      %p485 = pneg %p484
      // Predicated region
      $region69: #{tpu_custom_call.1} parent=5 // pred_check
        _
      $region70: #{tpu_custom_call.1} parent=5 // pred_check_branch
        %487 = sbr.rel (%p484) target = $region72
      $region71: #{tpu_custom_call.1} parent=5 // pred_region
        %s488 = ssub.s32 %s29, 1
        %s489 = sand.u32 %s42, 1
        %s490 = scalar_lea.sflag [#allocation4], %s489
        %s491 = sand.u32 %s42, 1
        %s492 = smul.addr %s491, 32
        %s493 = scalar_lea.vmem [#allocation3], %s492
        // Predicated region
        $region73: #{tpu_custom_call.1} parent=71 // pred_check
          %p494 = pneg %p55
        $region74: #{tpu_custom_call.1} parent=71 // pred_check_branch
          %496 = sbr.rel (%p494) target = $region76
        $region75: #{tpu_custom_call.1} parent=71 // pred_region
          %497 = dma.done %s490, 512
        $region76: #{tpu_custom_call.1} parent=71 // pred_fallthru
          _
        // Predicated region
        $region77: #{tpu_custom_call.1} parent=71 // pred_check
          %p498 = pneg %p76
        $region78: #{tpu_custom_call.1} parent=71 // pred_check_branch
          %500 = sbr.rel (%p498) target = $region80
        $region79: #{tpu_custom_call.1} parent=71 // pred_region
          %501 = dma.done [#allocation7], 32
        $region80: #{tpu_custom_call.1} parent=71 // pred_fallthru
          _
        // Predicated region
        $region81: #{tpu_custom_call.1} parent=71 // pred_check
          %p502 = pneg %p97
        $region82: #{tpu_custom_call.1} parent=71 // pred_check_branch
          %504 = sbr.rel (%p502) target = $region84
        $region83: #{tpu_custom_call.1} parent=71 // pred_region
          %505 = dma.done [#allocation7], 32
        $region84: #{tpu_custom_call.1} parent=71 // pred_fallthru
          _
        // Predicated region
        $region85: #{tpu_custom_call.1} parent=71 // pred_check
          %p506 = pneg %p118
        $region86: #{tpu_custom_call.1} parent=71 // pred_check_branch
          %508 = sbr.rel (%p506) target = $region88
        $region87: #{tpu_custom_call.1} parent=71 // pred_region
          %509 = dma.done [#allocation10], 12288
        $region88: #{tpu_custom_call.1} parent=71 // pred_fallthru
          _
        // Predicated region
        $region89: #{tpu_custom_call.1} parent=71 // pred_check
          %p510 = pneg %p160
        $region90: #{tpu_custom_call.1} parent=71 // pred_check_branch
          %512 = sbr.rel (%p510) target = $region92
        $region91: #{tpu_custom_call.1} parent=71 // pred_region
          %513 = dma.done [#allocation10], 4096
        $region92: #{tpu_custom_call.1} parent=71 // pred_fallthru
          _
        // Predicated region
        $region93: #{tpu_custom_call.1} parent=71 // pred_check
          %p514 = pneg %p202
        $region94: #{tpu_custom_call.1} parent=71 // pred_check_branch
          %516 = sbr.rel (%p514) target = $region96
        $region95: #{tpu_custom_call.1} parent=71 // pred_region
          %517 = dma.done [#allocation13], 32
        $region96: #{tpu_custom_call.1} parent=71 // pred_fallthru
          _
        // Predicated region
        $region97: #{tpu_custom_call.1} parent=71 // pred_check
          %p518 = pneg %p223
        $region98: #{tpu_custom_call.1} parent=71 // pred_check_branch
          %520 = sbr.rel (%p518) target = $region100
        $region99: #{tpu_custom_call.1} parent=71 // pred_region
          %521 = dma.done [#allocation13], 32
        $region100: #{tpu_custom_call.1} parent=71 // pred_fallthru
          _
        // Predicated region
        $region101: #{tpu_custom_call.1} parent=71 // pred_check
          %p522 = pneg %p244
        $region102: #{tpu_custom_call.1} parent=71 // pred_check_branch
          %524 = sbr.rel (%p522) target = $region104
        $region103: #{tpu_custom_call.1} parent=71 // pred_region
          %525 = dma.done [#allocation16], 16384
        $region104: #{tpu_custom_call.1} parent=71 // pred_fallthru
          _
        // Predicated region
        $region105: #{tpu_custom_call.1} parent=71 // pred_check
          %p526 = pneg %p286
        $region106: #{tpu_custom_call.1} parent=71 // pred_check_branch
          %528 = sbr.rel (%p526) target = $region108
        $region107: #{tpu_custom_call.1} parent=71 // pred_region
          %529 = dma.done [#allocation16], 16384
        $region108: #{tpu_custom_call.1} parent=71 // pred_fallthru
          _
        %s530 = sand.u32 %s42, 1
        %s531 = scalar_lea.sflag [#allocation4], %s530
        %s532 = sand.u32 %s42, 1
        %s533 = smul.addr %s532, 32
        %s534 = scalar_lea.vmem [#allocation3], %s533
        %p535 = pneg %p55
        %p536 = pneg %p52
        %p537 = pneg %p76
        %p538 = pneg %p73
        %p539 = pneg %p97
        %p540 = pneg %p94
        %p541 = pneg %p118
        %p542 = pneg %p115
        %p543 = pneg %p139
        %p544 = pneg %p136
        %p545 = pneg %p160
        %p546 = pneg %p157
        %p547 = pneg %p181
        %p548 = pneg %p178
        %p549 = pneg %p202
        %p550 = pneg %p199
        %p551 = pneg %p223
        %p552 = pneg %p220
        %p553 = pneg %p244
        %p554 = pneg %p241
        %p555 = pneg %p265
        %p556 = pneg %p262
        %p557 = pneg %p286
        %p558 = pneg %p283
        %p559 = pneg %p307
        %p560 = pneg %p304
        %p561 = pneg %p333
        %p562 = pneg %p330
        %s563 = sand.u32 %s320, 1
        %s564 = scalar_lea.sflag [#allocation5], %s563
        %s565 = sand.u32 %s320, 1
        %s566 = smul.addr %s565, 32
        %s567 = scalar_lea.vmem [#allocation18], %s566
        %s568 = smul.u32 2, %s34
        %s569 = smul.u32 2, %s34
        %v571 = vld [vmem:[%s493] sm:$0xff]
        %v572 = vld [vmem:[%s493 + $0x8] sm:$0xff]
        %v573 = vld [vmem:[%s493 + $0x10] sm:$0xff]
        %v574 = vld [vmem:[%s493 + $0x18] sm:$0xff]
        %v575 = vld [vmem:[#allocation6] sm:$0x3]
        %v576 = vld [vmem:[#allocation8] sm:$0x3]
        %v577 = vadd.f32 %v571, %v572
        %578 = vadd.xlane.f32.xlu0 %v577
        %v579 = vpop.xlane.xlu0 %578
        %v580 = vadd.f32 %v573, %v574
        %581 = vadd.xlane.f32.xlu0 %v580
        %v582 = vpop.xlane.xlu0 %581
        %v583 = vrcp.pop 256.0
        %v584 = vmul.f32 %v579, %v583
        %v585 = vmul.f32 %v582, %v583
        %v586 = vsub.f32 %v571, %v584
        %v587 = vsub.f32 %v572, %v584
        %v588 = vsub.f32 %v573, %v585
        %v589 = vsub.f32 %v574, %v585
        %v590 = vmul.f32 %v586, %v586
        %v591 = vmul.f32 %v587, %v587
        %v592 = vmul.f32 %v588, %v588
        %v593 = vmul.f32 %v589, %v589
        %v594 = vadd.f32 %v590, %v591
        %595 = vadd.xlane.f32.xlu0 %v594
        %v596 = vpop.xlane.xlu0 %595
        %v597 = vadd.f32 %v592, %v593
        %598 = vadd.xlane.f32.xlu0 %v597
        %v599 = vpop.xlane.xlu0 %598
        %v600 = vmul.f32 %v596, %v583
        %v601 = vmul.f32 %v599, %v583
        %v602 = vadd.f32 %v600, 1e-05
        %v603 = vadd.f32 %v601, 1e-05
        %v604 = vrsqrt.pop %v602
        %v605 = vrsqrt.pop %v603
        %v606 = vmul.f32 %v586, %v604
        %v607 = vmul.f32 %v587, %v604
        %v608 = vmul.f32 %v588, %v605
        %v609 = vmul.f32 %v589, %v605
        %v611 = vlaneseq
        %v612 = vshrl.u32 %v611, 7
        %v613 = vsub.s32 0, %v612
        %v614 = vrot.slane %v575, %v613
        %v615 = vlaneseq
        %v616 = vshrl.u32 %v615, 7
        %v617 = vsub.s32 1, %v616
        %v618 = vrot.slane %v575, %v617
        %v621 = vmul.f32 %v606, %v614
        %v622 = vmul.f32 %v607, %v618
        %v623 = vmul.f32 %v608, %v614
        %v624 = vmul.f32 %v609, %v618
        %v626 = vlaneseq
        %v627 = vshrl.u32 %v626, 7
        %v628 = vsub.s32 0, %v627
        %v629 = vrot.slane %v576, %v628
        %v630 = vlaneseq
        %v631 = vshrl.u32 %v630, 7
        %v632 = vsub.s32 1, %v631
        %v633 = vrot.slane %v576, %v632
        %v636 = vadd.f32 %v621, %v629
        %v637 = vadd.f32 %v622, %v633
        %v638 = vadd.f32 %v623, %v629
        %v639 = vadd.f32 %v624, %v633
        %v640 = vpack.c.bf16 %v638, %v636
        %v641 = vpack.c.bf16 %v639, %v637
        %v642 = vld [vmem:[#allocation9] sm:$0xff]
        %v643 = vld [vmem:[#allocation9 + $0x8] sm:$0xff]
        %v644 = vld [vmem:[#allocation9 + $0x10] sm:$0xff]
        %v645 = vld [vmem:[#allocation9 + $0x18] sm:$0xff]
        %v646 = vld [vmem:[#allocation9 + $0x20] sm:$0xff]
        %v647 = vld [vmem:[#allocation9 + $0x28] sm:$0xff]
        %v648 = vld [vmem:[#allocation9 + $0x30] sm:$0xff]
        %v649 = vld [vmem:[#allocation9 + $0x38] sm:$0xff]
        %v650 = vld [vmem:[#allocation9 + $0x40] sm:$0xff]
        %v651 = vld [vmem:[#allocation9 + $0x48] sm:$0xff]
        %v652 = vld [vmem:[#allocation9 + $0x50] sm:$0xff]
        %v653 = vld [vmem:[#allocation9 + $0x58] sm:$0xff]
        %v654 = vld [vmem:[#allocation9 + $0x60] sm:$0xff]
        %v655 = vld [vmem:[#allocation9 + $0x68] sm:$0xff]
        %v656 = vld [vmem:[#allocation9 + $0x70] sm:$0xff]
        %v657 = vld [vmem:[#allocation9 + $0x78] sm:$0xff]
        %v658 = vld [vmem:[#allocation9 + $0x80] sm:$0xff]
        %v659 = vld [vmem:[#allocation9 + $0x88] sm:$0xff]
        %v660 = vld [vmem:[#allocation9 + $0x90] sm:$0xff]
        %v661 = vld [vmem:[#allocation9 + $0x98] sm:$0xff]
        %v662 = vld [vmem:[#allocation9 + $0xa0] sm:$0xff]
        %v663 = vld [vmem:[#allocation9 + $0xa8] sm:$0xff]
        %v664 = vld [vmem:[#allocation9 + $0xb0] sm:$0xff]
        %v665 = vld [vmem:[#allocation9 + $0xb8] sm:$0xff]
        %v666 = vld [vmem:[#allocation9 + $0xc0] sm:$0xff]
        %v667 = vld [vmem:[#allocation9 + $0xc8] sm:$0xff]
        %v668 = vld [vmem:[#allocation9 + $0xd0] sm:$0xff]
        %v669 = vld [vmem:[#allocation9 + $0xd8] sm:$0xff]
        %v670 = vld [vmem:[#allocation9 + $0xe0] sm:$0xff]
        %v671 = vld [vmem:[#allocation9 + $0xe8] sm:$0xff]
        %v672 = vld [vmem:[#allocation9 + $0xf0] sm:$0xff]
        %v673 = vld [vmem:[#allocation9 + $0xf8] sm:$0xff]
        %v674 = vld [vmem:[#allocation9 + $0x100] sm:$0xff]
        %v675 = vld [vmem:[#allocation9 + $0x108] sm:$0xff]
        %v676 = vld [vmem:[#allocation9 + $0x110] sm:$0xff]
        %v677 = vld [vmem:[#allocation9 + $0x118] sm:$0xff]
        %v678 = vld [vmem:[#allocation9 + $0x120] sm:$0xff]
        %v679 = vld [vmem:[#allocation9 + $0x128] sm:$0xff]
        %v680 = vld [vmem:[#allocation9 + $0x130] sm:$0xff]
        %v681 = vld [vmem:[#allocation9 + $0x138] sm:$0xff]
        %v682 = vld [vmem:[#allocation9 + $0x140] sm:$0xff]
        %v683 = vld [vmem:[#allocation9 + $0x148] sm:$0xff]
        %v684 = vld [vmem:[#allocation9 + $0x150] sm:$0xff]
        %v685 = vld [vmem:[#allocation9 + $0x158] sm:$0xff]
        %v686 = vld [vmem:[#allocation9 + $0x160] sm:$0xff]
        %v687 = vld [vmem:[#allocation9 + $0x168] sm:$0xff]
        %v688 = vld [vmem:[#allocation9 + $0x170] sm:$0xff]
        %v689 = vld [vmem:[#allocation9 + $0x178] sm:$0xff]
        %v690 = vld [vmem:[#allocation9 + $0x180] sm:$0xff]
        %v691 = vld [vmem:[#allocation9 + $0x188] sm:$0xff]
        %v692 = vld [vmem:[#allocation9 + $0x190] sm:$0xff]
        %v693 = vld [vmem:[#allocation9 + $0x198] sm:$0xff]
        %v694 = vld [vmem:[#allocation9 + $0x1a0] sm:$0xff]
        %v695 = vld [vmem:[#allocation9 + $0x1a8] sm:$0xff]
        %v696 = vld [vmem:[#allocation9 + $0x1b0] sm:$0xff]
        %v697 = vld [vmem:[#allocation9 + $0x1b8] sm:$0xff]
        %v698 = vld [vmem:[#allocation9 + $0x1c0] sm:$0xff]
        %v699 = vld [vmem:[#allocation9 + $0x1c8] sm:$0xff]
        %v700 = vld [vmem:[#allocation9 + $0x1d0] sm:$0xff]
        %v701 = vld [vmem:[#allocation9 + $0x1d8] sm:$0xff]
        %v702 = vld [vmem:[#allocation9 + $0x1e0] sm:$0xff]
        %v703 = vld [vmem:[#allocation9 + $0x1e8] sm:$0xff]
        %v704 = vld [vmem:[#allocation9 + $0x1f0] sm:$0xff]
        %v705 = vld [vmem:[#allocation9 + $0x1f8] sm:$0xff]
        %v706 = vld [vmem:[#allocation9 + $0x200] sm:$0xff]
        %v707 = vld [vmem:[#allocation9 + $0x208] sm:$0xff]
        %v708 = vld [vmem:[#allocation9 + $0x210] sm:$0xff]
        %v709 = vld [vmem:[#allocation9 + $0x218] sm:$0xff]
        %v710 = vld [vmem:[#allocation9 + $0x220] sm:$0xff]
        %v711 = vld [vmem:[#allocation9 + $0x228] sm:$0xff]
        %v712 = vld [vmem:[#allocation9 + $0x230] sm:$0xff]
        %v713 = vld [vmem:[#allocation9 + $0x238] sm:$0xff]
        %v714 = vld [vmem:[#allocation9 + $0x240] sm:$0xff]
        %v715 = vld [vmem:[#allocation9 + $0x248] sm:$0xff]
        %v716 = vld [vmem:[#allocation9 + $0x250] sm:$0xff]
        %v717 = vld [vmem:[#allocation9 + $0x258] sm:$0xff]
        %v718 = vld [vmem:[#allocation9 + $0x260] sm:$0xff]
        %v719 = vld [vmem:[#allocation9 + $0x268] sm:$0xff]
        %v720 = vld [vmem:[#allocation9 + $0x270] sm:$0xff]
        %v721 = vld [vmem:[#allocation9 + $0x278] sm:$0xff]
        %v722 = vld [vmem:[#allocation9 + $0x280] sm:$0xff]
        %v723 = vld [vmem:[#allocation9 + $0x288] sm:$0xff]
        %v724 = vld [vmem:[#allocation9 + $0x290] sm:$0xff]
        %v725 = vld [vmem:[#allocation9 + $0x298] sm:$0xff]
        %v726 = vld [vmem:[#allocation9 + $0x2a0] sm:$0xff]
        %v727 = vld [vmem:[#allocation9 + $0x2a8] sm:$0xff]
        %v728 = vld [vmem:[#allocation9 + $0x2b0] sm:$0xff]
        %v729 = vld [vmem:[#allocation9 + $0x2b8] sm:$0xff]
        %v730 = vld [vmem:[#allocation9 + $0x2c0] sm:$0xff]
        %v731 = vld [vmem:[#allocation9 + $0x2c8] sm:$0xff]
        %v732 = vld [vmem:[#allocation9 + $0x2d0] sm:$0xff]
        %v733 = vld [vmem:[#allocation9 + $0x2d8] sm:$0xff]
        %v734 = vld [vmem:[#allocation9 + $0x2e0] sm:$0xff]
        %v735 = vld [vmem:[#allocation9 + $0x2e8] sm:$0xff]
        %v736 = vld [vmem:[#allocation9 + $0x2f0] sm:$0xff]
        %v737 = vld [vmem:[#allocation9 + $0x2f8] sm:$0xff]
        %v738 = vld [vmem:[%s4] sm:$0x3f]
        %v740 = vlaneseq
        %v741 = vshrl.u32 %v740, 7
        %v742 = vsub.s32 0, %v741
        %v743 = vrot.slane %v738, %v742
        %v744 = vlaneseq
        %v745 = vshrl.u32 %v744, 7
        %v746 = vsub.s32 1, %v745
        %v747 = vrot.slane %v738, %v746
        %v748 = vlaneseq
        %v749 = vshrl.u32 %v748, 7
        %v750 = vsub.s32 2, %v749
        %v751 = vrot.slane %v738, %v750
        %v752 = vlaneseq
        %v753 = vshrl.u32 %v752, 7
        %v754 = vsub.s32 3, %v753
        %v755 = vrot.slane %v738, %v754
        %v756 = vlaneseq
        %v757 = vshrl.u32 %v756, 7
        %v758 = vsub.s32 4, %v757
        %v759 = vrot.slane %v738, %v758
        %v760 = vlaneseq
        %v761 = vshrl.u32 %v760, 7
        %v762 = vsub.s32 5, %v761
        %v763 = vrot.slane %v738, %v762
        %v866 = vunpack.c.l.b16 %v642
        %v867 = vunpack.c.h.b16 %v642
        %v868 = vunpack.c.l.b16 %v643
        %v869 = vunpack.c.h.b16 %v643
        %v870 = vunpack.c.l.b16 %v644
        %v871 = vunpack.c.h.b16 %v644
        %v872 = vunpack.c.l.b16 %v645
        %v873 = vunpack.c.h.b16 %v645
        %v874 = vunpack.c.l.b16 %v646
        %v875 = vunpack.c.h.b16 %v646
        %v876 = vunpack.c.l.b16 %v647
        %v877 = vunpack.c.h.b16 %v647
        %v878 = vunpack.c.l.b16 %v648
        %v879 = vunpack.c.h.b16 %v648
        %v880 = vunpack.c.l.b16 %v649
        %v881 = vunpack.c.h.b16 %v649
        %v882 = vunpack.c.l.b16 %v650
        %v883 = vunpack.c.h.b16 %v650
        %v884 = vunpack.c.l.b16 %v651
        %v885 = vunpack.c.h.b16 %v651
        %v886 = vunpack.c.l.b16 %v652
        %v887 = vunpack.c.h.b16 %v652
        %v888 = vunpack.c.l.b16 %v653
        %v889 = vunpack.c.h.b16 %v653
        %v890 = vunpack.c.l.b16 %v654
        %v891 = vunpack.c.h.b16 %v654
        %v892 = vunpack.c.l.b16 %v655
        %v893 = vunpack.c.h.b16 %v655
        %v894 = vunpack.c.l.b16 %v656
        %v895 = vunpack.c.h.b16 %v656
        %v896 = vunpack.c.l.b16 %v657
        %v897 = vunpack.c.h.b16 %v657
        %v898 = vunpack.c.l.b16 %v658
        %v899 = vunpack.c.h.b16 %v658
        %v900 = vunpack.c.l.b16 %v659
        %v901 = vunpack.c.h.b16 %v659
        %v902 = vunpack.c.l.b16 %v660
        %v903 = vunpack.c.h.b16 %v660
        %v904 = vunpack.c.l.b16 %v661
        %v905 = vunpack.c.h.b16 %v661
        %v906 = vunpack.c.l.b16 %v662
        %v907 = vunpack.c.h.b16 %v662
        %v908 = vunpack.c.l.b16 %v663
        %v909 = vunpack.c.h.b16 %v663
        %v910 = vunpack.c.l.b16 %v664
        %v911 = vunpack.c.h.b16 %v664
        %v912 = vunpack.c.l.b16 %v665
        %v913 = vunpack.c.h.b16 %v665
        %v914 = vunpack.c.l.b16 %v666
        %v915 = vunpack.c.h.b16 %v666
        %v916 = vunpack.c.l.b16 %v667
        %v917 = vunpack.c.h.b16 %v667
        %v918 = vunpack.c.l.b16 %v668
        %v919 = vunpack.c.h.b16 %v668
        %v920 = vunpack.c.l.b16 %v669
        %v921 = vunpack.c.h.b16 %v669
        %v922 = vunpack.c.l.b16 %v670
        %v923 = vunpack.c.h.b16 %v670
        %v924 = vunpack.c.l.b16 %v671
        %v925 = vunpack.c.h.b16 %v671
        %v926 = vunpack.c.l.b16 %v672
        %v927 = vunpack.c.h.b16 %v672
        %v928 = vunpack.c.l.b16 %v673
        %v929 = vunpack.c.h.b16 %v673
        %v930 = vunpack.c.l.b16 %v674
        %v931 = vunpack.c.h.b16 %v674
        %v932 = vunpack.c.l.b16 %v675
        %v933 = vunpack.c.h.b16 %v675
        %v934 = vunpack.c.l.b16 %v676
        %v935 = vunpack.c.h.b16 %v676
        %v936 = vunpack.c.l.b16 %v677
        %v937 = vunpack.c.h.b16 %v677
        %v938 = vunpack.c.l.b16 %v678
        %v939 = vunpack.c.h.b16 %v678
        %v940 = vunpack.c.l.b16 %v679
        %v941 = vunpack.c.h.b16 %v679
        %v942 = vunpack.c.l.b16 %v680
        %v943 = vunpack.c.h.b16 %v680
        %v944 = vunpack.c.l.b16 %v681
        %v945 = vunpack.c.h.b16 %v681
        %v946 = vunpack.c.l.b16 %v682
        %v947 = vunpack.c.h.b16 %v682
        %v948 = vunpack.c.l.b16 %v683
        %v949 = vunpack.c.h.b16 %v683
        %v950 = vunpack.c.l.b16 %v684
        %v951 = vunpack.c.h.b16 %v684
        %v952 = vunpack.c.l.b16 %v685
        %v953 = vunpack.c.h.b16 %v685
        %v954 = vunpack.c.l.b16 %v686
        %v955 = vunpack.c.h.b16 %v686
        %v956 = vunpack.c.l.b16 %v687
        %v957 = vunpack.c.h.b16 %v687
        %v958 = vunpack.c.l.b16 %v688
        %v959 = vunpack.c.h.b16 %v688
        %v960 = vunpack.c.l.b16 %v689
        %v961 = vunpack.c.h.b16 %v689
        %v962 = vunpack.c.l.b16 %v690
        %v963 = vunpack.c.h.b16 %v690
        %v964 = vunpack.c.l.b16 %v691
        %v965 = vunpack.c.h.b16 %v691
        %v966 = vunpack.c.l.b16 %v692
        %v967 = vunpack.c.h.b16 %v692
        %v968 = vunpack.c.l.b16 %v693
        %v969 = vunpack.c.h.b16 %v693
        %v970 = vunpack.c.l.b16 %v694
        %v971 = vunpack.c.h.b16 %v694
        %v972 = vunpack.c.l.b16 %v695
        %v973 = vunpack.c.h.b16 %v695
        %v974 = vunpack.c.l.b16 %v696
        %v975 = vunpack.c.h.b16 %v696
        %v976 = vunpack.c.l.b16 %v697
        %v977 = vunpack.c.h.b16 %v697
        %v978 = vunpack.c.l.b16 %v698
        %v979 = vunpack.c.h.b16 %v698
        %v980 = vunpack.c.l.b16 %v699
        %v981 = vunpack.c.h.b16 %v699
        %v982 = vunpack.c.l.b16 %v700
        %v983 = vunpack.c.h.b16 %v700
        %v984 = vunpack.c.l.b16 %v701
        %v985 = vunpack.c.h.b16 %v701
        %v986 = vunpack.c.l.b16 %v702
        %v987 = vunpack.c.h.b16 %v702
        %v988 = vunpack.c.l.b16 %v703
        %v989 = vunpack.c.h.b16 %v703
        %v990 = vunpack.c.l.b16 %v704
        %v991 = vunpack.c.h.b16 %v704
        %v992 = vunpack.c.l.b16 %v705
        %v993 = vunpack.c.h.b16 %v705
        %v994 = vunpack.c.l.b16 %v706
        %v995 = vunpack.c.h.b16 %v706
        %v996 = vunpack.c.l.b16 %v707
        %v997 = vunpack.c.h.b16 %v707
        %v998 = vunpack.c.l.b16 %v708
        %v999 = vunpack.c.h.b16 %v708
        %v1000 = vunpack.c.l.b16 %v709
        %v1001 = vunpack.c.h.b16 %v709
        %v1002 = vunpack.c.l.b16 %v710
        %v1003 = vunpack.c.h.b16 %v710
        %v1004 = vunpack.c.l.b16 %v711
        %v1005 = vunpack.c.h.b16 %v711
        %v1006 = vunpack.c.l.b16 %v712
        %v1007 = vunpack.c.h.b16 %v712
        %v1008 = vunpack.c.l.b16 %v713
        %v1009 = vunpack.c.h.b16 %v713
        %v1010 = vunpack.c.l.b16 %v714
        %v1011 = vunpack.c.h.b16 %v714
        %v1012 = vunpack.c.l.b16 %v715
        %v1013 = vunpack.c.h.b16 %v715
        %v1014 = vunpack.c.l.b16 %v716
        %v1015 = vunpack.c.h.b16 %v716
        %v1016 = vunpack.c.l.b16 %v717
        %v1017 = vunpack.c.h.b16 %v717
        %v1018 = vunpack.c.l.b16 %v718
        %v1019 = vunpack.c.h.b16 %v718
        %v1020 = vunpack.c.l.b16 %v719
        %v1021 = vunpack.c.h.b16 %v719
        %v1022 = vunpack.c.l.b16 %v720
        %v1023 = vunpack.c.h.b16 %v720
        %v1024 = vunpack.c.l.b16 %v721
        %v1025 = vunpack.c.h.b16 %v721
        %v1026 = vunpack.c.l.b16 %v722
        %v1027 = vunpack.c.h.b16 %v722
        %v1028 = vunpack.c.l.b16 %v723
        %v1029 = vunpack.c.h.b16 %v723
        %v1030 = vunpack.c.l.b16 %v724
        %v1031 = vunpack.c.h.b16 %v724
        %v1032 = vunpack.c.l.b16 %v725
        %v1033 = vunpack.c.h.b16 %v725
        %v1034 = vunpack.c.l.b16 %v726
        %v1035 = vunpack.c.h.b16 %v726
        %v1036 = vunpack.c.l.b16 %v727
        %v1037 = vunpack.c.h.b16 %v727
        %v1038 = vunpack.c.l.b16 %v728
        %v1039 = vunpack.c.h.b16 %v728
        %v1040 = vunpack.c.l.b16 %v729
        %v1041 = vunpack.c.h.b16 %v729
        %v1042 = vunpack.c.l.b16 %v730
        %v1043 = vunpack.c.h.b16 %v730
        %v1044 = vunpack.c.l.b16 %v731
        %v1045 = vunpack.c.h.b16 %v731
        %v1046 = vunpack.c.l.b16 %v732
        %v1047 = vunpack.c.h.b16 %v732
        %v1048 = vunpack.c.l.b16 %v733
        %v1049 = vunpack.c.h.b16 %v733
        %v1050 = vunpack.c.l.b16 %v734
        %v1051 = vunpack.c.h.b16 %v734
        %v1052 = vunpack.c.l.b16 %v735
        %v1053 = vunpack.c.h.b16 %v735
        %v1054 = vunpack.c.l.b16 %v736
        %v1055 = vunpack.c.h.b16 %v736
        %v1056 = vunpack.c.l.b16 %v737
        %v1057 = vunpack.c.h.b16 %v737
        %v1058 = vpack.c.b16 %v872, %v866
        %v1059 = vpack.c.b16 %v873, %v867
        %v1060 = vpack.c.b16 %v874, %v868
        %v1061 = vpack.c.b16 %v875, %v869
        %v1062 = vpack.c.b16 %v876, %v870
        %v1063 = vpack.c.b16 %v877, %v871
        %v1064 = vpack.c.b16 %v884, %v878
        %v1065 = vpack.c.b16 %v885, %v879
        %v1066 = vpack.c.b16 %v886, %v880
        %v1067 = vpack.c.b16 %v887, %v881
        %v1068 = vpack.c.b16 %v888, %v882
        %v1069 = vpack.c.b16 %v889, %v883
        %v1070 = vpack.c.b16 %v896, %v890
        %v1071 = vpack.c.b16 %v897, %v891
        %v1072 = vpack.c.b16 %v898, %v892
        %v1073 = vpack.c.b16 %v899, %v893
        %v1074 = vpack.c.b16 %v900, %v894
        %v1075 = vpack.c.b16 %v901, %v895
        %v1076 = vpack.c.b16 %v908, %v902
        %v1077 = vpack.c.b16 %v909, %v903
        %v1078 = vpack.c.b16 %v910, %v904
        %v1079 = vpack.c.b16 %v911, %v905
        %v1080 = vpack.c.b16 %v912, %v906
        %v1081 = vpack.c.b16 %v913, %v907
        %v1082 = vpack.c.b16 %v920, %v914
        %v1083 = vpack.c.b16 %v921, %v915
        %v1084 = vpack.c.b16 %v922, %v916
        %v1085 = vpack.c.b16 %v923, %v917
        %v1086 = vpack.c.b16 %v924, %v918
        %v1087 = vpack.c.b16 %v925, %v919
        %v1088 = vpack.c.b16 %v932, %v926
        %v1089 = vpack.c.b16 %v933, %v927
        %v1090 = vpack.c.b16 %v934, %v928
        %v1091 = vpack.c.b16 %v935, %v929
        %v1092 = vpack.c.b16 %v936, %v930
        %v1093 = vpack.c.b16 %v937, %v931
        %v1094 = vpack.c.b16 %v944, %v938
        %v1095 = vpack.c.b16 %v945, %v939
        %v1096 = vpack.c.b16 %v946, %v940
        %v1097 = vpack.c.b16 %v947, %v941
        %v1098 = vpack.c.b16 %v948, %v942
        %v1099 = vpack.c.b16 %v949, %v943
        %v1100 = vpack.c.b16 %v956, %v950
        %v1101 = vpack.c.b16 %v957, %v951
        %v1102 = vpack.c.b16 %v958, %v952
        %v1103 = vpack.c.b16 %v959, %v953
        %v1104 = vpack.c.b16 %v960, %v954
        %v1105 = vpack.c.b16 %v961, %v955
        %v1106 = vpack.c.b16 %v968, %v962
        %v1107 = vpack.c.b16 %v969, %v963
        %v1108 = vpack.c.b16 %v970, %v964
        %v1109 = vpack.c.b16 %v971, %v965
        %v1110 = vpack.c.b16 %v972, %v966
        %v1111 = vpack.c.b16 %v973, %v967
        %v1112 = vpack.c.b16 %v980, %v974
        %v1113 = vpack.c.b16 %v981, %v975
        %v1114 = vpack.c.b16 %v982, %v976
        %v1115 = vpack.c.b16 %v983, %v977
        %v1116 = vpack.c.b16 %v984, %v978
        %v1117 = vpack.c.b16 %v985, %v979
        %v1118 = vpack.c.b16 %v992, %v986
        %v1119 = vpack.c.b16 %v993, %v987
        %v1120 = vpack.c.b16 %v994, %v988
        %v1121 = vpack.c.b16 %v995, %v989
        %v1122 = vpack.c.b16 %v996, %v990
        %v1123 = vpack.c.b16 %v997, %v991
        %v1124 = vpack.c.b16 %v1004, %v998
        %v1125 = vpack.c.b16 %v1005, %v999
        %v1126 = vpack.c.b16 %v1006, %v1000
        %v1127 = vpack.c.b16 %v1007, %v1001
        %v1128 = vpack.c.b16 %v1008, %v1002
        %v1129 = vpack.c.b16 %v1009, %v1003
        %v1130 = vpack.c.b16 %v1016, %v1010
        %v1131 = vpack.c.b16 %v1017, %v1011
        %v1132 = vpack.c.b16 %v1018, %v1012
        %v1133 = vpack.c.b16 %v1019, %v1013
        %v1134 = vpack.c.b16 %v1020, %v1014
        %v1135 = vpack.c.b16 %v1021, %v1015
        %v1136 = vpack.c.b16 %v1028, %v1022
        %v1137 = vpack.c.b16 %v1029, %v1023
        %v1138 = vpack.c.b16 %v1030, %v1024
        %v1139 = vpack.c.b16 %v1031, %v1025
        %v1140 = vpack.c.b16 %v1032, %v1026
        %v1141 = vpack.c.b16 %v1033, %v1027
        %v1142 = vpack.c.b16 %v1040, %v1034
        %v1143 = vpack.c.b16 %v1041, %v1035
        %v1144 = vpack.c.b16 %v1042, %v1036
        %v1145 = vpack.c.b16 %v1043, %v1037
        %v1146 = vpack.c.b16 %v1044, %v1038
        %v1147 = vpack.c.b16 %v1045, %v1039
        %v1148 = vpack.c.b16 %v1052, %v1046
        %v1149 = vpack.c.b16 %v1053, %v1047
        %v1150 = vpack.c.b16 %v1054, %v1048
        %v1151 = vpack.c.b16 %v1055, %v1049
        %v1152 = vpack.c.b16 %v1056, %v1050
        %v1153 = vpack.c.b16 %v1057, %v1051
        %1250 = vmatprep.subr.bf16.mxu0 %v1101
        %1251 = vmatpush1.bf16.msra.mxu0 %v1100
        %1252 = vmatprep.subr.bf16.mxu0 %v1095
        %1253 = vmatpush1.bf16.msra.mxu0 %v1094
        %1254 = vmatprep.subr.bf16.mxu0 %v1089
        %1255 = vmatpush1.bf16.msra.mxu0 %v1088
        %1256 = vmatprep.subr.bf16.mxu0 %v1083
        %1257 = vmatpush1.bf16.msra.mxu0 %v1082
        %1258 = vmatprep.subr.bf16.mxu0 %v1077
        %1259 = vmatpush1.bf16.msra.mxu0 %v1076
        %1260 = vmatprep.subr.bf16.mxu0 %v1071
        %1261 = vmatpush1.bf16.msra.mxu0 %v1070
        %1262 = vmatprep.subr.bf16.mxu0 %v1065
        %1263 = vmatpush1.bf16.msra.mxu0 %v1064
        %1264 = vmatprep.subr.bf16.mxu0 %v1059
        %1265 = vmatpush1.bf16.msra.mxu0 %v1058
        %1266 = vmatprep.subr.bf16.mxu0 %v1149
        %1267 = vmatpush2.bf16.msra.mxu0 %v1148
        %1268 = vmatprep.subr.bf16.mxu0 %v1143
        %1269 = vmatpush2.bf16.msra.mxu0 %v1142
        %1270 = vmatprep.subr.bf16.mxu0 %v1137
        %1271 = vmatpush2.bf16.msra.mxu0 %v1136
        %1272 = vmatprep.subr.bf16.mxu0 %v1131
        %1273 = vmatpush2.bf16.msra.mxu0 %v1130
        %1274 = vmatprep.subr.bf16.mxu0 %v1125
        %1275 = vmatpush2.bf16.msra.mxu0 %v1124
        %1276 = vmatprep.subr.bf16.mxu0 %v1119
        %1277 = vmatpush2.bf16.msra.mxu0 %v1118
        %1278 = vmatprep.subr.bf16.mxu0 %v1113
        %1279 = vmatpush2.bf16.msra.mxu0 %v1112
        %1280 = vmatprep.subr.bf16.mxu0 %v1107
        %1281 = vmatpush2.bf16.msra.mxu0 %v1106
        %1282 = vmatprep.mubr.bf16.mxu0 %v641
        %1283 = vmatmul.mubr.bf16.gmra.mxu0 %v640
        %v1284 = vpop.f32.mrf.mxu0
        %v1285 = vadd.f32 %v743, %v1284
        %v1286 = vpop.f32.mrf.mxu0
        %v1287 = vadd.f32 %v747, %v1286
        %v1288 = vpop.f32.mrf.mxu0
        %v1289 = vadd.f32 %v743, %v1288
        %v1290 = vpop.f32.mrf.mxu0
        %v1291 = vadd.f32 %v747, %v1290
        %1292 = vdwg.mxu0
        %1293 = vmatprep.subr.bf16.mxu0 %v1103
        %1294 = vmatpush1.bf16.msra.mxu0 %v1102
        %1295 = vmatprep.subr.bf16.mxu0 %v1097
        %1296 = vmatpush1.bf16.msra.mxu0 %v1096
        %1297 = vmatprep.subr.bf16.mxu0 %v1091
        %1298 = vmatpush1.bf16.msra.mxu0 %v1090
        %1299 = vmatprep.subr.bf16.mxu0 %v1085
        %1300 = vmatpush1.bf16.msra.mxu0 %v1084
        %1301 = vmatprep.subr.bf16.mxu0 %v1079
        %1302 = vmatpush1.bf16.msra.mxu0 %v1078
        %1303 = vmatprep.subr.bf16.mxu0 %v1073
        %1304 = vmatpush1.bf16.msra.mxu0 %v1072
        %1305 = vmatprep.subr.bf16.mxu0 %v1067
        %1306 = vmatpush1.bf16.msra.mxu0 %v1066
        %1307 = vmatprep.subr.bf16.mxu0 %v1061
        %1308 = vmatpush1.bf16.msra.mxu0 %v1060
        %1309 = vmatprep.subr.bf16.mxu0 %v1151
        %1310 = vmatpush2.bf16.msra.mxu0 %v1150
        %1311 = vmatprep.subr.bf16.mxu0 %v1145
        %1312 = vmatpush2.bf16.msra.mxu0 %v1144
        %1313 = vmatprep.subr.bf16.mxu0 %v1139
        %1314 = vmatpush2.bf16.msra.mxu0 %v1138
        %1315 = vmatprep.subr.bf16.mxu0 %v1133
        %1316 = vmatpush2.bf16.msra.mxu0 %v1132
        %1317 = vmatprep.subr.bf16.mxu0 %v1127
        %1318 = vmatpush2.bf16.msra.mxu0 %v1126
        %1319 = vmatprep.subr.bf16.mxu0 %v1121
        %1320 = vmatpush2.bf16.msra.mxu0 %v1120
        %1321 = vmatprep.subr.bf16.mxu0 %v1115
        %1322 = vmatpush2.bf16.msra.mxu0 %v1114
        %1323 = vmatprep.subr.bf16.mxu0 %v1109
        %1324 = vmatpush2.bf16.msra.mxu0 %v1108
        %1325 = vmatprep.mubr.bf16.mxu0 %v641
        %1326 = vmatmul.mubr.bf16.gmra.mxu0 %v640
        %v1327 = vpop.f32.mrf.mxu0
        %v1328 = vadd.f32 %v751, %v1327
        %v1329 = vpop.f32.mrf.mxu0
        %v1330 = vadd.f32 %v755, %v1329
        %v1331 = vpop.f32.mrf.mxu0
        %v1332 = vadd.f32 %v751, %v1331
        %v1333 = vpop.f32.mrf.mxu0
        %v1334 = vadd.f32 %v755, %v1333
        %1335 = vdwg.mxu0
        %1336 = vmatprep.subr.bf16.mxu0 %v1105
        %1337 = vmatpush1.bf16.msra.mxu0 %v1104
        %1338 = vmatprep.subr.bf16.mxu0 %v1099
        %1339 = vmatpush1.bf16.msra.mxu0 %v1098
        %1340 = vmatprep.subr.bf16.mxu0 %v1093
        %1341 = vmatpush1.bf16.msra.mxu0 %v1092
        %1342 = vmatprep.subr.bf16.mxu0 %v1087
        %1343 = vmatpush1.bf16.msra.mxu0 %v1086
        %1344 = vmatprep.subr.bf16.mxu0 %v1081
        %1345 = vmatpush1.bf16.msra.mxu0 %v1080
        %1346 = vmatprep.subr.bf16.mxu0 %v1075
        %1347 = vmatpush1.bf16.msra.mxu0 %v1074
        %1348 = vmatprep.subr.bf16.mxu0 %v1069
        %1349 = vmatpush1.bf16.msra.mxu0 %v1068
        %1350 = vmatprep.subr.bf16.mxu0 %v1063
        %1351 = vmatpush1.bf16.msra.mxu0 %v1062
        %1352 = vmatprep.subr.bf16.mxu0 %v1153
        %1353 = vmatpush2.bf16.msra.mxu0 %v1152
        %1354 = vmatprep.subr.bf16.mxu0 %v1147
        %1355 = vmatpush2.bf16.msra.mxu0 %v1146
        %1356 = vmatprep.subr.bf16.mxu0 %v1141
        %1357 = vmatpush2.bf16.msra.mxu0 %v1140
        %1358 = vmatprep.subr.bf16.mxu0 %v1135
        %1359 = vmatpush2.bf16.msra.mxu0 %v1134
        %1360 = vmatprep.subr.bf16.mxu0 %v1129
        %1361 = vmatpush2.bf16.msra.mxu0 %v1128
        %1362 = vmatprep.subr.bf16.mxu0 %v1123
        %1363 = vmatpush2.bf16.msra.mxu0 %v1122
        %1364 = vmatprep.subr.bf16.mxu0 %v1117
        %1365 = vmatpush2.bf16.msra.mxu0 %v1116
        %1366 = vmatprep.subr.bf16.mxu0 %v1111
        %1367 = vmatpush2.bf16.msra.mxu0 %v1110
        %1368 = vmatprep.mubr.bf16.mxu0 %v641
        %1369 = vmatmul.mubr.bf16.gmra.mxu0 %v640
        %v1370 = vpop.f32.mrf.mxu0
        %v1371 = vadd.f32 %v759, %v1370
        %v1372 = vpop.f32.mrf.mxu0
        %v1373 = vadd.f32 %v763, %v1372
        %v1374 = vpop.f32.mrf.mxu0
        %v1375 = vadd.f32 %v759, %v1374
        %v1376 = vpop.f32.mrf.mxu0
        %v1377 = vadd.f32 %v763, %v1376
        %1378 = vdwg.mxu0
        %v1379 = vpack.c.bf16 %v1285, %v1285
        %v1380 = vpack.c.bf16 %v1289, %v1289
        %v1381 = vpack.c.bf16 %v1328, %v1328
        %v1382 = vpack.c.bf16 %v1332, %v1332
        %v1383 = vpack.c.bf16 %v1371, %v1371
        %v1384 = vpack.c.bf16 %v1375, %v1375
        %1385 = vmatprep.subr.bf16.mxu0 0
        %1386 = vmatpush1.bf16.xpose.msra.mxu0 0
        %1387 = vmatprep.subr.bf16.mxu0 0
        %1388 = vmatpush1.bf16.xpose.msra.mxu0 0
        %1389 = vmatprep.subr.bf16.mxu0 0
        %1390 = vmatpush1.bf16.xpose.msra.mxu0 0
        %1391 = vmatprep.subr.bf16.mxu0 0
        %1392 = vmatpush1.bf16.xpose.msra.mxu0 0
        %1393 = vmatprep.subr.bf16.mxu0 0
        %1394 = vmatpush1.bf16.xpose.msra.mxu0 0
        %1395 = vmatprep.subr.bf16.mxu0 0
        %1396 = vmatpush1.bf16.xpose.msra.mxu0 0
        %1397 = vmatprep.subr.bf16.mxu0 0
        %1398 = vmatpush1.bf16.xpose.msra.mxu0 0
        %1399 = vmatprep.subr.bf16.mxu0 0
        %1400 = vmatpush1.bf16.xpose.msra.mxu0 %v1381
        %1401 = vmatprep.subr.bf16.mxu0 0
        %1402 = vmatpush2.bf16.xpose.msra.mxu0 0
        %1403 = vmatprep.subr.bf16.mxu0 0
        %1404 = vmatpush2.bf16.xpose.msra.mxu0 0
        %1405 = vmatprep.subr.bf16.mxu0 0
        %1406 = vmatpush2.bf16.xpose.msra.mxu0 0
        %1407 = vmatprep.subr.bf16.mxu0 0
        %1408 = vmatpush2.bf16.xpose.msra.mxu0 0
        %1409 = vmatprep.subr.bf16.mxu0 0
        %1410 = vmatpush2.bf16.xpose.msra.mxu0 0
        %1411 = vmatprep.subr.bf16.mxu0 0
        %1412 = vmatpush2.bf16.xpose.msra.mxu0 0
        %1413 = vmatprep.subr.bf16.mxu0 0
        %1414 = vmatpush2.bf16.xpose.msra.mxu0 0
        %1415 = vmatprep.subr.bf16.mxu0 0
        %1416 = vmatpush2.bf16.xpose.msra.mxu0 0
        %1417 = vmatprep.mubr.bf16.mxu0 0
        %1418 = vmatmul.mubr.bf16.gmra.mxu0 %v1379
        %v1419 = vpop.f32.mrf.mxu0
        %v1420 = vadd.f32 0.0, %v1419
        %v1421 = vpop.f32.mrf.mxu0
        %v1422 = vpop.f32.mrf.mxu0
        %v1423 = vpop.f32.mrf.mxu0
        %1424 = vdwg.mxu0
        %1425 = vmatprep.subr.bf16.mxu0 0
        %1426 = vmatpush1.bf16.xpose.msra.mxu0 0
        %1427 = vmatprep.subr.bf16.mxu0 0
        %1428 = vmatpush1.bf16.xpose.msra.mxu0 0
        %1429 = vmatprep.subr.bf16.mxu0 0
        %1430 = vmatpush1.bf16.xpose.msra.mxu0 0
        %1431 = vmatprep.subr.bf16.mxu0 0
        %1432 = vmatpush1.bf16.xpose.msra.mxu0 0
        %1433 = vmatprep.subr.bf16.mxu0 0
        %1434 = vmatpush1.bf16.xpose.msra.mxu0 0
        %1435 = vmatprep.subr.bf16.mxu0 0
        %1436 = vmatpush1.bf16.xpose.msra.mxu0 0
        %1437 = vmatprep.subr.bf16.mxu0 0
        %1438 = vmatpush1.bf16.xpose.msra.mxu0 0
        %1439 = vmatprep.subr.bf16.mxu0 0
        %1440 = vmatpush1.bf16.xpose.msra.mxu0 %v1382
        %1441 = vmatprep.subr.bf16.mxu0 0
        %1442 = vmatpush2.bf16.xpose.msra.mxu0 0
        %1443 = vmatprep.subr.bf16.mxu0 0
        %1444 = vmatpush2.bf16.xpose.msra.mxu0 0
        %1445 = vmatprep.subr.bf16.mxu0 0
        %1446 = vmatpush2.bf16.xpose.msra.mxu0 0
        %1447 = vmatprep.subr.bf16.mxu0 0
        %1448 = vmatpush2.bf16.xpose.msra.mxu0 0
        %1449 = vmatprep.subr.bf16.mxu0 0
        %1450 = vmatpush2.bf16.xpose.msra.mxu0 0
        %1451 = vmatprep.subr.bf16.mxu0 0
        %1452 = vmatpush2.bf16.xpose.msra.mxu0 0
        %1453 = vmatprep.subr.bf16.mxu0 0
        %1454 = vmatpush2.bf16.xpose.msra.mxu0 0
        %1455 = vmatprep.subr.bf16.mxu0 0
        %1456 = vmatpush2.bf16.xpose.msra.mxu0 0
        %1457 = vmatprep.mubr.bf16.mxu0 0
        %1458 = vmatmul.mubr.bf16.gmra.mxu0 %v1380
        %v1459 = vpop.f32.mrf.mxu0
        %v1460 = vadd.f32 0.0, %v1459
        %v1461 = vpop.f32.mrf.mxu0
        %v1462 = vpop.f32.mrf.mxu0
        %v1463 = vpop.f32.mrf.mxu0
        %1464 = vdwg.mxu0
        %vm1465 = vcmask 64512
        %v1466 = vsel %vm1465, %v1420, -inf
        %1467 = vmax.xlane.f32.xlu0 %v1466
        %v1468 = vpop.xlane.xlu0 %1467
        %v1469 = vsel %vm1465, %v1460, -inf
        %1470 = vmax.xlane.f32.xlu0 %v1469
        %v1471 = vpop.xlane.xlu0 %1470
        %v1472 = vsub.f32 %v1420, %v1468
        %v1473 = vsub.f32 %v1460, %v1471
        %v1474 = vmul.f32 %v1472, 1.442695
        %v1475 = vpow.pop %v1474
        %v1476 = vmul.f32 %v1473, 1.442695
        %v1477 = vpow.pop %v1476
        %v1478 = vsel %vm1465, %v1475, 0.0
        %1479 = vadd.xlane.f32.xlu0 %v1478
        %v1480 = vpop.xlane.xlu0 %1479
        %v1481 = vsel %vm1465, %v1477, 0.0
        %1482 = vadd.xlane.f32.xlu0 %v1481
        %v1483 = vpop.xlane.xlu0 %1482
        %v1484 = vpack.c.bf16 %v1475, %v1475
        %v1485 = vpack.c.bf16 %v1477, %v1477
        %v1487 = vsel %vm1465, %v1484, 0
        %vm1489 = vcmask 1043456
        %v1491 = vsel %vm1489, %v1383, 0
        %1493 = vmatprep.subr.bf16.mxu0 0
        %1494 = vmatpush1.bf16.msra.mxu0 0
        %1495 = vmatprep.subr.bf16.mxu0 0
        %1496 = vmatpush1.bf16.msra.mxu0 0
        %1497 = vmatprep.subr.bf16.mxu0 0
        %1498 = vmatpush1.bf16.msra.mxu0 0
        %1499 = vmatprep.subr.bf16.mxu0 0
        %1500 = vmatpush1.bf16.msra.mxu0 0
        %1501 = vmatprep.subr.bf16.mxu0 0
        %1502 = vmatpush1.bf16.msra.mxu0 0
        %1503 = vmatprep.subr.bf16.mxu0 0
        %1504 = vmatpush1.bf16.msra.mxu0 0
        %1505 = vmatprep.subr.bf16.mxu0 0
        %1506 = vmatpush1.bf16.msra.mxu0 0
        %1507 = vmatprep.subr.bf16.mxu0 0
        %1508 = vmatpush1.bf16.msra.mxu0 %v1491
        %1509 = vmatprep.subr.bf16.mxu0 0
        %1510 = vmatpush2.bf16.msra.mxu0 0
        %1511 = vmatprep.subr.bf16.mxu0 0
        %1512 = vmatpush2.bf16.msra.mxu0 0
        %1513 = vmatprep.subr.bf16.mxu0 0
        %1514 = vmatpush2.bf16.msra.mxu0 0
        %1515 = vmatprep.subr.bf16.mxu0 0
        %1516 = vmatpush2.bf16.msra.mxu0 0
        %1517 = vmatprep.subr.bf16.mxu0 0
        %1518 = vmatpush2.bf16.msra.mxu0 0
        %1519 = vmatprep.subr.bf16.mxu0 0
        %1520 = vmatpush2.bf16.msra.mxu0 0
        %1521 = vmatprep.subr.bf16.mxu0 0
        %1522 = vmatpush2.bf16.msra.mxu0 0
        %1523 = vmatprep.subr.bf16.mxu0 0
        %1524 = vmatpush2.bf16.msra.mxu0 0
        %1525 = vmatprep.mubr.bf16.mxu0 0
        %1526 = vmatmul.mubr.bf16.gmra.mxu0 %v1487
        %v1527 = vpop.f32.mrf.mxu0
        %v1528 = vadd.f32 0.0, %v1527
        %v1529 = vpop.f32.mrf.mxu0
        %v1530 = vpop.f32.mrf.mxu0
        %v1531 = vpop.f32.mrf.mxu0
        %1532 = vdwg.mxu0
        %v1534 = vsel %vm1465, %v1485, 0
        %v1537 = vsel %vm1489, %v1384, 0
        %1539 = vmatprep.subr.bf16.mxu0 0
        %1540 = vmatpush1.bf16.msra.mxu0 0
        %1541 = vmatprep.subr.bf16.mxu0 0
        %1542 = vmatpush1.bf16.msra.mxu0 0
        %1543 = vmatprep.subr.bf16.mxu0 0
        %1544 = vmatpush1.bf16.msra.mxu0 0
        %1545 = vmatprep.subr.bf16.mxu0 0
        %1546 = vmatpush1.bf16.msra.mxu0 0
        %1547 = vmatprep.subr.bf16.mxu0 0
        %1548 = vmatpush1.bf16.msra.mxu0 0
        %1549 = vmatprep.subr.bf16.mxu0 0
        %1550 = vmatpush1.bf16.msra.mxu0 0
        %1551 = vmatprep.subr.bf16.mxu0 0
        %1552 = vmatpush1.bf16.msra.mxu0 0
        %1553 = vmatprep.subr.bf16.mxu0 0
        %1554 = vmatpush1.bf16.msra.mxu0 %v1537
        %1555 = vmatprep.subr.bf16.mxu0 0
        %1556 = vmatpush2.bf16.msra.mxu0 0
        %1557 = vmatprep.subr.bf16.mxu0 0
        %1558 = vmatpush2.bf16.msra.mxu0 0
        %1559 = vmatprep.subr.bf16.mxu0 0
        %1560 = vmatpush2.bf16.msra.mxu0 0
        %1561 = vmatprep.subr.bf16.mxu0 0
        %1562 = vmatpush2.bf16.msra.mxu0 0
        %1563 = vmatprep.subr.bf16.mxu0 0
        %1564 = vmatpush2.bf16.msra.mxu0 0
        %1565 = vmatprep.subr.bf16.mxu0 0
        %1566 = vmatpush2.bf16.msra.mxu0 0
        %1567 = vmatprep.subr.bf16.mxu0 0
        %1568 = vmatpush2.bf16.msra.mxu0 0
        %1569 = vmatprep.subr.bf16.mxu0 0
        %1570 = vmatpush2.bf16.msra.mxu0 0
        %1571 = vmatprep.mubr.bf16.mxu0 0
        %1572 = vmatmul.mubr.bf16.gmra.mxu0 %v1534
        %v1573 = vpop.f32.mrf.mxu0
        %v1574 = vadd.f32 0.0, %v1573
        %v1575 = vpop.f32.mrf.mxu0
        %v1576 = vpop.f32.mrf.mxu0
        %v1577 = vpop.f32.mrf.mxu0
        %1578 = vdwg.mxu0
        %v1579 = vrcp.pop %v1480
        %v1580 = vrcp.pop %v1483
        %v1581 = vmul.f32 %v1528, %v1579
        %v1582 = vmul.f32 %v1574, %v1580
        %v1583 = vpack.c.bf16 %v1581, %v1581
        %v1584 = vpack.c.bf16 %v1582, %v1582
        %1585 = vst [vmem:[#allocation2] sm:$0xf] %v1583
        %1586 = vst [vmem:[#allocation2 + $0x8] sm:$0xf] %v1584
        %v1587 = vpack.c.bf16 %v1287, %v1287
        %v1588 = vpack.c.bf16 %v1291, %v1291
        %v1589 = vpack.c.bf16 %v1330, %v1330
        %v1590 = vpack.c.bf16 %v1334, %v1334
        %v1591 = vpack.c.bf16 %v1373, %v1373
        %v1592 = vpack.c.bf16 %v1377, %v1377
        %1593 = vmatprep.subr.bf16.mxu0 0
        %1594 = vmatpush1.bf16.xpose.msra.mxu0 0
        %1595 = vmatprep.subr.bf16.mxu0 0
        %1596 = vmatpush1.bf16.xpose.msra.mxu0 0
        %1597 = vmatprep.subr.bf16.mxu0 0
        %1598 = vmatpush1.bf16.xpose.msra.mxu0 0
        %1599 = vmatprep.subr.bf16.mxu0 0
        %1600 = vmatpush1.bf16.xpose.msra.mxu0 0
        %1601 = vmatprep.subr.bf16.mxu0 0
        %1602 = vmatpush1.bf16.xpose.msra.mxu0 0
        %1603 = vmatprep.subr.bf16.mxu0 0
        %1604 = vmatpush1.bf16.xpose.msra.mxu0 0
        %1605 = vmatprep.subr.bf16.mxu0 0
        %1606 = vmatpush1.bf16.xpose.msra.mxu0 0
        %1607 = vmatprep.subr.bf16.mxu0 0
        %1608 = vmatpush1.bf16.xpose.msra.mxu0 %v1589
        %1609 = vmatprep.subr.bf16.mxu0 0
        %1610 = vmatpush2.bf16.xpose.msra.mxu0 0
        %1611 = vmatprep.subr.bf16.mxu0 0
        %1612 = vmatpush2.bf16.xpose.msra.mxu0 0
        %1613 = vmatprep.subr.bf16.mxu0 0
        %1614 = vmatpush2.bf16.xpose.msra.mxu0 0
        %1615 = vmatprep.subr.bf16.mxu0 0
        %1616 = vmatpush2.bf16.xpose.msra.mxu0 0
        %1617 = vmatprep.subr.bf16.mxu0 0
        %1618 = vmatpush2.bf16.xpose.msra.mxu0 0
        %1619 = vmatprep.subr.bf16.mxu0 0
        %1620 = vmatpush2.bf16.xpose.msra.mxu0 0
        %1621 = vmatprep.subr.bf16.mxu0 0
        %1622 = vmatpush2.bf16.xpose.msra.mxu0 0
        %1623 = vmatprep.subr.bf16.mxu0 0
        %1624 = vmatpush2.bf16.xpose.msra.mxu0 0
        %1625 = vmatprep.mubr.bf16.mxu0 0
        %1626 = vmatmul.mubr.bf16.gmra.mxu0 %v1587
        %v1627 = vpop.f32.mrf.mxu0
        %v1628 = vadd.f32 0.0, %v1627
        %v1629 = vpop.f32.mrf.mxu0
        %v1630 = vpop.f32.mrf.mxu0
        %v1631 = vpop.f32.mrf.mxu0
        %1632 = vdwg.mxu0
        %1633 = vmatprep.subr.bf16.mxu0 0
        %1634 = vmatpush1.bf16.xpose.msra.mxu0 0
        %1635 = vmatprep.subr.bf16.mxu0 0
        %1636 = vmatpush1.bf16.xpose.msra.mxu0 0
        %1637 = vmatprep.subr.bf16.mxu0 0
        %1638 = vmatpush1.bf16.xpose.msra.mxu0 0
        %1639 = vmatprep.subr.bf16.mxu0 0
        %1640 = vmatpush1.bf16.xpose.msra.mxu0 0
        %1641 = vmatprep.subr.bf16.mxu0 0
        %1642 = vmatpush1.bf16.xpose.msra.mxu0 0
        %1643 = vmatprep.subr.bf16.mxu0 0
        %1644 = vmatpush1.bf16.xpose.msra.mxu0 0
        %1645 = vmatprep.subr.bf16.mxu0 0
        %1646 = vmatpush1.bf16.xpose.msra.mxu0 0
        %1647 = vmatprep.subr.bf16.mxu0 0
        %1648 = vmatpush1.bf16.xpose.msra.mxu0 %v1590
        %1649 = vmatprep.subr.bf16.mxu0 0
        %1650 = vmatpush2.bf16.xpose.msra.mxu0 0
        %1651 = vmatprep.subr.bf16.mxu0 0
        %1652 = vmatpush2.bf16.xpose.msra.mxu0 0
        %1653 = vmatprep.subr.bf16.mxu0 0
        %1654 = vmatpush2.bf16.xpose.msra.mxu0 0
        %1655 = vmatprep.subr.bf16.mxu0 0
        %1656 = vmatpush2.bf16.xpose.msra.mxu0 0
        %1657 = vmatprep.subr.bf16.mxu0 0
        %1658 = vmatpush2.bf16.xpose.msra.mxu0 0
        %1659 = vmatprep.subr.bf16.mxu0 0
        %1660 = vmatpush2.bf16.xpose.msra.mxu0 0
        %1661 = vmatprep.subr.bf16.mxu0 0
        %1662 = vmatpush2.bf16.xpose.msra.mxu0 0
        %1663 = vmatprep.subr.bf16.mxu0 0
        %1664 = vmatpush2.bf16.xpose.msra.mxu0 0
        %1665 = vmatprep.mubr.bf16.mxu0 0
        %1666 = vmatmul.mubr.bf16.gmra.mxu0 %v1588
        %v1667 = vpop.f32.mrf.mxu0
        %v1668 = vadd.f32 0.0, %v1667
        %v1669 = vpop.f32.mrf.mxu0
        %v1670 = vpop.f32.mrf.mxu0
        %v1671 = vpop.f32.mrf.mxu0
        %1672 = vdwg.mxu0
        %v1673 = vsel %vm1465, %v1628, -inf
        %1674 = vmax.xlane.f32.xlu0 %v1673
        %v1675 = vpop.xlane.xlu0 %1674
        %v1676 = vsel %vm1465, %v1668, -inf
        %1677 = vmax.xlane.f32.xlu0 %v1676
        %v1678 = vpop.xlane.xlu0 %1677
        %v1679 = vsub.f32 %v1628, %v1675
        %v1680 = vsub.f32 %v1668, %v1678
        %v1681 = vmul.f32 %v1679, 1.442695
        %v1682 = vpow.pop %v1681
        %v1683 = vmul.f32 %v1680, 1.442695
        %v1684 = vpow.pop %v1683
        %v1685 = vsel %vm1465, %v1682, 0.0
        %1686 = vadd.xlane.f32.xlu0 %v1685
        %v1687 = vpop.xlane.xlu0 %1686
        %v1688 = vsel %vm1465, %v1684, 0.0
        %1689 = vadd.xlane.f32.xlu0 %v1688
        %v1690 = vpop.xlane.xlu0 %1689
        %v1691 = vpack.c.bf16 %v1682, %v1682
        %v1692 = vpack.c.bf16 %v1684, %v1684
        %v1694 = vsel %vm1465, %v1691, 0
        %v1697 = vsel %vm1489, %v1591, 0
        %1699 = vmatprep.subr.bf16.mxu0 0
        %1700 = vmatpush1.bf16.msra.mxu0 0
        %1701 = vmatprep.subr.bf16.mxu0 0
        %1702 = vmatpush1.bf16.msra.mxu0 0
        %1703 = vmatprep.subr.bf16.mxu0 0
        %1704 = vmatpush1.bf16.msra.mxu0 0
        %1705 = vmatprep.subr.bf16.mxu0 0
        %1706 = vmatpush1.bf16.msra.mxu0 0
        %1707 = vmatprep.subr.bf16.mxu0 0
        %1708 = vmatpush1.bf16.msra.mxu0 0
        %1709 = vmatprep.subr.bf16.mxu0 0
        %1710 = vmatpush1.bf16.msra.mxu0 0
        %1711 = vmatprep.subr.bf16.mxu0 0
        %1712 = vmatpush1.bf16.msra.mxu0 0
        %1713 = vmatprep.subr.bf16.mxu0 0
        %1714 = vmatpush1.bf16.msra.mxu0 %v1697
        %1715 = vmatprep.subr.bf16.mxu0 0
        %1716 = vmatpush2.bf16.msra.mxu0 0
        %1717 = vmatprep.subr.bf16.mxu0 0
        %1718 = vmatpush2.bf16.msra.mxu0 0
        %1719 = vmatprep.subr.bf16.mxu0 0
        %1720 = vmatpush2.bf16.msra.mxu0 0
        %1721 = vmatprep.subr.bf16.mxu0 0
        %1722 = vmatpush2.bf16.msra.mxu0 0
        %1723 = vmatprep.subr.bf16.mxu0 0
        %1724 = vmatpush2.bf16.msra.mxu0 0
        %1725 = vmatprep.subr.bf16.mxu0 0
        %1726 = vmatpush2.bf16.msra.mxu0 0
        %1727 = vmatprep.subr.bf16.mxu0 0
        %1728 = vmatpush2.bf16.msra.mxu0 0
        %1729 = vmatprep.subr.bf16.mxu0 0
        %1730 = vmatpush2.bf16.msra.mxu0 0
        %1731 = vmatprep.mubr.bf16.mxu0 0
        %1732 = vmatmul.mubr.bf16.gmra.mxu0 %v1694
        %v1733 = vpop.f32.mrf.mxu0
        %v1734 = vadd.f32 0.0, %v1733
        %v1735 = vpop.f32.mrf.mxu0
        %v1736 = vpop.f32.mrf.mxu0
        %v1737 = vpop.f32.mrf.mxu0
        %1738 = vdwg.mxu0
        %v1740 = vsel %vm1465, %v1692, 0
        %v1743 = vsel %vm1489, %v1592, 0
        %1745 = vmatprep.subr.bf16.mxu0 0
        %1746 = vmatpush1.bf16.msra.mxu0 0
        %1747 = vmatprep.subr.bf16.mxu0 0
        %1748 = vmatpush1.bf16.msra.mxu0 0
        %1749 = vmatprep.subr.bf16.mxu0 0
        %1750 = vmatpush1.bf16.msra.mxu0 0
        %1751 = vmatprep.subr.bf16.mxu0 0
        %1752 = vmatpush1.bf16.msra.mxu0 0
        %1753 = vmatprep.subr.bf16.mxu0 0
        %1754 = vmatpush1.bf16.msra.mxu0 0
        %1755 = vmatprep.subr.bf16.mxu0 0
        %1756 = vmatpush1.bf16.msra.mxu0 0
        %1757 = vmatprep.subr.bf16.mxu0 0
        %1758 = vmatpush1.bf16.msra.mxu0 0
        %1759 = vmatprep.subr.bf16.mxu0 0
        %1760 = vmatpush1.bf16.msra.mxu0 %v1743
        %1761 = vmatprep.subr.bf16.mxu0 0
        %1762 = vmatpush2.bf16.msra.mxu0 0
        %1763 = vmatprep.subr.bf16.mxu0 0
        %1764 = vmatpush2.bf16.msra.mxu0 0
        %1765 = vmatprep.subr.bf16.mxu0 0
        %1766 = vmatpush2.bf16.msra.mxu0 0
        %1767 = vmatprep.subr.bf16.mxu0 0
        %1768 = vmatpush2.bf16.msra.mxu0 0
        %1769 = vmatprep.subr.bf16.mxu0 0
        %1770 = vmatpush2.bf16.msra.mxu0 0
        %1771 = vmatprep.subr.bf16.mxu0 0
        %1772 = vmatpush2.bf16.msra.mxu0 0
        %1773 = vmatprep.subr.bf16.mxu0 0
        %1774 = vmatpush2.bf16.msra.mxu0 0
        %1775 = vmatprep.subr.bf16.mxu0 0
        %1776 = vmatpush2.bf16.msra.mxu0 0
        %1777 = vmatprep.mubr.bf16.mxu0 0
        %1778 = vmatmul.mubr.bf16.gmra.mxu0 %v1740
        %v1779 = vpop.f32.mrf.mxu0
        %v1780 = vadd.f32 0.0, %v1779
        %v1781 = vpop.f32.mrf.mxu0
        %v1782 = vpop.f32.mrf.mxu0
        %v1783 = vpop.f32.mrf.mxu0
        %1784 = vdwg.mxu0
        %v1785 = vrcp.pop %v1687
        %v1786 = vrcp.pop %v1690
        %v1787 = vmul.f32 %v1734, %v1785
        %v1788 = vmul.f32 %v1780, %v1786
        %v1789 = vpack.c.bf16 %v1787, %v1787
        %v1790 = vpack.c.bf16 %v1788, %v1788
        %1791 = vst [vmem:[#allocation2 + $0x4] sm:$0xf] %v1789
        %1792 = vst [vmem:[#allocation2 + $0xc] sm:$0xf] %v1790
        %v1793 = vld [vmem:[#allocation2] sm:$0xff]
        %v1794 = vld [vmem:[#allocation2 + $0x8] sm:$0xff]
        %v1795 = vld [vmem:[#allocation11] sm:$0xff]
        %v1796 = vld [vmem:[#allocation11 + $0x8] sm:$0xff]
        %v1797 = vld [vmem:[#allocation11 + $0x10] sm:$0xff]
        %v1798 = vld [vmem:[#allocation11 + $0x18] sm:$0xff]
        %v1799 = vld [vmem:[#allocation11 + $0x20] sm:$0xff]
        %v1800 = vld [vmem:[#allocation11 + $0x28] sm:$0xff]
        %v1801 = vld [vmem:[#allocation11 + $0x30] sm:$0xff]
        %v1802 = vld [vmem:[#allocation11 + $0x38] sm:$0xff]
        %v1803 = vld [vmem:[#allocation11 + $0x40] sm:$0xff]
        %v1804 = vld [vmem:[#allocation11 + $0x48] sm:$0xff]
        %v1805 = vld [vmem:[#allocation11 + $0x50] sm:$0xff]
        %v1806 = vld [vmem:[#allocation11 + $0x58] sm:$0xff]
        %v1807 = vld [vmem:[#allocation11 + $0x60] sm:$0xff]
        %v1808 = vld [vmem:[#allocation11 + $0x68] sm:$0xff]
        %v1809 = vld [vmem:[#allocation11 + $0x70] sm:$0xff]
        %v1810 = vld [vmem:[#allocation11 + $0x78] sm:$0xff]
        %v1811 = vld [vmem:[#allocation11 + $0x80] sm:$0xff]
        %v1812 = vld [vmem:[#allocation11 + $0x88] sm:$0xff]
        %v1813 = vld [vmem:[#allocation11 + $0x90] sm:$0xff]
        %v1814 = vld [vmem:[#allocation11 + $0x98] sm:$0xff]
        %v1815 = vld [vmem:[#allocation11 + $0xa0] sm:$0xff]
        %v1816 = vld [vmem:[#allocation11 + $0xa8] sm:$0xff]
        %v1817 = vld [vmem:[#allocation11 + $0xb0] sm:$0xff]
        %v1818 = vld [vmem:[#allocation11 + $0xb8] sm:$0xff]
        %v1819 = vld [vmem:[#allocation11 + $0xc0] sm:$0xff]
        %v1820 = vld [vmem:[#allocation11 + $0xc8] sm:$0xff]
        %v1821 = vld [vmem:[#allocation11 + $0xd0] sm:$0xff]
        %v1822 = vld [vmem:[#allocation11 + $0xd8] sm:$0xff]
        %v1823 = vld [vmem:[#allocation11 + $0xe0] sm:$0xff]
        %v1824 = vld [vmem:[#allocation11 + $0xe8] sm:$0xff]
        %v1825 = vld [vmem:[#allocation11 + $0xf0] sm:$0xff]
        %v1826 = vld [vmem:[#allocation11 + $0xf8] sm:$0xff]
        %v1827 = vld [vmem:[%s6] sm:$0x3]
        %v1829 = vlaneseq
        %v1830 = vshrl.u32 %v1829, 7
        %v1831 = vsub.s32 0, %v1830
        %v1832 = vrot.slane %v1827, %v1831
        %v1833 = vlaneseq
        %v1834 = vshrl.u32 %v1833, 7
        %v1835 = vsub.s32 1, %v1834
        %v1836 = vrot.slane %v1827, %v1835
        %v1841 = vunpack.c.l.b16 %v1793
        %v1842 = vunpack.c.h.b16 %v1793
        %v1843 = vunpack.c.l.b16 %v1794
        %v1844 = vunpack.c.h.b16 %v1794
        %v1845 = vpack.c.b16 %v1843, %v1841
        %v1846 = vpack.c.b16 %v1844, %v1842
        %v1881 = vunpack.c.l.b16 %v1795
        %v1882 = vunpack.c.h.b16 %v1795
        %v1883 = vunpack.c.l.b16 %v1796
        %v1884 = vunpack.c.h.b16 %v1796
        %v1885 = vunpack.c.l.b16 %v1797
        %v1886 = vunpack.c.h.b16 %v1797
        %v1887 = vunpack.c.l.b16 %v1798
        %v1888 = vunpack.c.h.b16 %v1798
        %v1889 = vunpack.c.l.b16 %v1799
        %v1890 = vunpack.c.h.b16 %v1799
        %v1891 = vunpack.c.l.b16 %v1800
        %v1892 = vunpack.c.h.b16 %v1800
        %v1893 = vunpack.c.l.b16 %v1801
        %v1894 = vunpack.c.h.b16 %v1801
        %v1895 = vunpack.c.l.b16 %v1802
        %v1896 = vunpack.c.h.b16 %v1802
        %v1897 = vunpack.c.l.b16 %v1803
        %v1898 = vunpack.c.h.b16 %v1803
        %v1899 = vunpack.c.l.b16 %v1804
        %v1900 = vunpack.c.h.b16 %v1804
        %v1901 = vunpack.c.l.b16 %v1805
        %v1902 = vunpack.c.h.b16 %v1805
        %v1903 = vunpack.c.l.b16 %v1806
        %v1904 = vunpack.c.h.b16 %v1806
        %v1905 = vunpack.c.l.b16 %v1807
        %v1906 = vunpack.c.h.b16 %v1807
        %v1907 = vunpack.c.l.b16 %v1808
        %v1908 = vunpack.c.h.b16 %v1808
        %v1909 = vunpack.c.l.b16 %v1809
        %v1910 = vunpack.c.h.b16 %v1809
        %v1911 = vunpack.c.l.b16 %v1810
        %v1912 = vunpack.c.h.b16 %v1810
        %v1913 = vunpack.c.l.b16 %v1811
        %v1914 = vunpack.c.h.b16 %v1811
        %v1915 = vunpack.c.l.b16 %v1812
        %v1916 = vunpack.c.h.b16 %v1812
        %v1917 = vunpack.c.l.b16 %v1813
        %v1918 = vunpack.c.h.b16 %v1813
        %v1919 = vunpack.c.l.b16 %v1814
        %v1920 = vunpack.c.h.b16 %v1814
        %v1921 = vunpack.c.l.b16 %v1815
        %v1922 = vunpack.c.h.b16 %v1815
        %v1923 = vunpack.c.l.b16 %v1816
        %v1924 = vunpack.c.h.b16 %v1816
        %v1925 = vunpack.c.l.b16 %v1817
        %v1926 = vunpack.c.h.b16 %v1817
        %v1927 = vunpack.c.l.b16 %v1818
        %v1928 = vunpack.c.h.b16 %v1818
        %v1929 = vunpack.c.l.b16 %v1819
        %v1930 = vunpack.c.h.b16 %v1819
        %v1931 = vunpack.c.l.b16 %v1820
        %v1932 = vunpack.c.h.b16 %v1820
        %v1933 = vunpack.c.l.b16 %v1821
        %v1934 = vunpack.c.h.b16 %v1821
        %v1935 = vunpack.c.l.b16 %v1822
        %v1936 = vunpack.c.h.b16 %v1822
        %v1937 = vunpack.c.l.b16 %v1823
        %v1938 = vunpack.c.h.b16 %v1823
        %v1939 = vunpack.c.l.b16 %v1824
        %v1940 = vunpack.c.h.b16 %v1824
        %v1941 = vunpack.c.l.b16 %v1825
        %v1942 = vunpack.c.h.b16 %v1825
        %v1943 = vunpack.c.l.b16 %v1826
        %v1944 = vunpack.c.h.b16 %v1826
        %v1945 = vpack.c.b16 %v1883, %v1881
        %v1946 = vpack.c.b16 %v1884, %v1882
        %v1947 = vpack.c.b16 %v1887, %v1885
        %v1948 = vpack.c.b16 %v1888, %v1886
        %v1949 = vpack.c.b16 %v1891, %v1889
        %v1950 = vpack.c.b16 %v1892, %v1890
        %v1951 = vpack.c.b16 %v1895, %v1893
        %v1952 = vpack.c.b16 %v1896, %v1894
        %v1953 = vpack.c.b16 %v1899, %v1897
        %v1954 = vpack.c.b16 %v1900, %v1898
        %v1955 = vpack.c.b16 %v1903, %v1901
        %v1956 = vpack.c.b16 %v1904, %v1902
        %v1957 = vpack.c.b16 %v1907, %v1905
        %v1958 = vpack.c.b16 %v1908, %v1906
        %v1959 = vpack.c.b16 %v1911, %v1909
        %v1960 = vpack.c.b16 %v1912, %v1910
        %v1961 = vpack.c.b16 %v1915, %v1913
        %v1962 = vpack.c.b16 %v1916, %v1914
        %v1963 = vpack.c.b16 %v1919, %v1917
        %v1964 = vpack.c.b16 %v1920, %v1918
        %v1965 = vpack.c.b16 %v1923, %v1921
        %v1966 = vpack.c.b16 %v1924, %v1922
        %v1967 = vpack.c.b16 %v1927, %v1925
        %v1968 = vpack.c.b16 %v1928, %v1926
        %v1969 = vpack.c.b16 %v1931, %v1929
        %v1970 = vpack.c.b16 %v1932, %v1930
        %v1971 = vpack.c.b16 %v1935, %v1933
        %v1972 = vpack.c.b16 %v1936, %v1934
        %v1973 = vpack.c.b16 %v1939, %v1937
        %v1974 = vpack.c.b16 %v1940, %v1938
        %v1975 = vpack.c.b16 %v1943, %v1941
        %v1976 = vpack.c.b16 %v1944, %v1942
        %2009 = vmatprep.subr.bf16.mxu0 %v1960
        %2010 = vmatpush1.bf16.msra.mxu0 %v1959
        %2011 = vmatprep.subr.bf16.mxu0 %v1958
        %2012 = vmatpush1.bf16.msra.mxu0 %v1957
        %2013 = vmatprep.subr.bf16.mxu0 %v1956
        %2014 = vmatpush1.bf16.msra.mxu0 %v1955
        %2015 = vmatprep.subr.bf16.mxu0 %v1954
        %2016 = vmatpush1.bf16.msra.mxu0 %v1953
        %2017 = vmatprep.subr.bf16.mxu0 %v1952
        %2018 = vmatpush1.bf16.msra.mxu0 %v1951
        %2019 = vmatprep.subr.bf16.mxu0 %v1950
        %2020 = vmatpush1.bf16.msra.mxu0 %v1949
        %2021 = vmatprep.subr.bf16.mxu0 %v1948
        %2022 = vmatpush1.bf16.msra.mxu0 %v1947
        %2023 = vmatprep.subr.bf16.mxu0 %v1946
        %2024 = vmatpush1.bf16.msra.mxu0 %v1945
        %2025 = vmatprep.subr.bf16.mxu0 %v1976
        %2026 = vmatpush2.bf16.msra.mxu0 %v1975
        %2027 = vmatprep.subr.bf16.mxu0 %v1974
        %2028 = vmatpush2.bf16.msra.mxu0 %v1973
        %2029 = vmatprep.subr.bf16.mxu0 %v1972
        %2030 = vmatpush2.bf16.msra.mxu0 %v1971
        %2031 = vmatprep.subr.bf16.mxu0 %v1970
        %2032 = vmatpush2.bf16.msra.mxu0 %v1969
        %2033 = vmatprep.subr.bf16.mxu0 %v1968
        %2034 = vmatpush2.bf16.msra.mxu0 %v1967
        %2035 = vmatprep.subr.bf16.mxu0 %v1966
        %2036 = vmatpush2.bf16.msra.mxu0 %v1965
        %2037 = vmatprep.subr.bf16.mxu0 %v1964
        %2038 = vmatpush2.bf16.msra.mxu0 %v1963
        %2039 = vmatprep.subr.bf16.mxu0 %v1962
        %2040 = vmatpush2.bf16.msra.mxu0 %v1961
        %2041 = vmatprep.mubr.bf16.mxu0 %v1846
        %2042 = vmatmul.mubr.bf16.gmra.mxu0 %v1845
        %v2043 = vpop.f32.mrf.mxu0
        %v2044 = vadd.f32 %v1832, %v2043
        %v2045 = vpop.f32.mrf.mxu0
        %v2046 = vadd.f32 %v1836, %v2045
        %v2047 = vpop.f32.mrf.mxu0
        %v2048 = vadd.f32 %v1832, %v2047
        %v2049 = vpop.f32.mrf.mxu0
        %v2050 = vadd.f32 %v1836, %v2049
        %2051 = vdwg.mxu0
        %v2052 = vadd.f32 %v571, %v2044
        %v2053 = vadd.f32 %v572, %v2046
        %v2054 = vadd.f32 %v573, %v2048
        %v2055 = vadd.f32 %v574, %v2050
        %v2056 = vld [vmem:[#allocation12] sm:$0x3]
        %v2057 = vld [vmem:[#allocation14] sm:$0x3]
        %v2058 = vadd.f32 %v2052, %v2053
        %2059 = vadd.xlane.f32.xlu0 %v2058
        %v2060 = vpop.xlane.xlu0 %2059
        %v2061 = vadd.f32 %v2054, %v2055
        %2062 = vadd.xlane.f32.xlu0 %v2061
        %v2063 = vpop.xlane.xlu0 %2062
        %v2064 = vmul.f32 %v2060, %v583
        %v2065 = vmul.f32 %v2063, %v583
        %v2066 = vsub.f32 %v2052, %v2064
        %v2067 = vsub.f32 %v2053, %v2064
        %v2068 = vsub.f32 %v2054, %v2065
        %v2069 = vsub.f32 %v2055, %v2065
        %v2070 = vmul.f32 %v2066, %v2066
        %v2071 = vmul.f32 %v2067, %v2067
        %v2072 = vmul.f32 %v2068, %v2068
        %v2073 = vmul.f32 %v2069, %v2069
        %v2074 = vadd.f32 %v2070, %v2071
        %2075 = vadd.xlane.f32.xlu0 %v2074
        %v2076 = vpop.xlane.xlu0 %2075
        %v2077 = vadd.f32 %v2072, %v2073
        %2078 = vadd.xlane.f32.xlu0 %v2077
        %v2079 = vpop.xlane.xlu0 %2078
        %v2080 = vmul.f32 %v2076, %v583
        %v2081 = vmul.f32 %v2079, %v583
        %v2082 = vadd.f32 %v2080, 1e-05
        %v2083 = vadd.f32 %v2081, 1e-05
        %v2084 = vrsqrt.pop %v2082
        %v2085 = vrsqrt.pop %v2083
        %v2086 = vmul.f32 %v2066, %v2084
        %v2087 = vmul.f32 %v2067, %v2084
        %v2088 = vmul.f32 %v2068, %v2085
        %v2089 = vmul.f32 %v2069, %v2085
        %v2091 = vlaneseq
        %v2092 = vshrl.u32 %v2091, 7
        %v2093 = vsub.s32 0, %v2092
        %v2094 = vrot.slane %v2056, %v2093
        %v2095 = vlaneseq
        %v2096 = vshrl.u32 %v2095, 7
        %v2097 = vsub.s32 1, %v2096
        %v2098 = vrot.slane %v2056, %v2097
        %v2101 = vmul.f32 %v2086, %v2094
        %v2102 = vmul.f32 %v2087, %v2098
        %v2103 = vmul.f32 %v2088, %v2094
        %v2104 = vmul.f32 %v2089, %v2098
        %v2106 = vlaneseq
        %v2107 = vshrl.u32 %v2106, 7
        %v2108 = vsub.s32 0, %v2107
        %v2109 = vrot.slane %v2057, %v2108
        %v2110 = vlaneseq
        %v2111 = vshrl.u32 %v2110, 7
        %v2112 = vsub.s32 1, %v2111
        %v2113 = vrot.slane %v2057, %v2112
        %v2116 = vadd.f32 %v2101, %v2109
        %v2117 = vadd.f32 %v2102, %v2113
        %v2118 = vadd.f32 %v2103, %v2109
        %v2119 = vadd.f32 %v2104, %v2113
        %v2120 = vpack.c.bf16 %v2118, %v2116
        %v2121 = vpack.c.bf16 %v2119, %v2117
        %v2122 = vld [vmem:[#allocation15] sm:$0xff]
        %v2123 = vld [vmem:[#allocation15 + $0x8] sm:$0xff]
        %v2124 = vld [vmem:[#allocation15 + $0x10] sm:$0xff]
        %v2125 = vld [vmem:[#allocation15 + $0x18] sm:$0xff]
        %v2126 = vld [vmem:[#allocation15 + $0x20] sm:$0xff]
        %v2127 = vld [vmem:[#allocation15 + $0x28] sm:$0xff]
        %v2128 = vld [vmem:[#allocation15 + $0x30] sm:$0xff]
        %v2129 = vld [vmem:[#allocation15 + $0x38] sm:$0xff]
        %v2130 = vld [vmem:[#allocation15 + $0x40] sm:$0xff]
        %v2131 = vld [vmem:[#allocation15 + $0x48] sm:$0xff]
        %v2132 = vld [vmem:[#allocation15 + $0x50] sm:$0xff]
        %v2133 = vld [vmem:[#allocation15 + $0x58] sm:$0xff]
        %v2134 = vld [vmem:[#allocation15 + $0x60] sm:$0xff]
        %v2135 = vld [vmem:[#allocation15 + $0x68] sm:$0xff]
        %v2136 = vld [vmem:[#allocation15 + $0x70] sm:$0xff]
        %v2137 = vld [vmem:[#allocation15 + $0x78] sm:$0xff]
        %v2138 = vld [vmem:[#allocation15 + $0x80] sm:$0xff]
        %v2139 = vld [vmem:[#allocation15 + $0x88] sm:$0xff]
        %v2140 = vld [vmem:[#allocation15 + $0x90] sm:$0xff]
        %v2141 = vld [vmem:[#allocation15 + $0x98] sm:$0xff]
        %v2142 = vld [vmem:[#allocation15 + $0xa0] sm:$0xff]
        %v2143 = vld [vmem:[#allocation15 + $0xa8] sm:$0xff]
        %v2144 = vld [vmem:[#allocation15 + $0xb0] sm:$0xff]
        %v2145 = vld [vmem:[#allocation15 + $0xb8] sm:$0xff]
        %v2146 = vld [vmem:[#allocation15 + $0xc0] sm:$0xff]
        %v2147 = vld [vmem:[#allocation15 + $0xc8] sm:$0xff]
        %v2148 = vld [vmem:[#allocation15 + $0xd0] sm:$0xff]
        %v2149 = vld [vmem:[#allocation15 + $0xd8] sm:$0xff]
        %v2150 = vld [vmem:[#allocation15 + $0xe0] sm:$0xff]
        %v2151 = vld [vmem:[#allocation15 + $0xe8] sm:$0xff]
        %v2152 = vld [vmem:[#allocation15 + $0xf0] sm:$0xff]
        %v2153 = vld [vmem:[#allocation15 + $0xf8] sm:$0xff]
        %v2154 = vld [vmem:[#allocation15 + $0x100] sm:$0xff]
        %v2155 = vld [vmem:[#allocation15 + $0x108] sm:$0xff]
        %v2156 = vld [vmem:[#allocation15 + $0x110] sm:$0xff]
        %v2157 = vld [vmem:[#allocation15 + $0x118] sm:$0xff]
        %v2158 = vld [vmem:[#allocation15 + $0x120] sm:$0xff]
        %v2159 = vld [vmem:[#allocation15 + $0x128] sm:$0xff]
        %v2160 = vld [vmem:[#allocation15 + $0x130] sm:$0xff]
        %v2161 = vld [vmem:[#allocation15 + $0x138] sm:$0xff]
        %v2162 = vld [vmem:[#allocation15 + $0x140] sm:$0xff]
        %v2163 = vld [vmem:[#allocation15 + $0x148] sm:$0xff]
        %v2164 = vld [vmem:[#allocation15 + $0x150] sm:$0xff]
        %v2165 = vld [vmem:[#allocation15 + $0x158] sm:$0xff]
        %v2166 = vld [vmem:[#allocation15 + $0x160] sm:$0xff]
        %v2167 = vld [vmem:[#allocation15 + $0x168] sm:$0xff]
        %v2168 = vld [vmem:[#allocation15 + $0x170] sm:$0xff]
        %v2169 = vld [vmem:[#allocation15 + $0x178] sm:$0xff]
        %v2170 = vld [vmem:[#allocation15 + $0x180] sm:$0xff]
        %v2171 = vld [vmem:[#allocation15 + $0x188] sm:$0xff]
        %v2172 = vld [vmem:[#allocation15 + $0x190] sm:$0xff]
        %v2173 = vld [vmem:[#allocation15 + $0x198] sm:$0xff]
        %v2174 = vld [vmem:[#allocation15 + $0x1a0] sm:$0xff]
        %v2175 = vld [vmem:[#allocation15 + $0x1a8] sm:$0xff]
        %v2176 = vld [vmem:[#allocation15 + $0x1b0] sm:$0xff]
        %v2177 = vld [vmem:[#allocation15 + $0x1b8] sm:$0xff]
        %v2178 = vld [vmem:[#allocation15 + $0x1c0] sm:$0xff]
        %v2179 = vld [vmem:[#allocation15 + $0x1c8] sm:$0xff]
        %v2180 = vld [vmem:[#allocation15 + $0x1d0] sm:$0xff]
        %v2181 = vld [vmem:[#allocation15 + $0x1d8] sm:$0xff]
        %v2182 = vld [vmem:[#allocation15 + $0x1e0] sm:$0xff]
        %v2183 = vld [vmem:[#allocation15 + $0x1e8] sm:$0xff]
        %v2184 = vld [vmem:[#allocation15 + $0x1f0] sm:$0xff]
        %v2185 = vld [vmem:[#allocation15 + $0x1f8] sm:$0xff]
        %v2186 = vld [vmem:[#allocation15 + $0x200] sm:$0xff]
        %v2187 = vld [vmem:[#allocation15 + $0x208] sm:$0xff]
        %v2188 = vld [vmem:[#allocation15 + $0x210] sm:$0xff]
        %v2189 = vld [vmem:[#allocation15 + $0x218] sm:$0xff]
        %v2190 = vld [vmem:[#allocation15 + $0x220] sm:$0xff]
        %v2191 = vld [vmem:[#allocation15 + $0x228] sm:$0xff]
        %v2192 = vld [vmem:[#allocation15 + $0x230] sm:$0xff]
        %v2193 = vld [vmem:[#allocation15 + $0x238] sm:$0xff]
        %v2194 = vld [vmem:[#allocation15 + $0x240] sm:$0xff]
        %v2195 = vld [vmem:[#allocation15 + $0x248] sm:$0xff]
        %v2196 = vld [vmem:[#allocation15 + $0x250] sm:$0xff]
        %v2197 = vld [vmem:[#allocation15 + $0x258] sm:$0xff]
        %v2198 = vld [vmem:[#allocation15 + $0x260] sm:$0xff]
        %v2199 = vld [vmem:[#allocation15 + $0x268] sm:$0xff]
        %v2200 = vld [vmem:[#allocation15 + $0x270] sm:$0xff]
        %v2201 = vld [vmem:[#allocation15 + $0x278] sm:$0xff]
        %v2202 = vld [vmem:[#allocation15 + $0x280] sm:$0xff]
        %v2203 = vld [vmem:[#allocation15 + $0x288] sm:$0xff]
        %v2204 = vld [vmem:[#allocation15 + $0x290] sm:$0xff]
        %v2205 = vld [vmem:[#allocation15 + $0x298] sm:$0xff]
        %v2206 = vld [vmem:[#allocation15 + $0x2a0] sm:$0xff]
        %v2207 = vld [vmem:[#allocation15 + $0x2a8] sm:$0xff]
        %v2208 = vld [vmem:[#allocation15 + $0x2b0] sm:$0xff]
        %v2209 = vld [vmem:[#allocation15 + $0x2b8] sm:$0xff]
        %v2210 = vld [vmem:[#allocation15 + $0x2c0] sm:$0xff]
        %v2211 = vld [vmem:[#allocation15 + $0x2c8] sm:$0xff]
        %v2212 = vld [vmem:[#allocation15 + $0x2d0] sm:$0xff]
        %v2213 = vld [vmem:[#allocation15 + $0x2d8] sm:$0xff]
        %v2214 = vld [vmem:[#allocation15 + $0x2e0] sm:$0xff]
        %v2215 = vld [vmem:[#allocation15 + $0x2e8] sm:$0xff]
        %v2216 = vld [vmem:[#allocation15 + $0x2f0] sm:$0xff]
        %v2217 = vld [vmem:[#allocation15 + $0x2f8] sm:$0xff]
        %v2218 = vld [vmem:[#allocation15 + $0x300] sm:$0xff]
        %v2219 = vld [vmem:[#allocation15 + $0x308] sm:$0xff]
        %v2220 = vld [vmem:[#allocation15 + $0x310] sm:$0xff]
        %v2221 = vld [vmem:[#allocation15 + $0x318] sm:$0xff]
        %v2222 = vld [vmem:[#allocation15 + $0x320] sm:$0xff]
        %v2223 = vld [vmem:[#allocation15 + $0x328] sm:$0xff]
        %v2224 = vld [vmem:[#allocation15 + $0x330] sm:$0xff]
        %v2225 = vld [vmem:[#allocation15 + $0x338] sm:$0xff]
        %v2226 = vld [vmem:[#allocation15 + $0x340] sm:$0xff]
        %v2227 = vld [vmem:[#allocation15 + $0x348] sm:$0xff]
        %v2228 = vld [vmem:[#allocation15 + $0x350] sm:$0xff]
        %v2229 = vld [vmem:[#allocation15 + $0x358] sm:$0xff]
        %v2230 = vld [vmem:[#allocation15 + $0x360] sm:$0xff]
        %v2231 = vld [vmem:[#allocation15 + $0x368] sm:$0xff]
        %v2232 = vld [vmem:[#allocation15 + $0x370] sm:$0xff]
        %v2233 = vld [vmem:[#allocation15 + $0x378] sm:$0xff]
        %v2234 = vld [vmem:[#allocation15 + $0x380] sm:$0xff]
        %v2235 = vld [vmem:[#allocation15 + $0x388] sm:$0xff]
        %v2236 = vld [vmem:[#allocation15 + $0x390] sm:$0xff]
        %v2237 = vld [vmem:[#allocation15 + $0x398] sm:$0xff]
        %v2238 = vld [vmem:[#allocation15 + $0x3a0] sm:$0xff]
        %v2239 = vld [vmem:[#allocation15 + $0x3a8] sm:$0xff]
        %v2240 = vld [vmem:[#allocation15 + $0x3b0] sm:$0xff]
        %v2241 = vld [vmem:[#allocation15 + $0x3b8] sm:$0xff]
        %v2242 = vld [vmem:[#allocation15 + $0x3c0] sm:$0xff]
        %v2243 = vld [vmem:[#allocation15 + $0x3c8] sm:$0xff]
        %v2244 = vld [vmem:[#allocation15 + $0x3d0] sm:$0xff]
        %v2245 = vld [vmem:[#allocation15 + $0x3d8] sm:$0xff]
        %v2246 = vld [vmem:[#allocation15 + $0x3e0] sm:$0xff]
        %v2247 = vld [vmem:[#allocation15 + $0x3e8] sm:$0xff]
        %v2248 = vld [vmem:[#allocation15 + $0x3f0] sm:$0xff]
        %v2249 = vld [vmem:[#allocation15 + $0x3f8] sm:$0xff]
        %v2250 = vld [vmem:[%s10] sm:$0xff]
        %v2252 = vlaneseq
        %v2253 = vshrl.u32 %v2252, 7
        %v2254 = vsub.s32 0, %v2253
        %v2255 = vrot.slane %v2250, %v2254
        %v2256 = vlaneseq
        %v2257 = vshrl.u32 %v2256, 7
        %v2258 = vsub.s32 1, %v2257
        %v2259 = vrot.slane %v2250, %v2258
        %v2260 = vlaneseq
        %v2261 = vshrl.u32 %v2260, 7
        %v2262 = vsub.s32 2, %v2261
        %v2263 = vrot.slane %v2250, %v2262
        %v2264 = vlaneseq
        %v2265 = vshrl.u32 %v2264, 7
        %v2266 = vsub.s32 3, %v2265
        %v2267 = vrot.slane %v2250, %v2266
        %v2268 = vlaneseq
        %v2269 = vshrl.u32 %v2268, 7
        %v2270 = vsub.s32 4, %v2269
        %v2271 = vrot.slane %v2250, %v2270
        %v2272 = vlaneseq
        %v2273 = vshrl.u32 %v2272, 7
        %v2274 = vsub.s32 5, %v2273
        %v2275 = vrot.slane %v2250, %v2274
        %v2276 = vlaneseq
        %v2277 = vshrl.u32 %v2276, 7
        %v2278 = vsub.s32 6, %v2277
        %v2279 = vrot.slane %v2250, %v2278
        %v2280 = vlaneseq
        %v2281 = vshrl.u32 %v2280, 7
        %v2282 = vsub.s32 7, %v2281
        %v2283 = vrot.slane %v2250, %v2282
        %v2420 = vunpack.c.l.b16 %v2122
        %v2421 = vunpack.c.h.b16 %v2122
        %v2422 = vunpack.c.l.b16 %v2123
        %v2423 = vunpack.c.h.b16 %v2123
        %v2424 = vunpack.c.l.b16 %v2124
        %v2425 = vunpack.c.h.b16 %v2124
        %v2426 = vunpack.c.l.b16 %v2125
        %v2427 = vunpack.c.h.b16 %v2125
        %v2428 = vunpack.c.l.b16 %v2126
        %v2429 = vunpack.c.h.b16 %v2126
        %v2430 = vunpack.c.l.b16 %v2127
        %v2431 = vunpack.c.h.b16 %v2127
        %v2432 = vunpack.c.l.b16 %v2128
        %v2433 = vunpack.c.h.b16 %v2128
        %v2434 = vunpack.c.l.b16 %v2129
        %v2435 = vunpack.c.h.b16 %v2129
        %v2436 = vunpack.c.l.b16 %v2130
        %v2437 = vunpack.c.h.b16 %v2130
        %v2438 = vunpack.c.l.b16 %v2131
        %v2439 = vunpack.c.h.b16 %v2131
        %v2440 = vunpack.c.l.b16 %v2132
        %v2441 = vunpack.c.h.b16 %v2132
        %v2442 = vunpack.c.l.b16 %v2133
        %v2443 = vunpack.c.h.b16 %v2133
        %v2444 = vunpack.c.l.b16 %v2134
        %v2445 = vunpack.c.h.b16 %v2134
        %v2446 = vunpack.c.l.b16 %v2135
        %v2447 = vunpack.c.h.b16 %v2135
        %v2448 = vunpack.c.l.b16 %v2136
        %v2449 = vunpack.c.h.b16 %v2136
        %v2450 = vunpack.c.l.b16 %v2137
        %v2451 = vunpack.c.h.b16 %v2137
        %v2452 = vunpack.c.l.b16 %v2138
        %v2453 = vunpack.c.h.b16 %v2138
        %v2454 = vunpack.c.l.b16 %v2139
        %v2455 = vunpack.c.h.b16 %v2139
        %v2456 = vunpack.c.l.b16 %v2140
        %v2457 = vunpack.c.h.b16 %v2140
        %v2458 = vunpack.c.l.b16 %v2141
        %v2459 = vunpack.c.h.b16 %v2141
        %v2460 = vunpack.c.l.b16 %v2142
        %v2461 = vunpack.c.h.b16 %v2142
        %v2462 = vunpack.c.l.b16 %v2143
        %v2463 = vunpack.c.h.b16 %v2143
        %v2464 = vunpack.c.l.b16 %v2144
        %v2465 = vunpack.c.h.b16 %v2144
        %v2466 = vunpack.c.l.b16 %v2145
        %v2467 = vunpack.c.h.b16 %v2145
        %v2468 = vunpack.c.l.b16 %v2146
        %v2469 = vunpack.c.h.b16 %v2146
        %v2470 = vunpack.c.l.b16 %v2147
        %v2471 = vunpack.c.h.b16 %v2147
        %v2472 = vunpack.c.l.b16 %v2148
        %v2473 = vunpack.c.h.b16 %v2148
        %v2474 = vunpack.c.l.b16 %v2149
        %v2475 = vunpack.c.h.b16 %v2149
        %v2476 = vunpack.c.l.b16 %v2150
        %v2477 = vunpack.c.h.b16 %v2150
        %v2478 = vunpack.c.l.b16 %v2151
        %v2479 = vunpack.c.h.b16 %v2151
        %v2480 = vunpack.c.l.b16 %v2152
        %v2481 = vunpack.c.h.b16 %v2152
        %v2482 = vunpack.c.l.b16 %v2153
        %v2483 = vunpack.c.h.b16 %v2153
        %v2484 = vunpack.c.l.b16 %v2154
        %v2485 = vunpack.c.h.b16 %v2154
        %v2486 = vunpack.c.l.b16 %v2155
        %v2487 = vunpack.c.h.b16 %v2155
        %v2488 = vunpack.c.l.b16 %v2156
        %v2489 = vunpack.c.h.b16 %v2156
        %v2490 = vunpack.c.l.b16 %v2157
        %v2491 = vunpack.c.h.b16 %v2157
        %v2492 = vunpack.c.l.b16 %v2158
        %v2493 = vunpack.c.h.b16 %v2158
        %v2494 = vunpack.c.l.b16 %v2159
        %v2495 = vunpack.c.h.b16 %v2159
        %v2496 = vunpack.c.l.b16 %v2160
        %v2497 = vunpack.c.h.b16 %v2160
        %v2498 = vunpack.c.l.b16 %v2161
        %v2499 = vunpack.c.h.b16 %v2161
        %v2500 = vunpack.c.l.b16 %v2162
        %v2501 = vunpack.c.h.b16 %v2162
        %v2502 = vunpack.c.l.b16 %v2163
        %v2503 = vunpack.c.h.b16 %v2163
        %v2504 = vunpack.c.l.b16 %v2164
        %v2505 = vunpack.c.h.b16 %v2164
        %v2506 = vunpack.c.l.b16 %v2165
        %v2507 = vunpack.c.h.b16 %v2165
        %v2508 = vunpack.c.l.b16 %v2166
        %v2509 = vunpack.c.h.b16 %v2166
        %v2510 = vunpack.c.l.b16 %v2167
        %v2511 = vunpack.c.h.b16 %v2167
        %v2512 = vunpack.c.l.b16 %v2168
        %v2513 = vunpack.c.h.b16 %v2168
        %v2514 = vunpack.c.l.b16 %v2169
        %v2515 = vunpack.c.h.b16 %v2169
        %v2516 = vunpack.c.l.b16 %v2170
        %v2517 = vunpack.c.h.b16 %v2170
        %v2518 = vunpack.c.l.b16 %v2171
        %v2519 = vunpack.c.h.b16 %v2171
        %v2520 = vunpack.c.l.b16 %v2172
        %v2521 = vunpack.c.h.b16 %v2172
        %v2522 = vunpack.c.l.b16 %v2173
        %v2523 = vunpack.c.h.b16 %v2173
        %v2524 = vunpack.c.l.b16 %v2174
        %v2525 = vunpack.c.h.b16 %v2174
        %v2526 = vunpack.c.l.b16 %v2175
        %v2527 = vunpack.c.h.b16 %v2175
        %v2528 = vunpack.c.l.b16 %v2176
        %v2529 = vunpack.c.h.b16 %v2176
        %v2530 = vunpack.c.l.b16 %v2177
        %v2531 = vunpack.c.h.b16 %v2177
        %v2532 = vunpack.c.l.b16 %v2178
        %v2533 = vunpack.c.h.b16 %v2178
        %v2534 = vunpack.c.l.b16 %v2179
        %v2535 = vunpack.c.h.b16 %v2179
        %v2536 = vunpack.c.l.b16 %v2180
        %v2537 = vunpack.c.h.b16 %v2180
        %v2538 = vunpack.c.l.b16 %v2181
        %v2539 = vunpack.c.h.b16 %v2181
        %v2540 = vunpack.c.l.b16 %v2182
        %v2541 = vunpack.c.h.b16 %v2182
        %v2542 = vunpack.c.l.b16 %v2183
        %v2543 = vunpack.c.h.b16 %v2183
        %v2544 = vunpack.c.l.b16 %v2184
        %v2545 = vunpack.c.h.b16 %v2184
        %v2546 = vunpack.c.l.b16 %v2185
        %v2547 = vunpack.c.h.b16 %v2185
        %v2548 = vunpack.c.l.b16 %v2186
        %v2549 = vunpack.c.h.b16 %v2186
        %v2550 = vunpack.c.l.b16 %v2187
        %v2551 = vunpack.c.h.b16 %v2187
        %v2552 = vunpack.c.l.b16 %v2188
        %v2553 = vunpack.c.h.b16 %v2188
        %v2554 = vunpack.c.l.b16 %v2189
        %v2555 = vunpack.c.h.b16 %v2189
        %v2556 = vunpack.c.l.b16 %v2190
        %v2557 = vunpack.c.h.b16 %v2190
        %v2558 = vunpack.c.l.b16 %v2191
        %v2559 = vunpack.c.h.b16 %v2191
        %v2560 = vunpack.c.l.b16 %v2192
        %v2561 = vunpack.c.h.b16 %v2192
        %v2562 = vunpack.c.l.b16 %v2193
        %v2563 = vunpack.c.h.b16 %v2193
        %v2564 = vunpack.c.l.b16 %v2194
        %v2565 = vunpack.c.h.b16 %v2194
        %v2566 = vunpack.c.l.b16 %v2195
        %v2567 = vunpack.c.h.b16 %v2195
        %v2568 = vunpack.c.l.b16 %v2196
        %v2569 = vunpack.c.h.b16 %v2196
        %v2570 = vunpack.c.l.b16 %v2197
        %v2571 = vunpack.c.h.b16 %v2197
        %v2572 = vunpack.c.l.b16 %v2198
        %v2573 = vunpack.c.h.b16 %v2198
        %v2574 = vunpack.c.l.b16 %v2199
        %v2575 = vunpack.c.h.b16 %v2199
        %v2576 = vunpack.c.l.b16 %v2200
        %v2577 = vunpack.c.h.b16 %v2200
        %v2578 = vunpack.c.l.b16 %v2201
        %v2579 = vunpack.c.h.b16 %v2201
        %v2580 = vunpack.c.l.b16 %v2202
        %v2581 = vunpack.c.h.b16 %v2202
        %v2582 = vunpack.c.l.b16 %v2203
        %v2583 = vunpack.c.h.b16 %v2203
        %v2584 = vunpack.c.l.b16 %v2204
        %v2585 = vunpack.c.h.b16 %v2204
        %v2586 = vunpack.c.l.b16 %v2205
        %v2587 = vunpack.c.h.b16 %v2205
        %v2588 = vunpack.c.l.b16 %v2206
        %v2589 = vunpack.c.h.b16 %v2206
        %v2590 = vunpack.c.l.b16 %v2207
        %v2591 = vunpack.c.h.b16 %v2207
        %v2592 = vunpack.c.l.b16 %v2208
        %v2593 = vunpack.c.h.b16 %v2208
        %v2594 = vunpack.c.l.b16 %v2209
        %v2595 = vunpack.c.h.b16 %v2209
        %v2596 = vunpack.c.l.b16 %v2210
        %v2597 = vunpack.c.h.b16 %v2210
        %v2598 = vunpack.c.l.b16 %v2211
        %v2599 = vunpack.c.h.b16 %v2211
        %v2600 = vunpack.c.l.b16 %v2212
        %v2601 = vunpack.c.h.b16 %v2212
        %v2602 = vunpack.c.l.b16 %v2213
        %v2603 = vunpack.c.h.b16 %v2213
        %v2604 = vunpack.c.l.b16 %v2214
        %v2605 = vunpack.c.h.b16 %v2214
        %v2606 = vunpack.c.l.b16 %v2215
        %v2607 = vunpack.c.h.b16 %v2215
        %v2608 = vunpack.c.l.b16 %v2216
        %v2609 = vunpack.c.h.b16 %v2216
        %v2610 = vunpack.c.l.b16 %v2217
        %v2611 = vunpack.c.h.b16 %v2217
        %v2612 = vunpack.c.l.b16 %v2218
        %v2613 = vunpack.c.h.b16 %v2218
        %v2614 = vunpack.c.l.b16 %v2219
        %v2615 = vunpack.c.h.b16 %v2219
        %v2616 = vunpack.c.l.b16 %v2220
        %v2617 = vunpack.c.h.b16 %v2220
        %v2618 = vunpack.c.l.b16 %v2221
        %v2619 = vunpack.c.h.b16 %v2221
        %v2620 = vunpack.c.l.b16 %v2222
        %v2621 = vunpack.c.h.b16 %v2222
        %v2622 = vunpack.c.l.b16 %v2223
        %v2623 = vunpack.c.h.b16 %v2223
        %v2624 = vunpack.c.l.b16 %v2224
        %v2625 = vunpack.c.h.b16 %v2224
        %v2626 = vunpack.c.l.b16 %v2225
        %v2627 = vunpack.c.h.b16 %v2225
        %v2628 = vunpack.c.l.b16 %v2226
        %v2629 = vunpack.c.h.b16 %v2226
        %v2630 = vunpack.c.l.b16 %v2227
        %v2631 = vunpack.c.h.b16 %v2227
        %v2632 = vunpack.c.l.b16 %v2228
        %v2633 = vunpack.c.h.b16 %v2228
        %v2634 = vunpack.c.l.b16 %v2229
        %v2635 = vunpack.c.h.b16 %v2229
        %v2636 = vunpack.c.l.b16 %v2230
        %v2637 = vunpack.c.h.b16 %v2230
        %v2638 = vunpack.c.l.b16 %v2231
        %v2639 = vunpack.c.h.b16 %v2231
        %v2640 = vunpack.c.l.b16 %v2232
        %v2641 = vunpack.c.h.b16 %v2232
        %v2642 = vunpack.c.l.b16 %v2233
        %v2643 = vunpack.c.h.b16 %v2233
        %v2644 = vunpack.c.l.b16 %v2234
        %v2645 = vunpack.c.h.b16 %v2234
        %v2646 = vunpack.c.l.b16 %v2235
        %v2647 = vunpack.c.h.b16 %v2235
        %v2648 = vunpack.c.l.b16 %v2236
        %v2649 = vunpack.c.h.b16 %v2236
        %v2650 = vunpack.c.l.b16 %v2237
        %v2651 = vunpack.c.h.b16 %v2237
        %v2652 = vunpack.c.l.b16 %v2238
        %v2653 = vunpack.c.h.b16 %v2238
        %v2654 = vunpack.c.l.b16 %v2239
        %v2655 = vunpack.c.h.b16 %v2239
        %v2656 = vunpack.c.l.b16 %v2240
        %v2657 = vunpack.c.h.b16 %v2240
        %v2658 = vunpack.c.l.b16 %v2241
        %v2659 = vunpack.c.h.b16 %v2241
        %v2660 = vunpack.c.l.b16 %v2242
        %v2661 = vunpack.c.h.b16 %v2242
        %v2662 = vunpack.c.l.b16 %v2243
        %v2663 = vunpack.c.h.b16 %v2243
        %v2664 = vunpack.c.l.b16 %v2244
        %v2665 = vunpack.c.h.b16 %v2244
        %v2666 = vunpack.c.l.b16 %v2245
        %v2667 = vunpack.c.h.b16 %v2245
        %v2668 = vunpack.c.l.b16 %v2246
        %v2669 = vunpack.c.h.b16 %v2246
        %v2670 = vunpack.c.l.b16 %v2247
        %v2671 = vunpack.c.h.b16 %v2247
        %v2672 = vunpack.c.l.b16 %v2248
        %v2673 = vunpack.c.h.b16 %v2248
        %v2674 = vunpack.c.l.b16 %v2249
        %v2675 = vunpack.c.h.b16 %v2249
        %v2676 = vpack.c.b16 %v2428, %v2420
        %v2677 = vpack.c.b16 %v2429, %v2421
        %v2678 = vpack.c.b16 %v2430, %v2422
        %v2679 = vpack.c.b16 %v2431, %v2423
        %v2680 = vpack.c.b16 %v2432, %v2424
        %v2681 = vpack.c.b16 %v2433, %v2425
        %v2682 = vpack.c.b16 %v2434, %v2426
        %v2683 = vpack.c.b16 %v2435, %v2427
        %v2684 = vpack.c.b16 %v2444, %v2436
        %v2685 = vpack.c.b16 %v2445, %v2437
        %v2686 = vpack.c.b16 %v2446, %v2438
        %v2687 = vpack.c.b16 %v2447, %v2439
        %v2688 = vpack.c.b16 %v2448, %v2440
        %v2689 = vpack.c.b16 %v2449, %v2441
        %v2690 = vpack.c.b16 %v2450, %v2442
        %v2691 = vpack.c.b16 %v2451, %v2443
        %v2692 = vpack.c.b16 %v2460, %v2452
        %v2693 = vpack.c.b16 %v2461, %v2453
        %v2694 = vpack.c.b16 %v2462, %v2454
        %v2695 = vpack.c.b16 %v2463, %v2455
        %v2696 = vpack.c.b16 %v2464, %v2456
        %v2697 = vpack.c.b16 %v2465, %v2457
        %v2698 = vpack.c.b16 %v2466, %v2458
        %v2699 = vpack.c.b16 %v2467, %v2459
        %v2700 = vpack.c.b16 %v2476, %v2468
        %v2701 = vpack.c.b16 %v2477, %v2469
        %v2702 = vpack.c.b16 %v2478, %v2470
        %v2703 = vpack.c.b16 %v2479, %v2471
        %v2704 = vpack.c.b16 %v2480, %v2472
        %v2705 = vpack.c.b16 %v2481, %v2473
        %v2706 = vpack.c.b16 %v2482, %v2474
        %v2707 = vpack.c.b16 %v2483, %v2475
        %v2708 = vpack.c.b16 %v2492, %v2484
        %v2709 = vpack.c.b16 %v2493, %v2485
        %v2710 = vpack.c.b16 %v2494, %v2486
        %v2711 = vpack.c.b16 %v2495, %v2487
        %v2712 = vpack.c.b16 %v2496, %v2488
        %v2713 = vpack.c.b16 %v2497, %v2489
        %v2714 = vpack.c.b16 %v2498, %v2490
        %v2715 = vpack.c.b16 %v2499, %v2491
        %v2716 = vpack.c.b16 %v2508, %v2500
        %v2717 = vpack.c.b16 %v2509, %v2501
        %v2718 = vpack.c.b16 %v2510, %v2502
        %v2719 = vpack.c.b16 %v2511, %v2503
        %v2720 = vpack.c.b16 %v2512, %v2504
        %v2721 = vpack.c.b16 %v2513, %v2505
        %v2722 = vpack.c.b16 %v2514, %v2506
        %v2723 = vpack.c.b16 %v2515, %v2507
        %v2724 = vpack.c.b16 %v2524, %v2516
        %v2725 = vpack.c.b16 %v2525, %v2517
        %v2726 = vpack.c.b16 %v2526, %v2518
        %v2727 = vpack.c.b16 %v2527, %v2519
        %v2728 = vpack.c.b16 %v2528, %v2520
        %v2729 = vpack.c.b16 %v2529, %v2521
        %v2730 = vpack.c.b16 %v2530, %v2522
        %v2731 = vpack.c.b16 %v2531, %v2523
        %v2732 = vpack.c.b16 %v2540, %v2532
        %v2733 = vpack.c.b16 %v2541, %v2533
        %v2734 = vpack.c.b16 %v2542, %v2534
        %v2735 = vpack.c.b16 %v2543, %v2535
        %v2736 = vpack.c.b16 %v2544, %v2536
        %v2737 = vpack.c.b16 %v2545, %v2537
        %v2738 = vpack.c.b16 %v2546, %v2538
        %v2739 = vpack.c.b16 %v2547, %v2539
        %v2740 = vpack.c.b16 %v2556, %v2548
        %v2741 = vpack.c.b16 %v2557, %v2549
        %v2742 = vpack.c.b16 %v2558, %v2550
        %v2743 = vpack.c.b16 %v2559, %v2551
        %v2744 = vpack.c.b16 %v2560, %v2552
        %v2745 = vpack.c.b16 %v2561, %v2553
        %v2746 = vpack.c.b16 %v2562, %v2554
        %v2747 = vpack.c.b16 %v2563, %v2555
        %v2748 = vpack.c.b16 %v2572, %v2564
        %v2749 = vpack.c.b16 %v2573, %v2565
        %v2750 = vpack.c.b16 %v2574, %v2566
        %v2751 = vpack.c.b16 %v2575, %v2567
        %v2752 = vpack.c.b16 %v2576, %v2568
        %v2753 = vpack.c.b16 %v2577, %v2569
        %v2754 = vpack.c.b16 %v2578, %v2570
        %v2755 = vpack.c.b16 %v2579, %v2571
        %v2756 = vpack.c.b16 %v2588, %v2580
        %v2757 = vpack.c.b16 %v2589, %v2581
        %v2758 = vpack.c.b16 %v2590, %v2582
        %v2759 = vpack.c.b16 %v2591, %v2583
        %v2760 = vpack.c.b16 %v2592, %v2584
        %v2761 = vpack.c.b16 %v2593, %v2585
        %v2762 = vpack.c.b16 %v2594, %v2586
        %v2763 = vpack.c.b16 %v2595, %v2587
        %v2764 = vpack.c.b16 %v2604, %v2596
        %v2765 = vpack.c.b16 %v2605, %v2597
        %v2766 = vpack.c.b16 %v2606, %v2598
        %v2767 = vpack.c.b16 %v2607, %v2599
        %v2768 = vpack.c.b16 %v2608, %v2600
        %v2769 = vpack.c.b16 %v2609, %v2601
        %v2770 = vpack.c.b16 %v2610, %v2602
        %v2771 = vpack.c.b16 %v2611, %v2603
        %v2772 = vpack.c.b16 %v2620, %v2612
        %v2773 = vpack.c.b16 %v2621, %v2613
        %v2774 = vpack.c.b16 %v2622, %v2614
        %v2775 = vpack.c.b16 %v2623, %v2615
        %v2776 = vpack.c.b16 %v2624, %v2616
        %v2777 = vpack.c.b16 %v2625, %v2617
        %v2778 = vpack.c.b16 %v2626, %v2618
        %v2779 = vpack.c.b16 %v2627, %v2619
        %v2780 = vpack.c.b16 %v2636, %v2628
        %v2781 = vpack.c.b16 %v2637, %v2629
        %v2782 = vpack.c.b16 %v2638, %v2630
        %v2783 = vpack.c.b16 %v2639, %v2631
        %v2784 = vpack.c.b16 %v2640, %v2632
        %v2785 = vpack.c.b16 %v2641, %v2633
        %v2786 = vpack.c.b16 %v2642, %v2634
        %v2787 = vpack.c.b16 %v2643, %v2635
        %v2788 = vpack.c.b16 %v2652, %v2644
        %v2789 = vpack.c.b16 %v2653, %v2645
        %v2790 = vpack.c.b16 %v2654, %v2646
        %v2791 = vpack.c.b16 %v2655, %v2647
        %v2792 = vpack.c.b16 %v2656, %v2648
        %v2793 = vpack.c.b16 %v2657, %v2649
        %v2794 = vpack.c.b16 %v2658, %v2650
        %v2795 = vpack.c.b16 %v2659, %v2651
        %v2796 = vpack.c.b16 %v2668, %v2660
        %v2797 = vpack.c.b16 %v2669, %v2661
        %v2798 = vpack.c.b16 %v2670, %v2662
        %v2799 = vpack.c.b16 %v2671, %v2663
        %v2800 = vpack.c.b16 %v2672, %v2664
        %v2801 = vpack.c.b16 %v2673, %v2665
        %v2802 = vpack.c.b16 %v2674, %v2666
        %v2803 = vpack.c.b16 %v2675, %v2667
        %2932 = vmatprep.subr.bf16.mxu0 %v2733
        %2933 = vmatpush1.bf16.msra.mxu0 %v2732
        %2934 = vmatprep.subr.bf16.mxu0 %v2725
        %2935 = vmatpush1.bf16.msra.mxu0 %v2724
        %2936 = vmatprep.subr.bf16.mxu0 %v2717
        %2937 = vmatpush1.bf16.msra.mxu0 %v2716
        %2938 = vmatprep.subr.bf16.mxu0 %v2709
        %2939 = vmatpush1.bf16.msra.mxu0 %v2708
        %2940 = vmatprep.subr.bf16.mxu0 %v2701
        %2941 = vmatpush1.bf16.msra.mxu0 %v2700
        %2942 = vmatprep.subr.bf16.mxu0 %v2693
        %2943 = vmatpush1.bf16.msra.mxu0 %v2692
        %2944 = vmatprep.subr.bf16.mxu0 %v2685
        %2945 = vmatpush1.bf16.msra.mxu0 %v2684
        %2946 = vmatprep.subr.bf16.mxu0 %v2677
        %2947 = vmatpush1.bf16.msra.mxu0 %v2676
        %2948 = vmatprep.subr.bf16.mxu0 %v2797
        %2949 = vmatpush2.bf16.msra.mxu0 %v2796
        %2950 = vmatprep.subr.bf16.mxu0 %v2789
        %2951 = vmatpush2.bf16.msra.mxu0 %v2788
        %2952 = vmatprep.subr.bf16.mxu0 %v2781
        %2953 = vmatpush2.bf16.msra.mxu0 %v2780
        %2954 = vmatprep.subr.bf16.mxu0 %v2773
        %2955 = vmatpush2.bf16.msra.mxu0 %v2772
        %2956 = vmatprep.subr.bf16.mxu0 %v2765
        %2957 = vmatpush2.bf16.msra.mxu0 %v2764
        %2958 = vmatprep.subr.bf16.mxu0 %v2757
        %2959 = vmatpush2.bf16.msra.mxu0 %v2756
        %2960 = vmatprep.subr.bf16.mxu0 %v2749
        %2961 = vmatpush2.bf16.msra.mxu0 %v2748
        %2962 = vmatprep.subr.bf16.mxu0 %v2741
        %2963 = vmatpush2.bf16.msra.mxu0 %v2740
        %2964 = vmatprep.mubr.bf16.mxu0 %v2121
        %2965 = vmatmul.mubr.bf16.gmra.mxu0 %v2120
        %v2966 = vpop.f32.mrf.mxu0
        %v2967 = vadd.f32 %v2255, %v2966
        %v2968 = vpop.f32.mrf.mxu0
        %v2969 = vadd.f32 %v2259, %v2968
        %v2970 = vpop.f32.mrf.mxu0
        %v2971 = vadd.f32 %v2255, %v2970
        %v2972 = vpop.f32.mrf.mxu0
        %v2973 = vadd.f32 %v2259, %v2972
        %2974 = vdwg.mxu0
        %2975 = vmatprep.subr.bf16.mxu0 %v2735
        %2976 = vmatpush1.bf16.msra.mxu0 %v2734
        %2977 = vmatprep.subr.bf16.mxu0 %v2727
        %2978 = vmatpush1.bf16.msra.mxu0 %v2726
        %2979 = vmatprep.subr.bf16.mxu0 %v2719
        %2980 = vmatpush1.bf16.msra.mxu0 %v2718
        %2981 = vmatprep.subr.bf16.mxu0 %v2711
        %2982 = vmatpush1.bf16.msra.mxu0 %v2710
        %2983 = vmatprep.subr.bf16.mxu0 %v2703
        %2984 = vmatpush1.bf16.msra.mxu0 %v2702
        %2985 = vmatprep.subr.bf16.mxu0 %v2695
        %2986 = vmatpush1.bf16.msra.mxu0 %v2694
        %2987 = vmatprep.subr.bf16.mxu0 %v2687
        %2988 = vmatpush1.bf16.msra.mxu0 %v2686
        %2989 = vmatprep.subr.bf16.mxu0 %v2679
        %2990 = vmatpush1.bf16.msra.mxu0 %v2678
        %2991 = vmatprep.subr.bf16.mxu0 %v2799
        %2992 = vmatpush2.bf16.msra.mxu0 %v2798
        %2993 = vmatprep.subr.bf16.mxu0 %v2791
        %2994 = vmatpush2.bf16.msra.mxu0 %v2790
        %2995 = vmatprep.subr.bf16.mxu0 %v2783
        %2996 = vmatpush2.bf16.msra.mxu0 %v2782
        %2997 = vmatprep.subr.bf16.mxu0 %v2775
        %2998 = vmatpush2.bf16.msra.mxu0 %v2774
        %2999 = vmatprep.subr.bf16.mxu0 %v2767
        %3000 = vmatpush2.bf16.msra.mxu0 %v2766
        %3001 = vmatprep.subr.bf16.mxu0 %v2759
        %3002 = vmatpush2.bf16.msra.mxu0 %v2758
        %3003 = vmatprep.subr.bf16.mxu0 %v2751
        %3004 = vmatpush2.bf16.msra.mxu0 %v2750
        %3005 = vmatprep.subr.bf16.mxu0 %v2743
        %3006 = vmatpush2.bf16.msra.mxu0 %v2742
        %3007 = vmatprep.mubr.bf16.mxu0 %v2121
        %3008 = vmatmul.mubr.bf16.gmra.mxu0 %v2120
        %v3009 = vpop.f32.mrf.mxu0
        %v3010 = vadd.f32 %v2263, %v3009
        %v3011 = vpop.f32.mrf.mxu0
        %v3012 = vadd.f32 %v2267, %v3011
        %v3013 = vpop.f32.mrf.mxu0
        %v3014 = vadd.f32 %v2263, %v3013
        %v3015 = vpop.f32.mrf.mxu0
        %v3016 = vadd.f32 %v2267, %v3015
        %3017 = vdwg.mxu0
        %3018 = vmatprep.subr.bf16.mxu0 %v2737
        %3019 = vmatpush1.bf16.msra.mxu0 %v2736
        %3020 = vmatprep.subr.bf16.mxu0 %v2729
        %3021 = vmatpush1.bf16.msra.mxu0 %v2728
        %3022 = vmatprep.subr.bf16.mxu0 %v2721
        %3023 = vmatpush1.bf16.msra.mxu0 %v2720
        %3024 = vmatprep.subr.bf16.mxu0 %v2713
        %3025 = vmatpush1.bf16.msra.mxu0 %v2712
        %3026 = vmatprep.subr.bf16.mxu0 %v2705
        %3027 = vmatpush1.bf16.msra.mxu0 %v2704
        %3028 = vmatprep.subr.bf16.mxu0 %v2697
        %3029 = vmatpush1.bf16.msra.mxu0 %v2696
        %3030 = vmatprep.subr.bf16.mxu0 %v2689
        %3031 = vmatpush1.bf16.msra.mxu0 %v2688
        %3032 = vmatprep.subr.bf16.mxu0 %v2681
        %3033 = vmatpush1.bf16.msra.mxu0 %v2680
        %3034 = vmatprep.subr.bf16.mxu0 %v2801
        %3035 = vmatpush2.bf16.msra.mxu0 %v2800
        %3036 = vmatprep.subr.bf16.mxu0 %v2793
        %3037 = vmatpush2.bf16.msra.mxu0 %v2792
        %3038 = vmatprep.subr.bf16.mxu0 %v2785
        %3039 = vmatpush2.bf16.msra.mxu0 %v2784
        %3040 = vmatprep.subr.bf16.mxu0 %v2777
        %3041 = vmatpush2.bf16.msra.mxu0 %v2776
        %3042 = vmatprep.subr.bf16.mxu0 %v2769
        %3043 = vmatpush2.bf16.msra.mxu0 %v2768
        %3044 = vmatprep.subr.bf16.mxu0 %v2761
        %3045 = vmatpush2.bf16.msra.mxu0 %v2760
        %3046 = vmatprep.subr.bf16.mxu0 %v2753
        %3047 = vmatpush2.bf16.msra.mxu0 %v2752
        %3048 = vmatprep.subr.bf16.mxu0 %v2745
        %3049 = vmatpush2.bf16.msra.mxu0 %v2744
        %3050 = vmatprep.mubr.bf16.mxu0 %v2121
        %3051 = vmatmul.mubr.bf16.gmra.mxu0 %v2120
        %v3052 = vpop.f32.mrf.mxu0
        %v3053 = vadd.f32 %v2271, %v3052
        %v3054 = vpop.f32.mrf.mxu0
        %v3055 = vadd.f32 %v2275, %v3054
        %v3056 = vpop.f32.mrf.mxu0
        %v3057 = vadd.f32 %v2271, %v3056
        %v3058 = vpop.f32.mrf.mxu0
        %v3059 = vadd.f32 %v2275, %v3058
        %3060 = vdwg.mxu0
        %3061 = vmatprep.subr.bf16.mxu0 %v2739
        %3062 = vmatpush1.bf16.msra.mxu0 %v2738
        %3063 = vmatprep.subr.bf16.mxu0 %v2731
        %3064 = vmatpush1.bf16.msra.mxu0 %v2730
        %3065 = vmatprep.subr.bf16.mxu0 %v2723
        %3066 = vmatpush1.bf16.msra.mxu0 %v2722
        %3067 = vmatprep.subr.bf16.mxu0 %v2715
        %3068 = vmatpush1.bf16.msra.mxu0 %v2714
        %3069 = vmatprep.subr.bf16.mxu0 %v2707
        %3070 = vmatpush1.bf16.msra.mxu0 %v2706
        %3071 = vmatprep.subr.bf16.mxu0 %v2699
        %3072 = vmatpush1.bf16.msra.mxu0 %v2698
        %3073 = vmatprep.subr.bf16.mxu0 %v2691
        %3074 = vmatpush1.bf16.msra.mxu0 %v2690
        %3075 = vmatprep.subr.bf16.mxu0 %v2683
        %3076 = vmatpush1.bf16.msra.mxu0 %v2682
        %3077 = vmatprep.subr.bf16.mxu0 %v2803
        %3078 = vmatpush2.bf16.msra.mxu0 %v2802
        %3079 = vmatprep.subr.bf16.mxu0 %v2795
        %3080 = vmatpush2.bf16.msra.mxu0 %v2794
        %3081 = vmatprep.subr.bf16.mxu0 %v2787
        %3082 = vmatpush2.bf16.msra.mxu0 %v2786
        %3083 = vmatprep.subr.bf16.mxu0 %v2779
        %3084 = vmatpush2.bf16.msra.mxu0 %v2778
        %3085 = vmatprep.subr.bf16.mxu0 %v2771
        %3086 = vmatpush2.bf16.msra.mxu0 %v2770
        %3087 = vmatprep.subr.bf16.mxu0 %v2763
        %3088 = vmatpush2.bf16.msra.mxu0 %v2762
        %3089 = vmatprep.subr.bf16.mxu0 %v2755
        %3090 = vmatpush2.bf16.msra.mxu0 %v2754
        %3091 = vmatprep.subr.bf16.mxu0 %v2747
        %3092 = vmatpush2.bf16.msra.mxu0 %v2746
        %3093 = vmatprep.mubr.bf16.mxu0 %v2121
        %3094 = vmatmul.mubr.bf16.gmra.mxu0 %v2120
        %v3095 = vpop.f32.mrf.mxu0
        %v3096 = vadd.f32 %v2279, %v3095
        %v3097 = vpop.f32.mrf.mxu0
        %v3098 = vadd.f32 %v2283, %v3097
        %v3099 = vpop.f32.mrf.mxu0
        %v3100 = vadd.f32 %v2279, %v3099
        %v3101 = vpop.f32.mrf.mxu0
        %v3102 = vadd.f32 %v2283, %v3101
        %3103 = vdwg.mxu0
        %v3104 = vmul.f32 %v2967, 0.5
        %v3105 = vmul.f32 %v2969, 0.5
        %v3106 = vmul.f32 %v3010, 0.5
        %v3107 = vmul.f32 %v3012, 0.5
        %v3108 = vmul.f32 %v3053, 0.5
        %v3109 = vmul.f32 %v3055, 0.5
        %v3110 = vmul.f32 %v3096, 0.5
        %v3111 = vmul.f32 %v3098, 0.5
        %v3112 = vmul.f32 %v2971, 0.5
        %v3113 = vmul.f32 %v2973, 0.5
        %v3114 = vmul.f32 %v3014, 0.5
        %v3115 = vmul.f32 %v3016, 0.5
        %v3116 = vmul.f32 %v3057, 0.5
        %v3117 = vmul.f32 %v3059, 0.5
        %v3118 = vmul.f32 %v3100, 0.5
        %v3119 = vmul.f32 %v3102, 0.5
        %v3120 = vmul.f32 %v2967, 0.70710677
        %v3121 = vmul.f32 %v2969, 0.70710677
        %v3122 = vmul.f32 %v3010, 0.70710677
        %v3123 = vmul.f32 %v3012, 0.70710677
        %v3124 = vmul.f32 %v3053, 0.70710677
        %v3125 = vmul.f32 %v3055, 0.70710677
        %v3126 = vmul.f32 %v3096, 0.70710677
        %v3127 = vmul.f32 %v3098, 0.70710677
        %v3128 = vmul.f32 %v2971, 0.70710677
        %v3129 = vmul.f32 %v2973, 0.70710677
        %v3130 = vmul.f32 %v3014, 0.70710677
        %v3131 = vmul.f32 %v3016, 0.70710677
        %v3132 = vmul.f32 %v3057, 0.70710677
        %v3133 = vmul.f32 %v3059, 0.70710677
        %v3134 = vmul.f32 %v3100, 0.70710677
        %v3135 = vmul.f32 %v3102, 0.70710677
        %v3136 = verf.f32.pop %v3120
        %v3137 = verf.f32.pop %v3121
        %v3138 = verf.f32.pop %v3122
        %v3139 = verf.f32.pop %v3123
        %v3140 = verf.f32.pop %v3124
        %v3141 = verf.f32.pop %v3125
        %v3142 = verf.f32.pop %v3126
        %v3143 = verf.f32.pop %v3127
        %v3144 = verf.f32.pop %v3128
        %v3145 = verf.f32.pop %v3129
        %v3146 = verf.f32.pop %v3130
        %v3147 = verf.f32.pop %v3131
        %v3148 = verf.f32.pop %v3132
        %v3149 = verf.f32.pop %v3133
        %v3150 = verf.f32.pop %v3134
        %v3151 = verf.f32.pop %v3135
        %v3152 = vadd.f32 %v3136, 1.0
        %v3153 = vadd.f32 %v3137, 1.0
        %v3154 = vadd.f32 %v3138, 1.0
        %v3155 = vadd.f32 %v3139, 1.0
        %v3156 = vadd.f32 %v3140, 1.0
        %v3157 = vadd.f32 %v3141, 1.0
        %v3158 = vadd.f32 %v3142, 1.0
        %v3159 = vadd.f32 %v3143, 1.0
        %v3160 = vadd.f32 %v3144, 1.0
        %v3161 = vadd.f32 %v3145, 1.0
        %v3162 = vadd.f32 %v3146, 1.0
        %v3163 = vadd.f32 %v3147, 1.0
        %v3164 = vadd.f32 %v3148, 1.0
        %v3165 = vadd.f32 %v3149, 1.0
        %v3166 = vadd.f32 %v3150, 1.0
        %v3167 = vadd.f32 %v3151, 1.0
        %v3168 = vmul.f32 %v3104, %v3152
        %v3169 = vmul.f32 %v3105, %v3153
        %v3170 = vmul.f32 %v3106, %v3154
        %v3171 = vmul.f32 %v3107, %v3155
        %v3172 = vmul.f32 %v3108, %v3156
        %v3173 = vmul.f32 %v3109, %v3157
        %v3174 = vmul.f32 %v3110, %v3158
        %v3175 = vmul.f32 %v3111, %v3159
        %v3176 = vmul.f32 %v3112, %v3160
        %v3177 = vmul.f32 %v3113, %v3161
        %v3178 = vmul.f32 %v3114, %v3162
        %v3179 = vmul.f32 %v3115, %v3163
        %v3180 = vmul.f32 %v3116, %v3164
        %v3181 = vmul.f32 %v3117, %v3165
        %v3182 = vmul.f32 %v3118, %v3166
        %v3183 = vmul.f32 %v3119, %v3167
        %v3184 = vpack.c.bf16 %v3176, %v3168
        %v3185 = vpack.c.bf16 %v3177, %v3169
        %v3186 = vpack.c.bf16 %v3178, %v3170
        %v3187 = vpack.c.bf16 %v3179, %v3171
        %v3188 = vpack.c.bf16 %v3180, %v3172
        %v3189 = vpack.c.bf16 %v3181, %v3173
        %v3190 = vpack.c.bf16 %v3182, %v3174
        %v3191 = vpack.c.bf16 %v3183, %v3175
        %v3192 = vld [vmem:[#allocation17] sm:$0xff]
        %v3193 = vld [vmem:[#allocation17 + $0x8] sm:$0xff]
        %v3194 = vld [vmem:[#allocation17 + $0x10] sm:$0xff]
        %v3195 = vld [vmem:[#allocation17 + $0x18] sm:$0xff]
        %v3196 = vld [vmem:[#allocation17 + $0x20] sm:$0xff]
        %v3197 = vld [vmem:[#allocation17 + $0x28] sm:$0xff]
        %v3198 = vld [vmem:[#allocation17 + $0x30] sm:$0xff]
        %v3199 = vld [vmem:[#allocation17 + $0x38] sm:$0xff]
        %v3200 = vld [vmem:[#allocation17 + $0x40] sm:$0xff]
        %v3201 = vld [vmem:[#allocation17 + $0x48] sm:$0xff]
        %v3202 = vld [vmem:[#allocation17 + $0x50] sm:$0xff]
        %v3203 = vld [vmem:[#allocation17 + $0x58] sm:$0xff]
        %v3204 = vld [vmem:[#allocation17 + $0x60] sm:$0xff]
        %v3205 = vld [vmem:[#allocation17 + $0x68] sm:$0xff]
        %v3206 = vld [vmem:[#allocation17 + $0x70] sm:$0xff]
        %v3207 = vld [vmem:[#allocation17 + $0x78] sm:$0xff]
        %v3208 = vld [vmem:[#allocation17 + $0x80] sm:$0xff]
        %v3209 = vld [vmem:[#allocation17 + $0x88] sm:$0xff]
        %v3210 = vld [vmem:[#allocation17 + $0x90] sm:$0xff]
        %v3211 = vld [vmem:[#allocation17 + $0x98] sm:$0xff]
        %v3212 = vld [vmem:[#allocation17 + $0xa0] sm:$0xff]
        %v3213 = vld [vmem:[#allocation17 + $0xa8] sm:$0xff]
        %v3214 = vld [vmem:[#allocation17 + $0xb0] sm:$0xff]
        %v3215 = vld [vmem:[#allocation17 + $0xb8] sm:$0xff]
        %v3216 = vld [vmem:[#allocation17 + $0xc0] sm:$0xff]
        %v3217 = vld [vmem:[#allocation17 + $0xc8] sm:$0xff]
        %v3218 = vld [vmem:[#allocation17 + $0xd0] sm:$0xff]
        %v3219 = vld [vmem:[#allocation17 + $0xd8] sm:$0xff]
        %v3220 = vld [vmem:[#allocation17 + $0xe0] sm:$0xff]
        %v3221 = vld [vmem:[#allocation17 + $0xe8] sm:$0xff]
        %v3222 = vld [vmem:[#allocation17 + $0xf0] sm:$0xff]
        %v3223 = vld [vmem:[#allocation17 + $0xf8] sm:$0xff]
        %v3224 = vld [vmem:[#allocation17 + $0x100] sm:$0xff]
        %v3225 = vld [vmem:[#allocation17 + $0x108] sm:$0xff]
        %v3226 = vld [vmem:[#allocation17 + $0x110] sm:$0xff]
        %v3227 = vld [vmem:[#allocation17 + $0x118] sm:$0xff]
        %v3228 = vld [vmem:[#allocation17 + $0x120] sm:$0xff]
        %v3229 = vld [vmem:[#allocation17 + $0x128] sm:$0xff]
        %v3230 = vld [vmem:[#allocation17 + $0x130] sm:$0xff]
        %v3231 = vld [vmem:[#allocation17 + $0x138] sm:$0xff]
        %v3232 = vld [vmem:[#allocation17 + $0x140] sm:$0xff]
        %v3233 = vld [vmem:[#allocation17 + $0x148] sm:$0xff]
        %v3234 = vld [vmem:[#allocation17 + $0x150] sm:$0xff]
        %v3235 = vld [vmem:[#allocation17 + $0x158] sm:$0xff]
        %v3236 = vld [vmem:[#allocation17 + $0x160] sm:$0xff]
        %v3237 = vld [vmem:[#allocation17 + $0x168] sm:$0xff]
        %v3238 = vld [vmem:[#allocation17 + $0x170] sm:$0xff]
        %v3239 = vld [vmem:[#allocation17 + $0x178] sm:$0xff]
        %v3240 = vld [vmem:[#allocation17 + $0x180] sm:$0xff]
        %v3241 = vld [vmem:[#allocation17 + $0x188] sm:$0xff]
        %v3242 = vld [vmem:[#allocation17 + $0x190] sm:$0xff]
        %v3243 = vld [vmem:[#allocation17 + $0x198] sm:$0xff]
        %v3244 = vld [vmem:[#allocation17 + $0x1a0] sm:$0xff]
        %v3245 = vld [vmem:[#allocation17 + $0x1a8] sm:$0xff]
        %v3246 = vld [vmem:[#allocation17 + $0x1b0] sm:$0xff]
        %v3247 = vld [vmem:[#allocation17 + $0x1b8] sm:$0xff]
        %v3248 = vld [vmem:[#allocation17 + $0x1c0] sm:$0xff]
        %v3249 = vld [vmem:[#allocation17 + $0x1c8] sm:$0xff]
        %v3250 = vld [vmem:[#allocation17 + $0x1d0] sm:$0xff]
        %v3251 = vld [vmem:[#allocation17 + $0x1d8] sm:$0xff]
        %v3252 = vld [vmem:[#allocation17 + $0x1e0] sm:$0xff]
        %v3253 = vld [vmem:[#allocation17 + $0x1e8] sm:$0xff]
        %v3254 = vld [vmem:[#allocation17 + $0x1f0] sm:$0xff]
        %v3255 = vld [vmem:[#allocation17 + $0x1f8] sm:$0xff]
        %v3256 = vld [vmem:[#allocation17 + $0x200] sm:$0xff]
        %v3257 = vld [vmem:[#allocation17 + $0x208] sm:$0xff]
        %v3258 = vld [vmem:[#allocation17 + $0x210] sm:$0xff]
        %v3259 = vld [vmem:[#allocation17 + $0x218] sm:$0xff]
        %v3260 = vld [vmem:[#allocation17 + $0x220] sm:$0xff]
        %v3261 = vld [vmem:[#allocation17 + $0x228] sm:$0xff]
        %v3262 = vld [vmem:[#allocation17 + $0x230] sm:$0xff]
        %v3263 = vld [vmem:[#allocation17 + $0x238] sm:$0xff]
        %v3264 = vld [vmem:[#allocation17 + $0x240] sm:$0xff]
        %v3265 = vld [vmem:[#allocation17 + $0x248] sm:$0xff]
        %v3266 = vld [vmem:[#allocation17 + $0x250] sm:$0xff]
        %v3267 = vld [vmem:[#allocation17 + $0x258] sm:$0xff]
        %v3268 = vld [vmem:[#allocation17 + $0x260] sm:$0xff]
        %v3269 = vld [vmem:[#allocation17 + $0x268] sm:$0xff]
        %v3270 = vld [vmem:[#allocation17 + $0x270] sm:$0xff]
        %v3271 = vld [vmem:[#allocation17 + $0x278] sm:$0xff]
        %v3272 = vld [vmem:[#allocation17 + $0x280] sm:$0xff]
        %v3273 = vld [vmem:[#allocation17 + $0x288] sm:$0xff]
        %v3274 = vld [vmem:[#allocation17 + $0x290] sm:$0xff]
        %v3275 = vld [vmem:[#allocation17 + $0x298] sm:$0xff]
        %v3276 = vld [vmem:[#allocation17 + $0x2a0] sm:$0xff]
        %v3277 = vld [vmem:[#allocation17 + $0x2a8] sm:$0xff]
        %v3278 = vld [vmem:[#allocation17 + $0x2b0] sm:$0xff]
        %v3279 = vld [vmem:[#allocation17 + $0x2b8] sm:$0xff]
        %v3280 = vld [vmem:[#allocation17 + $0x2c0] sm:$0xff]
        %v3281 = vld [vmem:[#allocation17 + $0x2c8] sm:$0xff]
        %v3282 = vld [vmem:[#allocation17 + $0x2d0] sm:$0xff]
        %v3283 = vld [vmem:[#allocation17 + $0x2d8] sm:$0xff]
        %v3284 = vld [vmem:[#allocation17 + $0x2e0] sm:$0xff]
        %v3285 = vld [vmem:[#allocation17 + $0x2e8] sm:$0xff]
        %v3286 = vld [vmem:[#allocation17 + $0x2f0] sm:$0xff]
        %v3287 = vld [vmem:[#allocation17 + $0x2f8] sm:$0xff]
        %v3288 = vld [vmem:[#allocation17 + $0x300] sm:$0xff]
        %v3289 = vld [vmem:[#allocation17 + $0x308] sm:$0xff]
        %v3290 = vld [vmem:[#allocation17 + $0x310] sm:$0xff]
        %v3291 = vld [vmem:[#allocation17 + $0x318] sm:$0xff]
        %v3292 = vld [vmem:[#allocation17 + $0x320] sm:$0xff]
        %v3293 = vld [vmem:[#allocation17 + $0x328] sm:$0xff]
        %v3294 = vld [vmem:[#allocation17 + $0x330] sm:$0xff]
        %v3295 = vld [vmem:[#allocation17 + $0x338] sm:$0xff]
        %v3296 = vld [vmem:[#allocation17 + $0x340] sm:$0xff]
        %v3297 = vld [vmem:[#allocation17 + $0x348] sm:$0xff]
        %v3298 = vld [vmem:[#allocation17 + $0x350] sm:$0xff]
        %v3299 = vld [vmem:[#allocation17 + $0x358] sm:$0xff]
        %v3300 = vld [vmem:[#allocation17 + $0x360] sm:$0xff]
        %v3301 = vld [vmem:[#allocation17 + $0x368] sm:$0xff]
        %v3302 = vld [vmem:[#allocation17 + $0x370] sm:$0xff]
        %v3303 = vld [vmem:[#allocation17 + $0x378] sm:$0xff]
        %v3304 = vld [vmem:[#allocation17 + $0x380] sm:$0xff]
        %v3305 = vld [vmem:[#allocation17 + $0x388] sm:$0xff]
        %v3306 = vld [vmem:[#allocation17 + $0x390] sm:$0xff]
        %v3307 = vld [vmem:[#allocation17 + $0x398] sm:$0xff]
        %v3308 = vld [vmem:[#allocation17 + $0x3a0] sm:$0xff]
        %v3309 = vld [vmem:[#allocation17 + $0x3a8] sm:$0xff]
        %v3310 = vld [vmem:[#allocation17 + $0x3b0] sm:$0xff]
        %v3311 = vld [vmem:[#allocation17 + $0x3b8] sm:$0xff]
        %v3312 = vld [vmem:[#allocation17 + $0x3c0] sm:$0xff]
        %v3313 = vld [vmem:[#allocation17 + $0x3c8] sm:$0xff]
        %v3314 = vld [vmem:[#allocation17 + $0x3d0] sm:$0xff]
        %v3315 = vld [vmem:[#allocation17 + $0x3d8] sm:$0xff]
        %v3316 = vld [vmem:[#allocation17 + $0x3e0] sm:$0xff]
        %v3317 = vld [vmem:[#allocation17 + $0x3e8] sm:$0xff]
        %v3318 = vld [vmem:[#allocation17 + $0x3f0] sm:$0xff]
        %v3319 = vld [vmem:[#allocation17 + $0x3f8] sm:$0xff]
        %v3320 = vld [vmem:[%s12] sm:$0x3]
        %v3322 = vlaneseq
        %v3323 = vshrl.u32 %v3322, 7
        %v3324 = vsub.s32 0, %v3323
        %v3325 = vrot.slane %v3320, %v3324
        %v3326 = vlaneseq
        %v3327 = vshrl.u32 %v3326, 7
        %v3328 = vsub.s32 1, %v3327
        %v3329 = vrot.slane %v3320, %v3328
        %v3460 = vunpack.c.l.b16 %v3192
        %v3461 = vunpack.c.h.b16 %v3192
        %v3462 = vunpack.c.l.b16 %v3193
        %v3463 = vunpack.c.h.b16 %v3193
        %v3464 = vunpack.c.l.b16 %v3194
        %v3465 = vunpack.c.h.b16 %v3194
        %v3466 = vunpack.c.l.b16 %v3195
        %v3467 = vunpack.c.h.b16 %v3195
        %v3468 = vunpack.c.l.b16 %v3196
        %v3469 = vunpack.c.h.b16 %v3196
        %v3470 = vunpack.c.l.b16 %v3197
        %v3471 = vunpack.c.h.b16 %v3197
        %v3472 = vunpack.c.l.b16 %v3198
        %v3473 = vunpack.c.h.b16 %v3198
        %v3474 = vunpack.c.l.b16 %v3199
        %v3475 = vunpack.c.h.b16 %v3199
        %v3476 = vunpack.c.l.b16 %v3200
        %v3477 = vunpack.c.h.b16 %v3200
        %v3478 = vunpack.c.l.b16 %v3201
        %v3479 = vunpack.c.h.b16 %v3201
        %v3480 = vunpack.c.l.b16 %v3202
        %v3481 = vunpack.c.h.b16 %v3202
        %v3482 = vunpack.c.l.b16 %v3203
        %v3483 = vunpack.c.h.b16 %v3203
        %v3484 = vunpack.c.l.b16 %v3204
        %v3485 = vunpack.c.h.b16 %v3204
        %v3486 = vunpack.c.l.b16 %v3205
        %v3487 = vunpack.c.h.b16 %v3205
        %v3488 = vunpack.c.l.b16 %v3206
        %v3489 = vunpack.c.h.b16 %v3206
        %v3490 = vunpack.c.l.b16 %v3207
        %v3491 = vunpack.c.h.b16 %v3207
        %v3492 = vunpack.c.l.b16 %v3208
        %v3493 = vunpack.c.h.b16 %v3208
        %v3494 = vunpack.c.l.b16 %v3209
        %v3495 = vunpack.c.h.b16 %v3209
        %v3496 = vunpack.c.l.b16 %v3210
        %v3497 = vunpack.c.h.b16 %v3210
        %v3498 = vunpack.c.l.b16 %v3211
        %v3499 = vunpack.c.h.b16 %v3211
        %v3500 = vunpack.c.l.b16 %v3212
        %v3501 = vunpack.c.h.b16 %v3212
        %v3502 = vunpack.c.l.b16 %v3213
        %v3503 = vunpack.c.h.b16 %v3213
        %v3504 = vunpack.c.l.b16 %v3214
        %v3505 = vunpack.c.h.b16 %v3214
        %v3506 = vunpack.c.l.b16 %v3215
        %v3507 = vunpack.c.h.b16 %v3215
        %v3508 = vunpack.c.l.b16 %v3216
        %v3509 = vunpack.c.h.b16 %v3216
        %v3510 = vunpack.c.l.b16 %v3217
        %v3511 = vunpack.c.h.b16 %v3217
        %v3512 = vunpack.c.l.b16 %v3218
        %v3513 = vunpack.c.h.b16 %v3218
        %v3514 = vunpack.c.l.b16 %v3219
        %v3515 = vunpack.c.h.b16 %v3219
        %v3516 = vunpack.c.l.b16 %v3220
        %v3517 = vunpack.c.h.b16 %v3220
        %v3518 = vunpack.c.l.b16 %v3221
        %v3519 = vunpack.c.h.b16 %v3221
        %v3520 = vunpack.c.l.b16 %v3222
        %v3521 = vunpack.c.h.b16 %v3222
        %v3522 = vunpack.c.l.b16 %v3223
        %v3523 = vunpack.c.h.b16 %v3223
        %v3524 = vunpack.c.l.b16 %v3224
        %v3525 = vunpack.c.h.b16 %v3224
        %v3526 = vunpack.c.l.b16 %v3225
        %v3527 = vunpack.c.h.b16 %v3225
        %v3528 = vunpack.c.l.b16 %v3226
        %v3529 = vunpack.c.h.b16 %v3226
        %v3530 = vunpack.c.l.b16 %v3227
        %v3531 = vunpack.c.h.b16 %v3227
        %v3532 = vunpack.c.l.b16 %v3228
        %v3533 = vunpack.c.h.b16 %v3228
        %v3534 = vunpack.c.l.b16 %v3229
        %v3535 = vunpack.c.h.b16 %v3229
        %v3536 = vunpack.c.l.b16 %v3230
        %v3537 = vunpack.c.h.b16 %v3230
        %v3538 = vunpack.c.l.b16 %v3231
        %v3539 = vunpack.c.h.b16 %v3231
        %v3540 = vunpack.c.l.b16 %v3232
        %v3541 = vunpack.c.h.b16 %v3232
        %v3542 = vunpack.c.l.b16 %v3233
        %v3543 = vunpack.c.h.b16 %v3233
        %v3544 = vunpack.c.l.b16 %v3234
        %v3545 = vunpack.c.h.b16 %v3234
        %v3546 = vunpack.c.l.b16 %v3235
        %v3547 = vunpack.c.h.b16 %v3235
        %v3548 = vunpack.c.l.b16 %v3236
        %v3549 = vunpack.c.h.b16 %v3236
        %v3550 = vunpack.c.l.b16 %v3237
        %v3551 = vunpack.c.h.b16 %v3237
        %v3552 = vunpack.c.l.b16 %v3238
        %v3553 = vunpack.c.h.b16 %v3238
        %v3554 = vunpack.c.l.b16 %v3239
        %v3555 = vunpack.c.h.b16 %v3239
        %v3556 = vunpack.c.l.b16 %v3240
        %v3557 = vunpack.c.h.b16 %v3240
        %v3558 = vunpack.c.l.b16 %v3241
        %v3559 = vunpack.c.h.b16 %v3241
        %v3560 = vunpack.c.l.b16 %v3242
        %v3561 = vunpack.c.h.b16 %v3242
        %v3562 = vunpack.c.l.b16 %v3243
        %v3563 = vunpack.c.h.b16 %v3243
        %v3564 = vunpack.c.l.b16 %v3244
        %v3565 = vunpack.c.h.b16 %v3244
        %v3566 = vunpack.c.l.b16 %v3245
        %v3567 = vunpack.c.h.b16 %v3245
        %v3568 = vunpack.c.l.b16 %v3246
        %v3569 = vunpack.c.h.b16 %v3246
        %v3570 = vunpack.c.l.b16 %v3247
        %v3571 = vunpack.c.h.b16 %v3247
        %v3572 = vunpack.c.l.b16 %v3248
        %v3573 = vunpack.c.h.b16 %v3248
        %v3574 = vunpack.c.l.b16 %v3249
        %v3575 = vunpack.c.h.b16 %v3249
        %v3576 = vunpack.c.l.b16 %v3250
        %v3577 = vunpack.c.h.b16 %v3250
        %v3578 = vunpack.c.l.b16 %v3251
        %v3579 = vunpack.c.h.b16 %v3251
        %v3580 = vunpack.c.l.b16 %v3252
        %v3581 = vunpack.c.h.b16 %v3252
        %v3582 = vunpack.c.l.b16 %v3253
        %v3583 = vunpack.c.h.b16 %v3253
        %v3584 = vunpack.c.l.b16 %v3254
        %v3585 = vunpack.c.h.b16 %v3254
        %v3586 = vunpack.c.l.b16 %v3255
        %v3587 = vunpack.c.h.b16 %v3255
        %v3588 = vunpack.c.l.b16 %v3256
        %v3589 = vunpack.c.h.b16 %v3256
        %v3590 = vunpack.c.l.b16 %v3257
        %v3591 = vunpack.c.h.b16 %v3257
        %v3592 = vunpack.c.l.b16 %v3258
        %v3593 = vunpack.c.h.b16 %v3258
        %v3594 = vunpack.c.l.b16 %v3259
        %v3595 = vunpack.c.h.b16 %v3259
        %v3596 = vunpack.c.l.b16 %v3260
        %v3597 = vunpack.c.h.b16 %v3260
        %v3598 = vunpack.c.l.b16 %v3261
        %v3599 = vunpack.c.h.b16 %v3261
        %v3600 = vunpack.c.l.b16 %v3262
        %v3601 = vunpack.c.h.b16 %v3262
        %v3602 = vunpack.c.l.b16 %v3263
        %v3603 = vunpack.c.h.b16 %v3263
        %v3604 = vunpack.c.l.b16 %v3264
        %v3605 = vunpack.c.h.b16 %v3264
        %v3606 = vunpack.c.l.b16 %v3265
        %v3607 = vunpack.c.h.b16 %v3265
        %v3608 = vunpack.c.l.b16 %v3266
        %v3609 = vunpack.c.h.b16 %v3266
        %v3610 = vunpack.c.l.b16 %v3267
        %v3611 = vunpack.c.h.b16 %v3267
        %v3612 = vunpack.c.l.b16 %v3268
        %v3613 = vunpack.c.h.b16 %v3268
        %v3614 = vunpack.c.l.b16 %v3269
        %v3615 = vunpack.c.h.b16 %v3269
        %v3616 = vunpack.c.l.b16 %v3270
        %v3617 = vunpack.c.h.b16 %v3270
        %v3618 = vunpack.c.l.b16 %v3271
        %v3619 = vunpack.c.h.b16 %v3271
        %v3620 = vunpack.c.l.b16 %v3272
        %v3621 = vunpack.c.h.b16 %v3272
        %v3622 = vunpack.c.l.b16 %v3273
        %v3623 = vunpack.c.h.b16 %v3273
        %v3624 = vunpack.c.l.b16 %v3274
        %v3625 = vunpack.c.h.b16 %v3274
        %v3626 = vunpack.c.l.b16 %v3275
        %v3627 = vunpack.c.h.b16 %v3275
        %v3628 = vunpack.c.l.b16 %v3276
        %v3629 = vunpack.c.h.b16 %v3276
        %v3630 = vunpack.c.l.b16 %v3277
        %v3631 = vunpack.c.h.b16 %v3277
        %v3632 = vunpack.c.l.b16 %v3278
        %v3633 = vunpack.c.h.b16 %v3278
        %v3634 = vunpack.c.l.b16 %v3279
        %v3635 = vunpack.c.h.b16 %v3279
        %v3636 = vunpack.c.l.b16 %v3280
        %v3637 = vunpack.c.h.b16 %v3280
        %v3638 = vunpack.c.l.b16 %v3281
        %v3639 = vunpack.c.h.b16 %v3281
        %v3640 = vunpack.c.l.b16 %v3282
        %v3641 = vunpack.c.h.b16 %v3282
        %v3642 = vunpack.c.l.b16 %v3283
        %v3643 = vunpack.c.h.b16 %v3283
        %v3644 = vunpack.c.l.b16 %v3284
        %v3645 = vunpack.c.h.b16 %v3284
        %v3646 = vunpack.c.l.b16 %v3285
        %v3647 = vunpack.c.h.b16 %v3285
        %v3648 = vunpack.c.l.b16 %v3286
        %v3649 = vunpack.c.h.b16 %v3286
        %v3650 = vunpack.c.l.b16 %v3287
        %v3651 = vunpack.c.h.b16 %v3287
        %v3652 = vunpack.c.l.b16 %v3288
        %v3653 = vunpack.c.h.b16 %v3288
        %v3654 = vunpack.c.l.b16 %v3289
        %v3655 = vunpack.c.h.b16 %v3289
        %v3656 = vunpack.c.l.b16 %v3290
        %v3657 = vunpack.c.h.b16 %v3290
        %v3658 = vunpack.c.l.b16 %v3291
        %v3659 = vunpack.c.h.b16 %v3291
        %v3660 = vunpack.c.l.b16 %v3292
        %v3661 = vunpack.c.h.b16 %v3292
        %v3662 = vunpack.c.l.b16 %v3293
        %v3663 = vunpack.c.h.b16 %v3293
        %v3664 = vunpack.c.l.b16 %v3294
        %v3665 = vunpack.c.h.b16 %v3294
        %v3666 = vunpack.c.l.b16 %v3295
        %v3667 = vunpack.c.h.b16 %v3295
        %v3668 = vunpack.c.l.b16 %v3296
        %v3669 = vunpack.c.h.b16 %v3296
        %v3670 = vunpack.c.l.b16 %v3297
        %v3671 = vunpack.c.h.b16 %v3297
        %v3672 = vunpack.c.l.b16 %v3298
        %v3673 = vunpack.c.h.b16 %v3298
        %v3674 = vunpack.c.l.b16 %v3299
        %v3675 = vunpack.c.h.b16 %v3299
        %v3676 = vunpack.c.l.b16 %v3300
        %v3677 = vunpack.c.h.b16 %v3300
        %v3678 = vunpack.c.l.b16 %v3301
        %v3679 = vunpack.c.h.b16 %v3301
        %v3680 = vunpack.c.l.b16 %v3302
        %v3681 = vunpack.c.h.b16 %v3302
        %v3682 = vunpack.c.l.b16 %v3303
        %v3683 = vunpack.c.h.b16 %v3303
        %v3684 = vunpack.c.l.b16 %v3304
        %v3685 = vunpack.c.h.b16 %v3304
        %v3686 = vunpack.c.l.b16 %v3305
        %v3687 = vunpack.c.h.b16 %v3305
        %v3688 = vunpack.c.l.b16 %v3306
        %v3689 = vunpack.c.h.b16 %v3306
        %v3690 = vunpack.c.l.b16 %v3307
        %v3691 = vunpack.c.h.b16 %v3307
        %v3692 = vunpack.c.l.b16 %v3308
        %v3693 = vunpack.c.h.b16 %v3308
        %v3694 = vunpack.c.l.b16 %v3309
        %v3695 = vunpack.c.h.b16 %v3309
        %v3696 = vunpack.c.l.b16 %v3310
        %v3697 = vunpack.c.h.b16 %v3310
        %v3698 = vunpack.c.l.b16 %v3311
        %v3699 = vunpack.c.h.b16 %v3311
        %v3700 = vunpack.c.l.b16 %v3312
        %v3701 = vunpack.c.h.b16 %v3312
        %v3702 = vunpack.c.l.b16 %v3313
        %v3703 = vunpack.c.h.b16 %v3313
        %v3704 = vunpack.c.l.b16 %v3314
        %v3705 = vunpack.c.h.b16 %v3314
        %v3706 = vunpack.c.l.b16 %v3315
        %v3707 = vunpack.c.h.b16 %v3315
        %v3708 = vunpack.c.l.b16 %v3316
        %v3709 = vunpack.c.h.b16 %v3316
        %v3710 = vunpack.c.l.b16 %v3317
        %v3711 = vunpack.c.h.b16 %v3317
        %v3712 = vunpack.c.l.b16 %v3318
        %v3713 = vunpack.c.h.b16 %v3318
        %v3714 = vunpack.c.l.b16 %v3319
        %v3715 = vunpack.c.h.b16 %v3319
        %v3716 = vpack.c.b16 %v3462, %v3460
        %v3717 = vpack.c.b16 %v3463, %v3461
        %v3718 = vpack.c.b16 %v3466, %v3464
        %v3719 = vpack.c.b16 %v3467, %v3465
        %v3720 = vpack.c.b16 %v3470, %v3468
        %v3721 = vpack.c.b16 %v3471, %v3469
        %v3722 = vpack.c.b16 %v3474, %v3472
        %v3723 = vpack.c.b16 %v3475, %v3473
        %v3724 = vpack.c.b16 %v3478, %v3476
        %v3725 = vpack.c.b16 %v3479, %v3477
        %v3726 = vpack.c.b16 %v3482, %v3480
        %v3727 = vpack.c.b16 %v3483, %v3481
        %v3728 = vpack.c.b16 %v3486, %v3484
        %v3729 = vpack.c.b16 %v3487, %v3485
        %v3730 = vpack.c.b16 %v3490, %v3488
        %v3731 = vpack.c.b16 %v3491, %v3489
        %v3732 = vpack.c.b16 %v3494, %v3492
        %v3733 = vpack.c.b16 %v3495, %v3493
        %v3734 = vpack.c.b16 %v3498, %v3496
        %v3735 = vpack.c.b16 %v3499, %v3497
        %v3736 = vpack.c.b16 %v3502, %v3500
        %v3737 = vpack.c.b16 %v3503, %v3501
        %v3738 = vpack.c.b16 %v3506, %v3504
        %v3739 = vpack.c.b16 %v3507, %v3505
        %v3740 = vpack.c.b16 %v3510, %v3508
        %v3741 = vpack.c.b16 %v3511, %v3509
        %v3742 = vpack.c.b16 %v3514, %v3512
        %v3743 = vpack.c.b16 %v3515, %v3513
        %v3744 = vpack.c.b16 %v3518, %v3516
        %v3745 = vpack.c.b16 %v3519, %v3517
        %v3746 = vpack.c.b16 %v3522, %v3520
        %v3747 = vpack.c.b16 %v3523, %v3521
        %v3748 = vpack.c.b16 %v3526, %v3524
        %v3749 = vpack.c.b16 %v3527, %v3525
        %v3750 = vpack.c.b16 %v3530, %v3528
        %v3751 = vpack.c.b16 %v3531, %v3529
        %v3752 = vpack.c.b16 %v3534, %v3532
        %v3753 = vpack.c.b16 %v3535, %v3533
        %v3754 = vpack.c.b16 %v3538, %v3536
        %v3755 = vpack.c.b16 %v3539, %v3537
        %v3756 = vpack.c.b16 %v3542, %v3540
        %v3757 = vpack.c.b16 %v3543, %v3541
        %v3758 = vpack.c.b16 %v3546, %v3544
        %v3759 = vpack.c.b16 %v3547, %v3545
        %v3760 = vpack.c.b16 %v3550, %v3548
        %v3761 = vpack.c.b16 %v3551, %v3549
        %v3762 = vpack.c.b16 %v3554, %v3552
        %v3763 = vpack.c.b16 %v3555, %v3553
        %v3764 = vpack.c.b16 %v3558, %v3556
        %v3765 = vpack.c.b16 %v3559, %v3557
        %v3766 = vpack.c.b16 %v3562, %v3560
        %v3767 = vpack.c.b16 %v3563, %v3561
        %v3768 = vpack.c.b16 %v3566, %v3564
        %v3769 = vpack.c.b16 %v3567, %v3565
        %v3770 = vpack.c.b16 %v3570, %v3568
        %v3771 = vpack.c.b16 %v3571, %v3569
        %v3772 = vpack.c.b16 %v3574, %v3572
        %v3773 = vpack.c.b16 %v3575, %v3573
        %v3774 = vpack.c.b16 %v3578, %v3576
        %v3775 = vpack.c.b16 %v3579, %v3577
        %v3776 = vpack.c.b16 %v3582, %v3580
        %v3777 = vpack.c.b16 %v3583, %v3581
        %v3778 = vpack.c.b16 %v3586, %v3584
        %v3779 = vpack.c.b16 %v3587, %v3585
        %v3780 = vpack.c.b16 %v3590, %v3588
        %v3781 = vpack.c.b16 %v3591, %v3589
        %v3782 = vpack.c.b16 %v3594, %v3592
        %v3783 = vpack.c.b16 %v3595, %v3593
        %v3784 = vpack.c.b16 %v3598, %v3596
        %v3785 = vpack.c.b16 %v3599, %v3597
        %v3786 = vpack.c.b16 %v3602, %v3600
        %v3787 = vpack.c.b16 %v3603, %v3601
        %v3788 = vpack.c.b16 %v3606, %v3604
        %v3789 = vpack.c.b16 %v3607, %v3605
        %v3790 = vpack.c.b16 %v3610, %v3608
        %v3791 = vpack.c.b16 %v3611, %v3609
        %v3792 = vpack.c.b16 %v3614, %v3612
        %v3793 = vpack.c.b16 %v3615, %v3613
        %v3794 = vpack.c.b16 %v3618, %v3616
        %v3795 = vpack.c.b16 %v3619, %v3617
        %v3796 = vpack.c.b16 %v3622, %v3620
        %v3797 = vpack.c.b16 %v3623, %v3621
        %v3798 = vpack.c.b16 %v3626, %v3624
        %v3799 = vpack.c.b16 %v3627, %v3625
        %v3800 = vpack.c.b16 %v3630, %v3628
        %v3801 = vpack.c.b16 %v3631, %v3629
        %v3802 = vpack.c.b16 %v3634, %v3632
        %v3803 = vpack.c.b16 %v3635, %v3633
        %v3804 = vpack.c.b16 %v3638, %v3636
        %v3805 = vpack.c.b16 %v3639, %v3637
        %v3806 = vpack.c.b16 %v3642, %v3640
        %v3807 = vpack.c.b16 %v3643, %v3641
        %v3808 = vpack.c.b16 %v3646, %v3644
        %v3809 = vpack.c.b16 %v3647, %v3645
        %v3810 = vpack.c.b16 %v3650, %v3648
        %v3811 = vpack.c.b16 %v3651, %v3649
        %v3812 = vpack.c.b16 %v3654, %v3652
        %v3813 = vpack.c.b16 %v3655, %v3653
        %v3814 = vpack.c.b16 %v3658, %v3656
        %v3815 = vpack.c.b16 %v3659, %v3657
        %v3816 = vpack.c.b16 %v3662, %v3660
        %v3817 = vpack.c.b16 %v3663, %v3661
        %v3818 = vpack.c.b16 %v3666, %v3664
        %v3819 = vpack.c.b16 %v3667, %v3665
        %v3820 = vpack.c.b16 %v3670, %v3668
        %v3821 = vpack.c.b16 %v3671, %v3669
        %v3822 = vpack.c.b16 %v3674, %v3672
        %v3823 = vpack.c.b16 %v3675, %v3673
        %v3824 = vpack.c.b16 %v3678, %v3676
        %v3825 = vpack.c.b16 %v3679, %v3677
        %v3826 = vpack.c.b16 %v3682, %v3680
        %v3827 = vpack.c.b16 %v3683, %v3681
        %v3828 = vpack.c.b16 %v3686, %v3684
        %v3829 = vpack.c.b16 %v3687, %v3685
        %v3830 = vpack.c.b16 %v3690, %v3688
        %v3831 = vpack.c.b16 %v3691, %v3689
        %v3832 = vpack.c.b16 %v3694, %v3692
        %v3833 = vpack.c.b16 %v3695, %v3693
        %v3834 = vpack.c.b16 %v3698, %v3696
        %v3835 = vpack.c.b16 %v3699, %v3697
        %v3836 = vpack.c.b16 %v3702, %v3700
        %v3837 = vpack.c.b16 %v3703, %v3701
        %v3838 = vpack.c.b16 %v3706, %v3704
        %v3839 = vpack.c.b16 %v3707, %v3705
        %v3840 = vpack.c.b16 %v3710, %v3708
        %v3841 = vpack.c.b16 %v3711, %v3709
        %v3842 = vpack.c.b16 %v3714, %v3712
        %v3843 = vpack.c.b16 %v3715, %v3713
        %3972 = vmatprep.subr.bf16.mxu0 %v3731
        %3973 = vmatpush1.bf16.msra.mxu0 %v3730
        %3974 = vmatprep.subr.bf16.mxu0 %v3729
        %3975 = vmatpush1.bf16.msra.mxu0 %v3728
        %3976 = vmatprep.subr.bf16.mxu0 %v3727
        %3977 = vmatpush1.bf16.msra.mxu0 %v3726
        %3978 = vmatprep.subr.bf16.mxu0 %v3725
        %3979 = vmatpush1.bf16.msra.mxu0 %v3724
        %3980 = vmatprep.subr.bf16.mxu0 %v3723
        %3981 = vmatpush1.bf16.msra.mxu0 %v3722
        %3982 = vmatprep.subr.bf16.mxu0 %v3721
        %3983 = vmatpush1.bf16.msra.mxu0 %v3720
        %3984 = vmatprep.subr.bf16.mxu0 %v3719
        %3985 = vmatpush1.bf16.msra.mxu0 %v3718
        %3986 = vmatprep.subr.bf16.mxu0 %v3717
        %3987 = vmatpush1.bf16.msra.mxu0 %v3716
        %3988 = vmatprep.subr.bf16.mxu0 %v3747
        %3989 = vmatpush2.bf16.msra.mxu0 %v3746
        %3990 = vmatprep.subr.bf16.mxu0 %v3745
        %3991 = vmatpush2.bf16.msra.mxu0 %v3744
        %3992 = vmatprep.subr.bf16.mxu0 %v3743
        %3993 = vmatpush2.bf16.msra.mxu0 %v3742
        %3994 = vmatprep.subr.bf16.mxu0 %v3741
        %3995 = vmatpush2.bf16.msra.mxu0 %v3740
        %3996 = vmatprep.subr.bf16.mxu0 %v3739
        %3997 = vmatpush2.bf16.msra.mxu0 %v3738
        %3998 = vmatprep.subr.bf16.mxu0 %v3737
        %3999 = vmatpush2.bf16.msra.mxu0 %v3736
        %4000 = vmatprep.subr.bf16.mxu0 %v3735
        %4001 = vmatpush2.bf16.msra.mxu0 %v3734
        %4002 = vmatprep.subr.bf16.mxu0 %v3733
        %4003 = vmatpush2.bf16.msra.mxu0 %v3732
        %4004 = vmatprep.mubr.bf16.mxu0 %v3185
        %4005 = vmatmul.mubr.bf16.gmra.mxu0 %v3184
        %v4006 = vpop.f32.mrf.mxu0
        %v4007 = vadd.f32 %v3325, %v4006
        %v4008 = vpop.f32.mrf.mxu0
        %v4009 = vadd.f32 %v3329, %v4008
        %v4010 = vpop.f32.mrf.mxu0
        %v4011 = vadd.f32 %v3325, %v4010
        %v4012 = vpop.f32.mrf.mxu0
        %v4013 = vadd.f32 %v3329, %v4012
        %4014 = vdwg.mxu0
        %4015 = vmatprep.subr.bf16.mxu0 %v3763
        %4016 = vmatpush1.bf16.msra.mxu0 %v3762
        %4017 = vmatprep.subr.bf16.mxu0 %v3761
        %4018 = vmatpush1.bf16.msra.mxu0 %v3760
        %4019 = vmatprep.subr.bf16.mxu0 %v3759
        %4020 = vmatpush1.bf16.msra.mxu0 %v3758
        %4021 = vmatprep.subr.bf16.mxu0 %v3757
        %4022 = vmatpush1.bf16.msra.mxu0 %v3756
        %4023 = vmatprep.subr.bf16.mxu0 %v3755
        %4024 = vmatpush1.bf16.msra.mxu0 %v3754
        %4025 = vmatprep.subr.bf16.mxu0 %v3753
        %4026 = vmatpush1.bf16.msra.mxu0 %v3752
        %4027 = vmatprep.subr.bf16.mxu0 %v3751
        %4028 = vmatpush1.bf16.msra.mxu0 %v3750
        %4029 = vmatprep.subr.bf16.mxu0 %v3749
        %4030 = vmatpush1.bf16.msra.mxu0 %v3748
        %4031 = vmatprep.subr.bf16.mxu0 %v3779
        %4032 = vmatpush2.bf16.msra.mxu0 %v3778
        %4033 = vmatprep.subr.bf16.mxu0 %v3777
        %4034 = vmatpush2.bf16.msra.mxu0 %v3776
        %4035 = vmatprep.subr.bf16.mxu0 %v3775
        %4036 = vmatpush2.bf16.msra.mxu0 %v3774
        %4037 = vmatprep.subr.bf16.mxu0 %v3773
        %4038 = vmatpush2.bf16.msra.mxu0 %v3772
        %4039 = vmatprep.subr.bf16.mxu0 %v3771
        %4040 = vmatpush2.bf16.msra.mxu0 %v3770
        %4041 = vmatprep.subr.bf16.mxu0 %v3769
        %4042 = vmatpush2.bf16.msra.mxu0 %v3768
        %4043 = vmatprep.subr.bf16.mxu0 %v3767
        %4044 = vmatpush2.bf16.msra.mxu0 %v3766
        %4045 = vmatprep.subr.bf16.mxu0 %v3765
        %4046 = vmatpush2.bf16.msra.mxu0 %v3764
        %4047 = vmatprep.mubr.bf16.mxu0 %v3187
        %4048 = vmatmul.mubr.bf16.gmra.mxu0 %v3186
        %v4049 = vpop.f32.mrf.mxu0
        %v4050 = vadd.f32 %v4007, %v4049
        %v4051 = vpop.f32.mrf.mxu0
        %v4052 = vadd.f32 %v4009, %v4051
        %v4053 = vpop.f32.mrf.mxu0
        %v4054 = vadd.f32 %v4011, %v4053
        %v4055 = vpop.f32.mrf.mxu0
        %v4056 = vadd.f32 %v4013, %v4055
        %4057 = vdwg.mxu0
        %4058 = vmatprep.subr.bf16.mxu0 %v3795
        %4059 = vmatpush1.bf16.msra.mxu0 %v3794
        %4060 = vmatprep.subr.bf16.mxu0 %v3793
        %4061 = vmatpush1.bf16.msra.mxu0 %v3792
        %4062 = vmatprep.subr.bf16.mxu0 %v3791
        %4063 = vmatpush1.bf16.msra.mxu0 %v3790
        %4064 = vmatprep.subr.bf16.mxu0 %v3789
        %4065 = vmatpush1.bf16.msra.mxu0 %v3788
        %4066 = vmatprep.subr.bf16.mxu0 %v3787
        %4067 = vmatpush1.bf16.msra.mxu0 %v3786
        %4068 = vmatprep.subr.bf16.mxu0 %v3785
        %4069 = vmatpush1.bf16.msra.mxu0 %v3784
        %4070 = vmatprep.subr.bf16.mxu0 %v3783
        %4071 = vmatpush1.bf16.msra.mxu0 %v3782
        %4072 = vmatprep.subr.bf16.mxu0 %v3781
        %4073 = vmatpush1.bf16.msra.mxu0 %v3780
        %4074 = vmatprep.subr.bf16.mxu0 %v3811
        %4075 = vmatpush2.bf16.msra.mxu0 %v3810
        %4076 = vmatprep.subr.bf16.mxu0 %v3809
        %4077 = vmatpush2.bf16.msra.mxu0 %v3808
        %4078 = vmatprep.subr.bf16.mxu0 %v3807
        %4079 = vmatpush2.bf16.msra.mxu0 %v3806
        %4080 = vmatprep.subr.bf16.mxu0 %v3805
        %4081 = vmatpush2.bf16.msra.mxu0 %v3804
        %4082 = vmatprep.subr.bf16.mxu0 %v3803
        %4083 = vmatpush2.bf16.msra.mxu0 %v3802
        %4084 = vmatprep.subr.bf16.mxu0 %v3801
        %4085 = vmatpush2.bf16.msra.mxu0 %v3800
        %4086 = vmatprep.subr.bf16.mxu0 %v3799
        %4087 = vmatpush2.bf16.msra.mxu0 %v3798
        %4088 = vmatprep.subr.bf16.mxu0 %v3797
        %4089 = vmatpush2.bf16.msra.mxu0 %v3796
        %4090 = vmatprep.mubr.bf16.mxu0 %v3189
        %4091 = vmatmul.mubr.bf16.gmra.mxu0 %v3188
        %v4092 = vpop.f32.mrf.mxu0
        %v4093 = vadd.f32 %v4050, %v4092
        %v4094 = vpop.f32.mrf.mxu0
        %v4095 = vadd.f32 %v4052, %v4094
        %v4096 = vpop.f32.mrf.mxu0
        %v4097 = vadd.f32 %v4054, %v4096
        %v4098 = vpop.f32.mrf.mxu0
        %v4099 = vadd.f32 %v4056, %v4098
        %4100 = vdwg.mxu0
        %4101 = vmatprep.subr.bf16.mxu0 %v3827
        %4102 = vmatpush1.bf16.msra.mxu0 %v3826
        %4103 = vmatprep.subr.bf16.mxu0 %v3825
        %4104 = vmatpush1.bf16.msra.mxu0 %v3824
        %4105 = vmatprep.subr.bf16.mxu0 %v3823
        %4106 = vmatpush1.bf16.msra.mxu0 %v3822
        %4107 = vmatprep.subr.bf16.mxu0 %v3821
        %4108 = vmatpush1.bf16.msra.mxu0 %v3820
        %4109 = vmatprep.subr.bf16.mxu0 %v3819
        %4110 = vmatpush1.bf16.msra.mxu0 %v3818
        %4111 = vmatprep.subr.bf16.mxu0 %v3817
        %4112 = vmatpush1.bf16.msra.mxu0 %v3816
        %4113 = vmatprep.subr.bf16.mxu0 %v3815
        %4114 = vmatpush1.bf16.msra.mxu0 %v3814
        %4115 = vmatprep.subr.bf16.mxu0 %v3813
        %4116 = vmatpush1.bf16.msra.mxu0 %v3812
        %4117 = vmatprep.subr.bf16.mxu0 %v3843
        %4118 = vmatpush2.bf16.msra.mxu0 %v3842
        %4119 = vmatprep.subr.bf16.mxu0 %v3841
        %4120 = vmatpush2.bf16.msra.mxu0 %v3840
        %4121 = vmatprep.subr.bf16.mxu0 %v3839
        %4122 = vmatpush2.bf16.msra.mxu0 %v3838
        %4123 = vmatprep.subr.bf16.mxu0 %v3837
        %4124 = vmatpush2.bf16.msra.mxu0 %v3836
        %4125 = vmatprep.subr.bf16.mxu0 %v3835
        %4126 = vmatpush2.bf16.msra.mxu0 %v3834
        %4127 = vmatprep.subr.bf16.mxu0 %v3833
        %4128 = vmatpush2.bf16.msra.mxu0 %v3832
        %4129 = vmatprep.subr.bf16.mxu0 %v3831
        %4130 = vmatpush2.bf16.msra.mxu0 %v3830
        %4131 = vmatprep.subr.bf16.mxu0 %v3829
        %4132 = vmatpush2.bf16.msra.mxu0 %v3828
        %4133 = vmatprep.mubr.bf16.mxu0 %v3191
        %4134 = vmatmul.mubr.bf16.gmra.mxu0 %v3190
        %v4135 = vpop.f32.mrf.mxu0
        %v4136 = vadd.f32 %v4093, %v4135
        %v4137 = vpop.f32.mrf.mxu0
        %v4138 = vadd.f32 %v4095, %v4137
        %v4139 = vpop.f32.mrf.mxu0
        %v4140 = vadd.f32 %v4097, %v4139
        %v4141 = vpop.f32.mrf.mxu0
        %v4142 = vadd.f32 %v4099, %v4141
        %4143 = vdwg.mxu0
        %v4144 = vadd.f32 %v2052, %v4136
        %v4145 = vadd.f32 %v2053, %v4138
        %v4146 = vadd.f32 %v2054, %v4140
        %v4147 = vadd.f32 %v2055, %v4142
        %4148 = vst [vmem:[%s567] sm:$0xff] %v4144
        %4149 = vst [vmem:[%s567 + $0x8] sm:$0xff] %v4145
        %4150 = vst [vmem:[%s567 + $0x10] sm:$0xff] %v4146
        %4151 = vst [vmem:[%s567 + $0x18] sm:$0xff] %v4147
        %s4152 = sand.u32 %s320, 1
        %s4153 = scalar_lea.sflag [#allocation5], %s4152
        %s4154 = sand.u32 %s320, 1
        %s4155 = smul.addr %s4154, 32
        %s4156 = scalar_lea.vmem [#allocation18], %s4155
        // Predicated region
        $region109: #{tpu_custom_call.1} parent=71 // pred_check
          %p4157 = pneg %p330
        $region110: #{tpu_custom_call.1} parent=71 // pred_check_branch
          %4159 = sbr.rel (%p4157) target = $region112
        $region111: #{tpu_custom_call.1} parent=71 // pred_region
          %s4160 = smul.u32 2, %s34
          %s4162 = ssub.s32 512, 512
          %4163 = vsyncadd %s4153, %s4162
          %s4164 = smul.addr %s4160, 2
          %s4165 = smul.addr %s4164, 128
          %s4166 = scalar_lea.hbm %s13, %s4165
          %s4167 = sshll.u32 %s4156, 4
          %s4168 = int_to_ptr.vmem [resolvable:$true] %s4167
          %4173 = dma.vmem_to_hbm [thread:$0]  %s4168, 512, %s4166, %s4153, 256, 256, 16
        $region112: #{tpu_custom_call.1} parent=71 // pred_fallthru
          _
      $region72: #{tpu_custom_call.1} parent=5 // pred_fallthru
        _
      %p4174 = scmp.le.s32.totalorder 2, %s29
      // Predicated region
      $region113: #{tpu_custom_call.1} parent=5 // pred_check
        %p4175 = pneg %p4174
      $region114: #{tpu_custom_call.1} parent=5 // pred_check_branch
        %4177 = sbr.rel (%p4175) target = $region116
      $region115: #{tpu_custom_call.1} parent=5 // pred_region
        %s4178 = ssub.s32 %s29, 2
        // Predicated region
        $region117: #{tpu_custom_call.1} parent=115 // pred_check
          %p4179 = pneg %p336
        $region118: #{tpu_custom_call.1} parent=115 // pred_check_branch
          %4181 = sbr.rel (%p4179) target = $region120
        $region119: #{tpu_custom_call.1} parent=115 // pred_region
          %s4182 = sand.u32 %s321, 1
          %s4183 = scalar_lea.sflag [#allocation5], %s4182
          %s4184 = sand.u32 %s321, 1
          %s4185 = smul.addr %s4184, 32
          %s4186 = scalar_lea.vmem [#allocation18], %s4185
          %4187 = dma.done %s4183, 512
        $region120: #{tpu_custom_call.1} parent=115 // pred_fallthru
          _
      $region116: #{tpu_custom_call.1} parent=5 // pred_fallthru
        _
    $region6: #{tpu_custom_call.1} parent=1 // loop_footer
      %s33 = sadd.s32 1, %s29
    $region7: #{tpu_custom_call.1} parent=1 // loop_footer_branch
      %28 = sbr.rel target = $region3
    $region8: #{tpu_custom_call.1} parent=1 // loop_exit
      _
    %4188 = vsyncpa [#allocation4], 1
    %s4189 = scalar_lea.sflag [#allocation4], 1
    %4190 = vsyncpa %s4189, 1
    %4191 = vsyncpa [#allocation7], 1
    %4192 = vsyncpa [#allocation10], 1
    %4193 = vsyncpa [#allocation13], 1
    %4194 = vsyncpa [#allocation16], 1
    %4195 = vsyncpa [#allocation5], 1
    %s4196 = scalar_lea.sflag [#allocation5], 1
    %4197 = vsyncpa %s4196, 1

</llo_original>
